<compile_context>
chip_gen: v7x
topology: tpu7x:2x2x1
jax: 0.10.0
libtpu: 0.0.40
codegen_flags: <defaults>
</compile_context>

<pallas_src>
import math
from functools import partial

import jax
import jax.numpy as jnp
from jax.experimental import pallas as pl
from jax.experimental.pallas import tpu as pltpu


# ----------------------------------------------------------------------------
# Configuration (small shapes consistent with the module's constructor)
# ----------------------------------------------------------------------------
CFG = dict(
    ctx_size=(8, 8, 8),
    roi_size=(4, 4, 4),
    ctx_patch=(4, 4, 4),
    roi_patch=(2, 2, 2),
    in_chans=2,
    embed_dim=32,
    depth=2,
    num_heads=4,
    mlp_ratio=4.0,
    out_chans=3,
)

LANE = 128  # lane-pad the head output so the final store is unmasked


# ----------------------------------------------------------------------------
# In-kernel math helpers
# ----------------------------------------------------------------------------
def _erf(x):
    # Abramowitz & Stegun 7.1.26 rational approximation (|err| < 1.5e-7).
    # Built only from exp/mul/add/where so it lowers on every TPU generation,
    # while matching PyTorch's exact-erf nn.GELU to float precision.
    a1, a2, a3, a4, a5 = (0.254829592, -0.284496736, 1.421413741,
                          -1.453152027, 1.061405429)
    p = 0.3275911
    ax = jnp.abs(x)
    t = 1.0 / (1.0 + p * ax)
    poly = ((((a5 * t + a4) * t + a3) * t + a2) * t + a1) * t
    y = 1.0 - poly * jnp.exp(-ax * ax)
    return jnp.where(x >= 0, y, -y)


def _gelu(x):
    return 0.5 * x * (1.0 + _erf(x * (1.0 / math.sqrt(2.0))))


# ----------------------------------------------------------------------------
# Fully fused ViT forward kernel (one grid step == one batch element)
# ----------------------------------------------------------------------------
def _vit_fused_kernel(
    # per-batch patchified inputs
    xctx_ref, xroi_ref,
    # patch-embed params (row bias = conv bias + pos embed + type embed)
    ctx_w_ref, ctx_rb_ref, roi_w_ref, roi_rb_ref, cls_ref,
    # depth-stacked, head-major block params
    n1_g_ref, n1_b_ref,
    qw_ref, qb_ref, kw_ref, kb_ref, vw_ref, vb_ref,
    pw_ref, pb_ref,
    n2_g_ref, n2_b_ref,
    f1w_ref, f1b_ref, f2w_ref, f2b_ref,
    # final norm + lane-padded head
    ng_ref, nb_ref, hw_ref, hb_ref,
    # output (lane padded)
    out_ref,
    # scratch: token sequence buffer
    seq_ref,
    *, depth, num_heads, head_dim, n_ctx, n_roi, seq_len,
):
    scale = float(head_dim) ** -0.5

    def mm(a, b):
        # bf16 MXU operands, f32 accumulation
        return jnp.dot(a.astype(jnp.bfloat16), b.astype(jnp.bfloat16),
                       preferred_element_type=jnp.float32)

    def mm_nt(a, b):  # a:(M,K), b:(N,K) -> (M,N)  (rhs-transposed contraction)
        return jax.lax.dot_general(
            a.astype(jnp.bfloat16), b.astype(jnp.bfloat16),
            dimension_numbers=(((1,), (1,)), ((), ())),
            preferred_element_type=jnp.float32)

    def layernorm(x, g, b):  # LayerNorm over last dim, eps = 1e-5 (torch default)
        mu = jnp.mean(x, axis=-1, keepdims=True)
        xc = x - mu
        var = jnp.mean(xc * xc, axis=-1, keepdims=True)
        return xc * jax.lax.rsqrt(var + 1e-5) * g + b

    # ---- patch embeddings; assemble [cls | ctx | roi] directly in VMEM ------
    x_ctx = mm(xctx_ref[0], ctx_w_ref[...]) + ctx_rb_ref[...]       # (nPc, E)
    x_roi = mm(xroi_ref[0], roi_w_ref[...]) + roi_rb_ref[...]       # (nPr, E)
    seq_ref[0:1, :] = cls_ref[...]                                  # cls: no pos/type
    seq_ref[1:1 + n_ctx, :] = x_ctx
    seq_ref[1 + n_ctx:seq_len, :] = x_roi
    h = seq_ref[...]                                                # (S, E) f32

    # ---- transformer blocks (drop_path=0, layer_scale=None, qk_norm=False) --
    for d in range(depth):
        # pre-LN attention
        y = layernorm(h, n1_g_ref[d], n1_b_ref[d])
        attn = None
        for hd in range(num_heads):
            q = (mm(y, qw_ref[d, hd]) + qb_ref[d, hd]) * scale      # (S, dh)
            k = mm(y, kw_ref[d, hd]) + kb_ref[d, hd]                # (S, dh)
            v = mm(y, vw_ref[d, hd]) + vb_ref[d, hd]                # (S, dh)
            s = mm_nt(q, k)                                         # (S, S) f32
            m = jnp.max(s, axis=-1, keepdims=True)
            p = jnp.exp(s - m)
            l = jnp.sum(p, axis=-1, keepdims=True)
            p = p * pl.reciprocal(l, approx=True)
            o = mm(p, v)                                            # (S, dh)
            o = mm(o, pw_ref[d, hd])                                # (S, E)
            attn = o if attn is None else attn + o                  # == concat+proj
        h = h + attn + pb_ref[d]                                    # residual

        # pre-LN MLP
        y = layernorm(h, n2_g_ref[d], n2_b_ref[d])
        z = _gelu(mm(y, f1w_ref[d]) + f1b_ref[d])                   # (S, hid)
        h = h + mm(z, f2w_ref[d]) + f2b_ref[d]                      # residual

    # ---- final LN + head on the ROI tokens only (lane-dense store) ----------
    seq_ref[...] = h
    xr = layernorm(seq_ref[1 + n_ctx:seq_len, :], ng_ref[...], nb_ref[...])
    out_ref[0] = mm(xr, hw_ref[...]) + hb_ref[...]                  # (nPr, LANE)


# ----------------------------------------------------------------------------
# Glue (patchify / parameter layout) in plain JAX
# ----------------------------------------------------------------------------
def _patchify3d(x, patch):
    """NCDHW -> (B, nPatches, C*pD*pH*pW); identical dot-order to Conv3d weight."""
    B, C, D, H, W = x.shape
    pD, pH, pW = patch
    nD, nH, nW = D // pD, H // pH, W // pW
    x = x.reshape(B, C, nD, pD, nH, pH, nW, pW)
    x = x.transpose(0, 2, 4, 6, 1, 3, 5, 7)
    return x.reshape(B, nD * nH * nW, C * pD * pH * pW)


def init_params(key, cfg):
    E = cfg["embed_dim"]
    C = cfg["in_chans"]
    Kc = C * math.prod(cfg["ctx_patch"])
    Kr = C * math.prod(cfg["roi_patch"])
    nPc = math.prod(s // p for s, p in zip(cfg["ctx_size"], cfg["ctx_patch"]))
    nPr = math.prod(s // p for s, p in zip(cfg["roi_size"], cfg["roi_patch"]))
    hid = int(E * cfg["mlp_ratio"])
    head_out = math.prod(cfg["roi_patch"]) * cfg["out_chans"]

    keys = iter(jax.random.split(key, 32 + 16 * cfg["depth"]))

    def nrm(shape, s=0.02):
        return s * jax.random.normal(next(keys), shape, dtype=jnp.float32)

    params = dict(
        ctx_proj_w=nrm((Kc, E)), ctx_proj_b=nrm((E,)),
        roi_proj_w=nrm((Kr, E)), roi_proj_b=nrm((E,)),
        cls_token=nrm((1, 1, E)),
        ctx_embed=nrm((1, 1, E)),
        roi_embed=nrm((1, 1, E)),
        ctx_pos=nrm((1, nPc, E)),
        roi_pos=nrm((1, nPr, E)),
        norm_g=jnp.ones((E,), jnp.float32), norm_b=jnp.zeros((E,), jnp.float32),
        head_w=nrm((E, head_out)), head_b=nrm((head_out,)),
        blocks=[],
    )
    for _ in range(cfg["depth"]):
        params["blocks"].append(dict(
            n1_g=jnp.ones((E,), jnp.float32), n1_b=jnp.zeros((E,), jnp.float32),
            qkv_w=nrm((E, 3 * E)), qkv_b=nrm((3 * E,)),
            proj_w=nrm((E, E)), proj_b=nrm((E,)),
            n2_g=jnp.ones((E,), jnp.float32), n2_b=jnp.zeros((E,), jnp.float32),
            fc1_w=nrm((E, hid)), fc1_b=nrm((hid,)),
            fc2_w=nrm((hid, E)), fc2_b=nrm((E,)),
        ))
    return params


@jax.jit
def vit_forward(x, params):
    cfg = CFG
    B = x.shape[0]
    E = cfg["embed_dim"]
    nH = cfg["num_heads"]
    dh = E // nH
    depth = cfg["depth"]
    hid = int(E * cfg["mlp_ratio"])
    Cout = cfg["out_chans"]
    rD, rH, rW = cfg["roi_size"]
    pD, pH_, pW = cfg["roi_patch"]
    head_out = pD * pH_ * pW * Cout

    # ---- patchify (pure layout glue) -----------------------------------------
    x_ctx_p = _patchify3d(x, cfg["ctx_patch"])                      # (B, nPc, Kc)
    off = tuple(((cs - rs) // 2) // cp * cp
                for cs, rs, cp in zip(cfg["ctx_size"], cfg["roi_size"], cfg["ctx_patch"]))
    x_roi_img = x[:, :, off[0]:off[0] + rD, off[1]:off[1] + rH, off[2]:off[2] + rW]
    x_roi_p = _patchify3d(x_roi_img, cfg["roi_patch"])              # (B, nPr, Kr)
    nPc, Kc = x_ctx_p.shape[1], x_ctx_p.shape[2]
    nPr, Kr = x_roi_p.shape[1], x_roi_p.shape[2]
    S = 1 + nPc + nPr

    # ---- fold conv bias + pos embed + type embed into per-row biases ---------
    ctx_rb = (params["ctx_pos"][0] + params["ctx_embed"][0, 0][None, :]
              + params["ctx_proj_b"][None, :])                      # (nPc, E)
    roi_rb = (params["roi_pos"][0] + params["roi_embed"][0, 0][None, :]
              + params["roi_proj_b"][None, :])                      # (nPr, E)
    cls = params["cls_token"].reshape(1, E)

    # ---- restructure block weights into depth-stacked, head-major layout -----
    def stack(name):
        return jnp.stack([blk[name] for blk in params["blocks"]])

    qkv_w = stack("qkv_w").reshape(depth, E, 3, nH, dh).transpose(0, 2, 3, 1, 4)
    qkv_b = stack("qkv_b").reshape(depth, 3, nH, 1, dh)
    qw, kw, vw = qkv_w[:, 0], qkv_w[:, 1], qkv_w[:, 2]              # (depth,nH,E,dh)
    qb, kb, vb = qkv_b[:, 0], qkv_b[:, 1], qkv_b[:, 2]              # (depth,nH,1,dh)
    pw = stack("proj_w").reshape(depth, nH, dh, E)
    pb = stack("proj_b").reshape(depth, 1, E)
    n1g, n1b = stack("n1_g").reshape(depth, 1, E), stack("n1_b").reshape(depth, 1, E)
    n2g, n2b = stack("n2_g").reshape(depth, 1, E), stack("n2_b").reshape(depth, 1, E)
    f1w, f1b = stack("fc1_w"), stack("fc1_b").reshape(depth, 1, hid)
    f2w, f2b = stack("fc2_w"), stack("fc2_b").reshape(depth, 1, E)

    # ---- lane-pad head weights so the single output store is unmasked --------
    hw = jnp.zeros((E, LANE), jnp.float32).at[:, :head_out].set(params["head_w"])
    hb = jnp.zeros((1, LANE), jnp.float32).at[0, :head_out].set(params["head_b"])
    ng, nb = params["norm_g"].reshape(1, E), params["norm_b"].reshape(1, E)

    kernel = partial(_vit_fused_kernel, depth=depth, num_heads=nH, head_dim=dh,
                     n_ctx=nPc, n_roi=nPr, seq_len=S)

    def rep0(rank):
        return lambda b: (0,) * rank

    in_specs = [
        pl.BlockSpec((1, nPc, Kc), lambda b: (b, 0, 0)),   # xctx (per-batch)
        pl.BlockSpec((1, nPr, Kr), lambda b: (b, 0, 0)),   # xroi (per-batch)
        pl.BlockSpec((Kc, E), rep0(2)),                    # ctx_w
        pl.BlockSpec((nPc, E), rep0(2)),                   # ctx_rb
        pl.BlockSpec((Kr, E), rep0(2)),                    # roi_w
        pl.BlockSpec((nPr, E), rep0(2)),                   # roi_rb
        pl.BlockSpec((1, E), rep0(2)),                     # cls
        pl.BlockSpec((depth, 1, E), rep0(3)),              # n1_g
        pl.BlockSpec((depth, 1, E), rep0(3)),              # n1_b
        pl.BlockSpec((depth, nH, E, dh), rep0(4)),         # qw
        pl.BlockSpec((depth, nH, 1, dh), rep0(4)),         # qb
        pl.BlockSpec((depth, nH, E, dh), rep0(4)),         # kw
        pl.BlockSpec((depth, nH, 1, dh), rep0(4)),         # kb
        pl.BlockSpec((depth, nH, E, dh), rep0(4)),         # vw
        pl.BlockSpec((depth, nH, 1, dh), rep0(4)),         # vb
        pl.BlockSpec((depth, nH, dh, E), rep0(4)),         # pw
        pl.BlockSpec((depth, 1, E), rep0(3)),              # pb
        pl.BlockSpec((depth, 1, E), rep0(3)),              # n2_g
        pl.BlockSpec((depth, 1, E), rep0(3)),              # n2_b
        pl.BlockSpec((depth, E, hid), rep0(3)),            # fc1_w
        pl.BlockSpec((depth, 1, hid), rep0(3)),            # fc1_b
        pl.BlockSpec((depth, hid, E), rep0(3)),            # fc2_w
        pl.BlockSpec((depth, 1, E), rep0(3)),              # fc2_b
        pl.BlockSpec((1, E), rep0(2)),                     # norm_g
        pl.BlockSpec((1, E), rep0(2)),                     # norm_b
        pl.BlockSpec((E, LANE), rep0(2)),                  # head_w (padded)
        pl.BlockSpec((1, LANE), rep0(2)),                  # head_b (padded)
    ]

    out_pad = pl.pallas_call(
        kernel,
        out_shape=jax.ShapeDtypeStruct((B, nPr, LANE), jnp.float32),
        grid=(B,),
        in_specs=in_specs,
        out_specs=pl.BlockSpec((1, nPr, LANE), lambda b: (b, 0, 0)),
        scratch_shapes=[pltpu.VMEM((S, E), jnp.float32)],
        compiler_params=pltpu.CompilerParams(dimension_semantics=("arbitrary",)),
    )(x_ctx_p, x_roi_p,
      params["ctx_proj_w"], ctx_rb, params["roi_proj_w"], roi_rb, cls,
      n1g, n1b, qw, qb, kw, kb, vw, vb, pw, pb, n2g, n2b,
      f1w, f1b, f2w, f2b, ng, nb, hw, hb)

    # ---- slice valid head columns, un-patchify (layout glue) -----------------
    out = out_pad[:, :, :head_out]                                   # (B, nPr, 24)
    gD, gH, gW = rD // pD, rH // pH_, rW // pW
    out = out.reshape(B, gD, gH, gW, pD, pH_, pW, Cout)
    out = out.transpose(0, 7, 1, 4, 2, 5, 3, 6).reshape(B, Cout, rD, rH, rW)
    return out


# ----------------------------------------------------------------------------
if __name__ == "__main__":
    key = jax.random.PRNGKey(0)
    pkey, xkey = jax.random.split(key)
    params = init_params(pkey, CFG)

    B = 2
    D, H, W = CFG["ctx_size"]
    x = jax.random.normal(xkey, (B, CFG["in_chans"], D, H, W), dtype=jnp.float32)

    out = vit_forward(x, params)
    out = jax.block_until_ready(out)

    expected = (B, CFG["out_chans"]) + CFG["roi_size"]
    assert out.shape == expected, (out.shape, expected)
    assert bool(jnp.all(jnp.isfinite(out)))
    print("KERNEL_OK")
</pallas_src>

<mosaic_0001>
module attributes {stable_mosaic.version = 11 : i64} {
  func.func @_vit_fused_kernel(%arg0: i32, %arg1: memref<1x8x128xf32, #tpu.memory_space<vmem>>, %arg2: memref<1x8x16xf32, #tpu.memory_space<vmem>>, %arg3: memref<128x32xf32, #tpu.memory_space<vmem>>, %arg4: memref<8x32xf32, #tpu.memory_space<vmem>>, %arg5: memref<16x32xf32, #tpu.memory_space<vmem>>, %arg6: memref<8x32xf32, #tpu.memory_space<vmem>>, %arg7: memref<1x32xf32, #tpu.memory_space<vmem>>, %arg8: memref<2x1x32xf32, #tpu.memory_space<vmem>>, %arg9: memref<2x1x32xf32, #tpu.memory_space<vmem>>, %arg10: memref<2x4x32x8xf32, #tpu.memory_space<vmem>>, %arg11: memref<2x4x1x8xf32, #tpu.memory_space<vmem>>, %arg12: memref<2x4x32x8xf32, #tpu.memory_space<vmem>>, %arg13: memref<2x4x1x8xf32, #tpu.memory_space<vmem>>, %arg14: memref<2x4x32x8xf32, #tpu.memory_space<vmem>>, %arg15: memref<2x4x1x8xf32, #tpu.memory_space<vmem>>, %arg16: memref<2x4x8x32xf32, #tpu.memory_space<vmem>>, %arg17: memref<2x1x32xf32, #tpu.memory_space<vmem>>, %arg18: memref<2x1x32xf32, #tpu.memory_space<vmem>>, %arg19: memref<2x1x32xf32, #tpu.memory_space<vmem>>, %arg20: memref<2x32x128xf32, #tpu.memory_space<vmem>>, %arg21: memref<2x1x128xf32, #tpu.memory_space<vmem>>, %arg22: memref<2x128x32xf32, #tpu.memory_space<vmem>>, %arg23: memref<2x1x32xf32, #tpu.memory_space<vmem>>, %arg24: memref<1x32xf32, #tpu.memory_space<vmem>>, %arg25: memref<1x32xf32, #tpu.memory_space<vmem>>, %arg26: memref<32x128xf32, #tpu.memory_space<vmem>>, %arg27: memref<1x128xf32, #tpu.memory_space<vmem>>, %arg28: memref<1x8x128xf32, #tpu.memory_space<vmem>>, %arg29: memref<17x32xf32, #tpu.memory_space<vmem>>) attributes {dimension_semantics = [#tpu.dimension_semantics<arbitrary>], iteration_bounds = array<i64: 2>, scalar_prefetch = 0 : i64, scratch_operands = 1 : i64, tpu.core_type = #tpu.core_type<tc>, window_params = [{transform_indices = @transform_0, window_bounds = array<i64: 1, 8, 128>}, {transform_indices = @transform_1, window_bounds = array<i64: 1, 8, 16>}, {pipeline_mode = #tpu.pipeline_mode<synchronous>, transform_indices = @transform_2, window_bounds = array<i64: 128, 32>}, {pipeline_mode = #tpu.pipeline_mode<synchronous>, transform_indices = @transform_3, window_bounds = array<i64: 8, 32>}, {pipeline_mode = #tpu.pipeline_mode<synchronous>, transform_indices = @transform_4, window_bounds = array<i64: 16, 32>}, {pipeline_mode = #tpu.pipeline_mode<synchronous>, transform_indices = @transform_5, window_bounds = array<i64: 8, 32>}, {pipeline_mode = #tpu.pipeline_mode<synchronous>, transform_indices = @transform_6, window_bounds = array<i64: 1, 32>}, {pipeline_mode = #tpu.pipeline_mode<synchronous>, transform_indices = @transform_7, window_bounds = array<i64: 2, 1, 32>}, {pipeline_mode = #tpu.pipeline_mode<synchronous>, transform_indices = @transform_8, window_bounds = array<i64: 2, 1, 32>}, {pipeline_mode = #tpu.pipeline_mode<synchronous>, transform_indices = @transform_9, window_bounds = array<i64: 2, 4, 32, 8>}, {pipeline_mode = #tpu.pipeline_mode<synchronous>, transform_indices = @transform_10, window_bounds = array<i64: 2, 4, 1, 8>}, {pipeline_mode = #tpu.pipeline_mode<synchronous>, transform_indices = @transform_11, window_bounds = array<i64: 2, 4, 32, 8>}, {pipeline_mode = #tpu.pipeline_mode<synchronous>, transform_indices = @transform_12, window_bounds = array<i64: 2, 4, 1, 8>}, {pipeline_mode = #tpu.pipeline_mode<synchronous>, transform_indices = @transform_13, window_bounds = array<i64: 2, 4, 32, 8>}, {pipeline_mode = #tpu.pipeline_mode<synchronous>, transform_indices = @transform_14, window_bounds = array<i64: 2, 4, 1, 8>}, {pipeline_mode = #tpu.pipeline_mode<synchronous>, transform_indices = @transform_15, window_bounds = array<i64: 2, 4, 8, 32>}, {pipeline_mode = #tpu.pipeline_mode<synchronous>, transform_indices = @transform_16, window_bounds = array<i64: 2, 1, 32>}, {pipeline_mode = #tpu.pipeline_mode<synchronous>, transform_indices = @transform_17, window_bounds = array<i64: 2, 1, 32>}, {pipeline_mode = #tpu.pipeline_mode<synchronous>, transform_indices = @transform_18, window_bounds = array<i64: 2, 1, 32>}, {pipeline_mode = #tpu.pipeline_mode<synchronous>, transform_indices = @transform_19, window_bounds = array<i64: 2, 32, 128>}, {pipeline_mode = #tpu.pipeline_mode<synchronous>, transform_indices = @transform_20, window_bounds = array<i64: 2, 1, 128>}, {pipeline_mode = #tpu.pipeline_mode<synchronous>, transform_indices = @transform_21, window_bounds = array<i64: 2, 128, 32>}, {pipeline_mode = #tpu.pipeline_mode<synchronous>, transform_indices = @transform_22, window_bounds = array<i64: 2, 1, 32>}, {pipeline_mode = #tpu.pipeline_mode<synchronous>, transform_indices = @transform_23, window_bounds = array<i64: 1, 32>}, {pipeline_mode = #tpu.pipeline_mode<synchronous>, transform_indices = @transform_24, window_bounds = array<i64: 1, 32>}, {pipeline_mode = #tpu.pipeline_mode<synchronous>, transform_indices = @transform_25, window_bounds = array<i64: 32, 128>}, {pipeline_mode = #tpu.pipeline_mode<synchronous>, transform_indices = @transform_26, window_bounds = array<i64: 1, 128>}, {transform_indices = @transform_27, window_bounds = array<i64: 1, 8, 128>}]} {
    %c0 = arith.constant 0 : index
    %c0_0 = arith.constant 0 : index
    %c0_1 = arith.constant 0 : index
    %0 = vector.load %arg1[%c0, %c0_0, %c0_1] : memref<1x8x128xf32, #tpu.memory_space<vmem>>, vector<1x8x128xf32>
    %1 = vector.shape_cast %0 : vector<1x8x128xf32> to vector<8x128xf32>
    %c0_2 = arith.constant 0 : index
    %c0_3 = arith.constant 0 : index
    %2 = vector.load %arg3[%c0_2, %c0_3] : memref<128x32xf32, #tpu.memory_space<vmem>>, vector<128x32xf32>
    %3 = arith.truncf %1 : vector<8x128xf32> to vector<8x128xbf16>
    %4 = arith.truncf %2 : vector<128x32xf32> to vector<128x32xbf16>
    %cst = arith.constant dense<0.000000e+00> : vector<8x32xf32>
    %5 = tpu.matmul %3, %4, %cst {dimension_numbers = #tpu.dot_dimension_numbers<[1], [0], [0], [1], [0, 0, 1, 1], [], []>} : vector<8x128xbf16>, vector<128x32xbf16>, vector<8x32xf32> -> vector<8x32xf32>
    %c0_4 = arith.constant 0 : index
    %c0_5 = arith.constant 0 : index
    %6 = vector.load %arg4[%c0_4, %c0_5] : memref<8x32xf32, #tpu.memory_space<vmem>>, vector<8x32xf32>
    %7 = arith.addf %5, %6 : vector<8x32xf32>
    %c0_6 = arith.constant 0 : index
    %c0_7 = arith.constant 0 : index
    %c0_8 = arith.constant 0 : index
    %8 = vector.load %arg2[%c0_6, %c0_7, %c0_8] : memref<1x8x16xf32, #tpu.memory_space<vmem>>, vector<1x8x16xf32>
    %9 = vector.shape_cast %8 : vector<1x8x16xf32> to vector<8x16xf32>
    %c0_9 = arith.constant 0 : index
    %c0_10 = arith.constant 0 : index
    %10 = vector.load %arg5[%c0_9, %c0_10] : memref<16x32xf32, #tpu.memory_space<vmem>>, vector<16x32xf32>
    %11 = arith.truncf %9 : vector<8x16xf32> to vector<8x16xbf16>
    %12 = arith.truncf %10 : vector<16x32xf32> to vector<16x32xbf16>
    %cst_11 = arith.constant dense<0.000000e+00> : vector<8x32xf32>
    %13 = tpu.matmul %11, %12, %cst_11 {dimension_numbers = #tpu.dot_dimension_numbers<[1], [0], [0], [1], [0, 0, 1, 1], [], []>} : vector<8x16xbf16>, vector<16x32xbf16>, vector<8x32xf32> -> vector<8x32xf32>
    %c0_12 = arith.constant 0 : index
    %c0_13 = arith.constant 0 : index
    %14 = vector.load %arg6[%c0_12, %c0_13] : memref<8x32xf32, #tpu.memory_space<vmem>>, vector<8x32xf32>
    %15 = arith.addf %13, %14 : vector<8x32xf32>
    %c0_14 = arith.constant 0 : index
    %c0_15 = arith.constant 0 : index
    %16 = vector.load %arg7[%c0_14, %c0_15] : memref<1x32xf32, #tpu.memory_space<vmem>>, vector<1x32xf32>
    %c0_16 = arith.constant 0 : index
    %c0_17 = arith.constant 0 : index
    %17 = vector.load %arg29[%c0_16, %c0_17] : memref<17x32xf32, #tpu.memory_space<vmem>>, vector<1x32xf32>
    tpu.vector_store %arg29[%c0_16, %c0_17], %16 {strides = array<i32>} : memref<17x32xf32, #tpu.memory_space<vmem>>, vector<1x32xf32>,
    %c1 = arith.constant 1 : index
    %c0_18 = arith.constant 0 : index
    %18 = vector.load %arg29[%c1, %c0_18] : memref<17x32xf32, #tpu.memory_space<vmem>>, vector<8x32xf32>
    tpu.vector_store %arg29[%c1, %c0_18], %7 {strides = array<i32>} : memref<17x32xf32, #tpu.memory_space<vmem>>, vector<8x32xf32>,
    %c9 = arith.constant 9 : index
    %c0_19 = arith.constant 0 : index
    %19 = vector.load %arg29[%c9, %c0_19] : memref<17x32xf32, #tpu.memory_space<vmem>>, vector<8x32xf32>
    tpu.vector_store %arg29[%c9, %c0_19], %15 {strides = array<i32>} : memref<17x32xf32, #tpu.memory_space<vmem>>, vector<8x32xf32>,
    %c0_20 = arith.constant 0 : index
    %c0_21 = arith.constant 0 : index
    %20 = vector.load %arg29[%c0_20, %c0_21] : memref<17x32xf32, #tpu.memory_space<vmem>>, vector<17x32xf32>
    %c0_22 = arith.constant 0 : index
    %c0_23 = arith.constant 0 : index
    %c0_24 = arith.constant 0 : index
    %21 = vector.load %arg8[%c0_22, %c0_23, %c0_24] : memref<2x1x32xf32, #tpu.memory_space<vmem>>, vector<1x1x32xf32>
    %22 = vector.shape_cast %21 : vector<1x1x32xf32> to vector<1x32xf32>
    %c0_25 = arith.constant 0 : index
    %c0_26 = arith.constant 0 : index
    %c0_27 = arith.constant 0 : index
    %23 = vector.load %arg9[%c0_25, %c0_26, %c0_27] : memref<2x1x32xf32, #tpu.memory_space<vmem>>, vector<1x1x32xf32>
    %24 = vector.shape_cast %23 : vector<1x1x32xf32> to vector<1x32xf32>
    %cst_28 = arith.constant dense<0.000000e+00> : vector<17xf32>
    %25 = vector.multi_reduction <add>, %20, %cst_28 [1] : vector<17x32xf32> to vector<17xf32>
    %26 = vector.shape_cast %25 : vector<17xf32> to vector<17x1xf32>
    %cst_29 = arith.constant 3.200000e+01 : f32
    %27 = vector.broadcast %cst_29 : f32 to vector<17x1xf32>
    %28 = arith.divf %26, %27 : vector<17x1xf32>
    %29 = vector.broadcast %28 : vector<17x1xf32> to vector<17x32xf32>
    %30 = arith.subf %20, %29 : vector<17x32xf32>
    %31 = arith.mulf %30, %30 : vector<17x32xf32>
    %cst_30 = arith.constant dense<0.000000e+00> : vector<17xf32>
    %32 = vector.multi_reduction <add>, %31, %cst_30 [1] : vector<17x32xf32> to vector<17xf32>
    %33 = vector.shape_cast %32 : vector<17xf32> to vector<17x1xf32>
    %cst_31 = arith.constant 3.200000e+01 : f32
    %34 = vector.broadcast %cst_31 : f32 to vector<17x1xf32>
    %35 = arith.divf %33, %34 : vector<17x1xf32>
    %cst_32 = arith.constant 9.99999974E-6 : f32
    %36 = vector.broadcast %cst_32 : f32 to vector<17x1xf32>
    %37 = arith.addf %35, %36 : vector<17x1xf32>
    %38 = math.rsqrt %37 : vector<17x1xf32>
    %39 = vector.broadcast %38 : vector<17x1xf32> to vector<17x32xf32>
    %40 = arith.mulf %30, %39 : vector<17x32xf32>
    %41 = vector.broadcast %22 : vector<1x32xf32> to vector<17x32xf32>
    %42 = arith.mulf %40, %41 : vector<17x32xf32>
    %43 = vector.broadcast %24 : vector<1x32xf32> to vector<17x32xf32>
    %44 = arith.addf %42, %43 : vector<17x32xf32>
    %c0_33 = arith.constant 0 : index
    %c0_34 = arith.constant 0 : index
    %c0_35 = arith.constant 0 : index
    %c0_36 = arith.constant 0 : index
    %45 = vector.load %arg10[%c0_33, %c0_34, %c0_35, %c0_36] : memref<2x4x32x8xf32, #tpu.memory_space<vmem>>, vector<1x1x32x8xf32>
    %46 = vector.shape_cast %45 : vector<1x1x32x8xf32> to vector<32x8xf32>
    %47 = arith.truncf %44 : vector<17x32xf32> to vector<17x32xbf16>
    %48 = arith.truncf %46 : vector<32x8xf32> to vector<32x8xbf16>
    %cst_37 = arith.constant dense<0.000000e+00> : vector<17x8xf32>
    %49 = tpu.matmul %47, %48, %cst_37 {dimension_numbers = #tpu.dot_dimension_numbers<[1], [0], [0], [1], [0, 0, 1, 1], [], []>} : vector<17x32xbf16>, vector<32x8xbf16>, vector<17x8xf32> -> vector<17x8xf32>
    %c0_38 = arith.constant 0 : index
    %c0_39 = arith.constant 0 : index
    %c0_40 = arith.constant 0 : index
    %c0_41 = arith.constant 0 : index
    %50 = vector.load %arg11[%c0_38, %c0_39, %c0_40, %c0_41] : memref<2x4x1x8xf32, #tpu.memory_space<vmem>>, vector<1x1x1x8xf32>
    %51 = vector.shape_cast %50 : vector<1x1x1x8xf32> to vector<1x8xf32>
    %52 = vector.broadcast %51 : vector<1x8xf32> to vector<17x8xf32>
    %53 = arith.addf %49, %52 : vector<17x8xf32>
    %cst_42 = arith.constant 0.353553385 : f32
    %54 = vector.broadcast %cst_42 : f32 to vector<17x8xf32>
    %55 = arith.mulf %53, %54 : vector<17x8xf32>
    %c0_43 = arith.constant 0 : index
    %c0_44 = arith.constant 0 : index
    %c0_45 = arith.constant 0 : index
    %c0_46 = arith.constant 0 : index
    %56 = vector.load %arg12[%c0_43, %c0_44, %c0_45, %c0_46] : memref<2x4x32x8xf32, #tpu.memory_space<vmem>>, vector<1x1x32x8xf32>
    %57 = vector.shape_cast %56 : vector<1x1x32x8xf32> to vector<32x8xf32>
    %58 = arith.truncf %44 : vector<17x32xf32> to vector<17x32xbf16>
    %59 = arith.truncf %57 : vector<32x8xf32> to vector<32x8xbf16>
    %cst_47 = arith.constant dense<0.000000e+00> : vector<17x8xf32>
    %60 = tpu.matmul %58, %59, %cst_47 {dimension_numbers = #tpu.dot_dimension_numbers<[1], [0], [0], [1], [0, 0, 1, 1], [], []>} : vector<17x32xbf16>, vector<32x8xbf16>, vector<17x8xf32> -> vector<17x8xf32>
    %c0_48 = arith.constant 0 : index
    %c0_49 = arith.constant 0 : index
    %c0_50 = arith.constant 0 : index
    %c0_51 = arith.constant 0 : index
    %61 = vector.load %arg13[%c0_48, %c0_49, %c0_50, %c0_51] : memref<2x4x1x8xf32, #tpu.memory_space<vmem>>, vector<1x1x1x8xf32>
    %62 = vector.shape_cast %61 : vector<1x1x1x8xf32> to vector<1x8xf32>
    %63 = vector.broadcast %62 : vector<1x8xf32> to vector<17x8xf32>
    %64 = arith.addf %60, %63 : vector<17x8xf32>
    %c0_52 = arith.constant 0 : index
    %c0_53 = arith.constant 0 : index
    %c0_54 = arith.constant 0 : index
    %c0_55 = arith.constant 0 : index
    %65 = vector.load %arg14[%c0_52, %c0_53, %c0_54, %c0_55] : memref<2x4x32x8xf32, #tpu.memory_space<vmem>>, vector<1x1x32x8xf32>
    %66 = vector.shape_cast %65 : vector<1x1x32x8xf32> to vector<32x8xf32>
    %67 = arith.truncf %44 : vector<17x32xf32> to vector<17x32xbf16>
    %68 = arith.truncf %66 : vector<32x8xf32> to vector<32x8xbf16>
    %cst_56 = arith.constant dense<0.000000e+00> : vector<17x8xf32>
    %69 = tpu.matmul %67, %68, %cst_56 {dimension_numbers = #tpu.dot_dimension_numbers<[1], [0], [0], [1], [0, 0, 1, 1], [], []>} : vector<17x32xbf16>, vector<32x8xbf16>, vector<17x8xf32> -> vector<17x8xf32>
    %c0_57 = arith.constant 0 : index
    %c0_58 = arith.constant 0 : index
    %c0_59 = arith.constant 0 : index
    %c0_60 = arith.constant 0 : index
    %70 = vector.load %arg15[%c0_57, %c0_58, %c0_59, %c0_60] : memref<2x4x1x8xf32, #tpu.memory_space<vmem>>, vector<1x1x1x8xf32>
    %71 = vector.shape_cast %70 : vector<1x1x1x8xf32> to vector<1x8xf32>
    %72 = vector.broadcast %71 : vector<1x8xf32> to vector<17x8xf32>
    %73 = arith.addf %69, %72 : vector<17x8xf32>
    %74 = arith.truncf %55 : vector<17x8xf32> to vector<17x8xbf16>
    %75 = arith.truncf %64 : vector<17x8xf32> to vector<17x8xbf16>
    %cst_61 = arith.constant dense<0.000000e+00> : vector<17x17xf32>
    %76 = tpu.matmul %74, %75, %cst_61 {dimension_numbers = #tpu.dot_dimension_numbers<[1], [1], [0], [0], [0, 0, 1, 0], [], []>} : vector<17x8xbf16>, vector<17x8xbf16>, vector<17x17xf32> -> vector<17x17xf32>
    %cst_62 = arith.constant dense<0xFF800000> : vector<17xf32>
    %77 = vector.multi_reduction <maximumf>, %76, %cst_62 [1] : vector<17x17xf32> to vector<17xf32>
    %78 = vector.shape_cast %77 : vector<17xf32> to vector<17x1xf32>
    %79 = vector.broadcast %78 : vector<17x1xf32> to vector<17x17xf32>
    %80 = arith.subf %76, %79 : vector<17x17xf32>
    %81 = math.exp %80 : vector<17x17xf32>
    %cst_63 = arith.constant dense<0.000000e+00> : vector<17xf32>
    %82 = vector.multi_reduction <add>, %81, %cst_63 [1] : vector<17x17xf32> to vector<17xf32>
    %83 = vector.shape_cast %82 : vector<17xf32> to vector<17x1xf32>
    %84 = tpu.reciprocal %83 {approx = true} : vector<17x1xf32> -> vector<17x1xf32>
    %85 = vector.broadcast %84 : vector<17x1xf32> to vector<17x17xf32>
    %86 = arith.mulf %81, %85 : vector<17x17xf32>
    %87 = arith.truncf %86 : vector<17x17xf32> to vector<17x17xbf16>
    %88 = arith.truncf %73 : vector<17x8xf32> to vector<17x8xbf16>
    %cst_64 = arith.constant dense<0.000000e+00> : vector<17x8xf32>
    %89 = tpu.matmul %87, %88, %cst_64 {dimension_numbers = #tpu.dot_dimension_numbers<[1], [0], [0], [1], [0, 0, 1, 1], [], []>} : vector<17x17xbf16>, vector<17x8xbf16>, vector<17x8xf32> -> vector<17x8xf32>
    %c0_65 = arith.constant 0 : index
    %c0_66 = arith.constant 0 : index
    %c0_67 = arith.constant 0 : index
    %c0_68 = arith.constant 0 : index
    %90 = vector.load %arg16[%c0_65, %c0_66, %c0_67, %c0_68] : memref<2x4x8x32xf32, #tpu.memory_space<vmem>>, vector<1x1x8x32xf32>
    %91 = vector.shape_cast %90 : vector<1x1x8x32xf32> to vector<8x32xf32>
    %92 = arith.truncf %89 : vector<17x8xf32> to vector<17x8xbf16>
    %93 = arith.truncf %91 : vector<8x32xf32> to vector<8x32xbf16>
    %cst_69 = arith.constant dense<0.000000e+00> : vector<17x32xf32>
    %94 = tpu.matmul %92, %93, %cst_69 {dimension_numbers = #tpu.dot_dimension_numbers<[1], [0], [0], [1], [0, 0, 1, 1], [], []>} : vector<17x8xbf16>, vector<8x32xbf16>, vector<17x32xf32> -> vector<17x32xf32>
    %c0_70 = arith.constant 0 : index
    %c1_71 = arith.constant 1 : index
    %c0_72 = arith.constant 0 : index
    %c0_73 = arith.constant 0 : index
    %95 = vector.load %arg10[%c0_70, %c1_71, %c0_72, %c0_73] : memref<2x4x32x8xf32, #tpu.memory_space<vmem>>, vector<1x1x32x8xf32>
    %96 = vector.shape_cast %95 : vector<1x1x32x8xf32> to vector<32x8xf32>
    %97 = arith.truncf %44 : vector<17x32xf32> to vector<17x32xbf16>
    %98 = arith.truncf %96 : vector<32x8xf32> to vector<32x8xbf16>
    %cst_74 = arith.constant dense<0.000000e+00> : vector<17x8xf32>
    %99 = tpu.matmul %97, %98, %cst_74 {dimension_numbers = #tpu.dot_dimension_numbers<[1], [0], [0], [1], [0, 0, 1, 1], [], []>} : vector<17x32xbf16>, vector<32x8xbf16>, vector<17x8xf32> -> vector<17x8xf32>
    %c0_75 = arith.constant 0 : index
    %c1_76 = arith.constant 1 : index
    %c0_77 = arith.constant 0 : index
    %c0_78 = arith.constant 0 : index
    %100 = vector.load %arg11[%c0_75, %c1_76, %c0_77, %c0_78] : memref<2x4x1x8xf32, #tpu.memory_space<vmem>>, vector<1x1x1x8xf32>
    %101 = vector.shape_cast %100 : vector<1x1x1x8xf32> to vector<1x8xf32>
    %102 = vector.broadcast %101 : vector<1x8xf32> to vector<17x8xf32>
    %103 = arith.addf %99, %102 : vector<17x8xf32>
    %cst_79 = arith.constant 0.353553385 : f32
    %104 = vector.broadcast %cst_79 : f32 to vector<17x8xf32>
    %105 = arith.mulf %103, %104 : vector<17x8xf32>
    %c0_80 = arith.constant 0 : index
    %c1_81 = arith.constant 1 : index
    %c0_82 = arith.constant 0 : index
    %c0_83 = arith.constant 0 : index
    %106 = vector.load %arg12[%c0_80, %c1_81, %c0_82, %c0_83] : memref<2x4x32x8xf32, #tpu.memory_space<vmem>>, vector<1x1x32x8xf32>
    %107 = vector.shape_cast %106 : vector<1x1x32x8xf32> to vector<32x8xf32>
    %108 = arith.truncf %44 : vector<17x32xf32> to vector<17x32xbf16>
    %109 = arith.truncf %107 : vector<32x8xf32> to vector<32x8xbf16>
    %cst_84 = arith.constant dense<0.000000e+00> : vector<17x8xf32>
    %110 = tpu.matmul %108, %109, %cst_84 {dimension_numbers = #tpu.dot_dimension_numbers<[1], [0], [0], [1], [0, 0, 1, 1], [], []>} : vector<17x32xbf16>, vector<32x8xbf16>, vector<17x8xf32> -> vector<17x8xf32>
    %c0_85 = arith.constant 0 : index
    %c1_86 = arith.constant 1 : index
    %c0_87 = arith.constant 0 : index
    %c0_88 = arith.constant 0 : index
    %111 = vector.load %arg13[%c0_85, %c1_86, %c0_87, %c0_88] : memref<2x4x1x8xf32, #tpu.memory_space<vmem>>, vector<1x1x1x8xf32>
    %112 = vector.shape_cast %111 : vector<1x1x1x8xf32> to vector<1x8xf32>
    %113 = vector.broadcast %112 : vector<1x8xf32> to vector<17x8xf32>
    %114 = arith.addf %110, %113 : vector<17x8xf32>
    %c0_89 = arith.constant 0 : index
    %c1_90 = arith.constant 1 : index
    %c0_91 = arith.constant 0 : index
    %c0_92 = arith.constant 0 : index
    %115 = vector.load %arg14[%c0_89, %c1_90, %c0_91, %c0_92] : memref<2x4x32x8xf32, #tpu.memory_space<vmem>>, vector<1x1x32x8xf32>
    %116 = vector.shape_cast %115 : vector<1x1x32x8xf32> to vector<32x8xf32>
    %117 = arith.truncf %44 : vector<17x32xf32> to vector<17x32xbf16>
    %118 = arith.truncf %116 : vector<32x8xf32> to vector<32x8xbf16>
    %cst_93 = arith.constant dense<0.000000e+00> : vector<17x8xf32>
    %119 = tpu.matmul %117, %118, %cst_93 {dimension_numbers = #tpu.dot_dimension_numbers<[1], [0], [0], [1], [0, 0, 1, 1], [], []>} : vector<17x32xbf16>, vector<32x8xbf16>, vector<17x8xf32> -> vector<17x8xf32>
    %c0_94 = arith.constant 0 : index
    %c1_95 = arith.constant 1 : index
    %c0_96 = arith.constant 0 : index
    %c0_97 = arith.constant 0 : index
    %120 = vector.load %arg15[%c0_94, %c1_95, %c0_96, %c0_97] : memref<2x4x1x8xf32, #tpu.memory_space<vmem>>, vector<1x1x1x8xf32>
    %121 = vector.shape_cast %120 : vector<1x1x1x8xf32> to vector<1x8xf32>
    %122 = vector.broadcast %121 : vector<1x8xf32> to vector<17x8xf32>
    %123 = arith.addf %119, %122 : vector<17x8xf32>
    %124 = arith.truncf %105 : vector<17x8xf32> to vector<17x8xbf16>
    %125 = arith.truncf %114 : vector<17x8xf32> to vector<17x8xbf16>
    %cst_98 = arith.constant dense<0.000000e+00> : vector<17x17xf32>
    %126 = tpu.matmul %124, %125, %cst_98 {dimension_numbers = #tpu.dot_dimension_numbers<[1], [1], [0], [0], [0, 0, 1, 0], [], []>} : vector<17x8xbf16>, vector<17x8xbf16>, vector<17x17xf32> -> vector<17x17xf32>
    %cst_99 = arith.constant dense<0xFF800000> : vector<17xf32>
    %127 = vector.multi_reduction <maximumf>, %126, %cst_99 [1] : vector<17x17xf32> to vector<17xf32>
    %128 = vector.shape_cast %127 : vector<17xf32> to vector<17x1xf32>
    %129 = vector.broadcast %128 : vector<17x1xf32> to vector<17x17xf32>
    %130 = arith.subf %126, %129 : vector<17x17xf32>
    %131 = math.exp %130 : vector<17x17xf32>
    %cst_100 = arith.constant dense<0.000000e+00> : vector<17xf32>
    %132 = vector.multi_reduction <add>, %131, %cst_100 [1] : vector<17x17xf32> to vector<17xf32>
    %133 = vector.shape_cast %132 : vector<17xf32> to vector<17x1xf32>
    %134 = tpu.reciprocal %133 {approx = true} : vector<17x1xf32> -> vector<17x1xf32>
    %135 = vector.broadcast %134 : vector<17x1xf32> to vector<17x17xf32>
    %136 = arith.mulf %131, %135 : vector<17x17xf32>
    %137 = arith.truncf %136 : vector<17x17xf32> to vector<17x17xbf16>
    %138 = arith.truncf %123 : vector<17x8xf32> to vector<17x8xbf16>
    %cst_101 = arith.constant dense<0.000000e+00> : vector<17x8xf32>
    %139 = tpu.matmul %137, %138, %cst_101 {dimension_numbers = #tpu.dot_dimension_numbers<[1], [0], [0], [1], [0, 0, 1, 1], [], []>} : vector<17x17xbf16>, vector<17x8xbf16>, vector<17x8xf32> -> vector<17x8xf32>
    %c0_102 = arith.constant 0 : index
    %c1_103 = arith.constant 1 : index
    %c0_104 = arith.constant 0 : index
    %c0_105 = arith.constant 0 : index
    %140 = vector.load %arg16[%c0_102, %c1_103, %c0_104, %c0_105] : memref<2x4x8x32xf32, #tpu.memory_space<vmem>>, vector<1x1x8x32xf32>
    %141 = vector.shape_cast %140 : vector<1x1x8x32xf32> to vector<8x32xf32>
    %142 = arith.truncf %139 : vector<17x8xf32> to vector<17x8xbf16>
    %143 = arith.truncf %141 : vector<8x32xf32> to vector<8x32xbf16>
    %cst_106 = arith.constant dense<0.000000e+00> : vector<17x32xf32>
    %144 = tpu.matmul %142, %143, %cst_106 {dimension_numbers = #tpu.dot_dimension_numbers<[1], [0], [0], [1], [0, 0, 1, 1], [], []>} : vector<17x8xbf16>, vector<8x32xbf16>, vector<17x32xf32> -> vector<17x32xf32>
    %145 = arith.addf %94, %144 : vector<17x32xf32>
    %c0_107 = arith.constant 0 : index
    %c2 = arith.constant 2 : index
    %c0_108 = arith.constant 0 : index
    %c0_109 = arith.constant 0 : index
    %146 = vector.load %arg10[%c0_107, %c2, %c0_108, %c0_109] : memref<2x4x32x8xf32, #tpu.memory_space<vmem>>, vector<1x1x32x8xf32>
    %147 = vector.shape_cast %146 : vector<1x1x32x8xf32> to vector<32x8xf32>
    %148 = arith.truncf %44 : vector<17x32xf32> to vector<17x32xbf16>
    %149 = arith.truncf %147 : vector<32x8xf32> to vector<32x8xbf16>
    %cst_110 = arith.constant dense<0.000000e+00> : vector<17x8xf32>
    %150 = tpu.matmul %148, %149, %cst_110 {dimension_numbers = #tpu.dot_dimension_numbers<[1], [0], [0], [1], [0, 0, 1, 1], [], []>} : vector<17x32xbf16>, vector<32x8xbf16>, vector<17x8xf32> -> vector<17x8xf32>
    %c0_111 = arith.constant 0 : index
    %c2_112 = arith.constant 2 : index
    %c0_113 = arith.constant 0 : index
    %c0_114 = arith.constant 0 : index
    %151 = vector.load %arg11[%c0_111, %c2_112, %c0_113, %c0_114] : memref<2x4x1x8xf32, #tpu.memory_space<vmem>>, vector<1x1x1x8xf32>
    %152 = vector.shape_cast %151 : vector<1x1x1x8xf32> to vector<1x8xf32>
    %153 = vector.broadcast %152 : vector<1x8xf32> to vector<17x8xf32>
    %154 = arith.addf %150, %153 : vector<17x8xf32>
    %cst_115 = arith.constant 0.353553385 : f32
    %155 = vector.broadcast %cst_115 : f32 to vector<17x8xf32>
    %156 = arith.mulf %154, %155 : vector<17x8xf32>
    %c0_116 = arith.constant 0 : index
    %c2_117 = arith.constant 2 : index
    %c0_118 = arith.constant 0 : index
    %c0_119 = arith.constant 0 : index
    %157 = vector.load %arg12[%c0_116, %c2_117, %c0_118, %c0_119] : memref<2x4x32x8xf32, #tpu.memory_space<vmem>>, vector<1x1x32x8xf32>
    %158 = vector.shape_cast %157 : vector<1x1x32x8xf32> to vector<32x8xf32>
    %159 = arith.truncf %44 : vector<17x32xf32> to vector<17x32xbf16>
    %160 = arith.truncf %158 : vector<32x8xf32> to vector<32x8xbf16>
    %cst_120 = arith.constant dense<0.000000e+00> : vector<17x8xf32>
    %161 = tpu.matmul %159, %160, %cst_120 {dimension_numbers = #tpu.dot_dimension_numbers<[1], [0], [0], [1], [0, 0, 1, 1], [], []>} : vector<17x32xbf16>, vector<32x8xbf16>, vector<17x8xf32> -> vector<17x8xf32>
    %c0_121 = arith.constant 0 : index
    %c2_122 = arith.constant 2 : index
    %c0_123 = arith.constant 0 : index
    %c0_124 = arith.constant 0 : index
    %162 = vector.load %arg13[%c0_121, %c2_122, %c0_123, %c0_124] : memref<2x4x1x8xf32, #tpu.memory_space<vmem>>, vector<1x1x1x8xf32>
    %163 = vector.shape_cast %162 : vector<1x1x1x8xf32> to vector<1x8xf32>
    %164 = vector.broadcast %163 : vector<1x8xf32> to vector<17x8xf32>
    %165 = arith.addf %161, %164 : vector<17x8xf32>
    %c0_125 = arith.constant 0 : index
    %c2_126 = arith.constant 2 : index
    %c0_127 = arith.constant 0 : index
    %c0_128 = arith.constant 0 : index
    %166 = vector.load %arg14[%c0_125, %c2_126, %c0_127, %c0_128] : memref<2x4x32x8xf32, #tpu.memory_space<vmem>>, vector<1x1x32x8xf32>
    %167 = vector.shape_cast %166 : vector<1x1x32x8xf32> to vector<32x8xf32>
    %168 = arith.truncf %44 : vector<17x32xf32> to vector<17x32xbf16>
    %169 = arith.truncf %167 : vector<32x8xf32> to vector<32x8xbf16>
    %cst_129 = arith.constant dense<0.000000e+00> : vector<17x8xf32>
    %170 = tpu.matmul %168, %169, %cst_129 {dimension_numbers = #tpu.dot_dimension_numbers<[1], [0], [0], [1], [0, 0, 1, 1], [], []>} : vector<17x32xbf16>, vector<32x8xbf16>, vector<17x8xf32> -> vector<17x8xf32>
    %c0_130 = arith.constant 0 : index
    %c2_131 = arith.constant 2 : index
    %c0_132 = arith.constant 0 : index
    %c0_133 = arith.constant 0 : index
    %171 = vector.load %arg15[%c0_130, %c2_131, %c0_132, %c0_133] : memref<2x4x1x8xf32, #tpu.memory_space<vmem>>, vector<1x1x1x8xf32>
    %172 = vector.shape_cast %171 : vector<1x1x1x8xf32> to vector<1x8xf32>
    %173 = vector.broadcast %172 : vector<1x8xf32> to vector<17x8xf32>
    %174 = arith.addf %170, %173 : vector<17x8xf32>
    %175 = arith.truncf %156 : vector<17x8xf32> to vector<17x8xbf16>
    %176 = arith.truncf %165 : vector<17x8xf32> to vector<17x8xbf16>
    %cst_134 = arith.constant dense<0.000000e+00> : vector<17x17xf32>
    %177 = tpu.matmul %175, %176, %cst_134 {dimension_numbers = #tpu.dot_dimension_numbers<[1], [1], [0], [0], [0, 0, 1, 0], [], []>} : vector<17x8xbf16>, vector<17x8xbf16>, vector<17x17xf32> -> vector<17x17xf32>
    %cst_135 = arith.constant dense<0xFF800000> : vector<17xf32>
    %178 = vector.multi_reduction <maximumf>, %177, %cst_135 [1] : vector<17x17xf32> to vector<17xf32>
    %179 = vector.shape_cast %178 : vector<17xf32> to vector<17x1xf32>
    %180 = vector.broadcast %179 : vector<17x1xf32> to vector<17x17xf32>
    %181 = arith.subf %177, %180 : vector<17x17xf32>
    %182 = math.exp %181 : vector<17x17xf32>
    %cst_136 = arith.constant dense<0.000000e+00> : vector<17xf32>
    %183 = vector.multi_reduction <add>, %182, %cst_136 [1] : vector<17x17xf32> to vector<17xf32>
    %184 = vector.shape_cast %183 : vector<17xf32> to vector<17x1xf32>
    %185 = tpu.reciprocal %184 {approx = true} : vector<17x1xf32> -> vector<17x1xf32>
    %186 = vector.broadcast %185 : vector<17x1xf32> to vector<17x17xf32>
    %187 = arith.mulf %182, %186 : vector<17x17xf32>
    %188 = arith.truncf %187 : vector<17x17xf32> to vector<17x17xbf16>
    %189 = arith.truncf %174 : vector<17x8xf32> to vector<17x8xbf16>
    %cst_137 = arith.constant dense<0.000000e+00> : vector<17x8xf32>
    %190 = tpu.matmul %188, %189, %cst_137 {dimension_numbers = #tpu.dot_dimension_numbers<[1], [0], [0], [1], [0, 0, 1, 1], [], []>} : vector<17x17xbf16>, vector<17x8xbf16>, vector<17x8xf32> -> vector<17x8xf32>
    %c0_138 = arith.constant 0 : index
    %c2_139 = arith.constant 2 : index
    %c0_140 = arith.constant 0 : index
    %c0_141 = arith.constant 0 : index
    %191 = vector.load %arg16[%c0_138, %c2_139, %c0_140, %c0_141] : memref<2x4x8x32xf32, #tpu.memory_space<vmem>>, vector<1x1x8x32xf32>
    %192 = vector.shape_cast %191 : vector<1x1x8x32xf32> to vector<8x32xf32>
    %193 = arith.truncf %190 : vector<17x8xf32> to vector<17x8xbf16>
    %194 = arith.truncf %192 : vector<8x32xf32> to vector<8x32xbf16>
    %cst_142 = arith.constant dense<0.000000e+00> : vector<17x32xf32>
    %195 = tpu.matmul %193, %194, %cst_142 {dimension_numbers = #tpu.dot_dimension_numbers<[1], [0], [0], [1], [0, 0, 1, 1], [], []>} : vector<17x8xbf16>, vector<8x32xbf16>, vector<17x32xf32> -> vector<17x32xf32>
    %196 = arith.addf %145, %195 : vector<17x32xf32>
    %c0_143 = arith.constant 0 : index
    %c3 = arith.constant 3 : index
    %c0_144 = arith.constant 0 : index
    %c0_145 = arith.constant 0 : index
    %197 = vector.load %arg10[%c0_143, %c3, %c0_144, %c0_145] : memref<2x4x32x8xf32, #tpu.memory_space<vmem>>, vector<1x1x32x8xf32>
    %198 = vector.shape_cast %197 : vector<1x1x32x8xf32> to vector<32x8xf32>
    %199 = arith.truncf %44 : vector<17x32xf32> to vector<17x32xbf16>
    %200 = arith.truncf %198 : vector<32x8xf32> to vector<32x8xbf16>
    %cst_146 = arith.constant dense<0.000000e+00> : vector<17x8xf32>
    %201 = tpu.matmul %199, %200, %cst_146 {dimension_numbers = #tpu.dot_dimension_numbers<[1], [0], [0], [1], [0, 0, 1, 1], [], []>} : vector<17x32xbf16>, vector<32x8xbf16>, vector<17x8xf32> -> vector<17x8xf32>
    %c0_147 = arith.constant 0 : index
    %c3_148 = arith.constant 3 : index
    %c0_149 = arith.constant 0 : index
    %c0_150 = arith.constant 0 : index
    %202 = vector.load %arg11[%c0_147, %c3_148, %c0_149, %c0_150] : memref<2x4x1x8xf32, #tpu.memory_space<vmem>>, vector<1x1x1x8xf32>
    %203 = vector.shape_cast %202 : vector<1x1x1x8xf32> to vector<1x8xf32>
    %204 = vector.broadcast %203 : vector<1x8xf32> to vector<17x8xf32>
    %205 = arith.addf %201, %204 : vector<17x8xf32>
    %cst_151 = arith.constant 0.353553385 : f32
    %206 = vector.broadcast %cst_151 : f32 to vector<17x8xf32>
    %207 = arith.mulf %205, %206 : vector<17x8xf32>
    %c0_152 = arith.constant 0 : index
    %c3_153 = arith.constant 3 : index
    %c0_154 = arith.constant 0 : index
    %c0_155 = arith.constant 0 : index
    %208 = vector.load %arg12[%c0_152, %c3_153, %c0_154, %c0_155] : memref<2x4x32x8xf32, #tpu.memory_space<vmem>>, vector<1x1x32x8xf32>
    %209 = vector.shape_cast %208 : vector<1x1x32x8xf32> to vector<32x8xf32>
    %210 = arith.truncf %44 : vector<17x32xf32> to vector<17x32xbf16>
    %211 = arith.truncf %209 : vector<32x8xf32> to vector<32x8xbf16>
    %cst_156 = arith.constant dense<0.000000e+00> : vector<17x8xf32>
    %212 = tpu.matmul %210, %211, %cst_156 {dimension_numbers = #tpu.dot_dimension_numbers<[1], [0], [0], [1], [0, 0, 1, 1], [], []>} : vector<17x32xbf16>, vector<32x8xbf16>, vector<17x8xf32> -> vector<17x8xf32>
    %c0_157 = arith.constant 0 : index
    %c3_158 = arith.constant 3 : index
    %c0_159 = arith.constant 0 : index
    %c0_160 = arith.constant 0 : index
    %213 = vector.load %arg13[%c0_157, %c3_158, %c0_159, %c0_160] : memref<2x4x1x8xf32, #tpu.memory_space<vmem>>, vector<1x1x1x8xf32>
    %214 = vector.shape_cast %213 : vector<1x1x1x8xf32> to vector<1x8xf32>
    %215 = vector.broadcast %214 : vector<1x8xf32> to vector<17x8xf32>
    %216 = arith.addf %212, %215 : vector<17x8xf32>
    %c0_161 = arith.constant 0 : index
    %c3_162 = arith.constant 3 : index
    %c0_163 = arith.constant 0 : index
    %c0_164 = arith.constant 0 : index
    %217 = vector.load %arg14[%c0_161, %c3_162, %c0_163, %c0_164] : memref<2x4x32x8xf32, #tpu.memory_space<vmem>>, vector<1x1x32x8xf32>
    %218 = vector.shape_cast %217 : vector<1x1x32x8xf32> to vector<32x8xf32>
    %219 = arith.truncf %44 : vector<17x32xf32> to vector<17x32xbf16>
    %220 = arith.truncf %218 : vector<32x8xf32> to vector<32x8xbf16>
    %cst_165 = arith.constant dense<0.000000e+00> : vector<17x8xf32>
    %221 = tpu.matmul %219, %220, %cst_165 {dimension_numbers = #tpu.dot_dimension_numbers<[1], [0], [0], [1], [0, 0, 1, 1], [], []>} : vector<17x32xbf16>, vector<32x8xbf16>, vector<17x8xf32> -> vector<17x8xf32>
    %c0_166 = arith.constant 0 : index
    %c3_167 = arith.constant 3 : index
    %c0_168 = arith.constant 0 : index
    %c0_169 = arith.constant 0 : index
    %222 = vector.load %arg15[%c0_166, %c3_167, %c0_168, %c0_169] : memref<2x4x1x8xf32, #tpu.memory_space<vmem>>, vector<1x1x1x8xf32>
    %223 = vector.shape_cast %222 : vector<1x1x1x8xf32> to vector<1x8xf32>
    %224 = vector.broadcast %223 : vector<1x8xf32> to vector<17x8xf32>
    %225 = arith.addf %221, %224 : vector<17x8xf32>
    %226 = arith.truncf %207 : vector<17x8xf32> to vector<17x8xbf16>
    %227 = arith.truncf %216 : vector<17x8xf32> to vector<17x8xbf16>
    %cst_170 = arith.constant dense<0.000000e+00> : vector<17x17xf32>
    %228 = tpu.matmul %226, %227, %cst_170 {dimension_numbers = #tpu.dot_dimension_numbers<[1], [1], [0], [0], [0, 0, 1, 0], [], []>} : vector<17x8xbf16>, vector<17x8xbf16>, vector<17x17xf32> -> vector<17x17xf32>
    %cst_171 = arith.constant dense<0xFF800000> : vector<17xf32>
    %229 = vector.multi_reduction <maximumf>, %228, %cst_171 [1] : vector<17x17xf32> to vector<17xf32>
    %230 = vector.shape_cast %229 : vector<17xf32> to vector<17x1xf32>
    %231 = vector.broadcast %230 : vector<17x1xf32> to vector<17x17xf32>
    %232 = arith.subf %228, %231 : vector<17x17xf32>
    %233 = math.exp %232 : vector<17x17xf32>
    %cst_172 = arith.constant dense<0.000000e+00> : vector<17xf32>
    %234 = vector.multi_reduction <add>, %233, %cst_172 [1] : vector<17x17xf32> to vector<17xf32>
    %235 = vector.shape_cast %234 : vector<17xf32> to vector<17x1xf32>
    %236 = tpu.reciprocal %235 {approx = true} : vector<17x1xf32> -> vector<17x1xf32>
    %237 = vector.broadcast %236 : vector<17x1xf32> to vector<17x17xf32>
    %238 = arith.mulf %233, %237 : vector<17x17xf32>
    %239 = arith.truncf %238 : vector<17x17xf32> to vector<17x17xbf16>
    %240 = arith.truncf %225 : vector<17x8xf32> to vector<17x8xbf16>
    %cst_173 = arith.constant dense<0.000000e+00> : vector<17x8xf32>
    %241 = tpu.matmul %239, %240, %cst_173 {dimension_numbers = #tpu.dot_dimension_numbers<[1], [0], [0], [1], [0, 0, 1, 1], [], []>} : vector<17x17xbf16>, vector<17x8xbf16>, vector<17x8xf32> -> vector<17x8xf32>
    %c0_174 = arith.constant 0 : index
    %c3_175 = arith.constant 3 : index
    %c0_176 = arith.constant 0 : index
    %c0_177 = arith.constant 0 : index
    %242 = vector.load %arg16[%c0_174, %c3_175, %c0_176, %c0_177] : memref<2x4x8x32xf32, #tpu.memory_space<vmem>>, vector<1x1x8x32xf32>
    %243 = vector.shape_cast %242 : vector<1x1x8x32xf32> to vector<8x32xf32>
    %244 = arith.truncf %241 : vector<17x8xf32> to vector<17x8xbf16>
    %245 = arith.truncf %243 : vector<8x32xf32> to vector<8x32xbf16>
    %cst_178 = arith.constant dense<0.000000e+00> : vector<17x32xf32>
    %246 = tpu.matmul %244, %245, %cst_178 {dimension_numbers = #tpu.dot_dimension_numbers<[1], [0], [0], [1], [0, 0, 1, 1], [], []>} : vector<17x8xbf16>, vector<8x32xbf16>, vector<17x32xf32> -> vector<17x32xf32>
    %247 = arith.addf %196, %246 : vector<17x32xf32>
    %248 = arith.addf %20, %247 : vector<17x32xf32>
    %c0_179 = arith.constant 0 : index
    %c0_180 = arith.constant 0 : index
    %c0_181 = arith.constant 0 : index
    %249 = vector.load %arg17[%c0_179, %c0_180, %c0_181] : memref<2x1x32xf32, #tpu.memory_space<vmem>>, vector<1x1x32xf32>
    %250 = vector.shape_cast %249 : vector<1x1x32xf32> to vector<1x32xf32>
    %251 = vector.broadcast %250 : vector<1x32xf32> to vector<17x32xf32>
    %252 = arith.addf %248, %251 : vector<17x32xf32>
    %c0_182 = arith.constant 0 : index
    %c0_183 = arith.constant 0 : index
    %c0_184 = arith.constant 0 : index
    %253 = vector.load %arg18[%c0_182, %c0_183, %c0_184] : memref<2x1x32xf32, #tpu.memory_space<vmem>>, vector<1x1x32xf32>
    %254 = vector.shape_cast %253 : vector<1x1x32xf32> to vector<1x32xf32>
    %c0_185 = arith.constant 0 : index
    %c0_186 = arith.constant 0 : index
    %c0_187 = arith.constant 0 : index
    %255 = vector.load %arg19[%c0_185, %c0_186, %c0_187] : memref<2x1x32xf32, #tpu.memory_space<vmem>>, vector<1x1x32xf32>
    %256 = vector.shape_cast %255 : vector<1x1x32xf32> to vector<1x32xf32>
    %cst_188 = arith.constant dense<0.000000e+00> : vector<17xf32>
    %257 = vector.multi_reduction <add>, %252, %cst_188 [1] : vector<17x32xf32> to vector<17xf32>
    %258 = vector.shape_cast %257 : vector<17xf32> to vector<17x1xf32>
    %cst_189 = arith.constant 3.200000e+01 : f32
    %259 = vector.broadcast %cst_189 : f32 to vector<17x1xf32>
    %260 = arith.divf %258, %259 : vector<17x1xf32>
    %261 = vector.broadcast %260 : vector<17x1xf32> to vector<17x32xf32>
    %262 = arith.subf %252, %261 : vector<17x32xf32>
    %263 = arith.mulf %262, %262 : vector<17x32xf32>
    %cst_190 = arith.constant dense<0.000000e+00> : vector<17xf32>
    %264 = vector.multi_reduction <add>, %263, %cst_190 [1] : vector<17x32xf32> to vector<17xf32>
    %265 = vector.shape_cast %264 : vector<17xf32> to vector<17x1xf32>
    %cst_191 = arith.constant 3.200000e+01 : f32
    %266 = vector.broadcast %cst_191 : f32 to vector<17x1xf32>
    %267 = arith.divf %265, %266 : vector<17x1xf32>
    %cst_192 = arith.constant 9.99999974E-6 : f32
    %268 = vector.broadcast %cst_192 : f32 to vector<17x1xf32>
    %269 = arith.addf %267, %268 : vector<17x1xf32>
    %270 = math.rsqrt %269 : vector<17x1xf32>
    %271 = vector.broadcast %270 : vector<17x1xf32> to vector<17x32xf32>
    %272 = arith.mulf %262, %271 : vector<17x32xf32>
    %273 = vector.broadcast %254 : vector<1x32xf32> to vector<17x32xf32>
    %274 = arith.mulf %272, %273 : vector<17x32xf32>
    %275 = vector.broadcast %256 : vector<1x32xf32> to vector<17x32xf32>
    %276 = arith.addf %274, %275 : vector<17x32xf32>
    %c0_193 = arith.constant 0 : index
    %c0_194 = arith.constant 0 : index
    %c0_195 = arith.constant 0 : index
    %277 = vector.load %arg20[%c0_193, %c0_194, %c0_195] : memref<2x32x128xf32, #tpu.memory_space<vmem>>, vector<1x32x128xf32>
    %278 = vector.shape_cast %277 : vector<1x32x128xf32> to vector<32x128xf32>
    %279 = arith.truncf %276 : vector<17x32xf32> to vector<17x32xbf16>
    %280 = arith.truncf %278 : vector<32x128xf32> to vector<32x128xbf16>
    %cst_196 = arith.constant dense<0.000000e+00> : vector<17x128xf32>
    %281 = tpu.matmul %279, %280, %cst_196 {dimension_numbers = #tpu.dot_dimension_numbers<[1], [0], [0], [1], [0, 0, 1, 1], [], []>} : vector<17x32xbf16>, vector<32x128xbf16>, vector<17x128xf32> -> vector<17x128xf32>
    %c0_197 = arith.constant 0 : index
    %c0_198 = arith.constant 0 : index
    %c0_199 = arith.constant 0 : index
    %282 = vector.load %arg21[%c0_197, %c0_198, %c0_199] : memref<2x1x128xf32, #tpu.memory_space<vmem>>, vector<1x1x128xf32>
    %283 = vector.shape_cast %282 : vector<1x1x128xf32> to vector<1x128xf32>
    %284 = vector.broadcast %283 : vector<1x128xf32> to vector<17x128xf32>
    %285 = arith.addf %281, %284 : vector<17x128xf32>
    %cst_200 = arith.constant 5.000000e-01 : f32
    %286 = vector.broadcast %cst_200 : f32 to vector<17x128xf32>
    %287 = arith.mulf %286, %285 : vector<17x128xf32>
    %cst_201 = arith.constant 0.707106769 : f32
    %288 = vector.broadcast %cst_201 : f32 to vector<17x128xf32>
    %289 = arith.mulf %285, %288 : vector<17x128xf32>
    %290 = math.absf %289 : vector<17x128xf32>
    %cst_202 = arith.constant 0.327591091 : f32
    %291 = vector.broadcast %cst_202 : f32 to vector<17x128xf32>
    %292 = arith.mulf %291, %290 : vector<17x128xf32>
    %cst_203 = arith.constant 1.000000e+00 : f32
    %293 = vector.broadcast %cst_203 : f32 to vector<17x128xf32>
    %294 = arith.addf %293, %292 : vector<17x128xf32>
    %cst_204 = arith.constant 1.000000e+00 : f32
    %295 = vector.broadcast %cst_204 : f32 to vector<17x128xf32>
    %296 = arith.divf %295, %294 : vector<17x128xf32>
    %cst_205 = arith.constant 1.06140542 : f32
    %297 = vector.broadcast %cst_205 : f32 to vector<17x128xf32>
    %298 = arith.mulf %297, %296 : vector<17x128xf32>
    %cst_206 = arith.constant -1.45315206 : f32
    %299 = vector.broadcast %cst_206 : f32 to vector<17x128xf32>
    %300 = arith.addf %298, %299 : vector<17x128xf32>
    %301 = arith.mulf %300, %296 : vector<17x128xf32>
    %cst_207 = arith.constant 1.42141378 : f32
    %302 = vector.broadcast %cst_207 : f32 to vector<17x128xf32>
    %303 = arith.addf %301, %302 : vector<17x128xf32>
    %304 = arith.mulf %303, %296 : vector<17x128xf32>
    %cst_208 = arith.constant -0.284496725 : f32
    %305 = vector.broadcast %cst_208 : f32 to vector<17x128xf32>
    %306 = arith.addf %304, %305 : vector<17x128xf32>
    %307 = arith.mulf %306, %296 : vector<17x128xf32>
    %cst_209 = arith.constant 0.254829586 : f32
    %308 = vector.broadcast %cst_209 : f32 to vector<17x128xf32>
    %309 = arith.addf %307, %308 : vector<17x128xf32>
    %310 = arith.mulf %309, %296 : vector<17x128xf32>
    %cst_210 = arith.constant 0.000000e+00 : f32
    %311 = vector.broadcast %cst_210 : f32 to vector<17x128xf32>
    %312 = arith.subf %311, %290 : vector<17x128xf32>
    %313 = arith.mulf %312, %290 : vector<17x128xf32>
    %314 = math.exp %313 : vector<17x128xf32>
    %315 = arith.mulf %310, %314 : vector<17x128xf32>
    %cst_211 = arith.constant 1.000000e+00 : f32
    %316 = vector.broadcast %cst_211 : f32 to vector<17x128xf32>
    %317 = arith.subf %316, %315 : vector<17x128xf32>
    %cst_212 = arith.constant 0.000000e+00 : f32
    %318 = vector.broadcast %cst_212 : f32 to vector<17x128xf32>
    %319 = arith.cmpf oge, %289, %318 : vector<17x128xf32>
    %cst_213 = arith.constant 0.000000e+00 : f32
    %320 = vector.broadcast %cst_213 : f32 to vector<17x128xf32>
    %321 = arith.subf %320, %317 : vector<17x128xf32>
    %322 = arith.select %319, %317, %321 : vector<17x128xi1>, vector<17x128xf32>
    %cst_214 = arith.constant 1.000000e+00 : f32
    %323 = vector.broadcast %cst_214 : f32 to vector<17x128xf32>
    %324 = arith.addf %323, %322 : vector<17x128xf32>
    %325 = arith.mulf %287, %324 : vector<17x128xf32>
    %c0_215 = arith.constant 0 : index
    %c0_216 = arith.constant 0 : index
    %c0_217 = arith.constant 0 : index
    %326 = vector.load %arg22[%c0_215, %c0_216, %c0_217] : memref<2x128x32xf32, #tpu.memory_space<vmem>>, vector<1x128x32xf32>
    %327 = vector.shape_cast %326 : vector<1x128x32xf32> to vector<128x32xf32>
    %328 = arith.truncf %325 : vector<17x128xf32> to vector<17x128xbf16>
    %329 = arith.truncf %327 : vector<128x32xf32> to vector<128x32xbf16>
    %cst_218 = arith.constant dense<0.000000e+00> : vector<17x32xf32>
    %330 = tpu.matmul %328, %329, %cst_218 {dimension_numbers = #tpu.dot_dimension_numbers<[1], [0], [0], [1], [0, 0, 1, 1], [], []>} : vector<17x128xbf16>, vector<128x32xbf16>, vector<17x32xf32> -> vector<17x32xf32>
    %331 = arith.addf %252, %330 : vector<17x32xf32>
    %c0_219 = arith.constant 0 : index
    %c0_220 = arith.constant 0 : index
    %c0_221 = arith.constant 0 : index
    %332 = vector.load %arg23[%c0_219, %c0_220, %c0_221] : memref<2x1x32xf32, #tpu.memory_space<vmem>>, vector<1x1x32xf32>
    %333 = vector.shape_cast %332 : vector<1x1x32xf32> to vector<1x32xf32>
    %334 = vector.broadcast %333 : vector<1x32xf32> to vector<17x32xf32>
    %335 = arith.addf %331, %334 : vector<17x32xf32>
    %c1_222 = arith.constant 1 : index
    %c0_223 = arith.constant 0 : index
    %c0_224 = arith.constant 0 : index
    %336 = vector.load %arg8[%c1_222, %c0_223, %c0_224] : memref<2x1x32xf32, #tpu.memory_space<vmem>>, vector<1x1x32xf32>
    %337 = vector.shape_cast %336 : vector<1x1x32xf32> to vector<1x32xf32>
    %c1_225 = arith.constant 1 : index
    %c0_226 = arith.constant 0 : index
    %c0_227 = arith.constant 0 : index
    %338 = vector.load %arg9[%c1_225, %c0_226, %c0_227] : memref<2x1x32xf32, #tpu.memory_space<vmem>>, vector<1x1x32xf32>
    %339 = vector.shape_cast %338 : vector<1x1x32xf32> to vector<1x32xf32>
    %cst_228 = arith.constant dense<0.000000e+00> : vector<17xf32>
    %340 = vector.multi_reduction <add>, %335, %cst_228 [1] : vector<17x32xf32> to vector<17xf32>
    %341 = vector.shape_cast %340 : vector<17xf32> to vector<17x1xf32>
    %cst_229 = arith.constant 3.200000e+01 : f32
    %342 = vector.broadcast %cst_229 : f32 to vector<17x1xf32>
    %343 = arith.divf %341, %342 : vector<17x1xf32>
    %344 = vector.broadcast %343 : vector<17x1xf32> to vector<17x32xf32>
    %345 = arith.subf %335, %344 : vector<17x32xf32>
    %346 = arith.mulf %345, %345 : vector<17x32xf32>
    %cst_230 = arith.constant dense<0.000000e+00> : vector<17xf32>
    %347 = vector.multi_reduction <add>, %346, %cst_230 [1] : vector<17x32xf32> to vector<17xf32>
    %348 = vector.shape_cast %347 : vector<17xf32> to vector<17x1xf32>
    %cst_231 = arith.constant 3.200000e+01 : f32
    %349 = vector.broadcast %cst_231 : f32 to vector<17x1xf32>
    %350 = arith.divf %348, %349 : vector<17x1xf32>
    %cst_232 = arith.constant 9.99999974E-6 : f32
    %351 = vector.broadcast %cst_232 : f32 to vector<17x1xf32>
    %352 = arith.addf %350, %351 : vector<17x1xf32>
    %353 = math.rsqrt %352 : vector<17x1xf32>
    %354 = vector.broadcast %353 : vector<17x1xf32> to vector<17x32xf32>
    %355 = arith.mulf %345, %354 : vector<17x32xf32>
    %356 = vector.broadcast %337 : vector<1x32xf32> to vector<17x32xf32>
    %357 = arith.mulf %355, %356 : vector<17x32xf32>
    %358 = vector.broadcast %339 : vector<1x32xf32> to vector<17x32xf32>
    %359 = arith.addf %357, %358 : vector<17x32xf32>
    %c1_233 = arith.constant 1 : index
    %c0_234 = arith.constant 0 : index
    %c0_235 = arith.constant 0 : index
    %c0_236 = arith.constant 0 : index
    %360 = vector.load %arg10[%c1_233, %c0_234, %c0_235, %c0_236] : memref<2x4x32x8xf32, #tpu.memory_space<vmem>>, vector<1x1x32x8xf32>
    %361 = vector.shape_cast %360 : vector<1x1x32x8xf32> to vector<32x8xf32>
    %362 = arith.truncf %359 : vector<17x32xf32> to vector<17x32xbf16>
    %363 = arith.truncf %361 : vector<32x8xf32> to vector<32x8xbf16>
    %cst_237 = arith.constant dense<0.000000e+00> : vector<17x8xf32>
    %364 = tpu.matmul %362, %363, %cst_237 {dimension_numbers = #tpu.dot_dimension_numbers<[1], [0], [0], [1], [0, 0, 1, 1], [], []>} : vector<17x32xbf16>, vector<32x8xbf16>, vector<17x8xf32> -> vector<17x8xf32>
    %c1_238 = arith.constant 1 : index
    %c0_239 = arith.constant 0 : index
    %c0_240 = arith.constant 0 : index
    %c0_241 = arith.constant 0 : index
    %365 = vector.load %arg11[%c1_238, %c0_239, %c0_240, %c0_241] : memref<2x4x1x8xf32, #tpu.memory_space<vmem>>, vector<1x1x1x8xf32>
    %366 = vector.shape_cast %365 : vector<1x1x1x8xf32> to vector<1x8xf32>
    %367 = vector.broadcast %366 : vector<1x8xf32> to vector<17x8xf32>
    %368 = arith.addf %364, %367 : vector<17x8xf32>
    %cst_242 = arith.constant 0.353553385 : f32
    %369 = vector.broadcast %cst_242 : f32 to vector<17x8xf32>
    %370 = arith.mulf %368, %369 : vector<17x8xf32>
    %c1_243 = arith.constant 1 : index
    %c0_244 = arith.constant 0 : index
    %c0_245 = arith.constant 0 : index
    %c0_246 = arith.constant 0 : index
    %371 = vector.load %arg12[%c1_243, %c0_244, %c0_245, %c0_246] : memref<2x4x32x8xf32, #tpu.memory_space<vmem>>, vector<1x1x32x8xf32>
    %372 = vector.shape_cast %371 : vector<1x1x32x8xf32> to vector<32x8xf32>
    %373 = arith.truncf %359 : vector<17x32xf32> to vector<17x32xbf16>
    %374 = arith.truncf %372 : vector<32x8xf32> to vector<32x8xbf16>
    %cst_247 = arith.constant dense<0.000000e+00> : vector<17x8xf32>
    %375 = tpu.matmul %373, %374, %cst_247 {dimension_numbers = #tpu.dot_dimension_numbers<[1], [0], [0], [1], [0, 0, 1, 1], [], []>} : vector<17x32xbf16>, vector<32x8xbf16>, vector<17x8xf32> -> vector<17x8xf32>
    %c1_248 = arith.constant 1 : index
    %c0_249 = arith.constant 0 : index
    %c0_250 = arith.constant 0 : index
    %c0_251 = arith.constant 0 : index
    %376 = vector.load %arg13[%c1_248, %c0_249, %c0_250, %c0_251] : memref<2x4x1x8xf32, #tpu.memory_space<vmem>>, vector<1x1x1x8xf32>
    %377 = vector.shape_cast %376 : vector<1x1x1x8xf32> to vector<1x8xf32>
    %378 = vector.broadcast %377 : vector<1x8xf32> to vector<17x8xf32>
    %379 = arith.addf %375, %378 : vector<17x8xf32>
    %c1_252 = arith.constant 1 : index
    %c0_253 = arith.constant 0 : index
    %c0_254 = arith.constant 0 : index
    %c0_255 = arith.constant 0 : index
    %380 = vector.load %arg14[%c1_252, %c0_253, %c0_254, %c0_255] : memref<2x4x32x8xf32, #tpu.memory_space<vmem>>, vector<1x1x32x8xf32>
    %381 = vector.shape_cast %380 : vector<1x1x32x8xf32> to vector<32x8xf32>
    %382 = arith.truncf %359 : vector<17x32xf32> to vector<17x32xbf16>
    %383 = arith.truncf %381 : vector<32x8xf32> to vector<32x8xbf16>
    %cst_256 = arith.constant dense<0.000000e+00> : vector<17x8xf32>
    %384 = tpu.matmul %382, %383, %cst_256 {dimension_numbers = #tpu.dot_dimension_numbers<[1], [0], [0], [1], [0, 0, 1, 1], [], []>} : vector<17x32xbf16>, vector<32x8xbf16>, vector<17x8xf32> -> vector<17x8xf32>
    %c1_257 = arith.constant 1 : index
    %c0_258 = arith.constant 0 : index
    %c0_259 = arith.constant 0 : index
    %c0_260 = arith.constant 0 : index
    %385 = vector.load %arg15[%c1_257, %c0_258, %c0_259, %c0_260] : memref<2x4x1x8xf32, #tpu.memory_space<vmem>>, vector<1x1x1x8xf32>
    %386 = vector.shape_cast %385 : vector<1x1x1x8xf32> to vector<1x8xf32>
    %387 = vector.broadcast %386 : vector<1x8xf32> to vector<17x8xf32>
    %388 = arith.addf %384, %387 : vector<17x8xf32>
    %389 = arith.truncf %370 : vector<17x8xf32> to vector<17x8xbf16>
    %390 = arith.truncf %379 : vector<17x8xf32> to vector<17x8xbf16>
    %cst_261 = arith.constant dense<0.000000e+00> : vector<17x17xf32>
    %391 = tpu.matmul %389, %390, %cst_261 {dimension_numbers = #tpu.dot_dimension_numbers<[1], [1], [0], [0], [0, 0, 1, 0], [], []>} : vector<17x8xbf16>, vector<17x8xbf16>, vector<17x17xf32> -> vector<17x17xf32>
    %cst_262 = arith.constant dense<0xFF800000> : vector<17xf32>
    %392 = vector.multi_reduction <maximumf>, %391, %cst_262 [1] : vector<17x17xf32> to vector<17xf32>
    %393 = vector.shape_cast %392 : vector<17xf32> to vector<17x1xf32>
    %394 = vector.broadcast %393 : vector<17x1xf32> to vector<17x17xf32>
    %395 = arith.subf %391, %394 : vector<17x17xf32>
    %396 = math.exp %395 : vector<17x17xf32>
    %cst_263 = arith.constant dense<0.000000e+00> : vector<17xf32>
    %397 = vector.multi_reduction <add>, %396, %cst_263 [1] : vector<17x17xf32> to vector<17xf32>
    %398 = vector.shape_cast %397 : vector<17xf32> to vector<17x1xf32>
    %399 = tpu.reciprocal %398 {approx = true} : vector<17x1xf32> -> vector<17x1xf32>
    %400 = vector.broadcast %399 : vector<17x1xf32> to vector<17x17xf32>
    %401 = arith.mulf %396, %400 : vector<17x17xf32>
    %402 = arith.truncf %401 : vector<17x17xf32> to vector<17x17xbf16>
    %403 = arith.truncf %388 : vector<17x8xf32> to vector<17x8xbf16>
    %cst_264 = arith.constant dense<0.000000e+00> : vector<17x8xf32>
    %404 = tpu.matmul %402, %403, %cst_264 {dimension_numbers = #tpu.dot_dimension_numbers<[1], [0], [0], [1], [0, 0, 1, 1], [], []>} : vector<17x17xbf16>, vector<17x8xbf16>, vector<17x8xf32> -> vector<17x8xf32>
    %c1_265 = arith.constant 1 : index
    %c0_266 = arith.constant 0 : index
    %c0_267 = arith.constant 0 : index
    %c0_268 = arith.constant 0 : index
    %405 = vector.load %arg16[%c1_265, %c0_266, %c0_267, %c0_268] : memref<2x4x8x32xf32, #tpu.memory_space<vmem>>, vector<1x1x8x32xf32>
    %406 = vector.shape_cast %405 : vector<1x1x8x32xf32> to vector<8x32xf32>
    %407 = arith.truncf %404 : vector<17x8xf32> to vector<17x8xbf16>
    %408 = arith.truncf %406 : vector<8x32xf32> to vector<8x32xbf16>
    %cst_269 = arith.constant dense<0.000000e+00> : vector<17x32xf32>
    %409 = tpu.matmul %407, %408, %cst_269 {dimension_numbers = #tpu.dot_dimension_numbers<[1], [0], [0], [1], [0, 0, 1, 1], [], []>} : vector<17x8xbf16>, vector<8x32xbf16>, vector<17x32xf32> -> vector<17x32xf32>
    %c1_270 = arith.constant 1 : index
    %c1_271 = arith.constant 1 : index
    %c0_272 = arith.constant 0 : index
    %c0_273 = arith.constant 0 : index
    %410 = vector.load %arg10[%c1_270, %c1_271, %c0_272, %c0_273] : memref<2x4x32x8xf32, #tpu.memory_space<vmem>>, vector<1x1x32x8xf32>
    %411 = vector.shape_cast %410 : vector<1x1x32x8xf32> to vector<32x8xf32>
    %412 = arith.truncf %359 : vector<17x32xf32> to vector<17x32xbf16>
    %413 = arith.truncf %411 : vector<32x8xf32> to vector<32x8xbf16>
    %cst_274 = arith.constant dense<0.000000e+00> : vector<17x8xf32>
    %414 = tpu.matmul %412, %413, %cst_274 {dimension_numbers = #tpu.dot_dimension_numbers<[1], [0], [0], [1], [0, 0, 1, 1], [], []>} : vector<17x32xbf16>, vector<32x8xbf16>, vector<17x8xf32> -> vector<17x8xf32>
    %c1_275 = arith.constant 1 : index
    %c1_276 = arith.constant 1 : index
    %c0_277 = arith.constant 0 : index
    %c0_278 = arith.constant 0 : index
    %415 = vector.load %arg11[%c1_275, %c1_276, %c0_277, %c0_278] : memref<2x4x1x8xf32, #tpu.memory_space<vmem>>, vector<1x1x1x8xf32>
    %416 = vector.shape_cast %415 : vector<1x1x1x8xf32> to vector<1x8xf32>
    %417 = vector.broadcast %416 : vector<1x8xf32> to vector<17x8xf32>
    %418 = arith.addf %414, %417 : vector<17x8xf32>
    %cst_279 = arith.constant 0.353553385 : f32
    %419 = vector.broadcast %cst_279 : f32 to vector<17x8xf32>
    %420 = arith.mulf %418, %419 : vector<17x8xf32>
    %c1_280 = arith.constant 1 : index
    %c1_281 = arith.constant 1 : index
    %c0_282 = arith.constant 0 : index
    %c0_283 = arith.constant 0 : index
    %421 = vector.load %arg12[%c1_280, %c1_281, %c0_282, %c0_283] : memref<2x4x32x8xf32, #tpu.memory_space<vmem>>, vector<1x1x32x8xf32>
    %422 = vector.shape_cast %421 : vector<1x1x32x8xf32> to vector<32x8xf32>
    %423 = arith.truncf %359 : vector<17x32xf32> to vector<17x32xbf16>
    %424 = arith.truncf %422 : vector<32x8xf32> to vector<32x8xbf16>
    %cst_284 = arith.constant dense<0.000000e+00> : vector<17x8xf32>
    %425 = tpu.matmul %423, %424, %cst_284 {dimension_numbers = #tpu.dot_dimension_numbers<[1], [0], [0], [1], [0, 0, 1, 1], [], []>} : vector<17x32xbf16>, vector<32x8xbf16>, vector<17x8xf32> -> vector<17x8xf32>
    %c1_285 = arith.constant 1 : index
    %c1_286 = arith.constant 1 : index
    %c0_287 = arith.constant 0 : index
    %c0_288 = arith.constant 0 : index
    %426 = vector.load %arg13[%c1_285, %c1_286, %c0_287, %c0_288] : memref<2x4x1x8xf32, #tpu.memory_space<vmem>>, vector<1x1x1x8xf32>
    %427 = vector.shape_cast %426 : vector<1x1x1x8xf32> to vector<1x8xf32>
    %428 = vector.broadcast %427 : vector<1x8xf32> to vector<17x8xf32>
    %429 = arith.addf %425, %428 : vector<17x8xf32>
    %c1_289 = arith.constant 1 : index
    %c1_290 = arith.constant 1 : index
    %c0_291 = arith.constant 0 : index
    %c0_292 = arith.constant 0 : index
    %430 = vector.load %arg14[%c1_289, %c1_290, %c0_291, %c0_292] : memref<2x4x32x8xf32, #tpu.memory_space<vmem>>, vector<1x1x32x8xf32>
    %431 = vector.shape_cast %430 : vector<1x1x32x8xf32> to vector<32x8xf32>
    %432 = arith.truncf %359 : vector<17x32xf32> to vector<17x32xbf16>
    %433 = arith.truncf %431 : vector<32x8xf32> to vector<32x8xbf16>
    %cst_293 = arith.constant dense<0.000000e+00> : vector<17x8xf32>
    %434 = tpu.matmul %432, %433, %cst_293 {dimension_numbers = #tpu.dot_dimension_numbers<[1], [0], [0], [1], [0, 0, 1, 1], [], []>} : vector<17x32xbf16>, vector<32x8xbf16>, vector<17x8xf32> -> vector<17x8xf32>
    %c1_294 = arith.constant 1 : index
    %c1_295 = arith.constant 1 : index
    %c0_296 = arith.constant 0 : index
    %c0_297 = arith.constant 0 : index
    %435 = vector.load %arg15[%c1_294, %c1_295, %c0_296, %c0_297] : memref<2x4x1x8xf32, #tpu.memory_space<vmem>>, vector<1x1x1x8xf32>
    %436 = vector.shape_cast %435 : vector<1x1x1x8xf32> to vector<1x8xf32>
    %437 = vector.broadcast %436 : vector<1x8xf32> to vector<17x8xf32>
    %438 = arith.addf %434, %437 : vector<17x8xf32>
    %439 = arith.truncf %420 : vector<17x8xf32> to vector<17x8xbf16>
    %440 = arith.truncf %429 : vector<17x8xf32> to vector<17x8xbf16>
    %cst_298 = arith.constant dense<0.000000e+00> : vector<17x17xf32>
    %441 = tpu.matmul %439, %440, %cst_298 {dimension_numbers = #tpu.dot_dimension_numbers<[1], [1], [0], [0], [0, 0, 1, 0], [], []>} : vector<17x8xbf16>, vector<17x8xbf16>, vector<17x17xf32> -> vector<17x17xf32>
    %cst_299 = arith.constant dense<0xFF800000> : vector<17xf32>
    %442 = vector.multi_reduction <maximumf>, %441, %cst_299 [1] : vector<17x17xf32> to vector<17xf32>
    %443 = vector.shape_cast %442 : vector<17xf32> to vector<17x1xf32>
    %444 = vector.broadcast %443 : vector<17x1xf32> to vector<17x17xf32>
    %445 = arith.subf %441, %444 : vector<17x17xf32>
    %446 = math.exp %445 : vector<17x17xf32>
    %cst_300 = arith.constant dense<0.000000e+00> : vector<17xf32>
    %447 = vector.multi_reduction <add>, %446, %cst_300 [1] : vector<17x17xf32> to vector<17xf32>
    %448 = vector.shape_cast %447 : vector<17xf32> to vector<17x1xf32>
    %449 = tpu.reciprocal %448 {approx = true} : vector<17x1xf32> -> vector<17x1xf32>
    %450 = vector.broadcast %449 : vector<17x1xf32> to vector<17x17xf32>
    %451 = arith.mulf %446, %450 : vector<17x17xf32>
    %452 = arith.truncf %451 : vector<17x17xf32> to vector<17x17xbf16>
    %453 = arith.truncf %438 : vector<17x8xf32> to vector<17x8xbf16>
    %cst_301 = arith.constant dense<0.000000e+00> : vector<17x8xf32>
    %454 = tpu.matmul %452, %453, %cst_301 {dimension_numbers = #tpu.dot_dimension_numbers<[1], [0], [0], [1], [0, 0, 1, 1], [], []>} : vector<17x17xbf16>, vector<17x8xbf16>, vector<17x8xf32> -> vector<17x8xf32>
    %c1_302 = arith.constant 1 : index
    %c1_303 = arith.constant 1 : index
    %c0_304 = arith.constant 0 : index
    %c0_305 = arith.constant 0 : index
    %455 = vector.load %arg16[%c1_302, %c1_303, %c0_304, %c0_305] : memref<2x4x8x32xf32, #tpu.memory_space<vmem>>, vector<1x1x8x32xf32>
    %456 = vector.shape_cast %455 : vector<1x1x8x32xf32> to vector<8x32xf32>
    %457 = arith.truncf %454 : vector<17x8xf32> to vector<17x8xbf16>
    %458 = arith.truncf %456 : vector<8x32xf32> to vector<8x32xbf16>
    %cst_306 = arith.constant dense<0.000000e+00> : vector<17x32xf32>
    %459 = tpu.matmul %457, %458, %cst_306 {dimension_numbers = #tpu.dot_dimension_numbers<[1], [0], [0], [1], [0, 0, 1, 1], [], []>} : vector<17x8xbf16>, vector<8x32xbf16>, vector<17x32xf32> -> vector<17x32xf32>
    %460 = arith.addf %409, %459 : vector<17x32xf32>
    %c1_307 = arith.constant 1 : index
    %c2_308 = arith.constant 2 : index
    %c0_309 = arith.constant 0 : index
    %c0_310 = arith.constant 0 : index
    %461 = vector.load %arg10[%c1_307, %c2_308, %c0_309, %c0_310] : memref<2x4x32x8xf32, #tpu.memory_space<vmem>>, vector<1x1x32x8xf32>
    %462 = vector.shape_cast %461 : vector<1x1x32x8xf32> to vector<32x8xf32>
    %463 = arith.truncf %359 : vector<17x32xf32> to vector<17x32xbf16>
    %464 = arith.truncf %462 : vector<32x8xf32> to vector<32x8xbf16>
    %cst_311 = arith.constant dense<0.000000e+00> : vector<17x8xf32>
    %465 = tpu.matmul %463, %464, %cst_311 {dimension_numbers = #tpu.dot_dimension_numbers<[1], [0], [0], [1], [0, 0, 1, 1], [], []>} : vector<17x32xbf16>, vector<32x8xbf16>, vector<17x8xf32> -> vector<17x8xf32>
    %c1_312 = arith.constant 1 : index
    %c2_313 = arith.constant 2 : index
    %c0_314 = arith.constant 0 : index
    %c0_315 = arith.constant 0 : index
    %466 = vector.load %arg11[%c1_312, %c2_313, %c0_314, %c0_315] : memref<2x4x1x8xf32, #tpu.memory_space<vmem>>, vector<1x1x1x8xf32>
    %467 = vector.shape_cast %466 : vector<1x1x1x8xf32> to vector<1x8xf32>
    %468 = vector.broadcast %467 : vector<1x8xf32> to vector<17x8xf32>
    %469 = arith.addf %465, %468 : vector<17x8xf32>
    %cst_316 = arith.constant 0.353553385 : f32
    %470 = vector.broadcast %cst_316 : f32 to vector<17x8xf32>
    %471 = arith.mulf %469, %470 : vector<17x8xf32>
    %c1_317 = arith.constant 1 : index
    %c2_318 = arith.constant 2 : index
    %c0_319 = arith.constant 0 : index
    %c0_320 = arith.constant 0 : index
    %472 = vector.load %arg12[%c1_317, %c2_318, %c0_319, %c0_320] : memref<2x4x32x8xf32, #tpu.memory_space<vmem>>, vector<1x1x32x8xf32>
    %473 = vector.shape_cast %472 : vector<1x1x32x8xf32> to vector<32x8xf32>
    %474 = arith.truncf %359 : vector<17x32xf32> to vector<17x32xbf16>
    %475 = arith.truncf %473 : vector<32x8xf32> to vector<32x8xbf16>
    %cst_321 = arith.constant dense<0.000000e+00> : vector<17x8xf32>
    %476 = tpu.matmul %474, %475, %cst_321 {dimension_numbers = #tpu.dot_dimension_numbers<[1], [0], [0], [1], [0, 0, 1, 1], [], []>} : vector<17x32xbf16>, vector<32x8xbf16>, vector<17x8xf32> -> vector<17x8xf32>
    %c1_322 = arith.constant 1 : index
    %c2_323 = arith.constant 2 : index
    %c0_324 = arith.constant 0 : index
    %c0_325 = arith.constant 0 : index
    %477 = vector.load %arg13[%c1_322, %c2_323, %c0_324, %c0_325] : memref<2x4x1x8xf32, #tpu.memory_space<vmem>>, vector<1x1x1x8xf32>
    %478 = vector.shape_cast %477 : vector<1x1x1x8xf32> to vector<1x8xf32>
    %479 = vector.broadcast %478 : vector<1x8xf32> to vector<17x8xf32>
    %480 = arith.addf %476, %479 : vector<17x8xf32>
    %c1_326 = arith.constant 1 : index
    %c2_327 = arith.constant 2 : index
    %c0_328 = arith.constant 0 : index
    %c0_329 = arith.constant 0 : index
    %481 = vector.load %arg14[%c1_326, %c2_327, %c0_328, %c0_329] : memref<2x4x32x8xf32, #tpu.memory_space<vmem>>, vector<1x1x32x8xf32>
    %482 = vector.shape_cast %481 : vector<1x1x32x8xf32> to vector<32x8xf32>
    %483 = arith.truncf %359 : vector<17x32xf32> to vector<17x32xbf16>
    %484 = arith.truncf %482 : vector<32x8xf32> to vector<32x8xbf16>
    %cst_330 = arith.constant dense<0.000000e+00> : vector<17x8xf32>
    %485 = tpu.matmul %483, %484, %cst_330 {dimension_numbers = #tpu.dot_dimension_numbers<[1], [0], [0], [1], [0, 0, 1, 1], [], []>} : vector<17x32xbf16>, vector<32x8xbf16>, vector<17x8xf32> -> vector<17x8xf32>
    %c1_331 = arith.constant 1 : index
    %c2_332 = arith.constant 2 : index
    %c0_333 = arith.constant 0 : index
    %c0_334 = arith.constant 0 : index
    %486 = vector.load %arg15[%c1_331, %c2_332, %c0_333, %c0_334] : memref<2x4x1x8xf32, #tpu.memory_space<vmem>>, vector<1x1x1x8xf32>
    %487 = vector.shape_cast %486 : vector<1x1x1x8xf32> to vector<1x8xf32>
    %488 = vector.broadcast %487 : vector<1x8xf32> to vector<17x8xf32>
    %489 = arith.addf %485, %488 : vector<17x8xf32>
    %490 = arith.truncf %471 : vector<17x8xf32> to vector<17x8xbf16>
    %491 = arith.truncf %480 : vector<17x8xf32> to vector<17x8xbf16>
    %cst_335 = arith.constant dense<0.000000e+00> : vector<17x17xf32>
    %492 = tpu.matmul %490, %491, %cst_335 {dimension_numbers = #tpu.dot_dimension_numbers<[1], [1], [0], [0], [0, 0, 1, 0], [], []>} : vector<17x8xbf16>, vector<17x8xbf16>, vector<17x17xf32> -> vector<17x17xf32>
    %cst_336 = arith.constant dense<0xFF800000> : vector<17xf32>
    %493 = vector.multi_reduction <maximumf>, %492, %cst_336 [1] : vector<17x17xf32> to vector<17xf32>
    %494 = vector.shape_cast %493 : vector<17xf32> to vector<17x1xf32>
    %495 = vector.broadcast %494 : vector<17x1xf32> to vector<17x17xf32>
    %496 = arith.subf %492, %495 : vector<17x17xf32>
    %497 = math.exp %496 : vector<17x17xf32>
    %cst_337 = arith.constant dense<0.000000e+00> : vector<17xf32>
    %498 = vector.multi_reduction <add>, %497, %cst_337 [1] : vector<17x17xf32> to vector<17xf32>
    %499 = vector.shape_cast %498 : vector<17xf32> to vector<17x1xf32>
    %500 = tpu.reciprocal %499 {approx = true} : vector<17x1xf32> -> vector<17x1xf32>
    %501 = vector.broadcast %500 : vector<17x1xf32> to vector<17x17xf32>
    %502 = arith.mulf %497, %501 : vector<17x17xf32>
    %503 = arith.truncf %502 : vector<17x17xf32> to vector<17x17xbf16>
    %504 = arith.truncf %489 : vector<17x8xf32> to vector<17x8xbf16>
    %cst_338 = arith.constant dense<0.000000e+00> : vector<17x8xf32>
    %505 = tpu.matmul %503, %504, %cst_338 {dimension_numbers = #tpu.dot_dimension_numbers<[1], [0], [0], [1], [0, 0, 1, 1], [], []>} : vector<17x17xbf16>, vector<17x8xbf16>, vector<17x8xf32> -> vector<17x8xf32>
    %c1_339 = arith.constant 1 : index
    %c2_340 = arith.constant 2 : index
    %c0_341 = arith.constant 0 : index
    %c0_342 = arith.constant 0 : index
    %506 = vector.load %arg16[%c1_339, %c2_340, %c0_341, %c0_342] : memref<2x4x8x32xf32, #tpu.memory_space<vmem>>, vector<1x1x8x32xf32>
    %507 = vector.shape_cast %506 : vector<1x1x8x32xf32> to vector<8x32xf32>
    %508 = arith.truncf %505 : vector<17x8xf32> to vector<17x8xbf16>
    %509 = arith.truncf %507 : vector<8x32xf32> to vector<8x32xbf16>
    %cst_343 = arith.constant dense<0.000000e+00> : vector<17x32xf32>
    %510 = tpu.matmul %508, %509, %cst_343 {dimension_numbers = #tpu.dot_dimension_numbers<[1], [0], [0], [1], [0, 0, 1, 1], [], []>} : vector<17x8xbf16>, vector<8x32xbf16>, vector<17x32xf32> -> vector<17x32xf32>
    %511 = arith.addf %460, %510 : vector<17x32xf32>
    %c1_344 = arith.constant 1 : index
    %c3_345 = arith.constant 3 : index
    %c0_346 = arith.constant 0 : index
    %c0_347 = arith.constant 0 : index
    %512 = vector.load %arg10[%c1_344, %c3_345, %c0_346, %c0_347] : memref<2x4x32x8xf32, #tpu.memory_space<vmem>>, vector<1x1x32x8xf32>
    %513 = vector.shape_cast %512 : vector<1x1x32x8xf32> to vector<32x8xf32>
    %514 = arith.truncf %359 : vector<17x32xf32> to vector<17x32xbf16>
    %515 = arith.truncf %513 : vector<32x8xf32> to vector<32x8xbf16>
    %cst_348 = arith.constant dense<0.000000e+00> : vector<17x8xf32>
    %516 = tpu.matmul %514, %515, %cst_348 {dimension_numbers = #tpu.dot_dimension_numbers<[1], [0], [0], [1], [0, 0, 1, 1], [], []>} : vector<17x32xbf16>, vector<32x8xbf16>, vector<17x8xf32> -> vector<17x8xf32>
    %c1_349 = arith.constant 1 : index
    %c3_350 = arith.constant 3 : index
    %c0_351 = arith.constant 0 : index
    %c0_352 = arith.constant 0 : index
    %517 = vector.load %arg11[%c1_349, %c3_350, %c0_351, %c0_352] : memref<2x4x1x8xf32, #tpu.memory_space<vmem>>, vector<1x1x1x8xf32>
    %518 = vector.shape_cast %517 : vector<1x1x1x8xf32> to vector<1x8xf32>
    %519 = vector.broadcast %518 : vector<1x8xf32> to vector<17x8xf32>
    %520 = arith.addf %516, %519 : vector<17x8xf32>
    %cst_353 = arith.constant 0.353553385 : f32
    %521 = vector.broadcast %cst_353 : f32 to vector<17x8xf32>
    %522 = arith.mulf %520, %521 : vector<17x8xf32>
    %c1_354 = arith.constant 1 : index
    %c3_355 = arith.constant 3 : index
    %c0_356 = arith.constant 0 : index
    %c0_357 = arith.constant 0 : index
    %523 = vector.load %arg12[%c1_354, %c3_355, %c0_356, %c0_357] : memref<2x4x32x8xf32, #tpu.memory_space<vmem>>, vector<1x1x32x8xf32>
    %524 = vector.shape_cast %523 : vector<1x1x32x8xf32> to vector<32x8xf32>
    %525 = arith.truncf %359 : vector<17x32xf32> to vector<17x32xbf16>
    %526 = arith.truncf %524 : vector<32x8xf32> to vector<32x8xbf16>
    %cst_358 = arith.constant dense<0.000000e+00> : vector<17x8xf32>
    %527 = tpu.matmul %525, %526, %cst_358 {dimension_numbers = #tpu.dot_dimension_numbers<[1], [0], [0], [1], [0, 0, 1, 1], [], []>} : vector<17x32xbf16>, vector<32x8xbf16>, vector<17x8xf32> -> vector<17x8xf32>
    %c1_359 = arith.constant 1 : index
    %c3_360 = arith.constant 3 : index
    %c0_361 = arith.constant 0 : index
    %c0_362 = arith.constant 0 : index
    %528 = vector.load %arg13[%c1_359, %c3_360, %c0_361, %c0_362] : memref<2x4x1x8xf32, #tpu.memory_space<vmem>>, vector<1x1x1x8xf32>
    %529 = vector.shape_cast %528 : vector<1x1x1x8xf32> to vector<1x8xf32>
    %530 = vector.broadcast %529 : vector<1x8xf32> to vector<17x8xf32>
    %531 = arith.addf %527, %530 : vector<17x8xf32>
    %c1_363 = arith.constant 1 : index
    %c3_364 = arith.constant 3 : index
    %c0_365 = arith.constant 0 : index
    %c0_366 = arith.constant 0 : index
    %532 = vector.load %arg14[%c1_363, %c3_364, %c0_365, %c0_366] : memref<2x4x32x8xf32, #tpu.memory_space<vmem>>, vector<1x1x32x8xf32>
    %533 = vector.shape_cast %532 : vector<1x1x32x8xf32> to vector<32x8xf32>
    %534 = arith.truncf %359 : vector<17x32xf32> to vector<17x32xbf16>
    %535 = arith.truncf %533 : vector<32x8xf32> to vector<32x8xbf16>
    %cst_367 = arith.constant dense<0.000000e+00> : vector<17x8xf32>
    %536 = tpu.matmul %534, %535, %cst_367 {dimension_numbers = #tpu.dot_dimension_numbers<[1], [0], [0], [1], [0, 0, 1, 1], [], []>} : vector<17x32xbf16>, vector<32x8xbf16>, vector<17x8xf32> -> vector<17x8xf32>
    %c1_368 = arith.constant 1 : index
    %c3_369 = arith.constant 3 : index
    %c0_370 = arith.constant 0 : index
    %c0_371 = arith.constant 0 : index
    %537 = vector.load %arg15[%c1_368, %c3_369, %c0_370, %c0_371] : memref<2x4x1x8xf32, #tpu.memory_space<vmem>>, vector<1x1x1x8xf32>
    %538 = vector.shape_cast %537 : vector<1x1x1x8xf32> to vector<1x8xf32>
    %539 = vector.broadcast %538 : vector<1x8xf32> to vector<17x8xf32>
    %540 = arith.addf %536, %539 : vector<17x8xf32>
    %541 = arith.truncf %522 : vector<17x8xf32> to vector<17x8xbf16>
    %542 = arith.truncf %531 : vector<17x8xf32> to vector<17x8xbf16>
    %cst_372 = arith.constant dense<0.000000e+00> : vector<17x17xf32>
    %543 = tpu.matmul %541, %542, %cst_372 {dimension_numbers = #tpu.dot_dimension_numbers<[1], [1], [0], [0], [0, 0, 1, 0], [], []>} : vector<17x8xbf16>, vector<17x8xbf16>, vector<17x17xf32> -> vector<17x17xf32>
    %cst_373 = arith.constant dense<0xFF800000> : vector<17xf32>
    %544 = vector.multi_reduction <maximumf>, %543, %cst_373 [1] : vector<17x17xf32> to vector<17xf32>
    %545 = vector.shape_cast %544 : vector<17xf32> to vector<17x1xf32>
    %546 = vector.broadcast %545 : vector<17x1xf32> to vector<17x17xf32>
    %547 = arith.subf %543, %546 : vector<17x17xf32>
    %548 = math.exp %547 : vector<17x17xf32>
    %cst_374 = arith.constant dense<0.000000e+00> : vector<17xf32>
    %549 = vector.multi_reduction <add>, %548, %cst_374 [1] : vector<17x17xf32> to vector<17xf32>
    %550 = vector.shape_cast %549 : vector<17xf32> to vector<17x1xf32>
    %551 = tpu.reciprocal %550 {approx = true} : vector<17x1xf32> -> vector<17x1xf32>
    %552 = vector.broadcast %551 : vector<17x1xf32> to vector<17x17xf32>
    %553 = arith.mulf %548, %552 : vector<17x17xf32>
    %554 = arith.truncf %553 : vector<17x17xf32> to vector<17x17xbf16>
    %555 = arith.truncf %540 : vector<17x8xf32> to vector<17x8xbf16>
    %cst_375 = arith.constant dense<0.000000e+00> : vector<17x8xf32>
    %556 = tpu.matmul %554, %555, %cst_375 {dimension_numbers = #tpu.dot_dimension_numbers<[1], [0], [0], [1], [0, 0, 1, 1], [], []>} : vector<17x17xbf16>, vector<17x8xbf16>, vector<17x8xf32> -> vector<17x8xf32>
    %c1_376 = arith.constant 1 : index
    %c3_377 = arith.constant 3 : index
    %c0_378 = arith.constant 0 : index
    %c0_379 = arith.constant 0 : index
    %557 = vector.load %arg16[%c1_376, %c3_377, %c0_378, %c0_379] : memref<2x4x8x32xf32, #tpu.memory_space<vmem>>, vector<1x1x8x32xf32>
    %558 = vector.shape_cast %557 : vector<1x1x8x32xf32> to vector<8x32xf32>
    %559 = arith.truncf %556 : vector<17x8xf32> to vector<17x8xbf16>
    %560 = arith.truncf %558 : vector<8x32xf32> to vector<8x32xbf16>
    %cst_380 = arith.constant dense<0.000000e+00> : vector<17x32xf32>
    %561 = tpu.matmul %559, %560, %cst_380 {dimension_numbers = #tpu.dot_dimension_numbers<[1], [0], [0], [1], [0, 0, 1, 1], [], []>} : vector<17x8xbf16>, vector<8x32xbf16>, vector<17x32xf32> -> vector<17x32xf32>
    %562 = arith.addf %511, %561 : vector<17x32xf32>
    %563 = arith.addf %335, %562 : vector<17x32xf32>
    %c1_381 = arith.constant 1 : index
    %c0_382 = arith.constant 0 : index
    %c0_383 = arith.constant 0 : index
    %564 = vector.load %arg17[%c1_381, %c0_382, %c0_383] : memref<2x1x32xf32, #tpu.memory_space<vmem>>, vector<1x1x32xf32>
    %565 = vector.shape_cast %564 : vector<1x1x32xf32> to vector<1x32xf32>
    %566 = vector.broadcast %565 : vector<1x32xf32> to vector<17x32xf32>
    %567 = arith.addf %563, %566 : vector<17x32xf32>
    %c1_384 = arith.constant 1 : index
    %c0_385 = arith.constant 0 : index
    %c0_386 = arith.constant 0 : index
    %568 = vector.load %arg18[%c1_384, %c0_385, %c0_386] : memref<2x1x32xf32, #tpu.memory_space<vmem>>, vector<1x1x32xf32>
    %569 = vector.shape_cast %568 : vector<1x1x32xf32> to vector<1x32xf32>
    %c1_387 = arith.constant 1 : index
    %c0_388 = arith.constant 0 : index
    %c0_389 = arith.constant 0 : index
    %570 = vector.load %arg19[%c1_387, %c0_388, %c0_389] : memref<2x1x32xf32, #tpu.memory_space<vmem>>, vector<1x1x32xf32>
    %571 = vector.shape_cast %570 : vector<1x1x32xf32> to vector<1x32xf32>
    %cst_390 = arith.constant dense<0.000000e+00> : vector<17xf32>
    %572 = vector.multi_reduction <add>, %567, %cst_390 [1] : vector<17x32xf32> to vector<17xf32>
    %573 = vector.shape_cast %572 : vector<17xf32> to vector<17x1xf32>
    %cst_391 = arith.constant 3.200000e+01 : f32
    %574 = vector.broadcast %cst_391 : f32 to vector<17x1xf32>
    %575 = arith.divf %573, %574 : vector<17x1xf32>
    %576 = vector.broadcast %575 : vector<17x1xf32> to vector<17x32xf32>
    %577 = arith.subf %567, %576 : vector<17x32xf32>
    %578 = arith.mulf %577, %577 : vector<17x32xf32>
    %cst_392 = arith.constant dense<0.000000e+00> : vector<17xf32>
    %579 = vector.multi_reduction <add>, %578, %cst_392 [1] : vector<17x32xf32> to vector<17xf32>
    %580 = vector.shape_cast %579 : vector<17xf32> to vector<17x1xf32>
    %cst_393 = arith.constant 3.200000e+01 : f32
    %581 = vector.broadcast %cst_393 : f32 to vector<17x1xf32>
    %582 = arith.divf %580, %581 : vector<17x1xf32>
    %cst_394 = arith.constant 9.99999974E-6 : f32
    %583 = vector.broadcast %cst_394 : f32 to vector<17x1xf32>
    %584 = arith.addf %582, %583 : vector<17x1xf32>
    %585 = math.rsqrt %584 : vector<17x1xf32>
    %586 = vector.broadcast %585 : vector<17x1xf32> to vector<17x32xf32>
    %587 = arith.mulf %577, %586 : vector<17x32xf32>
    %588 = vector.broadcast %569 : vector<1x32xf32> to vector<17x32xf32>
    %589 = arith.mulf %587, %588 : vector<17x32xf32>
    %590 = vector.broadcast %571 : vector<1x32xf32> to vector<17x32xf32>
    %591 = arith.addf %589, %590 : vector<17x32xf32>
    %c1_395 = arith.constant 1 : index
    %c0_396 = arith.constant 0 : index
    %c0_397 = arith.constant 0 : index
    %592 = vector.load %arg20[%c1_395, %c0_396, %c0_397] : memref<2x32x128xf32, #tpu.memory_space<vmem>>, vector<1x32x128xf32>
    %593 = vector.shape_cast %592 : vector<1x32x128xf32> to vector<32x128xf32>
    %594 = arith.truncf %591 : vector<17x32xf32> to vector<17x32xbf16>
    %595 = arith.truncf %593 : vector<32x128xf32> to vector<32x128xbf16>
    %cst_398 = arith.constant dense<0.000000e+00> : vector<17x128xf32>
    %596 = tpu.matmul %594, %595, %cst_398 {dimension_numbers = #tpu.dot_dimension_numbers<[1], [0], [0], [1], [0, 0, 1, 1], [], []>} : vector<17x32xbf16>, vector<32x128xbf16>, vector<17x128xf32> -> vector<17x128xf32>
    %c1_399 = arith.constant 1 : index
    %c0_400 = arith.constant 0 : index
    %c0_401 = arith.constant 0 : index
    %597 = vector.load %arg21[%c1_399, %c0_400, %c0_401] : memref<2x1x128xf32, #tpu.memory_space<vmem>>, vector<1x1x128xf32>
    %598 = vector.shape_cast %597 : vector<1x1x128xf32> to vector<1x128xf32>
    %599 = vector.broadcast %598 : vector<1x128xf32> to vector<17x128xf32>
    %600 = arith.addf %596, %599 : vector<17x128xf32>
    %cst_402 = arith.constant 5.000000e-01 : f32
    %601 = vector.broadcast %cst_402 : f32 to vector<17x128xf32>
    %602 = arith.mulf %601, %600 : vector<17x128xf32>
    %cst_403 = arith.constant 0.707106769 : f32
    %603 = vector.broadcast %cst_403 : f32 to vector<17x128xf32>
    %604 = arith.mulf %600, %603 : vector<17x128xf32>
    %605 = math.absf %604 : vector<17x128xf32>
    %cst_404 = arith.constant 0.327591091 : f32
    %606 = vector.broadcast %cst_404 : f32 to vector<17x128xf32>
    %607 = arith.mulf %606, %605 : vector<17x128xf32>
    %cst_405 = arith.constant 1.000000e+00 : f32
    %608 = vector.broadcast %cst_405 : f32 to vector<17x128xf32>
    %609 = arith.addf %608, %607 : vector<17x128xf32>
    %cst_406 = arith.constant 1.000000e+00 : f32
    %610 = vector.broadcast %cst_406 : f32 to vector<17x128xf32>
    %611 = arith.divf %610, %609 : vector<17x128xf32>
    %cst_407 = arith.constant 1.06140542 : f32
    %612 = vector.broadcast %cst_407 : f32 to vector<17x128xf32>
    %613 = arith.mulf %612, %611 : vector<17x128xf32>
    %cst_408 = arith.constant -1.45315206 : f32
    %614 = vector.broadcast %cst_408 : f32 to vector<17x128xf32>
    %615 = arith.addf %613, %614 : vector<17x128xf32>
    %616 = arith.mulf %615, %611 : vector<17x128xf32>
    %cst_409 = arith.constant 1.42141378 : f32
    %617 = vector.broadcast %cst_409 : f32 to vector<17x128xf32>
    %618 = arith.addf %616, %617 : vector<17x128xf32>
    %619 = arith.mulf %618, %611 : vector<17x128xf32>
    %cst_410 = arith.constant -0.284496725 : f32
    %620 = vector.broadcast %cst_410 : f32 to vector<17x128xf32>
    %621 = arith.addf %619, %620 : vector<17x128xf32>
    %622 = arith.mulf %621, %611 : vector<17x128xf32>
    %cst_411 = arith.constant 0.254829586 : f32
    %623 = vector.broadcast %cst_411 : f32 to vector<17x128xf32>
    %624 = arith.addf %622, %623 : vector<17x128xf32>
    %625 = arith.mulf %624, %611 : vector<17x128xf32>
    %cst_412 = arith.constant 0.000000e+00 : f32
    %626 = vector.broadcast %cst_412 : f32 to vector<17x128xf32>
    %627 = arith.subf %626, %605 : vector<17x128xf32>
    %628 = arith.mulf %627, %605 : vector<17x128xf32>
    %629 = math.exp %628 : vector<17x128xf32>
    %630 = arith.mulf %625, %629 : vector<17x128xf32>
    %cst_413 = arith.constant 1.000000e+00 : f32
    %631 = vector.broadcast %cst_413 : f32 to vector<17x128xf32>
    %632 = arith.subf %631, %630 : vector<17x128xf32>
    %cst_414 = arith.constant 0.000000e+00 : f32
    %633 = vector.broadcast %cst_414 : f32 to vector<17x128xf32>
    %634 = arith.cmpf oge, %604, %633 : vector<17x128xf32>
    %cst_415 = arith.constant 0.000000e+00 : f32
    %635 = vector.broadcast %cst_415 : f32 to vector<17x128xf32>
    %636 = arith.subf %635, %632 : vector<17x128xf32>
    %637 = arith.select %634, %632, %636 : vector<17x128xi1>, vector<17x128xf32>
    %cst_416 = arith.constant 1.000000e+00 : f32
    %638 = vector.broadcast %cst_416 : f32 to vector<17x128xf32>
    %639 = arith.addf %638, %637 : vector<17x128xf32>
    %640 = arith.mulf %602, %639 : vector<17x128xf32>
    %c1_417 = arith.constant 1 : index
    %c0_418 = arith.constant 0 : index
    %c0_419 = arith.constant 0 : index
    %641 = vector.load %arg22[%c1_417, %c0_418, %c0_419] : memref<2x128x32xf32, #tpu.memory_space<vmem>>, vector<1x128x32xf32>
    %642 = vector.shape_cast %641 : vector<1x128x32xf32> to vector<128x32xf32>
    %643 = arith.truncf %640 : vector<17x128xf32> to vector<17x128xbf16>
    %644 = arith.truncf %642 : vector<128x32xf32> to vector<128x32xbf16>
    %cst_420 = arith.constant dense<0.000000e+00> : vector<17x32xf32>
    %645 = tpu.matmul %643, %644, %cst_420 {dimension_numbers = #tpu.dot_dimension_numbers<[1], [0], [0], [1], [0, 0, 1, 1], [], []>} : vector<17x128xbf16>, vector<128x32xbf16>, vector<17x32xf32> -> vector<17x32xf32>
    %646 = arith.addf %567, %645 : vector<17x32xf32>
    %c1_421 = arith.constant 1 : index
    %c0_422 = arith.constant 0 : index
    %c0_423 = arith.constant 0 : index
    %647 = vector.load %arg23[%c1_421, %c0_422, %c0_423] : memref<2x1x32xf32, #tpu.memory_space<vmem>>, vector<1x1x32xf32>
    %648 = vector.shape_cast %647 : vector<1x1x32xf32> to vector<1x32xf32>
    %649 = vector.broadcast %648 : vector<1x32xf32> to vector<17x32xf32>
    %650 = arith.addf %646, %649 : vector<17x32xf32>
    %c0_424 = arith.constant 0 : index
    %c0_425 = arith.constant 0 : index
    %651 = vector.load %arg29[%c0_424, %c0_425] : memref<17x32xf32, #tpu.memory_space<vmem>>, vector<17x32xf32>
    tpu.vector_store %arg29[%c0_424, %c0_425], %650 {strides = array<i32>} : memref<17x32xf32, #tpu.memory_space<vmem>>, vector<17x32xf32>,
    %c9_426 = arith.constant 9 : index
    %c0_427 = arith.constant 0 : index
    %652 = vector.load %arg29[%c9_426, %c0_427] : memref<17x32xf32, #tpu.memory_space<vmem>>, vector<8x32xf32>
    %c0_428 = arith.constant 0 : index
    %c0_429 = arith.constant 0 : index
    %653 = vector.load %arg24[%c0_428, %c0_429] : memref<1x32xf32, #tpu.memory_space<vmem>>, vector<1x32xf32>
    %c0_430 = arith.constant 0 : index
    %c0_431 = arith.constant 0 : index
    %654 = vector.load %arg25[%c0_430, %c0_431] : memref<1x32xf32, #tpu.memory_space<vmem>>, vector<1x32xf32>
    %cst_432 = arith.constant dense<0.000000e+00> : vector<8xf32>
    %655 = vector.multi_reduction <add>, %652, %cst_432 [1] : vector<8x32xf32> to vector<8xf32>
    %656 = vector.shape_cast %655 : vector<8xf32> to vector<8x1xf32>
    %cst_433 = arith.constant 3.200000e+01 : f32
    %657 = vector.broadcast %cst_433 : f32 to vector<8x1xf32>
    %658 = arith.divf %656, %657 : vector<8x1xf32>
    %659 = vector.broadcast %658 : vector<8x1xf32> to vector<8x32xf32>
    %660 = arith.subf %652, %659 : vector<8x32xf32>
    %661 = arith.mulf %660, %660 : vector<8x32xf32>
    %cst_434 = arith.constant dense<0.000000e+00> : vector<8xf32>
    %662 = vector.multi_reduction <add>, %661, %cst_434 [1] : vector<8x32xf32> to vector<8xf32>
    %663 = vector.shape_cast %662 : vector<8xf32> to vector<8x1xf32>
    %cst_435 = arith.constant 3.200000e+01 : f32
    %664 = vector.broadcast %cst_435 : f32 to vector<8x1xf32>
    %665 = arith.divf %663, %664 : vector<8x1xf32>
    %cst_436 = arith.constant 9.99999974E-6 : f32
    %666 = vector.broadcast %cst_436 : f32 to vector<8x1xf32>
    %667 = arith.addf %665, %666 : vector<8x1xf32>
    %668 = math.rsqrt %667 : vector<8x1xf32>
    %669 = vector.broadcast %668 : vector<8x1xf32> to vector<8x32xf32>
    %670 = arith.mulf %660, %669 : vector<8x32xf32>
    %671 = vector.broadcast %653 : vector<1x32xf32> to vector<8x32xf32>
    %672 = arith.mulf %670, %671 : vector<8x32xf32>
    %673 = vector.broadcast %654 : vector<1x32xf32> to vector<8x32xf32>
    %674 = arith.addf %672, %673 : vector<8x32xf32>
    %c0_437 = arith.constant 0 : index
    %c0_438 = arith.constant 0 : index
    %675 = vector.load %arg26[%c0_437, %c0_438] : memref<32x128xf32, #tpu.memory_space<vmem>>, vector<32x128xf32>
    %676 = arith.truncf %674 : vector<8x32xf32> to vector<8x32xbf16>
    %677 = arith.truncf %675 : vector<32x128xf32> to vector<32x128xbf16>
    %cst_439 = arith.constant dense<0.000000e+00> : vector<8x128xf32>
    %678 = tpu.matmul %676, %677, %cst_439 {dimension_numbers = #tpu.dot_dimension_numbers<[1], [0], [0], [1], [0, 0, 1, 1], [], []>} : vector<8x32xbf16>, vector<32x128xbf16>, vector<8x128xf32> -> vector<8x128xf32>
    %c0_440 = arith.constant 0 : index
    %c0_441 = arith.constant 0 : index
    %679 = vector.load %arg27[%c0_440, %c0_441] : memref<1x128xf32, #tpu.memory_space<vmem>>, vector<1x128xf32>
    %680 = vector.broadcast %679 : vector<1x128xf32> to vector<8x128xf32>
    %681 = arith.addf %678, %680 : vector<8x128xf32>
    %c0_442 = arith.constant 0 : index
    %c0_443 = arith.constant 0 : index
    %c0_444 = arith.constant 0 : index
    %682 = vector.load %arg28[%c0_442, %c0_443, %c0_444] : memref<1x8x128xf32, #tpu.memory_space<vmem>>, vector<1x8x128xf32>
    %683 = vector.shape_cast %682 : vector<1x8x128xf32> to vector<8x128xf32>
    %684 = vector.shape_cast %681 : vector<8x128xf32> to vector<1x8x128xf32>
    tpu.vector_store %arg28[%c0_442, %c0_443, %c0_444], %684 {strides = array<i32>} : memref<1x8x128xf32, #tpu.memory_space<vmem>>, vector<1x8x128xf32>,
    return
  }
  func.func @transform_0(%arg0: i32) -> (i32, i32, i32) {
    %c0_i32 = arith.constant 0 : i32
    %c0_i32_0 = arith.constant 0 : i32
    %c0_i32_1 = arith.constant 0 : i32
    return %arg0, %c0_i32, %c0_i32_0 : i32, i32, i32
  }
  func.func @transform_1(%arg0: i32) -> (i32, i32, i32) {
    %c0_i32 = arith.constant 0 : i32
    %c0_i32_0 = arith.constant 0 : i32
    %c0_i32_1 = arith.constant 0 : i32
    return %arg0, %c0_i32, %c0_i32_0 : i32, i32, i32
  }
  func.func @transform_2(%arg0: i32) -> (i32, i32) {
    %c0_i32 = arith.constant 0 : i32
    %c0_i32_0 = arith.constant 0 : i32
    %c0_i32_1 = arith.constant 0 : i32
    return %c0_i32, %c0_i32_0 : i32, i32
  }
  func.func @transform_3(%arg0: i32) -> (i32, i32) {
    %c0_i32 = arith.constant 0 : i32
    %c0_i32_0 = arith.constant 0 : i32
    %c0_i32_1 = arith.constant 0 : i32
    return %c0_i32, %c0_i32_0 : i32, i32
  }
  func.func @transform_4(%arg0: i32) -> (i32, i32) {
    %c0_i32 = arith.constant 0 : i32
    %c0_i32_0 = arith.constant 0 : i32
    %c0_i32_1 = arith.constant 0 : i32
    return %c0_i32, %c0_i32_0 : i32, i32
  }
  func.func @transform_5(%arg0: i32) -> (i32, i32) {
    %c0_i32 = arith.constant 0 : i32
    %c0_i32_0 = arith.constant 0 : i32
    %c0_i32_1 = arith.constant 0 : i32
    return %c0_i32, %c0_i32_0 : i32, i32
  }
  func.func @transform_6(%arg0: i32) -> (i32, i32) {
    %c0_i32 = arith.constant 0 : i32
    %c0_i32_0 = arith.constant 0 : i32
    %c0_i32_1 = arith.constant 0 : i32
    return %c0_i32, %c0_i32_0 : i32, i32
  }
  func.func @transform_7(%arg0: i32) -> (i32, i32, i32) {
    %c0_i32 = arith.constant 0 : i32
    %c0_i32_0 = arith.constant 0 : i32
    %c0_i32_1 = arith.constant 0 : i32
    %c0_i32_2 = arith.constant 0 : i32
    return %c0_i32, %c0_i32_0, %c0_i32_1 : i32, i32, i32
  }
  func.func @transform_8(%arg0: i32) -> (i32, i32, i32) {
    %c0_i32 = arith.constant 0 : i32
    %c0_i32_0 = arith.constant 0 : i32
    %c0_i32_1 = arith.constant 0 : i32
    %c0_i32_2 = arith.constant 0 : i32
    return %c0_i32, %c0_i32_0, %c0_i32_1 : i32, i32, i32
  }
  func.func @transform_9(%arg0: i32) -> (i32, i32, i32, i32) {
    %c0_i32 = arith.constant 0 : i32
    %c0_i32_0 = arith.constant 0 : i32
    %c0_i32_1 = arith.constant 0 : i32
    %c0_i32_2 = arith.constant 0 : i32
    %c0_i32_3 = arith.constant 0 : i32
    return %c0_i32, %c0_i32_0, %c0_i32_1, %c0_i32_2 : i32, i32, i32, i32
  }
  func.func @transform_10(%arg0: i32) -> (i32, i32, i32, i32) {
    %c0_i32 = arith.constant 0 : i32
    %c0_i32_0 = arith.constant 0 : i32
    %c0_i32_1 = arith.constant 0 : i32
    %c0_i32_2 = arith.constant 0 : i32
    %c0_i32_3 = arith.constant 0 : i32
    return %c0_i32, %c0_i32_0, %c0_i32_1, %c0_i32_2 : i32, i32, i32, i32
  }
  func.func @transform_11(%arg0: i32) -> (i32, i32, i32, i32) {
    %c0_i32 = arith.constant 0 : i32
    %c0_i32_0 = arith.constant 0 : i32
    %c0_i32_1 = arith.constant 0 : i32
    %c0_i32_2 = arith.constant 0 : i32
    %c0_i32_3 = arith.constant 0 : i32
    return %c0_i32, %c0_i32_0, %c0_i32_1, %c0_i32_2 : i32, i32, i32, i32
  }
  func.func @transform_12(%arg0: i32) -> (i32, i32, i32, i32) {
    %c0_i32 = arith.constant 0 : i32
    %c0_i32_0 = arith.constant 0 : i32
    %c0_i32_1 = arith.constant 0 : i32
    %c0_i32_2 = arith.constant 0 : i32
    %c0_i32_3 = arith.constant 0 : i32
    return %c0_i32, %c0_i32_0, %c0_i32_1, %c0_i32_2 : i32, i32, i32, i32
  }
  func.func @transform_13(%arg0: i32) -> (i32, i32, i32, i32) {
    %c0_i32 = arith.constant 0 : i32
    %c0_i32_0 = arith.constant 0 : i32
    %c0_i32_1 = arith.constant 0 : i32
    %c0_i32_2 = arith.constant 0 : i32
    %c0_i32_3 = arith.constant 0 : i32
    return %c0_i32, %c0_i32_0, %c0_i32_1, %c0_i32_2 : i32, i32, i32, i32
  }
  func.func @transform_14(%arg0: i32) -> (i32, i32, i32, i32) {
    %c0_i32 = arith.constant 0 : i32
    %c0_i32_0 = arith.constant 0 : i32
    %c0_i32_1 = arith.constant 0 : i32
    %c0_i32_2 = arith.constant 0 : i32
    %c0_i32_3 = arith.constant 0 : i32
    return %c0_i32, %c0_i32_0, %c0_i32_1, %c0_i32_2 : i32, i32, i32, i32
  }
  func.func @transform_15(%arg0: i32) -> (i32, i32, i32, i32) {
    %c0_i32 = arith.constant 0 : i32
    %c0_i32_0 = arith.constant 0 : i32
    %c0_i32_1 = arith.constant 0 : i32
    %c0_i32_2 = arith.constant 0 : i32
    %c0_i32_3 = arith.constant 0 : i32
    return %c0_i32, %c0_i32_0, %c0_i32_1, %c0_i32_2 : i32, i32, i32, i32
  }
  func.func @transform_16(%arg0: i32) -> (i32, i32, i32) {
    %c0_i32 = arith.constant 0 : i32
    %c0_i32_0 = arith.constant 0 : i32
    %c0_i32_1 = arith.constant 0 : i32
    %c0_i32_2 = arith.constant 0 : i32
    return %c0_i32, %c0_i32_0, %c0_i32_1 : i32, i32, i32
  }
  func.func @transform_17(%arg0: i32) -> (i32, i32, i32) {
    %c0_i32 = arith.constant 0 : i32
    %c0_i32_0 = arith.constant 0 : i32
    %c0_i32_1 = arith.constant 0 : i32
    %c0_i32_2 = arith.constant 0 : i32
    return %c0_i32, %c0_i32_0, %c0_i32_1 : i32, i32, i32
  }
  func.func @transform_18(%arg0: i32) -> (i32, i32, i32) {
    %c0_i32 = arith.constant 0 : i32
    %c0_i32_0 = arith.constant 0 : i32
    %c0_i32_1 = arith.constant 0 : i32
    %c0_i32_2 = arith.constant 0 : i32
    return %c0_i32, %c0_i32_0, %c0_i32_1 : i32, i32, i32
  }
  func.func @transform_19(%arg0: i32) -> (i32, i32, i32) {
    %c0_i32 = arith.constant 0 : i32
    %c0_i32_0 = arith.constant 0 : i32
    %c0_i32_1 = arith.constant 0 : i32
    %c0_i32_2 = arith.constant 0 : i32
    return %c0_i32, %c0_i32_0, %c0_i32_1 : i32, i32, i32
  }
  func.func @transform_20(%arg0: i32) -> (i32, i32, i32) {
    %c0_i32 = arith.constant 0 : i32
    %c0_i32_0 = arith.constant 0 : i32
    %c0_i32_1 = arith.constant 0 : i32
    %c0_i32_2 = arith.constant 0 : i32
    return %c0_i32, %c0_i32_0, %c0_i32_1 : i32, i32, i32
  }
  func.func @transform_21(%arg0: i32) -> (i32, i32, i32) {
    %c0_i32 = arith.constant 0 : i32
    %c0_i32_0 = arith.constant 0 : i32
    %c0_i32_1 = arith.constant 0 : i32
    %c0_i32_2 = arith.constant 0 : i32
    return %c0_i32, %c0_i32_0, %c0_i32_1 : i32, i32, i32
  }
  func.func @transform_22(%arg0: i32) -> (i32, i32, i32) {
    %c0_i32 = arith.constant 0 : i32
    %c0_i32_0 = arith.constant 0 : i32
    %c0_i32_1 = arith.constant 0 : i32
    %c0_i32_2 = arith.constant 0 : i32
    return %c0_i32, %c0_i32_0, %c0_i32_1 : i32, i32, i32
  }
  func.func @transform_23(%arg0: i32) -> (i32, i32) {
    %c0_i32 = arith.constant 0 : i32
    %c0_i32_0 = arith.constant 0 : i32
    %c0_i32_1 = arith.constant 0 : i32
    return %c0_i32, %c0_i32_0 : i32, i32
  }
  func.func @transform_24(%arg0: i32) -> (i32, i32) {
    %c0_i32 = arith.constant 0 : i32
    %c0_i32_0 = arith.constant 0 : i32
    %c0_i32_1 = arith.constant 0 : i32
    return %c0_i32, %c0_i32_0 : i32, i32
  }
  func.func @transform_25(%arg0: i32) -> (i32, i32) {
    %c0_i32 = arith.constant 0 : i32
    %c0_i32_0 = arith.constant 0 : i32
    %c0_i32_1 = arith.constant 0 : i32
    return %c0_i32, %c0_i32_0 : i32, i32
  }
  func.func @transform_26(%arg0: i32) -> (i32, i32) {
    %c0_i32 = arith.constant 0 : i32
    %c0_i32_0 = arith.constant 0 : i32
    %c0_i32_1 = arith.constant 0 : i32
    return %c0_i32, %c0_i32_0 : i32, i32
  }
  func.func @transform_27(%arg0: i32) -> (i32, i32, i32) {
    %c0_i32 = arith.constant 0 : i32
    %c0_i32_0 = arith.constant 0 : i32
    %c0_i32_1 = arith.constant 0 : i32
    return %arg0, %c0_i32, %c0_i32_0 : i32, i32, i32
  }
}

</mosaic_0001>

<llo_original>
// kernel: vit_forward.1
$region0: #{vit_forward.1}
  #allocation0 [shape = 'u32[]', space=smem, size = 0x4, offset = 0x4, fixed_abs, tag = 'smem constant byte address 0x4 - core index']
  #allocation1 [shape = 'u32[144,128]{1,0:T(1,128)}', space=vmem, size = 0x12000, scoped, tag = 'internal scratch']
  #allocation2 [shape = 'f32[17,32]{1,0:T(8,128)}', space=vmem, size = 0x3000, scoped, tag = 'scratch operand']
  %s0 = inlined_call_operand.vmem [shape: f32[2,8,128], index: 0, kind: input, shape index: {}]
  %s1 = inlined_call_operand.vmem [shape: f32[2,8,16], index: 1, kind: input, shape index: {}]
  %s2 = inlined_call_operand.vmem [shape: f32[128,32], index: 2, kind: input, shape index: {}]
  %s3 = inlined_call_operand.vmem [shape: f32[8,32], index: 3, kind: input, shape index: {}]
  %s4 = inlined_call_operand.vmem [shape: f32[16,32], index: 4, kind: input, shape index: {}]
  %s5 = inlined_call_operand.vmem [shape: f32[8,32], index: 5, kind: input, shape index: {}]
  %s6 = inlined_call_operand.vmem [shape: f32[1,32], index: 6, kind: input, shape index: {}]
  %s7 = inlined_call_operand.vmem [shape: f32[2,1,32], index: 7, kind: input, shape index: {}]
  %s8 = inlined_call_operand.vmem [shape: f32[2,1,32], index: 8, kind: input, shape index: {}]
  %s9 = inlined_call_operand.vmem [shape: f32[2,4,32,8], index: 9, kind: input, shape index: {}]
  %s10 = inlined_call_operand.vmem [shape: f32[2,4,1,8], index: 10, kind: input, shape index: {}]
  %s11 = inlined_call_operand.vmem [shape: f32[2,4,32,8], index: 11, kind: input, shape index: {}]
  %s12 = inlined_call_operand.vmem [shape: f32[2,4,1,8], index: 12, kind: input, shape index: {}]
  %s13 = inlined_call_operand.vmem [shape: f32[2,4,32,8], index: 13, kind: input, shape index: {}]
  %s14 = inlined_call_operand.vmem [shape: f32[2,4,1,8], index: 14, kind: input, shape index: {}]
  %s15 = inlined_call_operand.vmem [shape: f32[2,4,8,32], index: 15, kind: input, shape index: {}]
  %s16 = inlined_call_operand.vmem [shape: f32[2,1,32], index: 16, kind: input, shape index: {}]
  %s17 = inlined_call_operand.vmem [shape: f32[2,1,32], index: 17, kind: input, shape index: {}]
  %s18 = inlined_call_operand.vmem [shape: f32[2,1,32], index: 18, kind: input, shape index: {}]
  %s19 = inlined_call_operand.vmem [shape: f32[2,32,128], index: 19, kind: input, shape index: {}]
  %s20 = inlined_call_operand.vmem [shape: f32[2,1,128], index: 20, kind: input, shape index: {}]
  %s21 = inlined_call_operand.vmem [shape: f32[2,128,32], index: 21, kind: input, shape index: {}]
  %s22 = inlined_call_operand.vmem [shape: f32[2,1,32], index: 22, kind: input, shape index: {}]
  %s23 = inlined_call_operand.vmem [shape: f32[1,32], index: 23, kind: input, shape index: {}]
  %s24 = inlined_call_operand.vmem [shape: f32[1,32], index: 24, kind: input, shape index: {}]
  %s25 = inlined_call_operand.vmem [shape: f32[32,128], index: 25, kind: input, shape index: {}]
  %s26 = inlined_call_operand.vmem [shape: f32[1,128], index: 26, kind: input, shape index: {}]
  %s27 = inlined_call_operand.vmem [shape: f32[2,8,128], index: 27, kind: output, shape index: {}]
  %s28 = sld [smem:[#allocation0]]
  $region141: #{vit_forward.1} parent=0
    _
  %s30 = ssub.s32 1, %s28
  %s31 = scalar_select 0, %s30, %s28
  loop: start=0, step=1, limit=4
  $region2: #{vit_forward.1} parent=0 // loop_pre_header
    _
  $region3: #{vit_forward.1} parent=0 // loop_header
    %s33 = sphi 0, %s37
    %p34 = scmp.ge.s32.totalorder %s33, 4
    %s43 = sphi 0, %s45
    %s46 = sphi 0, %s43
    %s47 = sphi 0, %s46
    %s63 = sphi 0, %s47
    %s69 = sphi 0, %s71
    %s72 = sphi 0, %s69
    %s73 = sphi 0, %s72
    %s89 = sphi 0, %s73
    %s93 = sphi 0, %s93
    %s95 = sphi 0, %s93
    %s96 = sphi 0, %s95
    %s110 = sphi 0, %s96
    %s114 = sphi 0, %s114
    %s116 = sphi 0, %s114
    %s117 = sphi 0, %s116
    %s131 = sphi 0, %s117
    %s135 = sphi 0, %s135
    %s137 = sphi 0, %s135
    %s138 = sphi 0, %s137
    %s152 = sphi 0, %s138
    %s156 = sphi 0, %s156
    %s158 = sphi 0, %s156
    %s159 = sphi 0, %s158
    %s173 = sphi 0, %s159
    %s177 = sphi 0, %s177
    %s179 = sphi 0, %s177
    %s180 = sphi 0, %s179
    %s194 = sphi 0, %s180
    %s198 = sphi 0, %s198
    %s200 = sphi 0, %s198
    %s201 = sphi 0, %s200
    %s215 = sphi 0, %s201
    %s219 = sphi 0, %s219
    %s221 = sphi 0, %s219
    %s222 = sphi 0, %s221
    %s236 = sphi 0, %s222
    %s240 = sphi 0, %s240
    %s242 = sphi 0, %s240
    %s243 = sphi 0, %s242
    %s257 = sphi 0, %s243
    %s261 = sphi 0, %s261
    %s263 = sphi 0, %s261
    %s264 = sphi 0, %s263
    %s278 = sphi 0, %s264
    %s282 = sphi 0, %s282
    %s284 = sphi 0, %s282
    %s285 = sphi 0, %s284
    %s299 = sphi 0, %s285
    %s303 = sphi 0, %s303
    %s305 = sphi 0, %s303
    %s306 = sphi 0, %s305
    %s320 = sphi 0, %s306
    %s324 = sphi 0, %s324
    %s326 = sphi 0, %s324
    %s327 = sphi 0, %s326
    %s341 = sphi 0, %s327
    %s345 = sphi 0, %s345
    %s347 = sphi 0, %s345
    %s348 = sphi 0, %s347
    %s362 = sphi 0, %s348
    %s366 = sphi 0, %s366
    %s368 = sphi 0, %s366
    %s369 = sphi 0, %s368
    %s383 = sphi 0, %s369
    %s387 = sphi 0, %s387
    %s389 = sphi 0, %s387
    %s390 = sphi 0, %s389
    %s404 = sphi 0, %s390
    %s408 = sphi 0, %s408
    %s410 = sphi 0, %s408
    %s411 = sphi 0, %s410
    %s425 = sphi 0, %s411
    %s429 = sphi 0, %s429
    %s431 = sphi 0, %s429
    %s432 = sphi 0, %s431
    %s446 = sphi 0, %s432
    %s450 = sphi 0, %s450
    %s452 = sphi 0, %s450
    %s453 = sphi 0, %s452
    %s467 = sphi 0, %s453
    %s471 = sphi 0, %s471
    %s473 = sphi 0, %s471
    %s474 = sphi 0, %s473
    %s488 = sphi 0, %s474
    %s492 = sphi 0, %s492
    %s494 = sphi 0, %s492
    %s495 = sphi 0, %s494
    %s509 = sphi 0, %s495
    %s513 = sphi 0, %s513
    %s515 = sphi 0, %s513
    %s516 = sphi 0, %s515
    %s530 = sphi 0, %s516
    %s534 = sphi 0, %s534
    %s536 = sphi 0, %s534
    %s537 = sphi 0, %s536
    %s551 = sphi 0, %s537
    %s555 = sphi 0, %s555
    %s557 = sphi 0, %s555
    %s558 = sphi 0, %s557
    %s572 = sphi 0, %s558
    %s576 = sphi 0, %s576
    %s578 = sphi 0, %s576
    %s579 = sphi 0, %s578
    %s593 = sphi 0, %s579
    %s597 = sphi 0, %s597
    %s599 = sphi 0, %s597
    %s600 = sphi 0, %s599
    %s614 = sphi 0, %s600
    %s620 = sphi 0, %s622
    %s623 = sphi 0, %s620
    %s624 = sphi 0, %s623
    %s640 = sphi 0, %s624
  $region4: #{vit_forward.1} parent=0 // loop_header_branch
    %36 = sbr.rel (%p34) target = $region8
  $region5: #{vit_forward.1} parent=0 // loop_body
    %s38 = ssub.s32 %s33, 1
    %s39 = ssub.s32 %s33, 2
    %s40 = sadd.s32 %s33, 1
    %s41 = ssub.s32 %s33, %s40
    %p42 = scmp.eq.s32.totalorder %s41, 0
    %s44 = sadd.s32 %s43, 1
    %s45 = scalar_select %p42, %s43, %s44
    %p48 = pneg %p42
    %p49 = scmp.eq.s32.totalorder %s33, 1
    %p50 = por %p48, %p49
    %p51 = scmp.ne.s32.totalorder %s43, %s46
    %p52 = scmp.eq.s32.totalorder %s33, 0
    %p53 = por %p51, %p52
    %p54 = scmp.ne.s32.totalorder %s43, %s46
    %p55 = scmp.eq.s32.totalorder %s38, 1
    %p56 = por %p54, %p55
    %p57 = scmp.ne.s32.totalorder %s46, %s47
    %p58 = scmp.eq.s32.totalorder %s38, 0
    %p59 = por %p57, %p58
    %p60 = scmp.ne.s32.totalorder %s46, %s47
    %p61 = scmp.eq.s32.totalorder %s39, 1
    %p62 = por %p60, %p61
    %p64 = scmp.ne.s32.totalorder %s47, %s63
    %p65 = scmp.eq.s32.totalorder %s39, 0
    %p66 = por %p64, %p65
    %s67 = ssub.s32 %s33, %s40
    %p68 = scmp.eq.s32.totalorder %s67, 0
    %s70 = sadd.s32 %s69, 1
    %s71 = scalar_select %p68, %s69, %s70
    %p74 = pneg %p68
    %p75 = scmp.eq.s32.totalorder %s33, 1
    %p76 = por %p74, %p75
    %p77 = scmp.ne.s32.totalorder %s69, %s72
    %p78 = scmp.eq.s32.totalorder %s33, 0
    %p79 = por %p77, %p78
    %p80 = scmp.ne.s32.totalorder %s69, %s72
    %p81 = scmp.eq.s32.totalorder %s38, 1
    %p82 = por %p80, %p81
    %p83 = scmp.ne.s32.totalorder %s72, %s73
    %p84 = scmp.eq.s32.totalorder %s38, 0
    %p85 = por %p83, %p84
    %p86 = scmp.ne.s32.totalorder %s72, %s73
    %p87 = scmp.eq.s32.totalorder %s39, 1
    %p88 = por %p86, %p87
    %p90 = scmp.ne.s32.totalorder %s73, %s89
    %p91 = scmp.eq.s32.totalorder %s39, 0
    %p92 = por %p90, %p91
    %s94 = sadd.s32 %s93, 1
    %p97 = scmp.eq.s32.totalorder %s33, 1
    %p98 = scmp.ne.s32.totalorder %s93, %s95
    %p99 = scmp.eq.s32.totalorder %s33, 0
    %p100 = por %p98, %p99
    %p101 = scmp.ne.s32.totalorder %s93, %s95
    %p102 = scmp.eq.s32.totalorder %s38, 1
    %p103 = por %p101, %p102
    %p104 = scmp.ne.s32.totalorder %s95, %s96
    %p105 = scmp.eq.s32.totalorder %s38, 0
    %p106 = por %p104, %p105
    %p107 = scmp.ne.s32.totalorder %s95, %s96
    %p108 = scmp.eq.s32.totalorder %s39, 1
    %p109 = por %p107, %p108
    %p111 = scmp.ne.s32.totalorder %s96, %s110
    %p112 = scmp.eq.s32.totalorder %s39, 0
    %p113 = por %p111, %p112
    %s115 = sadd.s32 %s114, 1
    %p118 = scmp.eq.s32.totalorder %s33, 1
    %p119 = scmp.ne.s32.totalorder %s114, %s116
    %p120 = scmp.eq.s32.totalorder %s33, 0
    %p121 = por %p119, %p120
    %p122 = scmp.ne.s32.totalorder %s114, %s116
    %p123 = scmp.eq.s32.totalorder %s38, 1
    %p124 = por %p122, %p123
    %p125 = scmp.ne.s32.totalorder %s116, %s117
    %p126 = scmp.eq.s32.totalorder %s38, 0
    %p127 = por %p125, %p126
    %p128 = scmp.ne.s32.totalorder %s116, %s117
    %p129 = scmp.eq.s32.totalorder %s39, 1
    %p130 = por %p128, %p129
    %p132 = scmp.ne.s32.totalorder %s117, %s131
    %p133 = scmp.eq.s32.totalorder %s39, 0
    %p134 = por %p132, %p133
    %s136 = sadd.s32 %s135, 1
    %p139 = scmp.eq.s32.totalorder %s33, 1
    %p140 = scmp.ne.s32.totalorder %s135, %s137
    %p141 = scmp.eq.s32.totalorder %s33, 0
    %p142 = por %p140, %p141
    %p143 = scmp.ne.s32.totalorder %s135, %s137
    %p144 = scmp.eq.s32.totalorder %s38, 1
    %p145 = por %p143, %p144
    %p146 = scmp.ne.s32.totalorder %s137, %s138
    %p147 = scmp.eq.s32.totalorder %s38, 0
    %p148 = por %p146, %p147
    %p149 = scmp.ne.s32.totalorder %s137, %s138
    %p150 = scmp.eq.s32.totalorder %s39, 1
    %p151 = por %p149, %p150
    %p153 = scmp.ne.s32.totalorder %s138, %s152
    %p154 = scmp.eq.s32.totalorder %s39, 0
    %p155 = por %p153, %p154
    %s157 = sadd.s32 %s156, 1
    %p160 = scmp.eq.s32.totalorder %s33, 1
    %p161 = scmp.ne.s32.totalorder %s156, %s158
    %p162 = scmp.eq.s32.totalorder %s33, 0
    %p163 = por %p161, %p162
    %p164 = scmp.ne.s32.totalorder %s156, %s158
    %p165 = scmp.eq.s32.totalorder %s38, 1
    %p166 = por %p164, %p165
    %p167 = scmp.ne.s32.totalorder %s158, %s159
    %p168 = scmp.eq.s32.totalorder %s38, 0
    %p169 = por %p167, %p168
    %p170 = scmp.ne.s32.totalorder %s158, %s159
    %p171 = scmp.eq.s32.totalorder %s39, 1
    %p172 = por %p170, %p171
    %p174 = scmp.ne.s32.totalorder %s159, %s173
    %p175 = scmp.eq.s32.totalorder %s39, 0
    %p176 = por %p174, %p175
    %s178 = sadd.s32 %s177, 1
    %p181 = scmp.eq.s32.totalorder %s33, 1
    %p182 = scmp.ne.s32.totalorder %s177, %s179
    %p183 = scmp.eq.s32.totalorder %s33, 0
    %p184 = por %p182, %p183
    %p185 = scmp.ne.s32.totalorder %s177, %s179
    %p186 = scmp.eq.s32.totalorder %s38, 1
    %p187 = por %p185, %p186
    %p188 = scmp.ne.s32.totalorder %s179, %s180
    %p189 = scmp.eq.s32.totalorder %s38, 0
    %p190 = por %p188, %p189
    %p191 = scmp.ne.s32.totalorder %s179, %s180
    %p192 = scmp.eq.s32.totalorder %s39, 1
    %p193 = por %p191, %p192
    %p195 = scmp.ne.s32.totalorder %s180, %s194
    %p196 = scmp.eq.s32.totalorder %s39, 0
    %p197 = por %p195, %p196
    %s199 = sadd.s32 %s198, 1
    %p202 = scmp.eq.s32.totalorder %s33, 1
    %p203 = scmp.ne.s32.totalorder %s198, %s200
    %p204 = scmp.eq.s32.totalorder %s33, 0
    %p205 = por %p203, %p204
    %p206 = scmp.ne.s32.totalorder %s198, %s200
    %p207 = scmp.eq.s32.totalorder %s38, 1
    %p208 = por %p206, %p207
    %p209 = scmp.ne.s32.totalorder %s200, %s201
    %p210 = scmp.eq.s32.totalorder %s38, 0
    %p211 = por %p209, %p210
    %p212 = scmp.ne.s32.totalorder %s200, %s201
    %p213 = scmp.eq.s32.totalorder %s39, 1
    %p214 = por %p212, %p213
    %p216 = scmp.ne.s32.totalorder %s201, %s215
    %p217 = scmp.eq.s32.totalorder %s39, 0
    %p218 = por %p216, %p217
    %s220 = sadd.s32 %s219, 1
    %p223 = scmp.eq.s32.totalorder %s33, 1
    %p224 = scmp.ne.s32.totalorder %s219, %s221
    %p225 = scmp.eq.s32.totalorder %s33, 0
    %p226 = por %p224, %p225
    %p227 = scmp.ne.s32.totalorder %s219, %s221
    %p228 = scmp.eq.s32.totalorder %s38, 1
    %p229 = por %p227, %p228
    %p230 = scmp.ne.s32.totalorder %s221, %s222
    %p231 = scmp.eq.s32.totalorder %s38, 0
    %p232 = por %p230, %p231
    %p233 = scmp.ne.s32.totalorder %s221, %s222
    %p234 = scmp.eq.s32.totalorder %s39, 1
    %p235 = por %p233, %p234
    %p237 = scmp.ne.s32.totalorder %s222, %s236
    %p238 = scmp.eq.s32.totalorder %s39, 0
    %p239 = por %p237, %p238
    %s241 = sadd.s32 %s240, 1
    %p244 = scmp.eq.s32.totalorder %s33, 1
    %p245 = scmp.ne.s32.totalorder %s240, %s242
    %p246 = scmp.eq.s32.totalorder %s33, 0
    %p247 = por %p245, %p246
    %p248 = scmp.ne.s32.totalorder %s240, %s242
    %p249 = scmp.eq.s32.totalorder %s38, 1
    %p250 = por %p248, %p249
    %p251 = scmp.ne.s32.totalorder %s242, %s243
    %p252 = scmp.eq.s32.totalorder %s38, 0
    %p253 = por %p251, %p252
    %p254 = scmp.ne.s32.totalorder %s242, %s243
    %p255 = scmp.eq.s32.totalorder %s39, 1
    %p256 = por %p254, %p255
    %p258 = scmp.ne.s32.totalorder %s243, %s257
    %p259 = scmp.eq.s32.totalorder %s39, 0
    %p260 = por %p258, %p259
    %s262 = sadd.s32 %s261, 1
    %p265 = scmp.eq.s32.totalorder %s33, 1
    %p266 = scmp.ne.s32.totalorder %s261, %s263
    %p267 = scmp.eq.s32.totalorder %s33, 0
    %p268 = por %p266, %p267
    %p269 = scmp.ne.s32.totalorder %s261, %s263
    %p270 = scmp.eq.s32.totalorder %s38, 1
    %p271 = por %p269, %p270
    %p272 = scmp.ne.s32.totalorder %s263, %s264
    %p273 = scmp.eq.s32.totalorder %s38, 0
    %p274 = por %p272, %p273
    %p275 = scmp.ne.s32.totalorder %s263, %s264
    %p276 = scmp.eq.s32.totalorder %s39, 1
    %p277 = por %p275, %p276
    %p279 = scmp.ne.s32.totalorder %s264, %s278
    %p280 = scmp.eq.s32.totalorder %s39, 0
    %p281 = por %p279, %p280
    %s283 = sadd.s32 %s282, 1
    %p286 = scmp.eq.s32.totalorder %s33, 1
    %p287 = scmp.ne.s32.totalorder %s282, %s284
    %p288 = scmp.eq.s32.totalorder %s33, 0
    %p289 = por %p287, %p288
    %p290 = scmp.ne.s32.totalorder %s282, %s284
    %p291 = scmp.eq.s32.totalorder %s38, 1
    %p292 = por %p290, %p291
    %p293 = scmp.ne.s32.totalorder %s284, %s285
    %p294 = scmp.eq.s32.totalorder %s38, 0
    %p295 = por %p293, %p294
    %p296 = scmp.ne.s32.totalorder %s284, %s285
    %p297 = scmp.eq.s32.totalorder %s39, 1
    %p298 = por %p296, %p297
    %p300 = scmp.ne.s32.totalorder %s285, %s299
    %p301 = scmp.eq.s32.totalorder %s39, 0
    %p302 = por %p300, %p301
    %s304 = sadd.s32 %s303, 1
    %p307 = scmp.eq.s32.totalorder %s33, 1
    %p308 = scmp.ne.s32.totalorder %s303, %s305
    %p309 = scmp.eq.s32.totalorder %s33, 0
    %p310 = por %p308, %p309
    %p311 = scmp.ne.s32.totalorder %s303, %s305
    %p312 = scmp.eq.s32.totalorder %s38, 1
    %p313 = por %p311, %p312
    %p314 = scmp.ne.s32.totalorder %s305, %s306
    %p315 = scmp.eq.s32.totalorder %s38, 0
    %p316 = por %p314, %p315
    %p317 = scmp.ne.s32.totalorder %s305, %s306
    %p318 = scmp.eq.s32.totalorder %s39, 1
    %p319 = por %p317, %p318
    %p321 = scmp.ne.s32.totalorder %s306, %s320
    %p322 = scmp.eq.s32.totalorder %s39, 0
    %p323 = por %p321, %p322
    %s325 = sadd.s32 %s324, 1
    %p328 = scmp.eq.s32.totalorder %s33, 1
    %p329 = scmp.ne.s32.totalorder %s324, %s326
    %p330 = scmp.eq.s32.totalorder %s33, 0
    %p331 = por %p329, %p330
    %p332 = scmp.ne.s32.totalorder %s324, %s326
    %p333 = scmp.eq.s32.totalorder %s38, 1
    %p334 = por %p332, %p333
    %p335 = scmp.ne.s32.totalorder %s326, %s327
    %p336 = scmp.eq.s32.totalorder %s38, 0
    %p337 = por %p335, %p336
    %p338 = scmp.ne.s32.totalorder %s326, %s327
    %p339 = scmp.eq.s32.totalorder %s39, 1
    %p340 = por %p338, %p339
    %p342 = scmp.ne.s32.totalorder %s327, %s341
    %p343 = scmp.eq.s32.totalorder %s39, 0
    %p344 = por %p342, %p343
    %s346 = sadd.s32 %s345, 1
    %p349 = scmp.eq.s32.totalorder %s33, 1
    %p350 = scmp.ne.s32.totalorder %s345, %s347
    %p351 = scmp.eq.s32.totalorder %s33, 0
    %p352 = por %p350, %p351
    %p353 = scmp.ne.s32.totalorder %s345, %s347
    %p354 = scmp.eq.s32.totalorder %s38, 1
    %p355 = por %p353, %p354
    %p356 = scmp.ne.s32.totalorder %s347, %s348
    %p357 = scmp.eq.s32.totalorder %s38, 0
    %p358 = por %p356, %p357
    %p359 = scmp.ne.s32.totalorder %s347, %s348
    %p360 = scmp.eq.s32.totalorder %s39, 1
    %p361 = por %p359, %p360
    %p363 = scmp.ne.s32.totalorder %s348, %s362
    %p364 = scmp.eq.s32.totalorder %s39, 0
    %p365 = por %p363, %p364
    %s367 = sadd.s32 %s366, 1
    %p370 = scmp.eq.s32.totalorder %s33, 1
    %p371 = scmp.ne.s32.totalorder %s366, %s368
    %p372 = scmp.eq.s32.totalorder %s33, 0
    %p373 = por %p371, %p372
    %p374 = scmp.ne.s32.totalorder %s366, %s368
    %p375 = scmp.eq.s32.totalorder %s38, 1
    %p376 = por %p374, %p375
    %p377 = scmp.ne.s32.totalorder %s368, %s369
    %p378 = scmp.eq.s32.totalorder %s38, 0
    %p379 = por %p377, %p378
    %p380 = scmp.ne.s32.totalorder %s368, %s369
    %p381 = scmp.eq.s32.totalorder %s39, 1
    %p382 = por %p380, %p381
    %p384 = scmp.ne.s32.totalorder %s369, %s383
    %p385 = scmp.eq.s32.totalorder %s39, 0
    %p386 = por %p384, %p385
    %s388 = sadd.s32 %s387, 1
    %p391 = scmp.eq.s32.totalorder %s33, 1
    %p392 = scmp.ne.s32.totalorder %s387, %s389
    %p393 = scmp.eq.s32.totalorder %s33, 0
    %p394 = por %p392, %p393
    %p395 = scmp.ne.s32.totalorder %s387, %s389
    %p396 = scmp.eq.s32.totalorder %s38, 1
    %p397 = por %p395, %p396
    %p398 = scmp.ne.s32.totalorder %s389, %s390
    %p399 = scmp.eq.s32.totalorder %s38, 0
    %p400 = por %p398, %p399
    %p401 = scmp.ne.s32.totalorder %s389, %s390
    %p402 = scmp.eq.s32.totalorder %s39, 1
    %p403 = por %p401, %p402
    %p405 = scmp.ne.s32.totalorder %s390, %s404
    %p406 = scmp.eq.s32.totalorder %s39, 0
    %p407 = por %p405, %p406
    %s409 = sadd.s32 %s408, 1
    %p412 = scmp.eq.s32.totalorder %s33, 1
    %p413 = scmp.ne.s32.totalorder %s408, %s410
    %p414 = scmp.eq.s32.totalorder %s33, 0
    %p415 = por %p413, %p414
    %p416 = scmp.ne.s32.totalorder %s408, %s410
    %p417 = scmp.eq.s32.totalorder %s38, 1
    %p418 = por %p416, %p417
    %p419 = scmp.ne.s32.totalorder %s410, %s411
    %p420 = scmp.eq.s32.totalorder %s38, 0
    %p421 = por %p419, %p420
    %p422 = scmp.ne.s32.totalorder %s410, %s411
    %p423 = scmp.eq.s32.totalorder %s39, 1
    %p424 = por %p422, %p423
    %p426 = scmp.ne.s32.totalorder %s411, %s425
    %p427 = scmp.eq.s32.totalorder %s39, 0
    %p428 = por %p426, %p427
    %s430 = sadd.s32 %s429, 1
    %p433 = scmp.eq.s32.totalorder %s33, 1
    %p434 = scmp.ne.s32.totalorder %s429, %s431
    %p435 = scmp.eq.s32.totalorder %s33, 0
    %p436 = por %p434, %p435
    %p437 = scmp.ne.s32.totalorder %s429, %s431
    %p438 = scmp.eq.s32.totalorder %s38, 1
    %p439 = por %p437, %p438
    %p440 = scmp.ne.s32.totalorder %s431, %s432
    %p441 = scmp.eq.s32.totalorder %s38, 0
    %p442 = por %p440, %p441
    %p443 = scmp.ne.s32.totalorder %s431, %s432
    %p444 = scmp.eq.s32.totalorder %s39, 1
    %p445 = por %p443, %p444
    %p447 = scmp.ne.s32.totalorder %s432, %s446
    %p448 = scmp.eq.s32.totalorder %s39, 0
    %p449 = por %p447, %p448
    %s451 = sadd.s32 %s450, 1
    %p454 = scmp.eq.s32.totalorder %s33, 1
    %p455 = scmp.ne.s32.totalorder %s450, %s452
    %p456 = scmp.eq.s32.totalorder %s33, 0
    %p457 = por %p455, %p456
    %p458 = scmp.ne.s32.totalorder %s450, %s452
    %p459 = scmp.eq.s32.totalorder %s38, 1
    %p460 = por %p458, %p459
    %p461 = scmp.ne.s32.totalorder %s452, %s453
    %p462 = scmp.eq.s32.totalorder %s38, 0
    %p463 = por %p461, %p462
    %p464 = scmp.ne.s32.totalorder %s452, %s453
    %p465 = scmp.eq.s32.totalorder %s39, 1
    %p466 = por %p464, %p465
    %p468 = scmp.ne.s32.totalorder %s453, %s467
    %p469 = scmp.eq.s32.totalorder %s39, 0
    %p470 = por %p468, %p469
    %s472 = sadd.s32 %s471, 1
    %p475 = scmp.eq.s32.totalorder %s33, 1
    %p476 = scmp.ne.s32.totalorder %s471, %s473
    %p477 = scmp.eq.s32.totalorder %s33, 0
    %p478 = por %p476, %p477
    %p479 = scmp.ne.s32.totalorder %s471, %s473
    %p480 = scmp.eq.s32.totalorder %s38, 1
    %p481 = por %p479, %p480
    %p482 = scmp.ne.s32.totalorder %s473, %s474
    %p483 = scmp.eq.s32.totalorder %s38, 0
    %p484 = por %p482, %p483
    %p485 = scmp.ne.s32.totalorder %s473, %s474
    %p486 = scmp.eq.s32.totalorder %s39, 1
    %p487 = por %p485, %p486
    %p489 = scmp.ne.s32.totalorder %s474, %s488
    %p490 = scmp.eq.s32.totalorder %s39, 0
    %p491 = por %p489, %p490
    %s493 = sadd.s32 %s492, 1
    %p496 = scmp.eq.s32.totalorder %s33, 1
    %p497 = scmp.ne.s32.totalorder %s492, %s494
    %p498 = scmp.eq.s32.totalorder %s33, 0
    %p499 = por %p497, %p498
    %p500 = scmp.ne.s32.totalorder %s492, %s494
    %p501 = scmp.eq.s32.totalorder %s38, 1
    %p502 = por %p500, %p501
    %p503 = scmp.ne.s32.totalorder %s494, %s495
    %p504 = scmp.eq.s32.totalorder %s38, 0
    %p505 = por %p503, %p504
    %p506 = scmp.ne.s32.totalorder %s494, %s495
    %p507 = scmp.eq.s32.totalorder %s39, 1
    %p508 = por %p506, %p507
    %p510 = scmp.ne.s32.totalorder %s495, %s509
    %p511 = scmp.eq.s32.totalorder %s39, 0
    %p512 = por %p510, %p511
    %s514 = sadd.s32 %s513, 1
    %p517 = scmp.eq.s32.totalorder %s33, 1
    %p518 = scmp.ne.s32.totalorder %s513, %s515
    %p519 = scmp.eq.s32.totalorder %s33, 0
    %p520 = por %p518, %p519
    %p521 = scmp.ne.s32.totalorder %s513, %s515
    %p522 = scmp.eq.s32.totalorder %s38, 1
    %p523 = por %p521, %p522
    %p524 = scmp.ne.s32.totalorder %s515, %s516
    %p525 = scmp.eq.s32.totalorder %s38, 0
    %p526 = por %p524, %p525
    %p527 = scmp.ne.s32.totalorder %s515, %s516
    %p528 = scmp.eq.s32.totalorder %s39, 1
    %p529 = por %p527, %p528
    %p531 = scmp.ne.s32.totalorder %s516, %s530
    %p532 = scmp.eq.s32.totalorder %s39, 0
    %p533 = por %p531, %p532
    %s535 = sadd.s32 %s534, 1
    %p538 = scmp.eq.s32.totalorder %s33, 1
    %p539 = scmp.ne.s32.totalorder %s534, %s536
    %p540 = scmp.eq.s32.totalorder %s33, 0
    %p541 = por %p539, %p540
    %p542 = scmp.ne.s32.totalorder %s534, %s536
    %p543 = scmp.eq.s32.totalorder %s38, 1
    %p544 = por %p542, %p543
    %p545 = scmp.ne.s32.totalorder %s536, %s537
    %p546 = scmp.eq.s32.totalorder %s38, 0
    %p547 = por %p545, %p546
    %p548 = scmp.ne.s32.totalorder %s536, %s537
    %p549 = scmp.eq.s32.totalorder %s39, 1
    %p550 = por %p548, %p549
    %p552 = scmp.ne.s32.totalorder %s537, %s551
    %p553 = scmp.eq.s32.totalorder %s39, 0
    %p554 = por %p552, %p553
    %s556 = sadd.s32 %s555, 1
    %p559 = scmp.eq.s32.totalorder %s33, 1
    %p560 = scmp.ne.s32.totalorder %s555, %s557
    %p561 = scmp.eq.s32.totalorder %s33, 0
    %p562 = por %p560, %p561
    %p563 = scmp.ne.s32.totalorder %s555, %s557
    %p564 = scmp.eq.s32.totalorder %s38, 1
    %p565 = por %p563, %p564
    %p566 = scmp.ne.s32.totalorder %s557, %s558
    %p567 = scmp.eq.s32.totalorder %s38, 0
    %p568 = por %p566, %p567
    %p569 = scmp.ne.s32.totalorder %s557, %s558
    %p570 = scmp.eq.s32.totalorder %s39, 1
    %p571 = por %p569, %p570
    %p573 = scmp.ne.s32.totalorder %s558, %s572
    %p574 = scmp.eq.s32.totalorder %s39, 0
    %p575 = por %p573, %p574
    %s577 = sadd.s32 %s576, 1
    %p580 = scmp.eq.s32.totalorder %s33, 1
    %p581 = scmp.ne.s32.totalorder %s576, %s578
    %p582 = scmp.eq.s32.totalorder %s33, 0
    %p583 = por %p581, %p582
    %p584 = scmp.ne.s32.totalorder %s576, %s578
    %p585 = scmp.eq.s32.totalorder %s38, 1
    %p586 = por %p584, %p585
    %p587 = scmp.ne.s32.totalorder %s578, %s579
    %p588 = scmp.eq.s32.totalorder %s38, 0
    %p589 = por %p587, %p588
    %p590 = scmp.ne.s32.totalorder %s578, %s579
    %p591 = scmp.eq.s32.totalorder %s39, 1
    %p592 = por %p590, %p591
    %p594 = scmp.ne.s32.totalorder %s579, %s593
    %p595 = scmp.eq.s32.totalorder %s39, 0
    %p596 = por %p594, %p595
    %s598 = sadd.s32 %s597, 1
    %p601 = scmp.eq.s32.totalorder %s33, 1
    %p602 = scmp.ne.s32.totalorder %s597, %s599
    %p603 = scmp.eq.s32.totalorder %s33, 0
    %p604 = por %p602, %p603
    %p605 = scmp.ne.s32.totalorder %s597, %s599
    %p606 = scmp.eq.s32.totalorder %s38, 1
    %p607 = por %p605, %p606
    %p608 = scmp.ne.s32.totalorder %s599, %s600
    %p609 = scmp.eq.s32.totalorder %s38, 0
    %p610 = por %p608, %p609
    %p611 = scmp.ne.s32.totalorder %s599, %s600
    %p612 = scmp.eq.s32.totalorder %s39, 1
    %p613 = por %p611, %p612
    %p615 = scmp.ne.s32.totalorder %s600, %s614
    %p616 = scmp.eq.s32.totalorder %s39, 0
    %p617 = por %p615, %p616
    %s618 = ssub.s32 %s33, %s40
    %p619 = scmp.eq.s32.totalorder %s618, 0
    %s621 = sadd.s32 %s620, 1
    %s622 = scalar_select %p619, %s620, %s621
    %p625 = pneg %p619
    %p626 = scmp.eq.s32.totalorder %s33, 1
    %p627 = por %p625, %p626
    %p628 = scmp.ne.s32.totalorder %s620, %s623
    %p629 = scmp.eq.s32.totalorder %s33, 0
    %p630 = por %p628, %p629
    %p631 = scmp.ne.s32.totalorder %s620, %s623
    %p632 = scmp.eq.s32.totalorder %s38, 1
    %p633 = por %p631, %p632
    %p634 = scmp.ne.s32.totalorder %s623, %s624
    %p635 = scmp.eq.s32.totalorder %s38, 0
    %p636 = por %p634, %p635
    %p637 = scmp.ne.s32.totalorder %s623, %s624
    %p638 = scmp.eq.s32.totalorder %s39, 1
    %p639 = por %p637, %p638
    %p641 = scmp.ne.s32.totalorder %s624, %s640
    %p642 = scmp.eq.s32.totalorder %s39, 0
    %p643 = por %p641, %p642
    %p644 = scmp.le.s32.totalorder 1, %s33
    %p645 = scmp.lt.s32.totalorder %s33, 3
    %p646 = pnand %p644, %p645
    %p647 = pneg %p646
    // Predicated region
    $region9: #{vit_forward.1} parent=5 // pred_check
      _
    $region10: #{vit_forward.1} parent=5 // pred_check_branch
      %649 = sbr.rel (%p646) target = $region12
    $region11: #{vit_forward.1} parent=5 // pred_region
      %s650 = ssub.s32 %s33, 1
      // Predicated region
      $region13: #{vit_forward.1} parent=11 // pred_check
        %p651 = pneg %p106
      $region14: #{vit_forward.1} parent=11 // pred_check_branch
        %653 = sbr.rel (%p651) target = $region16
      $region15: #{vit_forward.1} parent=11 // pred_region
        _
      $region16: #{vit_forward.1} parent=11 // pred_fallthru
        _
      // Predicated region
      $region17: #{vit_forward.1} parent=11 // pred_check
        %p654 = pneg %p127
      $region18: #{vit_forward.1} parent=11 // pred_check_branch
        %656 = sbr.rel (%p654) target = $region20
      $region19: #{vit_forward.1} parent=11 // pred_region
        _
      $region20: #{vit_forward.1} parent=11 // pred_fallthru
        _
      // Predicated region
      $region21: #{vit_forward.1} parent=11 // pred_check
        %p657 = pneg %p148
      $region22: #{vit_forward.1} parent=11 // pred_check_branch
        %659 = sbr.rel (%p657) target = $region24
      $region23: #{vit_forward.1} parent=11 // pred_region
        _
      $region24: #{vit_forward.1} parent=11 // pred_fallthru
        _
      // Predicated region
      $region25: #{vit_forward.1} parent=11 // pred_check
        %p660 = pneg %p169
      $region26: #{vit_forward.1} parent=11 // pred_check_branch
        %662 = sbr.rel (%p660) target = $region28
      $region27: #{vit_forward.1} parent=11 // pred_region
        _
      $region28: #{vit_forward.1} parent=11 // pred_fallthru
        _
      // Predicated region
      $region29: #{vit_forward.1} parent=11 // pred_check
        %p663 = pneg %p190
      $region30: #{vit_forward.1} parent=11 // pred_check_branch
        %665 = sbr.rel (%p663) target = $region32
      $region31: #{vit_forward.1} parent=11 // pred_region
        _
      $region32: #{vit_forward.1} parent=11 // pred_fallthru
        _
      // Predicated region
      $region33: #{vit_forward.1} parent=11 // pred_check
        %p666 = pneg %p211
      $region34: #{vit_forward.1} parent=11 // pred_check_branch
        %668 = sbr.rel (%p666) target = $region36
      $region35: #{vit_forward.1} parent=11 // pred_region
        _
      $region36: #{vit_forward.1} parent=11 // pred_fallthru
        _
      // Predicated region
      $region37: #{vit_forward.1} parent=11 // pred_check
        %p669 = pneg %p232
      $region38: #{vit_forward.1} parent=11 // pred_check_branch
        %671 = sbr.rel (%p669) target = $region40
      $region39: #{vit_forward.1} parent=11 // pred_region
        _
      $region40: #{vit_forward.1} parent=11 // pred_fallthru
        _
      // Predicated region
      $region41: #{vit_forward.1} parent=11 // pred_check
        %p672 = pneg %p253
      $region42: #{vit_forward.1} parent=11 // pred_check_branch
        %674 = sbr.rel (%p672) target = $region44
      $region43: #{vit_forward.1} parent=11 // pred_region
        _
      $region44: #{vit_forward.1} parent=11 // pred_fallthru
        _
      // Predicated region
      $region45: #{vit_forward.1} parent=11 // pred_check
        %p675 = pneg %p274
      $region46: #{vit_forward.1} parent=11 // pred_check_branch
        %677 = sbr.rel (%p675) target = $region48
      $region47: #{vit_forward.1} parent=11 // pred_region
        _
      $region48: #{vit_forward.1} parent=11 // pred_fallthru
        _
      // Predicated region
      $region49: #{vit_forward.1} parent=11 // pred_check
        %p678 = pneg %p295
      $region50: #{vit_forward.1} parent=11 // pred_check_branch
        %680 = sbr.rel (%p678) target = $region52
      $region51: #{vit_forward.1} parent=11 // pred_region
        _
      $region52: #{vit_forward.1} parent=11 // pred_fallthru
        _
      // Predicated region
      $region53: #{vit_forward.1} parent=11 // pred_check
        %p681 = pneg %p316
      $region54: #{vit_forward.1} parent=11 // pred_check_branch
        %683 = sbr.rel (%p681) target = $region56
      $region55: #{vit_forward.1} parent=11 // pred_region
        _
      $region56: #{vit_forward.1} parent=11 // pred_fallthru
        _
      // Predicated region
      $region57: #{vit_forward.1} parent=11 // pred_check
        %p684 = pneg %p337
      $region58: #{vit_forward.1} parent=11 // pred_check_branch
        %686 = sbr.rel (%p684) target = $region60
      $region59: #{vit_forward.1} parent=11 // pred_region
        _
      $region60: #{vit_forward.1} parent=11 // pred_fallthru
        _
      // Predicated region
      $region61: #{vit_forward.1} parent=11 // pred_check
        %p687 = pneg %p358
      $region62: #{vit_forward.1} parent=11 // pred_check_branch
        %689 = sbr.rel (%p687) target = $region64
      $region63: #{vit_forward.1} parent=11 // pred_region
        _
      $region64: #{vit_forward.1} parent=11 // pred_fallthru
        _
      // Predicated region
      $region65: #{vit_forward.1} parent=11 // pred_check
        %p690 = pneg %p379
      $region66: #{vit_forward.1} parent=11 // pred_check_branch
        %692 = sbr.rel (%p690) target = $region68
      $region67: #{vit_forward.1} parent=11 // pred_region
        _
      $region68: #{vit_forward.1} parent=11 // pred_fallthru
        _
      // Predicated region
      $region69: #{vit_forward.1} parent=11 // pred_check
        %p693 = pneg %p400
      $region70: #{vit_forward.1} parent=11 // pred_check_branch
        %695 = sbr.rel (%p693) target = $region72
      $region71: #{vit_forward.1} parent=11 // pred_region
        _
      $region72: #{vit_forward.1} parent=11 // pred_fallthru
        _
      // Predicated region
      $region73: #{vit_forward.1} parent=11 // pred_check
        %p696 = pneg %p421
      $region74: #{vit_forward.1} parent=11 // pred_check_branch
        %698 = sbr.rel (%p696) target = $region76
      $region75: #{vit_forward.1} parent=11 // pred_region
        _
      $region76: #{vit_forward.1} parent=11 // pred_fallthru
        _
      // Predicated region
      $region77: #{vit_forward.1} parent=11 // pred_check
        %p699 = pneg %p442
      $region78: #{vit_forward.1} parent=11 // pred_check_branch
        %701 = sbr.rel (%p699) target = $region80
      $region79: #{vit_forward.1} parent=11 // pred_region
        _
      $region80: #{vit_forward.1} parent=11 // pred_fallthru
        _
      // Predicated region
      $region81: #{vit_forward.1} parent=11 // pred_check
        %p702 = pneg %p463
      $region82: #{vit_forward.1} parent=11 // pred_check_branch
        %704 = sbr.rel (%p702) target = $region84
      $region83: #{vit_forward.1} parent=11 // pred_region
        _
      $region84: #{vit_forward.1} parent=11 // pred_fallthru
        _
      // Predicated region
      $region85: #{vit_forward.1} parent=11 // pred_check
        %p705 = pneg %p484
      $region86: #{vit_forward.1} parent=11 // pred_check_branch
        %707 = sbr.rel (%p705) target = $region88
      $region87: #{vit_forward.1} parent=11 // pred_region
        _
      $region88: #{vit_forward.1} parent=11 // pred_fallthru
        _
      // Predicated region
      $region89: #{vit_forward.1} parent=11 // pred_check
        %p708 = pneg %p505
      $region90: #{vit_forward.1} parent=11 // pred_check_branch
        %710 = sbr.rel (%p708) target = $region92
      $region91: #{vit_forward.1} parent=11 // pred_region
        _
      $region92: #{vit_forward.1} parent=11 // pred_fallthru
        _
      // Predicated region
      $region93: #{vit_forward.1} parent=11 // pred_check
        %p711 = pneg %p526
      $region94: #{vit_forward.1} parent=11 // pred_check_branch
        %713 = sbr.rel (%p711) target = $region96
      $region95: #{vit_forward.1} parent=11 // pred_region
        _
      $region96: #{vit_forward.1} parent=11 // pred_fallthru
        _
      // Predicated region
      $region97: #{vit_forward.1} parent=11 // pred_check
        %p714 = pneg %p547
      $region98: #{vit_forward.1} parent=11 // pred_check_branch
        %716 = sbr.rel (%p714) target = $region100
      $region99: #{vit_forward.1} parent=11 // pred_region
        _
      $region100: #{vit_forward.1} parent=11 // pred_fallthru
        _
      // Predicated region
      $region101: #{vit_forward.1} parent=11 // pred_check
        %p717 = pneg %p568
      $region102: #{vit_forward.1} parent=11 // pred_check_branch
        %719 = sbr.rel (%p717) target = $region104
      $region103: #{vit_forward.1} parent=11 // pred_region
        _
      $region104: #{vit_forward.1} parent=11 // pred_fallthru
        _
      // Predicated region
      $region105: #{vit_forward.1} parent=11 // pred_check
        %p720 = pneg %p589
      $region106: #{vit_forward.1} parent=11 // pred_check_branch
        %722 = sbr.rel (%p720) target = $region108
      $region107: #{vit_forward.1} parent=11 // pred_region
        _
      $region108: #{vit_forward.1} parent=11 // pred_fallthru
        _
      // Predicated region
      $region109: #{vit_forward.1} parent=11 // pred_check
        %p723 = pneg %p610
      $region110: #{vit_forward.1} parent=11 // pred_check_branch
        %725 = sbr.rel (%p723) target = $region112
      $region111: #{vit_forward.1} parent=11 // pred_region
        _
      $region112: #{vit_forward.1} parent=11 // pred_fallthru
        _
    $region12: #{vit_forward.1} parent=5 // pred_fallthru
      _
    %p726 = scmp.lt.s32.totalorder %s33, 2
    // Predicated region
    $region113: #{vit_forward.1} parent=5 // pred_check
      %p727 = pneg %p726
    $region114: #{vit_forward.1} parent=5 // pred_check_branch
      %729 = sbr.rel (%p727) target = $region116
    $region115: #{vit_forward.1} parent=5 // pred_region
      // Predicated region
      $region117: #{vit_forward.1} parent=115 // pred_check
        %p730 = pneg %p53
      $region118: #{vit_forward.1} parent=115 // pred_check_branch
        %732 = sbr.rel (%p730) target = $region120
      $region119: #{vit_forward.1} parent=115 // pred_region
        %p733 = scmp.lt.s32.totalorder %s33, 1
        %s734 = scalar_select %p733, %s33, 1
        %s735 = smul.addr %s734, 8
        %s736 = scalar_lea.vmem %s0, %s735
      $region120: #{vit_forward.1} parent=115 // pred_fallthru
        _
      // Predicated region
      $region121: #{vit_forward.1} parent=115 // pred_check
        %p737 = pneg %p79
      $region122: #{vit_forward.1} parent=115 // pred_check_branch
        %739 = sbr.rel (%p737) target = $region124
      $region123: #{vit_forward.1} parent=115 // pred_region
        %p740 = scmp.lt.s32.totalorder %s33, 1
        %s741 = scalar_select %p740, %s33, 1
        %s742 = smul.addr %s741, 8
        %s743 = scalar_lea.vmem %s1, %s742
      $region124: #{vit_forward.1} parent=115 // pred_fallthru
        _
    $region116: #{vit_forward.1} parent=5 // pred_fallthru
      _
    %p744 = scmp.le.s32.totalorder 1, %s33
    %p745 = scmp.lt.s32.totalorder %s33, 3
    %p746 = pnand %p744, %p745
    %p747 = pneg %p746
    // Predicated region
    $region125: #{vit_forward.1} parent=5 // pred_check
      _
    $region126: #{vit_forward.1} parent=5 // pred_check_branch
      %749 = sbr.rel (%p746) target = $region128
    $region127: #{vit_forward.1} parent=5 // pred_region
      %s750 = ssub.s32 %s33, 1
      %p751 = scmp.lt.s32.totalorder %s38, 1
      %s752 = scalar_select %p751, %s38, 1
      %s753 = smul.addr %s752, 8
      %s754 = scalar_lea.vmem %s0, %s753
      %p755 = pneg %p59
      %p756 = pneg %p56
      %p757 = scmp.lt.s32.totalorder %s38, 1
      %s758 = scalar_select %p757, %s38, 1
      %s759 = smul.addr %s758, 8
      %s760 = scalar_lea.vmem %s1, %s759
      %p761 = pneg %p85
      %p762 = pneg %p82
      %p763 = pneg %p106
      %p764 = pneg %p103
      %p765 = pneg %p127
      %p766 = pneg %p124
      %p767 = pneg %p148
      %p768 = pneg %p145
      %p769 = pneg %p169
      %p770 = pneg %p166
      %p771 = pneg %p190
      %p772 = pneg %p187
      %p773 = pneg %p211
      %p774 = pneg %p208
      %p775 = pneg %p232
      %p776 = pneg %p229
      %p777 = pneg %p253
      %p778 = pneg %p250
      %p779 = pneg %p274
      %p780 = pneg %p271
      %p781 = pneg %p295
      %p782 = pneg %p292
      %p783 = pneg %p316
      %p784 = pneg %p313
      %p785 = pneg %p337
      %p786 = pneg %p334
      %p787 = pneg %p358
      %p788 = pneg %p355
      %p789 = pneg %p379
      %p790 = pneg %p376
      %p791 = pneg %p400
      %p792 = pneg %p397
      %p793 = pneg %p421
      %p794 = pneg %p418
      %p795 = pneg %p442
      %p796 = pneg %p439
      %p797 = pneg %p463
      %p798 = pneg %p460
      %p799 = pneg %p484
      %p800 = pneg %p481
      %p801 = pneg %p505
      %p802 = pneg %p502
      %p803 = pneg %p526
      %p804 = pneg %p523
      %p805 = pneg %p547
      %p806 = pneg %p544
      %p807 = pneg %p568
      %p808 = pneg %p565
      %p809 = pneg %p589
      %p810 = pneg %p586
      %p811 = pneg %p610
      %p812 = pneg %p607
      %p813 = pneg %p636
      %p814 = pneg %p633
      %p815 = scmp.lt.s32.totalorder %s38, 1
      %s816 = scalar_select %p815, %s38, 1
      %s817 = smul.addr %s816, 8
      %s818 = scalar_lea.vmem %s27, %s817
      %p819 = scmp.lt.s32.totalorder %s38, 1
      %s820 = scalar_select %p819, %s38, 1
      %s821 = smul.addr %s820, 8
      %s822 = scalar_lea.vmem %s0, %s821
      %p823 = scmp.lt.s32.totalorder %s38, 1
      %s824 = scalar_select %p823, %s38, 1
      %s825 = smul.addr %s824, 8
      %s826 = scalar_lea.vmem %s1, %s825
      %p827 = scmp.lt.s32.totalorder %s38, 1
      %s828 = scalar_select %p827, %s38, 1
      %s829 = smul.addr %s828, 8
      %s830 = scalar_lea.vmem %s27, %s829
      %v832 = vld [vmem:[%s822] sm:$0xff]
      %v833 = vld [vmem:[%s2] sm:$0xff]
      %v834 = vld [vmem:[%s2 + $0x8] sm:$0xff]
      %v835 = vld [vmem:[%s2 + $0x10] sm:$0xff]
      %v836 = vld [vmem:[%s2 + $0x18] sm:$0xff]
      %v837 = vld [vmem:[%s2 + $0x20] sm:$0xff]
      %v838 = vld [vmem:[%s2 + $0x28] sm:$0xff]
      %v839 = vld [vmem:[%s2 + $0x30] sm:$0xff]
      %v840 = vld [vmem:[%s2 + $0x38] sm:$0xff]
      %v841 = vld [vmem:[%s2 + $0x40] sm:$0xff]
      %v842 = vld [vmem:[%s2 + $0x48] sm:$0xff]
      %v843 = vld [vmem:[%s2 + $0x50] sm:$0xff]
      %v844 = vld [vmem:[%s2 + $0x58] sm:$0xff]
      %v845 = vld [vmem:[%s2 + $0x60] sm:$0xff]
      %v846 = vld [vmem:[%s2 + $0x68] sm:$0xff]
      %v847 = vld [vmem:[%s2 + $0x70] sm:$0xff]
      %v848 = vld [vmem:[%s2 + $0x78] sm:$0xff]
      %v849 = vpack.c.bf16 %v832, %v832
      %v850 = vpack.c.bf16 %v834, %v833
      %v851 = vpack.c.bf16 %v836, %v835
      %v852 = vpack.c.bf16 %v838, %v837
      %v853 = vpack.c.bf16 %v840, %v839
      %v854 = vpack.c.bf16 %v842, %v841
      %v855 = vpack.c.bf16 %v844, %v843
      %v856 = vpack.c.bf16 %v846, %v845
      %v857 = vpack.c.bf16 %v848, %v847
      %v858 = vld [vmem:[%s3] sm:$0xff]
      %859 = vmatprep.subr.bf16.mxu0 0
      %860 = vmatpush1.bf16.msra.mxu0 %v850
      %861 = vmatprep.subr.bf16.mxu0 0
      %862 = vmatpush1.bf16.msra.mxu0 %v851
      %863 = vmatprep.subr.bf16.mxu0 0
      %864 = vmatpush1.bf16.msra.mxu0 %v852
      %865 = vmatprep.subr.bf16.mxu0 0
      %866 = vmatpush1.bf16.msra.mxu0 %v853
      %867 = vmatprep.subr.bf16.mxu0 0
      %868 = vmatpush1.bf16.msra.mxu0 %v854
      %869 = vmatprep.subr.bf16.mxu0 0
      %870 = vmatpush1.bf16.msra.mxu0 %v855
      %871 = vmatprep.subr.bf16.mxu0 0
      %872 = vmatpush1.bf16.msra.mxu0 %v856
      %873 = vmatprep.subr.bf16.mxu0 0
      %874 = vmatpush1.bf16.msra.mxu0 %v857
      %875 = vmatprep.subr.bf16.mxu0 0
      %876 = vmatpush1.bf16.msra.mxu0 0
      %877 = vmatprep.subr.bf16.mxu0 0
      %878 = vmatpush1.bf16.msra.mxu0 0
      %879 = vmatprep.subr.bf16.mxu0 0
      %880 = vmatpush1.bf16.msra.mxu0 0
      %881 = vmatprep.subr.bf16.mxu0 0
      %882 = vmatpush1.bf16.msra.mxu0 0
      %883 = vmatprep.subr.bf16.mxu0 0
      %884 = vmatpush1.bf16.msra.mxu0 0
      %885 = vmatprep.subr.bf16.mxu0 0
      %886 = vmatpush1.bf16.msra.mxu0 0
      %887 = vmatprep.subr.bf16.mxu0 0
      %888 = vmatpush1.bf16.msra.mxu0 0
      %889 = vmatprep.subr.bf16.mxu0 0
      %890 = vmatpush1.bf16.msra.mxu0 0
      %891 = vmatprep.mubr.bf16.mxu0 0
      %892 = vmatmul.mubr.bf16.gmra.mrb[0].mxu0 %v849
      %v893 = vpop.f32.mrb[0].mxu0
      %v894 = vadd.f32 %v858, %v893
      %v895 = vpop.f32.mrb[0].mxu0
      %v896 = vpop.f32.mrb[0].mxu0
      %v897 = vpop.f32.mrb[0].mxu0
      %898 = vdwg.mxu0
      %v899 = vld [vmem:[%s826] sm:$0xff]
      %v900 = vld [vmem:[%s4] sm:$0xff]
      %v901 = vld [vmem:[%s4 + $0x8] sm:$0xff]
      %v902 = vpack.c.bf16 %v899, %v899
      %v903 = vpack.c.bf16 %v901, %v900
      %v904 = vld [vmem:[%s5] sm:$0xff]
      %vm905 = vcmask 130048
      %v907 = vsel %vm905, %v902, 0
      %909 = vmatprep.subr.bf16.mxu0 0
      %910 = vmatpush1.bf16.msra.mxu0 %v903
      %911 = vmatprep.subr.bf16.mxu0 0
      %912 = vmatpush1.bf16.msra.mxu0 0
      %913 = vmatprep.subr.bf16.mxu0 0
      %914 = vmatpush1.bf16.msra.mxu0 0
      %915 = vmatprep.subr.bf16.mxu0 0
      %916 = vmatpush1.bf16.msra.mxu0 0
      %917 = vmatprep.subr.bf16.mxu0 0
      %918 = vmatpush1.bf16.msra.mxu0 0
      %919 = vmatprep.subr.bf16.mxu0 0
      %920 = vmatpush1.bf16.msra.mxu0 0
      %921 = vmatprep.subr.bf16.mxu0 0
      %922 = vmatpush1.bf16.msra.mxu0 0
      %923 = vmatprep.subr.bf16.mxu0 0
      %924 = vmatpush1.bf16.msra.mxu0 0
      %925 = vmatprep.subr.bf16.mxu0 0
      %926 = vmatpush1.bf16.msra.mxu0 0
      %927 = vmatprep.subr.bf16.mxu0 0
      %928 = vmatpush1.bf16.msra.mxu0 0
      %929 = vmatprep.subr.bf16.mxu0 0
      %930 = vmatpush1.bf16.msra.mxu0 0
      %931 = vmatprep.subr.bf16.mxu0 0
      %932 = vmatpush1.bf16.msra.mxu0 0
      %933 = vmatprep.subr.bf16.mxu0 0
      %934 = vmatpush1.bf16.msra.mxu0 0
      %935 = vmatprep.subr.bf16.mxu0 0
      %936 = vmatpush1.bf16.msra.mxu0 0
      %937 = vmatprep.subr.bf16.mxu0 0
      %938 = vmatpush1.bf16.msra.mxu0 0
      %939 = vmatprep.subr.bf16.mxu0 0
      %940 = vmatpush1.bf16.msra.mxu0 0
      %941 = vmatprep.mubr.bf16.mxu0 0
      %942 = vmatmul.mubr.bf16.gmra.mrb[0].mxu0 %v907
      %v943 = vpop.f32.mrb[0].mxu0
      %v944 = vadd.f32 %v904, %v943
      %v945 = vpop.f32.mrb[0].mxu0
      %v946 = vpop.f32.mrb[0].mxu0
      %v947 = vpop.f32.mrb[0].mxu0
      %948 = vdwg.mxu0
      %v949 = vld [vmem:[%s6] sm:$0x1]
      %vm950 = vcmask 253952
      %951 = vst.msk [vmem:[#allocation2] sm:$0x1] %vm950, %v949
      %vm952 = vcmask 261120
      %953 = vst.msk [vmem:[#allocation2 + $0x1] sm:$0xff] %vm952, %v894
      %954 = vst.msk [vmem:[#allocation2 + $0x9] sm:$0xff] %vm952, %v944
      %v955 = vld [vmem:[#allocation2] sm:$0xff]
      %v956 = vld [vmem:[#allocation2 + $0x8] sm:$0xff]
      %v957 = vld [vmem:[#allocation2 + $0x10] sm:$0x1]
      %v958 = vld [vmem:[%s7] sm:$0x1]
      %v959 = vld [vmem:[%s8] sm:$0x1]
      %v960 = vsel %vm952, %v955, 0.0
      %961 = vadd.xlane.f32.xlu0 %v960
      %v962 = vpop.xlane.xlu0 %961
      %v963 = vsel %vm952, %v956, 0.0
      %964 = vadd.xlane.f32.xlu0 %v963
      %v965 = vpop.xlane.xlu0 %964
      %v966 = vsel %vm950, %v957, 0.0
      %967 = vadd.xlane.f32.xlu0 %v966
      %v968 = vpop.xlane.xlu0 %967
      %v969 = vrcp.pop 32.0
      %v970 = vmul.f32 %v962, %v969
      %v971 = vmul.f32 %v965, %v969
      %v972 = vmul.f32 %v968, %v969
      %v973 = vsub.f32 %v955, %v970
      %v974 = vsub.f32 %v956, %v971
      %v975 = vsub.f32 %v957, %v972
      %v976 = vmul.f32 %v973, %v973
      %v977 = vmul.f32 %v974, %v974
      %v978 = vmul.f32 %v975, %v975
      %v979 = vsel %vm952, %v976, 0.0
      %980 = vadd.xlane.f32.xlu0 %v979
      %v981 = vpop.xlane.xlu0 %980
      %v982 = vsel %vm952, %v977, 0.0
      %983 = vadd.xlane.f32.xlu0 %v982
      %v984 = vpop.xlane.xlu0 %983
      %v985 = vsel %vm950, %v978, 0.0
      %986 = vadd.xlane.f32.xlu0 %v985
      %v987 = vpop.xlane.xlu0 %986
      %v988 = vmul.f32 %v981, %v969
      %v989 = vmul.f32 %v984, %v969
      %v990 = vmul.f32 %v987, %v969
      %v991 = vadd.f32 %v988, 1e-05
      %v992 = vadd.f32 %v989, 1e-05
      %v993 = vadd.f32 %v990, 1e-05
      %v994 = vrsqrt.pop %v991
      %v995 = vrsqrt.pop %v992
      %v996 = vrsqrt.pop %v993
      %v997 = vmul.f32 %v973, %v994
      %v998 = vmul.f32 %v974, %v995
      %v999 = vmul.f32 %v975, %v996
      %v1001 = vlaneseq
      %v1002 = vshrl.u32 %v1001, 7
      %v1003 = vsub.s32 0, %v1002
      %v1004 = vrot.slane %v958, %v1003
      %v1006 = vmul.f32 %v997, %v1004
      %v1007 = vmul.f32 %v998, %v1004
      %v1008 = vmul.f32 %v999, %v1004
      %v1010 = vlaneseq
      %v1011 = vshrl.u32 %v1010, 7
      %v1012 = vsub.s32 0, %v1011
      %v1013 = vrot.slane %v959, %v1012
      %v1015 = vadd.f32 %v1006, %v1013
      %v1016 = vadd.f32 %v1007, %v1013
      %v1017 = vadd.f32 %v1008, %v1013
      %v1018 = vld [vmem:[%s9] sm:$0xff]
      %v1019 = vld [vmem:[%s9 + $0x8] sm:$0xff]
      %v1020 = vld [vmem:[%s9 + $0x10] sm:$0xff]
      %v1021 = vld [vmem:[%s9 + $0x18] sm:$0xff]
      %v1022 = vpack.c.bf16 %v1016, %v1015
      %v1023 = vpack.c.bf16 %v1017, %v1017
      %v1024 = vpack.c.bf16 %v1019, %v1018
      %v1025 = vpack.c.bf16 %v1021, %v1020
      %v1026 = vld [vmem:[%s10] sm:$0x1]
      %v1028 = vlaneseq
      %v1029 = vshrl.u32 %v1028, 7
      %v1030 = vsub.s32 0, %v1029
      %v1031 = vrot.slane %v1026, %v1030
      %v1034 = vsel %vm952, %v1022, 0
      %v1037 = vsel %vm952, %v1023, 0
      %1039 = vmatprep.subr.bf16.mxu0 0
      %1040 = vmatpush1.bf16.msra.mxu0 %v1024
      %1041 = vmatprep.subr.bf16.mxu0 0
      %1042 = vmatpush1.bf16.msra.mxu0 %v1025
      %1043 = vmatprep.subr.bf16.mxu0 0
      %1044 = vmatpush1.bf16.msra.mxu0 0
      %1045 = vmatprep.subr.bf16.mxu0 0
      %1046 = vmatpush1.bf16.msra.mxu0 0
      %1047 = vmatprep.subr.bf16.mxu0 0
      %1048 = vmatpush1.bf16.msra.mxu0 0
      %1049 = vmatprep.subr.bf16.mxu0 0
      %1050 = vmatpush1.bf16.msra.mxu0 0
      %1051 = vmatprep.subr.bf16.mxu0 0
      %1052 = vmatpush1.bf16.msra.mxu0 0
      %1053 = vmatprep.subr.bf16.mxu0 0
      %1054 = vmatpush1.bf16.msra.mxu0 0
      %1055 = vmatprep.subr.bf16.mxu0 0
      %1056 = vmatpush1.bf16.msra.mxu0 0
      %1057 = vmatprep.subr.bf16.mxu0 0
      %1058 = vmatpush1.bf16.msra.mxu0 0
      %1059 = vmatprep.subr.bf16.mxu0 0
      %1060 = vmatpush1.bf16.msra.mxu0 0
      %1061 = vmatprep.subr.bf16.mxu0 0
      %1062 = vmatpush1.bf16.msra.mxu0 0
      %1063 = vmatprep.subr.bf16.mxu0 0
      %1064 = vmatpush1.bf16.msra.mxu0 0
      %1065 = vmatprep.subr.bf16.mxu0 0
      %1066 = vmatpush1.bf16.msra.mxu0 0
      %1067 = vmatprep.subr.bf16.mxu0 0
      %1068 = vmatpush1.bf16.msra.mxu0 0
      %1069 = vmatprep.subr.bf16.mxu0 0
      %1070 = vmatpush1.bf16.msra.mxu0 0
      %1071 = vmatprep.mubr.bf16.mxu0 0
      %1072 = vmatmul.mubr.bf16.gmra.mrb[0].mxu0 %v1034
      %v1073 = vpop.f32.mrb[0].mxu0
      %v1074 = vadd.f32 %v1031, %v1073
      %v1075 = vpop.f32.mrb[0].mxu0
      %v1076 = vpop.f32.mrb[0].mxu0
      %v1077 = vadd.f32 %v1031, %v1076
      %v1078 = vpop.f32.mrb[0].mxu0
      %1079 = vmatprep.mubr.bf16.mxu0 0
      %1080 = vmatmul.mubr.bf16.gmra.mrb[0].mxu0 %v1037
      %v1081 = vpop.f32.mrb[0].mxu0
      %v1082 = vadd.f32 %v1031, %v1081
      %v1083 = vpop.f32.mrb[0].mxu0
      %v1084 = vpop.f32.mrb[0].mxu0
      %v1085 = vpop.f32.mrb[0].mxu0
      %1086 = vdwg.mxu0
      %v1087 = vmul.f32 %v1074, 0.35355338
      %v1088 = vmul.f32 %v1077, 0.35355338
      %v1089 = vmul.f32 %v1082, 0.35355338
      %v1090 = vld [vmem:[%s11] sm:$0xff]
      %v1091 = vld [vmem:[%s11 + $0x8] sm:$0xff]
      %v1092 = vld [vmem:[%s11 + $0x10] sm:$0xff]
      %v1093 = vld [vmem:[%s11 + $0x18] sm:$0xff]
      %v1094 = vpack.c.bf16 %v1091, %v1090
      %v1095 = vpack.c.bf16 %v1093, %v1092
      %v1096 = vld [vmem:[%s12] sm:$0x1]
      %v1098 = vlaneseq
      %v1099 = vshrl.u32 %v1098, 7
      %v1100 = vsub.s32 0, %v1099
      %v1101 = vrot.slane %v1096, %v1100
      %1103 = vmatprep.subr.bf16.mxu0 0
      %1104 = vmatpush1.bf16.msra.mxu0 %v1094
      %1105 = vmatprep.subr.bf16.mxu0 0
      %1106 = vmatpush1.bf16.msra.mxu0 %v1095
      %1107 = vmatprep.subr.bf16.mxu0 0
      %1108 = vmatpush1.bf16.msra.mxu0 0
      %1109 = vmatprep.subr.bf16.mxu0 0
      %1110 = vmatpush1.bf16.msra.mxu0 0
      %1111 = vmatprep.subr.bf16.mxu0 0
      %1112 = vmatpush1.bf16.msra.mxu0 0
      %1113 = vmatprep.subr.bf16.mxu0 0
      %1114 = vmatpush1.bf16.msra.mxu0 0
      %1115 = vmatprep.subr.bf16.mxu0 0
      %1116 = vmatpush1.bf16.msra.mxu0 0
      %1117 = vmatprep.subr.bf16.mxu0 0
      %1118 = vmatpush1.bf16.msra.mxu0 0
      %1119 = vmatprep.subr.bf16.mxu0 0
      %1120 = vmatpush1.bf16.msra.mxu0 0
      %1121 = vmatprep.subr.bf16.mxu0 0
      %1122 = vmatpush1.bf16.msra.mxu0 0
      %1123 = vmatprep.subr.bf16.mxu0 0
      %1124 = vmatpush1.bf16.msra.mxu0 0
      %1125 = vmatprep.subr.bf16.mxu0 0
      %1126 = vmatpush1.bf16.msra.mxu0 0
      %1127 = vmatprep.subr.bf16.mxu0 0
      %1128 = vmatpush1.bf16.msra.mxu0 0
      %1129 = vmatprep.subr.bf16.mxu0 0
      %1130 = vmatpush1.bf16.msra.mxu0 0
      %1131 = vmatprep.subr.bf16.mxu0 0
      %1132 = vmatpush1.bf16.msra.mxu0 0
      %1133 = vmatprep.subr.bf16.mxu0 0
      %1134 = vmatpush1.bf16.msra.mxu0 0
      %1135 = vmatprep.mubr.bf16.mxu0 0
      %1136 = vmatmul.mubr.bf16.gmra.mrb[0].mxu0 %v1034
      %v1137 = vpop.f32.mrb[0].mxu0
      %v1138 = vadd.f32 %v1101, %v1137
      %v1139 = vpop.f32.mrb[0].mxu0
      %v1140 = vpop.f32.mrb[0].mxu0
      %v1141 = vadd.f32 %v1101, %v1140
      %v1142 = vpop.f32.mrb[0].mxu0
      %1143 = vmatprep.mubr.bf16.mxu0 0
      %1144 = vmatmul.mubr.bf16.gmra.mrb[0].mxu0 %v1037
      %v1145 = vpop.f32.mrb[0].mxu0
      %v1146 = vadd.f32 %v1101, %v1145
      %v1147 = vpop.f32.mrb[0].mxu0
      %v1148 = vpop.f32.mrb[0].mxu0
      %v1149 = vpop.f32.mrb[0].mxu0
      %1150 = vdwg.mxu0
      %v1151 = vld [vmem:[%s13] sm:$0xff]
      %v1152 = vld [vmem:[%s13 + $0x8] sm:$0xff]
      %v1153 = vld [vmem:[%s13 + $0x10] sm:$0xff]
      %v1154 = vld [vmem:[%s13 + $0x18] sm:$0xff]
      %v1155 = vpack.c.bf16 %v1152, %v1151
      %v1156 = vpack.c.bf16 %v1154, %v1153
      %v1157 = vld [vmem:[%s14] sm:$0x1]
      %v1159 = vlaneseq
      %v1160 = vshrl.u32 %v1159, 7
      %v1161 = vsub.s32 0, %v1160
      %v1162 = vrot.slane %v1157, %v1161
      %1164 = vmatprep.subr.bf16.mxu0 0
      %1165 = vmatpush1.bf16.msra.mxu0 %v1155
      %1166 = vmatprep.subr.bf16.mxu0 0
      %1167 = vmatpush1.bf16.msra.mxu0 %v1156
      %1168 = vmatprep.subr.bf16.mxu0 0
      %1169 = vmatpush1.bf16.msra.mxu0 0
      %1170 = vmatprep.subr.bf16.mxu0 0
      %1171 = vmatpush1.bf16.msra.mxu0 0
      %1172 = vmatprep.subr.bf16.mxu0 0
      %1173 = vmatpush1.bf16.msra.mxu0 0
      %1174 = vmatprep.subr.bf16.mxu0 0
      %1175 = vmatpush1.bf16.msra.mxu0 0
      %1176 = vmatprep.subr.bf16.mxu0 0
      %1177 = vmatpush1.bf16.msra.mxu0 0
      %1178 = vmatprep.subr.bf16.mxu0 0
      %1179 = vmatpush1.bf16.msra.mxu0 0
      %1180 = vmatprep.subr.bf16.mxu0 0
      %1181 = vmatpush1.bf16.msra.mxu0 0
      %1182 = vmatprep.subr.bf16.mxu0 0
      %1183 = vmatpush1.bf16.msra.mxu0 0
      %1184 = vmatprep.subr.bf16.mxu0 0
      %1185 = vmatpush1.bf16.msra.mxu0 0
      %1186 = vmatprep.subr.bf16.mxu0 0
      %1187 = vmatpush1.bf16.msra.mxu0 0
      %1188 = vmatprep.subr.bf16.mxu0 0
      %1189 = vmatpush1.bf16.msra.mxu0 0
      %1190 = vmatprep.subr.bf16.mxu0 0
      %1191 = vmatpush1.bf16.msra.mxu0 0
      %1192 = vmatprep.subr.bf16.mxu0 0
      %1193 = vmatpush1.bf16.msra.mxu0 0
      %1194 = vmatprep.subr.bf16.mxu0 0
      %1195 = vmatpush1.bf16.msra.mxu0 0
      %1196 = vmatprep.mubr.bf16.mxu0 0
      %1197 = vmatmul.mubr.bf16.gmra.mrb[0].mxu0 %v1034
      %v1198 = vpop.f32.mrb[0].mxu0
      %v1199 = vadd.f32 %v1162, %v1198
      %v1200 = vpop.f32.mrb[0].mxu0
      %v1201 = vpop.f32.mrb[0].mxu0
      %v1202 = vadd.f32 %v1162, %v1201
      %v1203 = vpop.f32.mrb[0].mxu0
      %1204 = vmatprep.mubr.bf16.mxu0 0
      %1205 = vmatmul.mubr.bf16.gmra.mrb[0].mxu0 %v1037
      %v1206 = vpop.f32.mrb[0].mxu0
      %v1207 = vadd.f32 %v1162, %v1206
      %v1208 = vpop.f32.mrb[0].mxu0
      %v1209 = vpop.f32.mrb[0].mxu0
      %v1210 = vpop.f32.mrb[0].mxu0
      %1211 = vdwg.mxu0
      %v1212 = vpack.c.bf16 %v1088, %v1087
      %v1213 = vpack.c.bf16 %v1089, %v1089
      %v1214 = vpack.c.bf16 %v1141, %v1138
      %v1215 = vpack.c.bf16 %v1146, %v1146
      %vm1216 = vcmask 64512
      %v1218 = vsel %vm1216, %v1212, 0
      %v1221 = vsel %vm1216, %v1213, 0
      %v1224 = vsel %vm1216, %v1214, 0
      %v1227 = vsel %vm1216, %v1215, 0
      %1229 = vmatprep.subr.bf16.mxu0 0
      %1230 = vmatpush1.bf16.xpose.msra.mxu0 %v1224
      %1231 = vmatprep.subr.bf16.mxu0 0
      %1232 = vmatpush1.bf16.xpose.msra.mxu0 %v1227
      %1233 = vmatprep.subr.bf16.mxu0 0
      %1234 = vmatpush1.bf16.xpose.msra.mxu0 0
      %1235 = vmatprep.subr.bf16.mxu0 0
      %1236 = vmatpush1.bf16.xpose.msra.mxu0 0
      %1237 = vmatprep.subr.bf16.mxu0 0
      %1238 = vmatpush1.bf16.xpose.msra.mxu0 0
      %1239 = vmatprep.subr.bf16.mxu0 0
      %1240 = vmatpush1.bf16.xpose.msra.mxu0 0
      %1241 = vmatprep.subr.bf16.mxu0 0
      %1242 = vmatpush1.bf16.xpose.msra.mxu0 0
      %1243 = vmatprep.subr.bf16.mxu0 0
      %1244 = vmatpush1.bf16.xpose.msra.mxu0 0
      %1245 = vmatprep.subr.bf16.mxu0 0
      %1246 = vmatpush1.bf16.xpose.msra.mxu0 0
      %1247 = vmatprep.subr.bf16.mxu0 0
      %1248 = vmatpush1.bf16.xpose.msra.mxu0 0
      %1249 = vmatprep.subr.bf16.mxu0 0
      %1250 = vmatpush1.bf16.xpose.msra.mxu0 0
      %1251 = vmatprep.subr.bf16.mxu0 0
      %1252 = vmatpush1.bf16.xpose.msra.mxu0 0
      %1253 = vmatprep.subr.bf16.mxu0 0
      %1254 = vmatpush1.bf16.xpose.msra.mxu0 0
      %1255 = vmatprep.subr.bf16.mxu0 0
      %1256 = vmatpush1.bf16.xpose.msra.mxu0 0
      %1257 = vmatprep.subr.bf16.mxu0 0
      %1258 = vmatpush1.bf16.xpose.msra.mxu0 0
      %1259 = vmatprep.subr.bf16.mxu0 0
      %1260 = vmatpush1.bf16.xpose.msra.mxu0 0
      %1261 = vmatprep.mubr.bf16.mxu0 0
      %1262 = vmatmul.mubr.bf16.gmra.mrb[0].mxu0 %v1218
      %v1263 = vpop.f32.mrb[0].mxu0
      %v1264 = vadd.f32 0.0, %v1263
      %v1265 = vpop.f32.mrb[0].mxu0
      %v1266 = vpop.f32.mrb[0].mxu0
      %v1267 = vadd.f32 0.0, %v1266
      %v1268 = vpop.f32.mrb[0].mxu0
      %1269 = vmatprep.mubr.bf16.mxu0 0
      %1270 = vmatmul.mubr.bf16.gmra.mrb[0].mxu0 %v1221
      %v1271 = vpop.f32.mrb[0].mxu0
      %v1272 = vadd.f32 0.0, %v1271
      %v1273 = vpop.f32.mrb[0].mxu0
      %v1274 = vpop.f32.mrb[0].mxu0
      %v1275 = vpop.f32.mrb[0].mxu0
      %1276 = vdwg.mxu0
      %vm1277 = vcmask 138240
      %v1278 = vsel %vm1277, %v1264, -inf
      %1279 = vmax.xlane.f32.xlu0 %v1278
      %v1280 = vpop.xlane.xlu0 %1279
      %v1281 = vsel %vm1277, %v1267, -inf
      %1282 = vmax.xlane.f32.xlu0 %v1281
      %v1283 = vpop.xlane.xlu0 %1282
      %vm1284 = vcmask 131072
      %v1285 = vsel %vm1284, %v1272, -inf
      %1286 = vmax.xlane.f32.xlu0 %v1285
      %v1287 = vpop.xlane.xlu0 %1286
      %v1288 = vsub.f32 %v1264, %v1280
      %v1289 = vsub.f32 %v1267, %v1283
      %v1290 = vsub.f32 %v1272, %v1287
      %v1291 = vmul.f32 %v1288, 1.442695
      %v1292 = vpow.pop %v1291
      %v1293 = vmul.f32 %v1289, 1.442695
      %v1294 = vpow.pop %v1293
      %v1295 = vmul.f32 %v1290, 1.442695
      %v1296 = vpow.pop %v1295
      %v1297 = vsel %vm1277, %v1292, 0.0
      %1298 = vadd.xlane.f32.xlu0 %v1297
      %v1299 = vpop.xlane.xlu0 %1298
      %v1300 = vsel %vm1277, %v1294, 0.0
      %1301 = vadd.xlane.f32.xlu0 %v1300
      %v1302 = vpop.xlane.xlu0 %1301
      %v1303 = vsel %vm1284, %v1296, 0.0
      %1304 = vadd.xlane.f32.xlu0 %v1303
      %v1305 = vpop.xlane.xlu0 %1304
      %v1306 = vrcp.pop %v1299
      %v1307 = vrcp.pop %v1302
      %v1308 = vrcp.pop %v1305
      %v1309 = vmul.f32 %v1292, %v1306
      %v1310 = vmul.f32 %v1294, %v1307
      %v1311 = vmul.f32 %v1296, %v1308
      %v1312 = vpack.c.bf16 %v1310, %v1309
      %v1313 = vpack.c.bf16 %v1311, %v1311
      %v1314 = vpack.c.bf16 %v1202, %v1199
      %v1315 = vpack.c.bf16 %v1207, %v1207
      %v1317 = vsel %vm1277, %v1312, 0
      %v1320 = vsel %vm1277, %v1313, 0
      %vm1322 = vcmask 1040384
      %v1323 = vsel 0, 4294967295, 65535
      %v1324 = vsel %vm1322, %v1323, 0
      %v1326 = vand.u32 %v1315, %v1324
      %1328 = vmatprep.subr.bf16.mxu0 0
      %1329 = vmatpush1.bf16.msra.mxu0 %v1314
      %1330 = vmatprep.subr.bf16.mxu0 0
      %1331 = vmatpush1.bf16.msra.mxu0 %v1326
      %1332 = vmatprep.subr.bf16.mxu0 0
      %1333 = vmatpush1.bf16.msra.mxu0 0
      %1334 = vmatprep.subr.bf16.mxu0 0
      %1335 = vmatpush1.bf16.msra.mxu0 0
      %1336 = vmatprep.subr.bf16.mxu0 0
      %1337 = vmatpush1.bf16.msra.mxu0 0
      %1338 = vmatprep.subr.bf16.mxu0 0
      %1339 = vmatpush1.bf16.msra.mxu0 0
      %1340 = vmatprep.subr.bf16.mxu0 0
      %1341 = vmatpush1.bf16.msra.mxu0 0
      %1342 = vmatprep.subr.bf16.mxu0 0
      %1343 = vmatpush1.bf16.msra.mxu0 0
      %1344 = vmatprep.subr.bf16.mxu0 0
      %1345 = vmatpush1.bf16.msra.mxu0 0
      %1346 = vmatprep.subr.bf16.mxu0 0
      %1347 = vmatpush1.bf16.msra.mxu0 0
      %1348 = vmatprep.subr.bf16.mxu0 0
      %1349 = vmatpush1.bf16.msra.mxu0 0
      %1350 = vmatprep.subr.bf16.mxu0 0
      %1351 = vmatpush1.bf16.msra.mxu0 0
      %1352 = vmatprep.subr.bf16.mxu0 0
      %1353 = vmatpush1.bf16.msra.mxu0 0
      %1354 = vmatprep.subr.bf16.mxu0 0
      %1355 = vmatpush1.bf16.msra.mxu0 0
      %1356 = vmatprep.subr.bf16.mxu0 0
      %1357 = vmatpush1.bf16.msra.mxu0 0
      %1358 = vmatprep.subr.bf16.mxu0 0
      %1359 = vmatpush1.bf16.msra.mxu0 0
      %1360 = vmatprep.mubr.bf16.mxu0 0
      %1361 = vmatmul.mubr.bf16.gmra.mrb[0].mxu0 %v1317
      %v1362 = vpop.f32.mrb[0].mxu0
      %v1363 = vadd.f32 0.0, %v1362
      %v1364 = vpop.f32.mrb[0].mxu0
      %v1365 = vpop.f32.mrb[0].mxu0
      %v1366 = vadd.f32 0.0, %v1365
      %v1367 = vpop.f32.mrb[0].mxu0
      %1368 = vmatprep.mubr.bf16.mxu0 0
      %1369 = vmatmul.mubr.bf16.gmra.mrb[0].mxu0 %v1320
      %v1370 = vpop.f32.mrb[0].mxu0
      %v1371 = vadd.f32 0.0, %v1370
      %v1372 = vpop.f32.mrb[0].mxu0
      %v1373 = vpop.f32.mrb[0].mxu0
      %v1374 = vpop.f32.mrb[0].mxu0
      %1375 = vdwg.mxu0
      %v1376 = vld [vmem:[%s15] sm:$0xff]
      %v1377 = vpack.c.bf16 %v1366, %v1363
      %v1378 = vpack.c.bf16 %v1371, %v1371
      %v1379 = vpack.c.bf16 %v1376, %v1376
      %s1380 = scalar_lea.vmem %s9, 32
      %v1381 = vld [vmem:[%s1380] sm:$0xff]
      %v1382 = vld [vmem:[%s1380 + $0x8] sm:$0xff]
      %v1383 = vld [vmem:[%s1380 + $0x10] sm:$0xff]
      %v1384 = vld [vmem:[%s1380 + $0x18] sm:$0xff]
      %v1385 = vpack.c.bf16 %v1382, %v1381
      %v1386 = vpack.c.bf16 %v1384, %v1383
      %s1387 = scalar_lea.vmem %s10, 1
      %v1388 = vld [vmem:[%s1387] sm:$0x1]
      %v1390 = vlaneseq
      %v1391 = vshrl.u32 %v1390, 7
      %v1392 = vsub.s32 0, %v1391
      %v1393 = vrot.slane %v1388, %v1392
      %1395 = vmatprep.subr.bf16.mxu0 0
      %1396 = vmatpush1.bf16.msra.mxu0 %v1385
      %1397 = vmatprep.subr.bf16.mxu0 0
      %1398 = vmatpush1.bf16.msra.mxu0 %v1386
      %1399 = vmatprep.subr.bf16.mxu0 0
      %1400 = vmatpush1.bf16.msra.mxu0 0
      %1401 = vmatprep.subr.bf16.mxu0 0
      %1402 = vmatpush1.bf16.msra.mxu0 0
      %1403 = vmatprep.subr.bf16.mxu0 0
      %1404 = vmatpush1.bf16.msra.mxu0 0
      %1405 = vmatprep.subr.bf16.mxu0 0
      %1406 = vmatpush1.bf16.msra.mxu0 0
      %1407 = vmatprep.subr.bf16.mxu0 0
      %1408 = vmatpush1.bf16.msra.mxu0 0
      %1409 = vmatprep.subr.bf16.mxu0 0
      %1410 = vmatpush1.bf16.msra.mxu0 0
      %1411 = vmatprep.subr.bf16.mxu0 0
      %1412 = vmatpush1.bf16.msra.mxu0 0
      %1413 = vmatprep.subr.bf16.mxu0 0
      %1414 = vmatpush1.bf16.msra.mxu0 0
      %1415 = vmatprep.subr.bf16.mxu0 0
      %1416 = vmatpush1.bf16.msra.mxu0 0
      %1417 = vmatprep.subr.bf16.mxu0 0
      %1418 = vmatpush1.bf16.msra.mxu0 0
      %1419 = vmatprep.subr.bf16.mxu0 0
      %1420 = vmatpush1.bf16.msra.mxu0 0
      %1421 = vmatprep.subr.bf16.mxu0 0
      %1422 = vmatpush1.bf16.msra.mxu0 0
      %1423 = vmatprep.subr.bf16.mxu0 0
      %1424 = vmatpush1.bf16.msra.mxu0 0
      %1425 = vmatprep.subr.bf16.mxu0 0
      %1426 = vmatpush1.bf16.msra.mxu0 0
      %1427 = vmatprep.mubr.bf16.mxu0 0
      %1428 = vmatmul.mubr.bf16.gmra.mrb[0].mxu0 %v1034
      %v1429 = vpop.f32.mrb[0].mxu0
      %v1430 = vadd.f32 %v1393, %v1429
      %v1431 = vpop.f32.mrb[0].mxu0
      %v1432 = vpop.f32.mrb[0].mxu0
      %v1433 = vadd.f32 %v1393, %v1432
      %v1434 = vpop.f32.mrb[0].mxu0
      %1435 = vmatprep.mubr.bf16.mxu0 0
      %1436 = vmatmul.mubr.bf16.gmra.mrb[0].mxu0 %v1037
      %v1437 = vpop.f32.mrb[0].mxu0
      %v1438 = vadd.f32 %v1393, %v1437
      %v1439 = vpop.f32.mrb[0].mxu0
      %v1440 = vpop.f32.mrb[0].mxu0
      %v1441 = vpop.f32.mrb[0].mxu0
      %1442 = vdwg.mxu0
      %v1443 = vmul.f32 %v1430, 0.35355338
      %v1444 = vmul.f32 %v1433, 0.35355338
      %v1445 = vmul.f32 %v1438, 0.35355338
      %s1446 = scalar_lea.vmem %s11, 32
      %v1447 = vld [vmem:[%s1446] sm:$0xff]
      %v1448 = vld [vmem:[%s1446 + $0x8] sm:$0xff]
      %v1449 = vld [vmem:[%s1446 + $0x10] sm:$0xff]
      %v1450 = vld [vmem:[%s1446 + $0x18] sm:$0xff]
      %v1451 = vpack.c.bf16 %v1448, %v1447
      %v1452 = vpack.c.bf16 %v1450, %v1449
      %s1453 = scalar_lea.vmem %s12, 1
      %v1454 = vld [vmem:[%s1453] sm:$0x1]
      %v1456 = vlaneseq
      %v1457 = vshrl.u32 %v1456, 7
      %v1458 = vsub.s32 0, %v1457
      %v1459 = vrot.slane %v1454, %v1458
      %1461 = vmatprep.subr.bf16.mxu0 0
      %1462 = vmatpush1.bf16.msra.mxu0 %v1451
      %1463 = vmatprep.subr.bf16.mxu0 0
      %1464 = vmatpush1.bf16.msra.mxu0 %v1452
      %1465 = vmatprep.subr.bf16.mxu0 0
      %1466 = vmatpush1.bf16.msra.mxu0 0
      %1467 = vmatprep.subr.bf16.mxu0 0
      %1468 = vmatpush1.bf16.msra.mxu0 0
      %1469 = vmatprep.subr.bf16.mxu0 0
      %1470 = vmatpush1.bf16.msra.mxu0 0
      %1471 = vmatprep.subr.bf16.mxu0 0
      %1472 = vmatpush1.bf16.msra.mxu0 0
      %1473 = vmatprep.subr.bf16.mxu0 0
      %1474 = vmatpush1.bf16.msra.mxu0 0
      %1475 = vmatprep.subr.bf16.mxu0 0
      %1476 = vmatpush1.bf16.msra.mxu0 0
      %1477 = vmatprep.subr.bf16.mxu0 0
      %1478 = vmatpush1.bf16.msra.mxu0 0
      %1479 = vmatprep.subr.bf16.mxu0 0
      %1480 = vmatpush1.bf16.msra.mxu0 0
      %1481 = vmatprep.subr.bf16.mxu0 0
      %1482 = vmatpush1.bf16.msra.mxu0 0
      %1483 = vmatprep.subr.bf16.mxu0 0
      %1484 = vmatpush1.bf16.msra.mxu0 0
      %1485 = vmatprep.subr.bf16.mxu0 0
      %1486 = vmatpush1.bf16.msra.mxu0 0
      %1487 = vmatprep.subr.bf16.mxu0 0
      %1488 = vmatpush1.bf16.msra.mxu0 0
      %1489 = vmatprep.subr.bf16.mxu0 0
      %1490 = vmatpush1.bf16.msra.mxu0 0
      %1491 = vmatprep.subr.bf16.mxu0 0
      %1492 = vmatpush1.bf16.msra.mxu0 0
      %1493 = vmatprep.mubr.bf16.mxu0 0
      %1494 = vmatmul.mubr.bf16.gmra.mrb[0].mxu0 %v1034
      %v1495 = vpop.f32.mrb[0].mxu0
      %v1496 = vadd.f32 %v1459, %v1495
      %v1497 = vpop.f32.mrb[0].mxu0
      %v1498 = vpop.f32.mrb[0].mxu0
      %v1499 = vadd.f32 %v1459, %v1498
      %v1500 = vpop.f32.mrb[0].mxu0
      %1501 = vmatprep.mubr.bf16.mxu0 0
      %1502 = vmatmul.mubr.bf16.gmra.mrb[0].mxu0 %v1037
      %v1503 = vpop.f32.mrb[0].mxu0
      %v1504 = vadd.f32 %v1459, %v1503
      %v1505 = vpop.f32.mrb[0].mxu0
      %v1506 = vpop.f32.mrb[0].mxu0
      %v1507 = vpop.f32.mrb[0].mxu0
      %1508 = vdwg.mxu0
      %s1509 = scalar_lea.vmem %s13, 32
      %v1510 = vld [vmem:[%s1509] sm:$0xff]
      %v1511 = vld [vmem:[%s1509 + $0x8] sm:$0xff]
      %v1512 = vld [vmem:[%s1509 + $0x10] sm:$0xff]
      %v1513 = vld [vmem:[%s1509 + $0x18] sm:$0xff]
      %v1514 = vpack.c.bf16 %v1511, %v1510
      %v1515 = vpack.c.bf16 %v1513, %v1512
      %s1516 = scalar_lea.vmem %s14, 1
      %v1517 = vld [vmem:[%s1516] sm:$0x1]
      %v1519 = vlaneseq
      %v1520 = vshrl.u32 %v1519, 7
      %v1521 = vsub.s32 0, %v1520
      %v1522 = vrot.slane %v1517, %v1521
      %1524 = vmatprep.subr.bf16.mxu0 0
      %1525 = vmatpush1.bf16.msra.mxu0 %v1514
      %1526 = vmatprep.subr.bf16.mxu0 0
      %1527 = vmatpush1.bf16.msra.mxu0 %v1515
      %1528 = vmatprep.subr.bf16.mxu0 0
      %1529 = vmatpush1.bf16.msra.mxu0 0
      %1530 = vmatprep.subr.bf16.mxu0 0
      %1531 = vmatpush1.bf16.msra.mxu0 0
      %1532 = vmatprep.subr.bf16.mxu0 0
      %1533 = vmatpush1.bf16.msra.mxu0 0
      %1534 = vmatprep.subr.bf16.mxu0 0
      %1535 = vmatpush1.bf16.msra.mxu0 0
      %1536 = vmatprep.subr.bf16.mxu0 0
      %1537 = vmatpush1.bf16.msra.mxu0 0
      %1538 = vmatprep.subr.bf16.mxu0 0
      %1539 = vmatpush1.bf16.msra.mxu0 0
      %1540 = vmatprep.subr.bf16.mxu0 0
      %1541 = vmatpush1.bf16.msra.mxu0 0
      %1542 = vmatprep.subr.bf16.mxu0 0
      %1543 = vmatpush1.bf16.msra.mxu0 0
      %1544 = vmatprep.subr.bf16.mxu0 0
      %1545 = vmatpush1.bf16.msra.mxu0 0
      %1546 = vmatprep.subr.bf16.mxu0 0
      %1547 = vmatpush1.bf16.msra.mxu0 0
      %1548 = vmatprep.subr.bf16.mxu0 0
      %1549 = vmatpush1.bf16.msra.mxu0 0
      %1550 = vmatprep.subr.bf16.mxu0 0
      %1551 = vmatpush1.bf16.msra.mxu0 0
      %1552 = vmatprep.subr.bf16.mxu0 0
      %1553 = vmatpush1.bf16.msra.mxu0 0
      %1554 = vmatprep.subr.bf16.mxu0 0
      %1555 = vmatpush1.bf16.msra.mxu0 0
      %1556 = vmatprep.mubr.bf16.mxu0 0
      %1557 = vmatmul.mubr.bf16.gmra.mrb[0].mxu0 %v1034
      %v1558 = vpop.f32.mrb[0].mxu0
      %v1559 = vadd.f32 %v1522, %v1558
      %v1560 = vpop.f32.mrb[0].mxu0
      %v1561 = vpop.f32.mrb[0].mxu0
      %v1562 = vadd.f32 %v1522, %v1561
      %v1563 = vpop.f32.mrb[0].mxu0
      %1564 = vmatprep.mubr.bf16.mxu0 0
      %1565 = vmatmul.mubr.bf16.gmra.mrb[0].mxu0 %v1037
      %v1566 = vpop.f32.mrb[0].mxu0
      %v1567 = vadd.f32 %v1522, %v1566
      %v1568 = vpop.f32.mrb[0].mxu0
      %v1569 = vpop.f32.mrb[0].mxu0
      %v1570 = vpop.f32.mrb[0].mxu0
      %1571 = vdwg.mxu0
      %v1572 = vpack.c.bf16 %v1444, %v1443
      %v1573 = vpack.c.bf16 %v1445, %v1445
      %v1574 = vpack.c.bf16 %v1499, %v1496
      %v1575 = vpack.c.bf16 %v1504, %v1504
      %v1577 = vsel %vm1216, %v1572, 0
      %v1580 = vsel %vm1216, %v1573, 0
      %v1583 = vsel %vm1216, %v1574, 0
      %v1586 = vsel %vm1216, %v1575, 0
      %1588 = vmatprep.subr.bf16.mxu0 0
      %1589 = vmatpush1.bf16.xpose.msra.mxu0 %v1583
      %1590 = vmatprep.subr.bf16.mxu0 0
      %1591 = vmatpush1.bf16.xpose.msra.mxu0 %v1586
      %1592 = vmatprep.subr.bf16.mxu0 0
      %1593 = vmatpush1.bf16.xpose.msra.mxu0 0
      %1594 = vmatprep.subr.bf16.mxu0 0
      %1595 = vmatpush1.bf16.xpose.msra.mxu0 0
      %1596 = vmatprep.subr.bf16.mxu0 0
      %1597 = vmatpush1.bf16.xpose.msra.mxu0 0
      %1598 = vmatprep.subr.bf16.mxu0 0
      %1599 = vmatpush1.bf16.xpose.msra.mxu0 0
      %1600 = vmatprep.subr.bf16.mxu0 0
      %1601 = vmatpush1.bf16.xpose.msra.mxu0 0
      %1602 = vmatprep.subr.bf16.mxu0 0
      %1603 = vmatpush1.bf16.xpose.msra.mxu0 0
      %1604 = vmatprep.subr.bf16.mxu0 0
      %1605 = vmatpush1.bf16.xpose.msra.mxu0 0
      %1606 = vmatprep.subr.bf16.mxu0 0
      %1607 = vmatpush1.bf16.xpose.msra.mxu0 0
      %1608 = vmatprep.subr.bf16.mxu0 0
      %1609 = vmatpush1.bf16.xpose.msra.mxu0 0
      %1610 = vmatprep.subr.bf16.mxu0 0
      %1611 = vmatpush1.bf16.xpose.msra.mxu0 0
      %1612 = vmatprep.subr.bf16.mxu0 0
      %1613 = vmatpush1.bf16.xpose.msra.mxu0 0
      %1614 = vmatprep.subr.bf16.mxu0 0
      %1615 = vmatpush1.bf16.xpose.msra.mxu0 0
      %1616 = vmatprep.subr.bf16.mxu0 0
      %1617 = vmatpush1.bf16.xpose.msra.mxu0 0
      %1618 = vmatprep.subr.bf16.mxu0 0
      %1619 = vmatpush1.bf16.xpose.msra.mxu0 0
      %1620 = vmatprep.mubr.bf16.mxu0 0
      %1621 = vmatmul.mubr.bf16.gmra.mrb[0].mxu0 %v1577
      %v1622 = vpop.f32.mrb[0].mxu0
      %v1623 = vadd.f32 0.0, %v1622
      %v1624 = vpop.f32.mrb[0].mxu0
      %v1625 = vpop.f32.mrb[0].mxu0
      %v1626 = vadd.f32 0.0, %v1625
      %v1627 = vpop.f32.mrb[0].mxu0
      %1628 = vmatprep.mubr.bf16.mxu0 0
      %1629 = vmatmul.mubr.bf16.gmra.mrb[0].mxu0 %v1580
      %v1630 = vpop.f32.mrb[0].mxu0
      %v1631 = vadd.f32 0.0, %v1630
      %v1632 = vpop.f32.mrb[0].mxu0
      %v1633 = vpop.f32.mrb[0].mxu0
      %v1634 = vpop.f32.mrb[0].mxu0
      %1635 = vdwg.mxu0
      %v1636 = vsel %vm1277, %v1623, -inf
      %1637 = vmax.xlane.f32.xlu0 %v1636
      %v1638 = vpop.xlane.xlu0 %1637
      %v1639 = vsel %vm1277, %v1626, -inf
      %1640 = vmax.xlane.f32.xlu0 %v1639
      %v1641 = vpop.xlane.xlu0 %1640
      %v1642 = vsel %vm1284, %v1631, -inf
      %1643 = vmax.xlane.f32.xlu0 %v1642
      %v1644 = vpop.xlane.xlu0 %1643
      %v1645 = vsub.f32 %v1623, %v1638
      %v1646 = vsub.f32 %v1626, %v1641
      %v1647 = vsub.f32 %v1631, %v1644
      %v1648 = vmul.f32 %v1645, 1.442695
      %v1649 = vpow.pop %v1648
      %v1650 = vmul.f32 %v1646, 1.442695
      %v1651 = vpow.pop %v1650
      %v1652 = vmul.f32 %v1647, 1.442695
      %v1653 = vpow.pop %v1652
      %v1654 = vsel %vm1277, %v1649, 0.0
      %1655 = vadd.xlane.f32.xlu0 %v1654
      %v1656 = vpop.xlane.xlu0 %1655
      %v1657 = vsel %vm1277, %v1651, 0.0
      %1658 = vadd.xlane.f32.xlu0 %v1657
      %v1659 = vpop.xlane.xlu0 %1658
      %v1660 = vsel %vm1284, %v1653, 0.0
      %1661 = vadd.xlane.f32.xlu0 %v1660
      %v1662 = vpop.xlane.xlu0 %1661
      %v1663 = vrcp.pop %v1656
      %v1664 = vrcp.pop %v1659
      %v1665 = vrcp.pop %v1662
      %v1666 = vmul.f32 %v1649, %v1663
      %v1667 = vmul.f32 %v1651, %v1664
      %v1668 = vmul.f32 %v1653, %v1665
      %v1669 = vpack.c.bf16 %v1667, %v1666
      %v1670 = vpack.c.bf16 %v1668, %v1668
      %v1671 = vpack.c.bf16 %v1562, %v1559
      %v1672 = vpack.c.bf16 %v1567, %v1567
      %v1674 = vsel %vm1277, %v1669, 0
      %v1677 = vsel %vm1277, %v1670, 0
      %v1680 = vand.u32 %v1672, %v1324
      %1682 = vmatprep.subr.bf16.mxu0 0
      %1683 = vmatpush1.bf16.msra.mxu0 %v1671
      %1684 = vmatprep.subr.bf16.mxu0 0
      %1685 = vmatpush1.bf16.msra.mxu0 %v1680
      %1686 = vmatprep.subr.bf16.mxu0 0
      %1687 = vmatpush1.bf16.msra.mxu0 0
      %1688 = vmatprep.subr.bf16.mxu0 0
      %1689 = vmatpush1.bf16.msra.mxu0 0
      %1690 = vmatprep.subr.bf16.mxu0 0
      %1691 = vmatpush1.bf16.msra.mxu0 0
      %1692 = vmatprep.subr.bf16.mxu0 0
      %1693 = vmatpush1.bf16.msra.mxu0 0
      %1694 = vmatprep.subr.bf16.mxu0 0
      %1695 = vmatpush1.bf16.msra.mxu0 0
      %1696 = vmatprep.subr.bf16.mxu0 0
      %1697 = vmatpush1.bf16.msra.mxu0 0
      %1698 = vmatprep.subr.bf16.mxu0 0
      %1699 = vmatpush1.bf16.msra.mxu0 0
      %1700 = vmatprep.subr.bf16.mxu0 0
      %1701 = vmatpush1.bf16.msra.mxu0 0
      %1702 = vmatprep.subr.bf16.mxu0 0
      %1703 = vmatpush1.bf16.msra.mxu0 0
      %1704 = vmatprep.subr.bf16.mxu0 0
      %1705 = vmatpush1.bf16.msra.mxu0 0
      %1706 = vmatprep.subr.bf16.mxu0 0
      %1707 = vmatpush1.bf16.msra.mxu0 0
      %1708 = vmatprep.subr.bf16.mxu0 0
      %1709 = vmatpush1.bf16.msra.mxu0 0
      %1710 = vmatprep.subr.bf16.mxu0 0
      %1711 = vmatpush1.bf16.msra.mxu0 0
      %1712 = vmatprep.subr.bf16.mxu0 0
      %1713 = vmatpush1.bf16.msra.mxu0 0
      %1714 = vmatprep.mubr.bf16.mxu0 0
      %1715 = vmatmul.mubr.bf16.gmra.mrb[0].mxu0 %v1674
      %v1716 = vpop.f32.mrb[0].mxu0
      %v1717 = vadd.f32 0.0, %v1716
      %v1718 = vpop.f32.mrb[0].mxu0
      %v1719 = vpop.f32.mrb[0].mxu0
      %v1720 = vadd.f32 0.0, %v1719
      %v1721 = vpop.f32.mrb[0].mxu0
      %1722 = vmatprep.mubr.bf16.mxu0 0
      %1723 = vmatmul.mubr.bf16.gmra.mrb[0].mxu0 %v1677
      %v1724 = vpop.f32.mrb[0].mxu0
      %v1725 = vadd.f32 0.0, %v1724
      %v1726 = vpop.f32.mrb[0].mxu0
      %v1727 = vpop.f32.mrb[0].mxu0
      %v1728 = vpop.f32.mrb[0].mxu0
      %1729 = vdwg.mxu0
      %s1730 = scalar_lea.vmem %s15, 8
      %v1731 = vld [vmem:[%s1730] sm:$0xff]
      %v1732 = vpack.c.bf16 %v1720, %v1717
      %v1733 = vpack.c.bf16 %v1725, %v1725
      %v1734 = vpack.c.bf16 %v1731, %v1731
      %v1736 = vsel %vm1216, %v1732, 0
      %v1739 = vsel %vm1216, %v1733, 0
      %vm1741 = vcmask 1043456
      %v1743 = vsel %vm1741, %v1734, 0
      %1745 = vmatprep.subr.bf16.mxu0 0
      %1746 = vmatpush1.bf16.msra.mxu0 %v1743
      %1747 = vmatprep.subr.bf16.mxu0 0
      %1748 = vmatpush1.bf16.msra.mxu0 0
      %1749 = vmatprep.subr.bf16.mxu0 0
      %1750 = vmatpush1.bf16.msra.mxu0 0
      %1751 = vmatprep.subr.bf16.mxu0 0
      %1752 = vmatpush1.bf16.msra.mxu0 0
      %1753 = vmatprep.subr.bf16.mxu0 0
      %1754 = vmatpush1.bf16.msra.mxu0 0
      %1755 = vmatprep.subr.bf16.mxu0 0
      %1756 = vmatpush1.bf16.msra.mxu0 0
      %1757 = vmatprep.subr.bf16.mxu0 0
      %1758 = vmatpush1.bf16.msra.mxu0 0
      %1759 = vmatprep.subr.bf16.mxu0 0
      %1760 = vmatpush1.bf16.msra.mxu0 0
      %1761 = vmatprep.subr.bf16.mxu0 0
      %1762 = vmatpush1.bf16.msra.mxu0 0
      %1763 = vmatprep.subr.bf16.mxu0 0
      %1764 = vmatpush1.bf16.msra.mxu0 0
      %1765 = vmatprep.subr.bf16.mxu0 0
      %1766 = vmatpush1.bf16.msra.mxu0 0
      %1767 = vmatprep.subr.bf16.mxu0 0
      %1768 = vmatpush1.bf16.msra.mxu0 0
      %1769 = vmatprep.subr.bf16.mxu0 0
      %1770 = vmatpush1.bf16.msra.mxu0 0
      %1771 = vmatprep.subr.bf16.mxu0 0
      %1772 = vmatpush1.bf16.msra.mxu0 0
      %1773 = vmatprep.subr.bf16.mxu0 0
      %1774 = vmatpush1.bf16.msra.mxu0 0
      %1775 = vmatprep.subr.bf16.mxu0 0
      %1776 = vmatpush1.bf16.msra.mxu0 0
      %1777 = vmatprep.mubr.bf16.mxu0 0
      %1778 = vmatmul.mubr.bf16.gmra.mrb[0].mxu0 %v1736
      %v1779 = vpop.f32.mrb[0].mxu0
      %v1780 = vadd.f32 0.0, %v1779
      %v1781 = vpop.f32.mrb[0].mxu0
      %v1782 = vpop.f32.mrb[0].mxu0
      %v1783 = vadd.f32 0.0, %v1782
      %v1784 = vpop.f32.mrb[0].mxu0
      %1785 = vmatprep.mubr.bf16.mxu0 0
      %1786 = vmatmul.mubr.bf16.gmra.mrb[0].mxu0 %v1739
      %v1787 = vpop.f32.mrb[0].mxu0
      %v1788 = vadd.f32 0.0, %v1787
      %v1789 = vpop.f32.mrb[0].mxu0
      %v1790 = vpop.f32.mrb[0].mxu0
      %v1791 = vpop.f32.mrb[0].mxu0
      %1792 = vdwg.mxu0
      %v1794 = vsel %vm1216, %v1377, 0
      %v1797 = vsel %vm1216, %v1378, 0
      %v1800 = vsel %vm1741, %v1379, 0
      %1802 = vmatprep.subr.bf16.mxu0 0
      %1803 = vmatpush1.bf16.msra.mxu0 %v1800
      %1804 = vmatprep.subr.bf16.mxu0 0
      %1805 = vmatpush1.bf16.msra.mxu0 0
      %1806 = vmatprep.subr.bf16.mxu0 0
      %1807 = vmatpush1.bf16.msra.mxu0 0
      %1808 = vmatprep.subr.bf16.mxu0 0
      %1809 = vmatpush1.bf16.msra.mxu0 0
      %1810 = vmatprep.subr.bf16.mxu0 0
      %1811 = vmatpush1.bf16.msra.mxu0 0
      %1812 = vmatprep.subr.bf16.mxu0 0
      %1813 = vmatpush1.bf16.msra.mxu0 0
      %1814 = vmatprep.subr.bf16.mxu0 0
      %1815 = vmatpush1.bf16.msra.mxu0 0
      %1816 = vmatprep.subr.bf16.mxu0 0
      %1817 = vmatpush1.bf16.msra.mxu0 0
      %1818 = vmatprep.subr.bf16.mxu0 0
      %1819 = vmatpush1.bf16.msra.mxu0 0
      %1820 = vmatprep.subr.bf16.mxu0 0
      %1821 = vmatpush1.bf16.msra.mxu0 0
      %1822 = vmatprep.subr.bf16.mxu0 0
      %1823 = vmatpush1.bf16.msra.mxu0 0
      %1824 = vmatprep.subr.bf16.mxu0 0
      %1825 = vmatpush1.bf16.msra.mxu0 0
      %1826 = vmatprep.subr.bf16.mxu0 0
      %1827 = vmatpush1.bf16.msra.mxu0 0
      %1828 = vmatprep.subr.bf16.mxu0 0
      %1829 = vmatpush1.bf16.msra.mxu0 0
      %1830 = vmatprep.subr.bf16.mxu0 0
      %1831 = vmatpush1.bf16.msra.mxu0 0
      %1832 = vmatprep.subr.bf16.mxu0 0
      %1833 = vmatpush1.bf16.msra.mxu0 0
      %1834 = vmatprep.mubr.bf16.mxu0 0
      %1835 = vmatmul.mubr.bf16.gmra.mrb[0].mxu0 %v1794
      %v1836 = vpop.f32.mrb[0].mxu0
      %v1837 = vadd.f32 %v1780, %v1836
      %v1838 = vpop.f32.mrb[0].mxu0
      %v1839 = vpop.f32.mrb[0].mxu0
      %v1840 = vadd.f32 %v1783, %v1839
      %v1841 = vpop.f32.mrb[0].mxu0
      %1842 = vmatprep.mubr.bf16.mxu0 0
      %1843 = vmatmul.mubr.bf16.gmra.mrb[0].mxu0 %v1797
      %v1844 = vpop.f32.mrb[0].mxu0
      %v1845 = vadd.f32 %v1788, %v1844
      %v1846 = vpop.f32.mrb[0].mxu0
      %v1847 = vpop.f32.mrb[0].mxu0
      %v1848 = vpop.f32.mrb[0].mxu0
      %1849 = vdwg.mxu0
      %s1850 = scalar_lea.vmem %s9, 64
      %v1851 = vld [vmem:[%s1850] sm:$0xff]
      %v1852 = vld [vmem:[%s1850 + $0x8] sm:$0xff]
      %v1853 = vld [vmem:[%s1850 + $0x10] sm:$0xff]
      %v1854 = vld [vmem:[%s1850 + $0x18] sm:$0xff]
      %v1855 = vpack.c.bf16 %v1852, %v1851
      %v1856 = vpack.c.bf16 %v1854, %v1853
      %s1857 = scalar_lea.vmem %s10, 2
      %v1858 = vld [vmem:[%s1857] sm:$0x1]
      %v1860 = vlaneseq
      %v1861 = vshrl.u32 %v1860, 7
      %v1862 = vsub.s32 0, %v1861
      %v1863 = vrot.slane %v1858, %v1862
      %1865 = vmatprep.subr.bf16.mxu0 0
      %1866 = vmatpush1.bf16.msra.mxu0 %v1855
      %1867 = vmatprep.subr.bf16.mxu0 0
      %1868 = vmatpush1.bf16.msra.mxu0 %v1856
      %1869 = vmatprep.subr.bf16.mxu0 0
      %1870 = vmatpush1.bf16.msra.mxu0 0
      %1871 = vmatprep.subr.bf16.mxu0 0
      %1872 = vmatpush1.bf16.msra.mxu0 0
      %1873 = vmatprep.subr.bf16.mxu0 0
      %1874 = vmatpush1.bf16.msra.mxu0 0
      %1875 = vmatprep.subr.bf16.mxu0 0
      %1876 = vmatpush1.bf16.msra.mxu0 0
      %1877 = vmatprep.subr.bf16.mxu0 0
      %1878 = vmatpush1.bf16.msra.mxu0 0
      %1879 = vmatprep.subr.bf16.mxu0 0
      %1880 = vmatpush1.bf16.msra.mxu0 0
      %1881 = vmatprep.subr.bf16.mxu0 0
      %1882 = vmatpush1.bf16.msra.mxu0 0
      %1883 = vmatprep.subr.bf16.mxu0 0
      %1884 = vmatpush1.bf16.msra.mxu0 0
      %1885 = vmatprep.subr.bf16.mxu0 0
      %1886 = vmatpush1.bf16.msra.mxu0 0
      %1887 = vmatprep.subr.bf16.mxu0 0
      %1888 = vmatpush1.bf16.msra.mxu0 0
      %1889 = vmatprep.subr.bf16.mxu0 0
      %1890 = vmatpush1.bf16.msra.mxu0 0
      %1891 = vmatprep.subr.bf16.mxu0 0
      %1892 = vmatpush1.bf16.msra.mxu0 0
      %1893 = vmatprep.subr.bf16.mxu0 0
      %1894 = vmatpush1.bf16.msra.mxu0 0
      %1895 = vmatprep.subr.bf16.mxu0 0
      %1896 = vmatpush1.bf16.msra.mxu0 0
      %1897 = vmatprep.mubr.bf16.mxu0 0
      %1898 = vmatmul.mubr.bf16.gmra.mrb[0].mxu0 %v1034
      %v1899 = vpop.f32.mrb[0].mxu0
      %v1900 = vadd.f32 %v1863, %v1899
      %v1901 = vpop.f32.mrb[0].mxu0
      %v1902 = vpop.f32.mrb[0].mxu0
      %v1903 = vadd.f32 %v1863, %v1902
      %v1904 = vpop.f32.mrb[0].mxu0
      %1905 = vmatprep.mubr.bf16.mxu0 0
      %1906 = vmatmul.mubr.bf16.gmra.mrb[0].mxu0 %v1037
      %v1907 = vpop.f32.mrb[0].mxu0
      %v1908 = vadd.f32 %v1863, %v1907
      %v1909 = vpop.f32.mrb[0].mxu0
      %v1910 = vpop.f32.mrb[0].mxu0
      %v1911 = vpop.f32.mrb[0].mxu0
      %1912 = vdwg.mxu0
      %v1913 = vmul.f32 %v1900, 0.35355338
      %v1914 = vmul.f32 %v1903, 0.35355338
      %v1915 = vmul.f32 %v1908, 0.35355338
      %s1916 = scalar_lea.vmem %s11, 64
      %v1917 = vld [vmem:[%s1916] sm:$0xff]
      %v1918 = vld [vmem:[%s1916 + $0x8] sm:$0xff]
      %v1919 = vld [vmem:[%s1916 + $0x10] sm:$0xff]
      %v1920 = vld [vmem:[%s1916 + $0x18] sm:$0xff]
      %v1921 = vpack.c.bf16 %v1918, %v1917
      %v1922 = vpack.c.bf16 %v1920, %v1919
      %s1923 = scalar_lea.vmem %s12, 2
      %v1924 = vld [vmem:[%s1923] sm:$0x1]
      %v1926 = vlaneseq
      %v1927 = vshrl.u32 %v1926, 7
      %v1928 = vsub.s32 0, %v1927
      %v1929 = vrot.slane %v1924, %v1928
      %1931 = vmatprep.subr.bf16.mxu0 0
      %1932 = vmatpush1.bf16.msra.mxu0 %v1921
      %1933 = vmatprep.subr.bf16.mxu0 0
      %1934 = vmatpush1.bf16.msra.mxu0 %v1922
      %1935 = vmatprep.subr.bf16.mxu0 0
      %1936 = vmatpush1.bf16.msra.mxu0 0
      %1937 = vmatprep.subr.bf16.mxu0 0
      %1938 = vmatpush1.bf16.msra.mxu0 0
      %1939 = vmatprep.subr.bf16.mxu0 0
      %1940 = vmatpush1.bf16.msra.mxu0 0
      %1941 = vmatprep.subr.bf16.mxu0 0
      %1942 = vmatpush1.bf16.msra.mxu0 0
      %1943 = vmatprep.subr.bf16.mxu0 0
      %1944 = vmatpush1.bf16.msra.mxu0 0
      %1945 = vmatprep.subr.bf16.mxu0 0
      %1946 = vmatpush1.bf16.msra.mxu0 0
      %1947 = vmatprep.subr.bf16.mxu0 0
      %1948 = vmatpush1.bf16.msra.mxu0 0
      %1949 = vmatprep.subr.bf16.mxu0 0
      %1950 = vmatpush1.bf16.msra.mxu0 0
      %1951 = vmatprep.subr.bf16.mxu0 0
      %1952 = vmatpush1.bf16.msra.mxu0 0
      %1953 = vmatprep.subr.bf16.mxu0 0
      %1954 = vmatpush1.bf16.msra.mxu0 0
      %1955 = vmatprep.subr.bf16.mxu0 0
      %1956 = vmatpush1.bf16.msra.mxu0 0
      %1957 = vmatprep.subr.bf16.mxu0 0
      %1958 = vmatpush1.bf16.msra.mxu0 0
      %1959 = vmatprep.subr.bf16.mxu0 0
      %1960 = vmatpush1.bf16.msra.mxu0 0
      %1961 = vmatprep.subr.bf16.mxu0 0
      %1962 = vmatpush1.bf16.msra.mxu0 0
      %1963 = vmatprep.mubr.bf16.mxu0 0
      %1964 = vmatmul.mubr.bf16.gmra.mrb[0].mxu0 %v1034
      %v1965 = vpop.f32.mrb[0].mxu0
      %v1966 = vadd.f32 %v1929, %v1965
      %v1967 = vpop.f32.mrb[0].mxu0
      %v1968 = vpop.f32.mrb[0].mxu0
      %v1969 = vadd.f32 %v1929, %v1968
      %v1970 = vpop.f32.mrb[0].mxu0
      %1971 = vmatprep.mubr.bf16.mxu0 0
      %1972 = vmatmul.mubr.bf16.gmra.mrb[0].mxu0 %v1037
      %v1973 = vpop.f32.mrb[0].mxu0
      %v1974 = vadd.f32 %v1929, %v1973
      %v1975 = vpop.f32.mrb[0].mxu0
      %v1976 = vpop.f32.mrb[0].mxu0
      %v1977 = vpop.f32.mrb[0].mxu0
      %1978 = vdwg.mxu0
      %s1979 = scalar_lea.vmem %s13, 64
      %v1980 = vld [vmem:[%s1979] sm:$0xff]
      %v1981 = vld [vmem:[%s1979 + $0x8] sm:$0xff]
      %v1982 = vld [vmem:[%s1979 + $0x10] sm:$0xff]
      %v1983 = vld [vmem:[%s1979 + $0x18] sm:$0xff]
      %v1984 = vpack.c.bf16 %v1981, %v1980
      %v1985 = vpack.c.bf16 %v1983, %v1982
      %s1986 = scalar_lea.vmem %s14, 2
      %v1987 = vld [vmem:[%s1986] sm:$0x1]
      %v1989 = vlaneseq
      %v1990 = vshrl.u32 %v1989, 7
      %v1991 = vsub.s32 0, %v1990
      %v1992 = vrot.slane %v1987, %v1991
      %1994 = vmatprep.subr.bf16.mxu0 0
      %1995 = vmatpush1.bf16.msra.mxu0 %v1984
      %1996 = vmatprep.subr.bf16.mxu0 0
      %1997 = vmatpush1.bf16.msra.mxu0 %v1985
      %1998 = vmatprep.subr.bf16.mxu0 0
      %1999 = vmatpush1.bf16.msra.mxu0 0
      %2000 = vmatprep.subr.bf16.mxu0 0
      %2001 = vmatpush1.bf16.msra.mxu0 0
      %2002 = vmatprep.subr.bf16.mxu0 0
      %2003 = vmatpush1.bf16.msra.mxu0 0
      %2004 = vmatprep.subr.bf16.mxu0 0
      %2005 = vmatpush1.bf16.msra.mxu0 0
      %2006 = vmatprep.subr.bf16.mxu0 0
      %2007 = vmatpush1.bf16.msra.mxu0 0
      %2008 = vmatprep.subr.bf16.mxu0 0
      %2009 = vmatpush1.bf16.msra.mxu0 0
      %2010 = vmatprep.subr.bf16.mxu0 0
      %2011 = vmatpush1.bf16.msra.mxu0 0
      %2012 = vmatprep.subr.bf16.mxu0 0
      %2013 = vmatpush1.bf16.msra.mxu0 0
      %2014 = vmatprep.subr.bf16.mxu0 0
      %2015 = vmatpush1.bf16.msra.mxu0 0
      %2016 = vmatprep.subr.bf16.mxu0 0
      %2017 = vmatpush1.bf16.msra.mxu0 0
      %2018 = vmatprep.subr.bf16.mxu0 0
      %2019 = vmatpush1.bf16.msra.mxu0 0
      %2020 = vmatprep.subr.bf16.mxu0 0
      %2021 = vmatpush1.bf16.msra.mxu0 0
      %2022 = vmatprep.subr.bf16.mxu0 0
      %2023 = vmatpush1.bf16.msra.mxu0 0
      %2024 = vmatprep.subr.bf16.mxu0 0
      %2025 = vmatpush1.bf16.msra.mxu0 0
      %2026 = vmatprep.mubr.bf16.mxu0 0
      %2027 = vmatmul.mubr.bf16.gmra.mrb[0].mxu0 %v1034
      %v2028 = vpop.f32.mrb[0].mxu0
      %v2029 = vadd.f32 %v1992, %v2028
      %v2030 = vpop.f32.mrb[0].mxu0
      %v2031 = vpop.f32.mrb[0].mxu0
      %v2032 = vadd.f32 %v1992, %v2031
      %v2033 = vpop.f32.mrb[0].mxu0
      %2034 = vmatprep.mubr.bf16.mxu0 0
      %2035 = vmatmul.mubr.bf16.gmra.mrb[0].mxu0 %v1037
      %v2036 = vpop.f32.mrb[0].mxu0
      %v2037 = vadd.f32 %v1992, %v2036
      %v2038 = vpop.f32.mrb[0].mxu0
      %v2039 = vpop.f32.mrb[0].mxu0
      %v2040 = vpop.f32.mrb[0].mxu0
      %2041 = vdwg.mxu0
      %v2042 = vpack.c.bf16 %v1914, %v1913
      %v2043 = vpack.c.bf16 %v1915, %v1915
      %v2044 = vpack.c.bf16 %v1969, %v1966
      %v2045 = vpack.c.bf16 %v1974, %v1974
      %v2047 = vsel %vm1216, %v2042, 0
      %v2050 = vsel %vm1216, %v2043, 0
      %v2053 = vsel %vm1216, %v2044, 0
      %v2056 = vsel %vm1216, %v2045, 0
      %2058 = vmatprep.subr.bf16.mxu0 0
      %2059 = vmatpush1.bf16.xpose.msra.mxu0 %v2053
      %2060 = vmatprep.subr.bf16.mxu0 0
      %2061 = vmatpush1.bf16.xpose.msra.mxu0 %v2056
      %2062 = vmatprep.subr.bf16.mxu0 0
      %2063 = vmatpush1.bf16.xpose.msra.mxu0 0
      %2064 = vmatprep.subr.bf16.mxu0 0
      %2065 = vmatpush1.bf16.xpose.msra.mxu0 0
      %2066 = vmatprep.subr.bf16.mxu0 0
      %2067 = vmatpush1.bf16.xpose.msra.mxu0 0
      %2068 = vmatprep.subr.bf16.mxu0 0
      %2069 = vmatpush1.bf16.xpose.msra.mxu0 0
      %2070 = vmatprep.subr.bf16.mxu0 0
      %2071 = vmatpush1.bf16.xpose.msra.mxu0 0
      %2072 = vmatprep.subr.bf16.mxu0 0
      %2073 = vmatpush1.bf16.xpose.msra.mxu0 0
      %2074 = vmatprep.subr.bf16.mxu0 0
      %2075 = vmatpush1.bf16.xpose.msra.mxu0 0
      %2076 = vmatprep.subr.bf16.mxu0 0
      %2077 = vmatpush1.bf16.xpose.msra.mxu0 0
      %2078 = vmatprep.subr.bf16.mxu0 0
      %2079 = vmatpush1.bf16.xpose.msra.mxu0 0
      %2080 = vmatprep.subr.bf16.mxu0 0
      %2081 = vmatpush1.bf16.xpose.msra.mxu0 0
      %2082 = vmatprep.subr.bf16.mxu0 0
      %2083 = vmatpush1.bf16.xpose.msra.mxu0 0
      %2084 = vmatprep.subr.bf16.mxu0 0
      %2085 = vmatpush1.bf16.xpose.msra.mxu0 0
      %2086 = vmatprep.subr.bf16.mxu0 0
      %2087 = vmatpush1.bf16.xpose.msra.mxu0 0
      %2088 = vmatprep.subr.bf16.mxu0 0
      %2089 = vmatpush1.bf16.xpose.msra.mxu0 0
      %2090 = vmatprep.mubr.bf16.mxu0 0
      %2091 = vmatmul.mubr.bf16.gmra.mrb[0].mxu0 %v2047
      %v2092 = vpop.f32.mrb[0].mxu0
      %v2093 = vadd.f32 0.0, %v2092
      %v2094 = vpop.f32.mrb[0].mxu0
      %v2095 = vpop.f32.mrb[0].mxu0
      %v2096 = vadd.f32 0.0, %v2095
      %v2097 = vpop.f32.mrb[0].mxu0
      %2098 = vmatprep.mubr.bf16.mxu0 0
      %2099 = vmatmul.mubr.bf16.gmra.mrb[0].mxu0 %v2050
      %v2100 = vpop.f32.mrb[0].mxu0
      %v2101 = vadd.f32 0.0, %v2100
      %v2102 = vpop.f32.mrb[0].mxu0
      %v2103 = vpop.f32.mrb[0].mxu0
      %v2104 = vpop.f32.mrb[0].mxu0
      %2105 = vdwg.mxu0
      %v2106 = vsel %vm1277, %v2093, -inf
      %2107 = vmax.xlane.f32.xlu0 %v2106
      %v2108 = vpop.xlane.xlu0 %2107
      %v2109 = vsel %vm1277, %v2096, -inf
      %2110 = vmax.xlane.f32.xlu0 %v2109
      %v2111 = vpop.xlane.xlu0 %2110
      %v2112 = vsel %vm1284, %v2101, -inf
      %2113 = vmax.xlane.f32.xlu0 %v2112
      %v2114 = vpop.xlane.xlu0 %2113
      %v2115 = vsub.f32 %v2093, %v2108
      %v2116 = vsub.f32 %v2096, %v2111
      %v2117 = vsub.f32 %v2101, %v2114
      %v2118 = vmul.f32 %v2115, 1.442695
      %v2119 = vpow.pop %v2118
      %v2120 = vmul.f32 %v2116, 1.442695
      %v2121 = vpow.pop %v2120
      %v2122 = vmul.f32 %v2117, 1.442695
      %v2123 = vpow.pop %v2122
      %v2124 = vsel %vm1277, %v2119, 0.0
      %2125 = vadd.xlane.f32.xlu0 %v2124
      %v2126 = vpop.xlane.xlu0 %2125
      %v2127 = vsel %vm1277, %v2121, 0.0
      %2128 = vadd.xlane.f32.xlu0 %v2127
      %v2129 = vpop.xlane.xlu0 %2128
      %v2130 = vsel %vm1284, %v2123, 0.0
      %2131 = vadd.xlane.f32.xlu0 %v2130
      %v2132 = vpop.xlane.xlu0 %2131
      %v2133 = vrcp.pop %v2126
      %v2134 = vrcp.pop %v2129
      %v2135 = vrcp.pop %v2132
      %v2136 = vmul.f32 %v2119, %v2133
      %v2137 = vmul.f32 %v2121, %v2134
      %v2138 = vmul.f32 %v2123, %v2135
      %v2139 = vpack.c.bf16 %v2137, %v2136
      %v2140 = vpack.c.bf16 %v2138, %v2138
      %v2141 = vpack.c.bf16 %v2032, %v2029
      %v2142 = vpack.c.bf16 %v2037, %v2037
      %v2144 = vsel %vm1277, %v2139, 0
      %v2147 = vsel %vm1277, %v2140, 0
      %v2150 = vand.u32 %v2142, %v1324
      %2152 = vmatprep.subr.bf16.mxu0 0
      %2153 = vmatpush1.bf16.msra.mxu0 %v2141
      %2154 = vmatprep.subr.bf16.mxu0 0
      %2155 = vmatpush1.bf16.msra.mxu0 %v2150
      %2156 = vmatprep.subr.bf16.mxu0 0
      %2157 = vmatpush1.bf16.msra.mxu0 0
      %2158 = vmatprep.subr.bf16.mxu0 0
      %2159 = vmatpush1.bf16.msra.mxu0 0
      %2160 = vmatprep.subr.bf16.mxu0 0
      %2161 = vmatpush1.bf16.msra.mxu0 0
      %2162 = vmatprep.subr.bf16.mxu0 0
      %2163 = vmatpush1.bf16.msra.mxu0 0
      %2164 = vmatprep.subr.bf16.mxu0 0
      %2165 = vmatpush1.bf16.msra.mxu0 0
      %2166 = vmatprep.subr.bf16.mxu0 0
      %2167 = vmatpush1.bf16.msra.mxu0 0
      %2168 = vmatprep.subr.bf16.mxu0 0
      %2169 = vmatpush1.bf16.msra.mxu0 0
      %2170 = vmatprep.subr.bf16.mxu0 0
      %2171 = vmatpush1.bf16.msra.mxu0 0
      %2172 = vmatprep.subr.bf16.mxu0 0
      %2173 = vmatpush1.bf16.msra.mxu0 0
      %2174 = vmatprep.subr.bf16.mxu0 0
      %2175 = vmatpush1.bf16.msra.mxu0 0
      %2176 = vmatprep.subr.bf16.mxu0 0
      %2177 = vmatpush1.bf16.msra.mxu0 0
      %2178 = vmatprep.subr.bf16.mxu0 0
      %2179 = vmatpush1.bf16.msra.mxu0 0
      %2180 = vmatprep.subr.bf16.mxu0 0
      %2181 = vmatpush1.bf16.msra.mxu0 0
      %2182 = vmatprep.subr.bf16.mxu0 0
      %2183 = vmatpush1.bf16.msra.mxu0 0
      %2184 = vmatprep.mubr.bf16.mxu0 0
      %2185 = vmatmul.mubr.bf16.gmra.mrb[0].mxu0 %v2144
      %v2186 = vpop.f32.mrb[0].mxu0
      %v2187 = vadd.f32 0.0, %v2186
      %v2188 = vpop.f32.mrb[0].mxu0
      %v2189 = vpop.f32.mrb[0].mxu0
      %v2190 = vadd.f32 0.0, %v2189
      %v2191 = vpop.f32.mrb[0].mxu0
      %2192 = vmatprep.mubr.bf16.mxu0 0
      %2193 = vmatmul.mubr.bf16.gmra.mrb[0].mxu0 %v2147
      %v2194 = vpop.f32.mrb[0].mxu0
      %v2195 = vadd.f32 0.0, %v2194
      %v2196 = vpop.f32.mrb[0].mxu0
      %v2197 = vpop.f32.mrb[0].mxu0
      %v2198 = vpop.f32.mrb[0].mxu0
      %2199 = vdwg.mxu0
      %s2200 = scalar_lea.vmem %s15, 16
      %v2201 = vld [vmem:[%s2200] sm:$0xff]
      %v2202 = vpack.c.bf16 %v2190, %v2187
      %v2203 = vpack.c.bf16 %v2195, %v2195
      %v2204 = vpack.c.bf16 %v2201, %v2201
      %v2206 = vsel %vm1216, %v2202, 0
      %v2209 = vsel %vm1216, %v2203, 0
      %v2212 = vsel %vm1741, %v2204, 0
      %2214 = vmatprep.subr.bf16.mxu0 0
      %2215 = vmatpush1.bf16.msra.mxu0 %v2212
      %2216 = vmatprep.subr.bf16.mxu0 0
      %2217 = vmatpush1.bf16.msra.mxu0 0
      %2218 = vmatprep.subr.bf16.mxu0 0
      %2219 = vmatpush1.bf16.msra.mxu0 0
      %2220 = vmatprep.subr.bf16.mxu0 0
      %2221 = vmatpush1.bf16.msra.mxu0 0
      %2222 = vmatprep.subr.bf16.mxu0 0
      %2223 = vmatpush1.bf16.msra.mxu0 0
      %2224 = vmatprep.subr.bf16.mxu0 0
      %2225 = vmatpush1.bf16.msra.mxu0 0
      %2226 = vmatprep.subr.bf16.mxu0 0
      %2227 = vmatpush1.bf16.msra.mxu0 0
      %2228 = vmatprep.subr.bf16.mxu0 0
      %2229 = vmatpush1.bf16.msra.mxu0 0
      %2230 = vmatprep.subr.bf16.mxu0 0
      %2231 = vmatpush1.bf16.msra.mxu0 0
      %2232 = vmatprep.subr.bf16.mxu0 0
      %2233 = vmatpush1.bf16.msra.mxu0 0
      %2234 = vmatprep.subr.bf16.mxu0 0
      %2235 = vmatpush1.bf16.msra.mxu0 0
      %2236 = vmatprep.subr.bf16.mxu0 0
      %2237 = vmatpush1.bf16.msra.mxu0 0
      %2238 = vmatprep.subr.bf16.mxu0 0
      %2239 = vmatpush1.bf16.msra.mxu0 0
      %2240 = vmatprep.subr.bf16.mxu0 0
      %2241 = vmatpush1.bf16.msra.mxu0 0
      %2242 = vmatprep.subr.bf16.mxu0 0
      %2243 = vmatpush1.bf16.msra.mxu0 0
      %2244 = vmatprep.subr.bf16.mxu0 0
      %2245 = vmatpush1.bf16.msra.mxu0 0
      %2246 = vmatprep.mubr.bf16.mxu0 0
      %2247 = vmatmul.mubr.bf16.gmra.mrb[0].mxu0 %v2206
      %v2248 = vpop.f32.mrb[0].mxu0
      %v2249 = vadd.f32 0.0, %v2248
      %v2250 = vpop.f32.mrb[0].mxu0
      %v2251 = vpop.f32.mrb[0].mxu0
      %v2252 = vadd.f32 0.0, %v2251
      %v2253 = vpop.f32.mrb[0].mxu0
      %2254 = vmatprep.mubr.bf16.mxu0 0
      %2255 = vmatmul.mubr.bf16.gmra.mrb[0].mxu0 %v2209
      %v2256 = vpop.f32.mrb[0].mxu0
      %v2257 = vadd.f32 0.0, %v2256
      %v2258 = vpop.f32.mrb[0].mxu0
      %v2259 = vpop.f32.mrb[0].mxu0
      %v2260 = vpop.f32.mrb[0].mxu0
      %2261 = vdwg.mxu0
      %v2262 = vadd.f32 %v1837, %v2249
      %v2263 = vadd.f32 %v1840, %v2252
      %v2264 = vadd.f32 %v1845, %v2257
      %s2265 = scalar_lea.vmem %s9, 96
      %v2266 = vld [vmem:[%s2265] sm:$0xff]
      %v2267 = vld [vmem:[%s2265 + $0x8] sm:$0xff]
      %v2268 = vld [vmem:[%s2265 + $0x10] sm:$0xff]
      %v2269 = vld [vmem:[%s2265 + $0x18] sm:$0xff]
      %v2270 = vpack.c.bf16 %v2267, %v2266
      %v2271 = vpack.c.bf16 %v2269, %v2268
      %s2272 = scalar_lea.vmem %s10, 3
      %v2273 = vld [vmem:[%s2272] sm:$0x1]
      %v2275 = vlaneseq
      %v2276 = vshrl.u32 %v2275, 7
      %v2277 = vsub.s32 0, %v2276
      %v2278 = vrot.slane %v2273, %v2277
      %2280 = vmatprep.subr.bf16.mxu0 0
      %2281 = vmatpush1.bf16.msra.mxu0 %v2270
      %2282 = vmatprep.subr.bf16.mxu0 0
      %2283 = vmatpush1.bf16.msra.mxu0 %v2271
      %2284 = vmatprep.subr.bf16.mxu0 0
      %2285 = vmatpush1.bf16.msra.mxu0 0
      %2286 = vmatprep.subr.bf16.mxu0 0
      %2287 = vmatpush1.bf16.msra.mxu0 0
      %2288 = vmatprep.subr.bf16.mxu0 0
      %2289 = vmatpush1.bf16.msra.mxu0 0
      %2290 = vmatprep.subr.bf16.mxu0 0
      %2291 = vmatpush1.bf16.msra.mxu0 0
      %2292 = vmatprep.subr.bf16.mxu0 0
      %2293 = vmatpush1.bf16.msra.mxu0 0
      %2294 = vmatprep.subr.bf16.mxu0 0
      %2295 = vmatpush1.bf16.msra.mxu0 0
      %2296 = vmatprep.subr.bf16.mxu0 0
      %2297 = vmatpush1.bf16.msra.mxu0 0
      %2298 = vmatprep.subr.bf16.mxu0 0
      %2299 = vmatpush1.bf16.msra.mxu0 0
      %2300 = vmatprep.subr.bf16.mxu0 0
      %2301 = vmatpush1.bf16.msra.mxu0 0
      %2302 = vmatprep.subr.bf16.mxu0 0
      %2303 = vmatpush1.bf16.msra.mxu0 0
      %2304 = vmatprep.subr.bf16.mxu0 0
      %2305 = vmatpush1.bf16.msra.mxu0 0
      %2306 = vmatprep.subr.bf16.mxu0 0
      %2307 = vmatpush1.bf16.msra.mxu0 0
      %2308 = vmatprep.subr.bf16.mxu0 0
      %2309 = vmatpush1.bf16.msra.mxu0 0
      %2310 = vmatprep.subr.bf16.mxu0 0
      %2311 = vmatpush1.bf16.msra.mxu0 0
      %2312 = vmatprep.mubr.bf16.mxu0 0
      %2313 = vmatmul.mubr.bf16.gmra.mrb[0].mxu0 %v1034
      %v2314 = vpop.f32.mrb[0].mxu0
      %v2315 = vadd.f32 %v2278, %v2314
      %v2316 = vpop.f32.mrb[0].mxu0
      %v2317 = vpop.f32.mrb[0].mxu0
      %v2318 = vadd.f32 %v2278, %v2317
      %v2319 = vpop.f32.mrb[0].mxu0
      %2320 = vmatprep.mubr.bf16.mxu0 0
      %2321 = vmatmul.mubr.bf16.gmra.mrb[0].mxu0 %v1037
      %v2322 = vpop.f32.mrb[0].mxu0
      %v2323 = vadd.f32 %v2278, %v2322
      %v2324 = vpop.f32.mrb[0].mxu0
      %v2325 = vpop.f32.mrb[0].mxu0
      %v2326 = vpop.f32.mrb[0].mxu0
      %2327 = vdwg.mxu0
      %v2328 = vmul.f32 %v2315, 0.35355338
      %v2329 = vmul.f32 %v2318, 0.35355338
      %v2330 = vmul.f32 %v2323, 0.35355338
      %s2331 = scalar_lea.vmem %s11, 96
      %v2332 = vld [vmem:[%s2331] sm:$0xff]
      %v2333 = vld [vmem:[%s2331 + $0x8] sm:$0xff]
      %v2334 = vld [vmem:[%s2331 + $0x10] sm:$0xff]
      %v2335 = vld [vmem:[%s2331 + $0x18] sm:$0xff]
      %v2336 = vpack.c.bf16 %v2333, %v2332
      %v2337 = vpack.c.bf16 %v2335, %v2334
      %s2338 = scalar_lea.vmem %s12, 3
      %v2339 = vld [vmem:[%s2338] sm:$0x1]
      %v2341 = vlaneseq
      %v2342 = vshrl.u32 %v2341, 7
      %v2343 = vsub.s32 0, %v2342
      %v2344 = vrot.slane %v2339, %v2343
      %2346 = vmatprep.subr.bf16.mxu0 0
      %2347 = vmatpush1.bf16.msra.mxu0 %v2336
      %2348 = vmatprep.subr.bf16.mxu0 0
      %2349 = vmatpush1.bf16.msra.mxu0 %v2337
      %2350 = vmatprep.subr.bf16.mxu0 0
      %2351 = vmatpush1.bf16.msra.mxu0 0
      %2352 = vmatprep.subr.bf16.mxu0 0
      %2353 = vmatpush1.bf16.msra.mxu0 0
      %2354 = vmatprep.subr.bf16.mxu0 0
      %2355 = vmatpush1.bf16.msra.mxu0 0
      %2356 = vmatprep.subr.bf16.mxu0 0
      %2357 = vmatpush1.bf16.msra.mxu0 0
      %2358 = vmatprep.subr.bf16.mxu0 0
      %2359 = vmatpush1.bf16.msra.mxu0 0
      %2360 = vmatprep.subr.bf16.mxu0 0
      %2361 = vmatpush1.bf16.msra.mxu0 0
      %2362 = vmatprep.subr.bf16.mxu0 0
      %2363 = vmatpush1.bf16.msra.mxu0 0
      %2364 = vmatprep.subr.bf16.mxu0 0
      %2365 = vmatpush1.bf16.msra.mxu0 0
      %2366 = vmatprep.subr.bf16.mxu0 0
      %2367 = vmatpush1.bf16.msra.mxu0 0
      %2368 = vmatprep.subr.bf16.mxu0 0
      %2369 = vmatpush1.bf16.msra.mxu0 0
      %2370 = vmatprep.subr.bf16.mxu0 0
      %2371 = vmatpush1.bf16.msra.mxu0 0
      %2372 = vmatprep.subr.bf16.mxu0 0
      %2373 = vmatpush1.bf16.msra.mxu0 0
      %2374 = vmatprep.subr.bf16.mxu0 0
      %2375 = vmatpush1.bf16.msra.mxu0 0
      %2376 = vmatprep.subr.bf16.mxu0 0
      %2377 = vmatpush1.bf16.msra.mxu0 0
      %2378 = vmatprep.mubr.bf16.mxu0 0
      %2379 = vmatmul.mubr.bf16.gmra.mrb[0].mxu0 %v1034
      %v2380 = vpop.f32.mrb[0].mxu0
      %v2381 = vadd.f32 %v2344, %v2380
      %v2382 = vpop.f32.mrb[0].mxu0
      %v2383 = vpop.f32.mrb[0].mxu0
      %v2384 = vadd.f32 %v2344, %v2383
      %v2385 = vpop.f32.mrb[0].mxu0
      %2386 = vmatprep.mubr.bf16.mxu0 0
      %2387 = vmatmul.mubr.bf16.gmra.mrb[0].mxu0 %v1037
      %v2388 = vpop.f32.mrb[0].mxu0
      %v2389 = vadd.f32 %v2344, %v2388
      %v2390 = vpop.f32.mrb[0].mxu0
      %v2391 = vpop.f32.mrb[0].mxu0
      %v2392 = vpop.f32.mrb[0].mxu0
      %2393 = vdwg.mxu0
      %s2394 = scalar_lea.vmem %s13, 96
      %v2395 = vld [vmem:[%s2394] sm:$0xff]
      %v2396 = vld [vmem:[%s2394 + $0x8] sm:$0xff]
      %v2397 = vld [vmem:[%s2394 + $0x10] sm:$0xff]
      %v2398 = vld [vmem:[%s2394 + $0x18] sm:$0xff]
      %v2399 = vpack.c.bf16 %v2396, %v2395
      %v2400 = vpack.c.bf16 %v2398, %v2397
      %s2401 = scalar_lea.vmem %s14, 3
      %v2402 = vld [vmem:[%s2401] sm:$0x1]
      %v2404 = vlaneseq
      %v2405 = vshrl.u32 %v2404, 7
      %v2406 = vsub.s32 0, %v2405
      %v2407 = vrot.slane %v2402, %v2406
      %2409 = vmatprep.subr.bf16.mxu0 0
      %2410 = vmatpush1.bf16.msra.mxu0 %v2399
      %2411 = vmatprep.subr.bf16.mxu0 0
      %2412 = vmatpush1.bf16.msra.mxu0 %v2400
      %2413 = vmatprep.subr.bf16.mxu0 0
      %2414 = vmatpush1.bf16.msra.mxu0 0
      %2415 = vmatprep.subr.bf16.mxu0 0
      %2416 = vmatpush1.bf16.msra.mxu0 0
      %2417 = vmatprep.subr.bf16.mxu0 0
      %2418 = vmatpush1.bf16.msra.mxu0 0
      %2419 = vmatprep.subr.bf16.mxu0 0
      %2420 = vmatpush1.bf16.msra.mxu0 0
      %2421 = vmatprep.subr.bf16.mxu0 0
      %2422 = vmatpush1.bf16.msra.mxu0 0
      %2423 = vmatprep.subr.bf16.mxu0 0
      %2424 = vmatpush1.bf16.msra.mxu0 0
      %2425 = vmatprep.subr.bf16.mxu0 0
      %2426 = vmatpush1.bf16.msra.mxu0 0
      %2427 = vmatprep.subr.bf16.mxu0 0
      %2428 = vmatpush1.bf16.msra.mxu0 0
      %2429 = vmatprep.subr.bf16.mxu0 0
      %2430 = vmatpush1.bf16.msra.mxu0 0
      %2431 = vmatprep.subr.bf16.mxu0 0
      %2432 = vmatpush1.bf16.msra.mxu0 0
      %2433 = vmatprep.subr.bf16.mxu0 0
      %2434 = vmatpush1.bf16.msra.mxu0 0
      %2435 = vmatprep.subr.bf16.mxu0 0
      %2436 = vmatpush1.bf16.msra.mxu0 0
      %2437 = vmatprep.subr.bf16.mxu0 0
      %2438 = vmatpush1.bf16.msra.mxu0 0
      %2439 = vmatprep.subr.bf16.mxu0 0
      %2440 = vmatpush1.bf16.msra.mxu0 0
      %2441 = vmatprep.mubr.bf16.mxu0 0
      %2442 = vmatmul.mubr.bf16.gmra.mrb[0].mxu0 %v1034
      %v2443 = vpop.f32.mrb[0].mxu0
      %v2444 = vadd.f32 %v2407, %v2443
      %v2445 = vpop.f32.mrb[0].mxu0
      %v2446 = vpop.f32.mrb[0].mxu0
      %v2447 = vadd.f32 %v2407, %v2446
      %v2448 = vpop.f32.mrb[0].mxu0
      %2449 = vmatprep.mubr.bf16.mxu0 0
      %2450 = vmatmul.mubr.bf16.gmra.mrb[0].mxu0 %v1037
      %v2451 = vpop.f32.mrb[0].mxu0
      %v2452 = vadd.f32 %v2407, %v2451
      %v2453 = vpop.f32.mrb[0].mxu0
      %v2454 = vpop.f32.mrb[0].mxu0
      %v2455 = vpop.f32.mrb[0].mxu0
      %2456 = vdwg.mxu0
      %v2457 = vpack.c.bf16 %v2329, %v2328
      %v2458 = vpack.c.bf16 %v2330, %v2330
      %v2459 = vpack.c.bf16 %v2384, %v2381
      %v2460 = vpack.c.bf16 %v2389, %v2389
      %v2462 = vsel %vm1216, %v2457, 0
      %v2465 = vsel %vm1216, %v2458, 0
      %v2468 = vsel %vm1216, %v2459, 0
      %v2471 = vsel %vm1216, %v2460, 0
      %2473 = vmatprep.subr.bf16.mxu0 0
      %2474 = vmatpush1.bf16.xpose.msra.mxu0 %v2468
      %2475 = vmatprep.subr.bf16.mxu0 0
      %2476 = vmatpush1.bf16.xpose.msra.mxu0 %v2471
      %2477 = vmatprep.subr.bf16.mxu0 0
      %2478 = vmatpush1.bf16.xpose.msra.mxu0 0
      %2479 = vmatprep.subr.bf16.mxu0 0
      %2480 = vmatpush1.bf16.xpose.msra.mxu0 0
      %2481 = vmatprep.subr.bf16.mxu0 0
      %2482 = vmatpush1.bf16.xpose.msra.mxu0 0
      %2483 = vmatprep.subr.bf16.mxu0 0
      %2484 = vmatpush1.bf16.xpose.msra.mxu0 0
      %2485 = vmatprep.subr.bf16.mxu0 0
      %2486 = vmatpush1.bf16.xpose.msra.mxu0 0
      %2487 = vmatprep.subr.bf16.mxu0 0
      %2488 = vmatpush1.bf16.xpose.msra.mxu0 0
      %2489 = vmatprep.subr.bf16.mxu0 0
      %2490 = vmatpush1.bf16.xpose.msra.mxu0 0
      %2491 = vmatprep.subr.bf16.mxu0 0
      %2492 = vmatpush1.bf16.xpose.msra.mxu0 0
      %2493 = vmatprep.subr.bf16.mxu0 0
      %2494 = vmatpush1.bf16.xpose.msra.mxu0 0
      %2495 = vmatprep.subr.bf16.mxu0 0
      %2496 = vmatpush1.bf16.xpose.msra.mxu0 0
      %2497 = vmatprep.subr.bf16.mxu0 0
      %2498 = vmatpush1.bf16.xpose.msra.mxu0 0
      %2499 = vmatprep.subr.bf16.mxu0 0
      %2500 = vmatpush1.bf16.xpose.msra.mxu0 0
      %2501 = vmatprep.subr.bf16.mxu0 0
      %2502 = vmatpush1.bf16.xpose.msra.mxu0 0
      %2503 = vmatprep.subr.bf16.mxu0 0
      %2504 = vmatpush1.bf16.xpose.msra.mxu0 0
      %2505 = vmatprep.mubr.bf16.mxu0 0
      %2506 = vmatmul.mubr.bf16.gmra.mrb[0].mxu0 %v2462
      %v2507 = vpop.f32.mrb[0].mxu0
      %v2508 = vadd.f32 0.0, %v2507
      %v2509 = vpop.f32.mrb[0].mxu0
      %v2510 = vpop.f32.mrb[0].mxu0
      %v2511 = vadd.f32 0.0, %v2510
      %v2512 = vpop.f32.mrb[0].mxu0
      %2513 = vmatprep.mubr.bf16.mxu0 0
      %2514 = vmatmul.mubr.bf16.gmra.mrb[0].mxu0 %v2465
      %v2515 = vpop.f32.mrb[0].mxu0
      %v2516 = vadd.f32 0.0, %v2515
      %v2517 = vpop.f32.mrb[0].mxu0
      %v2518 = vpop.f32.mrb[0].mxu0
      %v2519 = vpop.f32.mrb[0].mxu0
      %2520 = vdwg.mxu0
      %v2521 = vsel %vm1277, %v2508, -inf
      %2522 = vmax.xlane.f32.xlu0 %v2521
      %v2523 = vpop.xlane.xlu0 %2522
      %v2524 = vsel %vm1277, %v2511, -inf
      %2525 = vmax.xlane.f32.xlu0 %v2524
      %v2526 = vpop.xlane.xlu0 %2525
      %v2527 = vsel %vm1284, %v2516, -inf
      %2528 = vmax.xlane.f32.xlu0 %v2527
      %v2529 = vpop.xlane.xlu0 %2528
      %v2530 = vsub.f32 %v2508, %v2523
      %v2531 = vsub.f32 %v2511, %v2526
      %v2532 = vsub.f32 %v2516, %v2529
      %v2533 = vmul.f32 %v2530, 1.442695
      %v2534 = vpow.pop %v2533
      %v2535 = vmul.f32 %v2531, 1.442695
      %v2536 = vpow.pop %v2535
      %v2537 = vmul.f32 %v2532, 1.442695
      %v2538 = vpow.pop %v2537
      %v2539 = vsel %vm1277, %v2534, 0.0
      %2540 = vadd.xlane.f32.xlu0 %v2539
      %v2541 = vpop.xlane.xlu0 %2540
      %v2542 = vsel %vm1277, %v2536, 0.0
      %2543 = vadd.xlane.f32.xlu0 %v2542
      %v2544 = vpop.xlane.xlu0 %2543
      %v2545 = vsel %vm1284, %v2538, 0.0
      %2546 = vadd.xlane.f32.xlu0 %v2545
      %v2547 = vpop.xlane.xlu0 %2546
      %v2548 = vrcp.pop %v2541
      %v2549 = vrcp.pop %v2544
      %v2550 = vrcp.pop %v2547
      %v2551 = vmul.f32 %v2534, %v2548
      %v2552 = vmul.f32 %v2536, %v2549
      %v2553 = vmul.f32 %v2538, %v2550
      %v2554 = vpack.c.bf16 %v2552, %v2551
      %v2555 = vpack.c.bf16 %v2553, %v2553
      %v2556 = vpack.c.bf16 %v2447, %v2444
      %v2557 = vpack.c.bf16 %v2452, %v2452
      %v2559 = vsel %vm1277, %v2554, 0
      %v2562 = vsel %vm1277, %v2555, 0
      %v2565 = vand.u32 %v2557, %v1324
      %2567 = vmatprep.subr.bf16.mxu0 0
      %2568 = vmatpush1.bf16.msra.mxu0 %v2556
      %2569 = vmatprep.subr.bf16.mxu0 0
      %2570 = vmatpush1.bf16.msra.mxu0 %v2565
      %2571 = vmatprep.subr.bf16.mxu0 0
      %2572 = vmatpush1.bf16.msra.mxu0 0
      %2573 = vmatprep.subr.bf16.mxu0 0
      %2574 = vmatpush1.bf16.msra.mxu0 0
      %2575 = vmatprep.subr.bf16.mxu0 0
      %2576 = vmatpush1.bf16.msra.mxu0 0
      %2577 = vmatprep.subr.bf16.mxu0 0
      %2578 = vmatpush1.bf16.msra.mxu0 0
      %2579 = vmatprep.subr.bf16.mxu0 0
      %2580 = vmatpush1.bf16.msra.mxu0 0
      %2581 = vmatprep.subr.bf16.mxu0 0
      %2582 = vmatpush1.bf16.msra.mxu0 0
      %2583 = vmatprep.subr.bf16.mxu0 0
      %2584 = vmatpush1.bf16.msra.mxu0 0
      %2585 = vmatprep.subr.bf16.mxu0 0
      %2586 = vmatpush1.bf16.msra.mxu0 0
      %2587 = vmatprep.subr.bf16.mxu0 0
      %2588 = vmatpush1.bf16.msra.mxu0 0
      %2589 = vmatprep.subr.bf16.mxu0 0
      %2590 = vmatpush1.bf16.msra.mxu0 0
      %2591 = vmatprep.subr.bf16.mxu0 0
      %2592 = vmatpush1.bf16.msra.mxu0 0
      %2593 = vmatprep.subr.bf16.mxu0 0
      %2594 = vmatpush1.bf16.msra.mxu0 0
      %2595 = vmatprep.subr.bf16.mxu0 0
      %2596 = vmatpush1.bf16.msra.mxu0 0
      %2597 = vmatprep.subr.bf16.mxu0 0
      %2598 = vmatpush1.bf16.msra.mxu0 0
      %2599 = vmatprep.mubr.bf16.mxu0 0
      %2600 = vmatmul.mubr.bf16.gmra.mrb[0].mxu0 %v2559
      %v2601 = vpop.f32.mrb[0].mxu0
      %v2602 = vadd.f32 0.0, %v2601
      %v2603 = vpop.f32.mrb[0].mxu0
      %v2604 = vpop.f32.mrb[0].mxu0
      %v2605 = vadd.f32 0.0, %v2604
      %v2606 = vpop.f32.mrb[0].mxu0
      %2607 = vmatprep.mubr.bf16.mxu0 0
      %2608 = vmatmul.mubr.bf16.gmra.mrb[0].mxu0 %v2562
      %v2609 = vpop.f32.mrb[0].mxu0
      %v2610 = vadd.f32 0.0, %v2609
      %v2611 = vpop.f32.mrb[0].mxu0
      %v2612 = vpop.f32.mrb[0].mxu0
      %v2613 = vpop.f32.mrb[0].mxu0
      %2614 = vdwg.mxu0
      %s2615 = scalar_lea.vmem %s15, 24
      %v2616 = vld [vmem:[%s2615] sm:$0xff]
      %v2617 = vpack.c.bf16 %v2605, %v2602
      %v2618 = vpack.c.bf16 %v2610, %v2610
      %v2619 = vpack.c.bf16 %v2616, %v2616
      %v2621 = vsel %vm1216, %v2617, 0
      %v2624 = vsel %vm1216, %v2618, 0
      %v2627 = vsel %vm1741, %v2619, 0
      %2629 = vmatprep.subr.bf16.mxu0 0
      %2630 = vmatpush1.bf16.msra.mxu0 %v2627
      %2631 = vmatprep.subr.bf16.mxu0 0
      %2632 = vmatpush1.bf16.msra.mxu0 0
      %2633 = vmatprep.subr.bf16.mxu0 0
      %2634 = vmatpush1.bf16.msra.mxu0 0
      %2635 = vmatprep.subr.bf16.mxu0 0
      %2636 = vmatpush1.bf16.msra.mxu0 0
      %2637 = vmatprep.subr.bf16.mxu0 0
      %2638 = vmatpush1.bf16.msra.mxu0 0
      %2639 = vmatprep.subr.bf16.mxu0 0
      %2640 = vmatpush1.bf16.msra.mxu0 0
      %2641 = vmatprep.subr.bf16.mxu0 0
      %2642 = vmatpush1.bf16.msra.mxu0 0
      %2643 = vmatprep.subr.bf16.mxu0 0
      %2644 = vmatpush1.bf16.msra.mxu0 0
      %2645 = vmatprep.subr.bf16.mxu0 0
      %2646 = vmatpush1.bf16.msra.mxu0 0
      %2647 = vmatprep.subr.bf16.mxu0 0
      %2648 = vmatpush1.bf16.msra.mxu0 0
      %2649 = vmatprep.subr.bf16.mxu0 0
      %2650 = vmatpush1.bf16.msra.mxu0 0
      %2651 = vmatprep.subr.bf16.mxu0 0
      %2652 = vmatpush1.bf16.msra.mxu0 0
      %2653 = vmatprep.subr.bf16.mxu0 0
      %2654 = vmatpush1.bf16.msra.mxu0 0
      %2655 = vmatprep.subr.bf16.mxu0 0
      %2656 = vmatpush1.bf16.msra.mxu0 0
      %2657 = vmatprep.subr.bf16.mxu0 0
      %2658 = vmatpush1.bf16.msra.mxu0 0
      %2659 = vmatprep.subr.bf16.mxu0 0
      %2660 = vmatpush1.bf16.msra.mxu0 0
      %2661 = vmatprep.mubr.bf16.mxu0 0
      %2662 = vmatmul.mubr.bf16.gmra.mrb[0].mxu0 %v2621
      %v2663 = vpop.f32.mrb[0].mxu0
      %v2664 = vadd.f32 0.0, %v2663
      %v2665 = vpop.f32.mrb[0].mxu0
      %v2666 = vpop.f32.mrb[0].mxu0
      %v2667 = vadd.f32 0.0, %v2666
      %v2668 = vpop.f32.mrb[0].mxu0
      %2669 = vmatprep.mubr.bf16.mxu0 0
      %2670 = vmatmul.mubr.bf16.gmra.mrb[0].mxu0 %v2624
      %v2671 = vpop.f32.mrb[0].mxu0
      %v2672 = vadd.f32 0.0, %v2671
      %v2673 = vpop.f32.mrb[0].mxu0
      %v2674 = vpop.f32.mrb[0].mxu0
      %v2675 = vpop.f32.mrb[0].mxu0
      %2676 = vdwg.mxu0
      %v2677 = vadd.f32 %v2262, %v2664
      %v2678 = vadd.f32 %v2263, %v2667
      %v2679 = vadd.f32 %v2264, %v2672
      %v2680 = vadd.f32 %v955, %v2677
      %v2681 = vadd.f32 %v956, %v2678
      %v2682 = vadd.f32 %v957, %v2679
      %v2683 = vld [vmem:[%s16] sm:$0x1]
      %v2685 = vlaneseq
      %v2686 = vshrl.u32 %v2685, 7
      %v2687 = vsub.s32 0, %v2686
      %v2688 = vrot.slane %v2683, %v2687
      %v2690 = vadd.f32 %v2680, %v2688
      %v2691 = vadd.f32 %v2681, %v2688
      %v2692 = vadd.f32 %v2682, %v2688
      %v2693 = vld [vmem:[%s17] sm:$0x1]
      %v2694 = vld [vmem:[%s18] sm:$0x1]
      %v2695 = vsel %vm952, %v2690, 0.0
      %2696 = vadd.xlane.f32.xlu0 %v2695
      %v2697 = vpop.xlane.xlu0 %2696
      %v2698 = vsel %vm952, %v2691, 0.0
      %2699 = vadd.xlane.f32.xlu0 %v2698
      %v2700 = vpop.xlane.xlu0 %2699
      %v2701 = vsel %vm950, %v2692, 0.0
      %2702 = vadd.xlane.f32.xlu0 %v2701
      %v2703 = vpop.xlane.xlu0 %2702
      %v2704 = vmul.f32 %v2697, %v969
      %v2705 = vmul.f32 %v2700, %v969
      %v2706 = vmul.f32 %v2703, %v969
      %v2707 = vsub.f32 %v2690, %v2704
      %v2708 = vsub.f32 %v2691, %v2705
      %v2709 = vsub.f32 %v2692, %v2706
      %v2710 = vmul.f32 %v2707, %v2707
      %v2711 = vmul.f32 %v2708, %v2708
      %v2712 = vmul.f32 %v2709, %v2709
      %v2713 = vsel %vm952, %v2710, 0.0
      %2714 = vadd.xlane.f32.xlu0 %v2713
      %v2715 = vpop.xlane.xlu0 %2714
      %v2716 = vsel %vm952, %v2711, 0.0
      %2717 = vadd.xlane.f32.xlu0 %v2716
      %v2718 = vpop.xlane.xlu0 %2717
      %v2719 = vsel %vm950, %v2712, 0.0
      %2720 = vadd.xlane.f32.xlu0 %v2719
      %v2721 = vpop.xlane.xlu0 %2720
      %v2722 = vmul.f32 %v2715, %v969
      %v2723 = vmul.f32 %v2718, %v969
      %v2724 = vmul.f32 %v2721, %v969
      %v2725 = vadd.f32 %v2722, 1e-05
      %v2726 = vadd.f32 %v2723, 1e-05
      %v2727 = vadd.f32 %v2724, 1e-05
      %v2728 = vrsqrt.pop %v2725
      %v2729 = vrsqrt.pop %v2726
      %v2730 = vrsqrt.pop %v2727
      %v2731 = vmul.f32 %v2707, %v2728
      %v2732 = vmul.f32 %v2708, %v2729
      %v2733 = vmul.f32 %v2709, %v2730
      %v2735 = vlaneseq
      %v2736 = vshrl.u32 %v2735, 7
      %v2737 = vsub.s32 0, %v2736
      %v2738 = vrot.slane %v2693, %v2737
      %v2740 = vmul.f32 %v2731, %v2738
      %v2741 = vmul.f32 %v2732, %v2738
      %v2742 = vmul.f32 %v2733, %v2738
      %v2744 = vlaneseq
      %v2745 = vshrl.u32 %v2744, 7
      %v2746 = vsub.s32 0, %v2745
      %v2747 = vrot.slane %v2694, %v2746
      %v2749 = vadd.f32 %v2740, %v2747
      %v2750 = vadd.f32 %v2741, %v2747
      %v2751 = vadd.f32 %v2742, %v2747
      %v2752 = vld [vmem:[%s19] sm:$0xff]
      %v2753 = vld [vmem:[%s19 + $0x8] sm:$0xff]
      %v2754 = vld [vmem:[%s19 + $0x10] sm:$0xff]
      %v2755 = vld [vmem:[%s19 + $0x18] sm:$0xff]
      %v2756 = vpack.c.bf16 %v2750, %v2749
      %v2757 = vpack.c.bf16 %v2751, %v2751
      %v2758 = vpack.c.bf16 %v2753, %v2752
      %v2759 = vpack.c.bf16 %v2755, %v2754
      %v2760 = vld [vmem:[%s20] sm:$0x1]
      %v2762 = vlaneseq
      %v2763 = vshrl.u32 %v2762, 7
      %v2764 = vsub.s32 0, %v2763
      %v2765 = vrot.slane %v2760, %v2764
      %v2768 = vsel %vm952, %v2756, 0
      %v2771 = vsel %vm952, %v2757, 0
      %2773 = vmatprep.subr.bf16.mxu0 0
      %2774 = vmatpush1.bf16.msra.mxu0 %v2758
      %2775 = vmatprep.subr.bf16.mxu0 0
      %2776 = vmatpush1.bf16.msra.mxu0 %v2759
      %2777 = vmatprep.subr.bf16.mxu0 0
      %2778 = vmatpush1.bf16.msra.mxu0 0
      %2779 = vmatprep.subr.bf16.mxu0 0
      %2780 = vmatpush1.bf16.msra.mxu0 0
      %2781 = vmatprep.subr.bf16.mxu0 0
      %2782 = vmatpush1.bf16.msra.mxu0 0
      %2783 = vmatprep.subr.bf16.mxu0 0
      %2784 = vmatpush1.bf16.msra.mxu0 0
      %2785 = vmatprep.subr.bf16.mxu0 0
      %2786 = vmatpush1.bf16.msra.mxu0 0
      %2787 = vmatprep.subr.bf16.mxu0 0
      %2788 = vmatpush1.bf16.msra.mxu0 0
      %2789 = vmatprep.subr.bf16.mxu0 0
      %2790 = vmatpush1.bf16.msra.mxu0 0
      %2791 = vmatprep.subr.bf16.mxu0 0
      %2792 = vmatpush1.bf16.msra.mxu0 0
      %2793 = vmatprep.subr.bf16.mxu0 0
      %2794 = vmatpush1.bf16.msra.mxu0 0
      %2795 = vmatprep.subr.bf16.mxu0 0
      %2796 = vmatpush1.bf16.msra.mxu0 0
      %2797 = vmatprep.subr.bf16.mxu0 0
      %2798 = vmatpush1.bf16.msra.mxu0 0
      %2799 = vmatprep.subr.bf16.mxu0 0
      %2800 = vmatpush1.bf16.msra.mxu0 0
      %2801 = vmatprep.subr.bf16.mxu0 0
      %2802 = vmatpush1.bf16.msra.mxu0 0
      %2803 = vmatprep.subr.bf16.mxu0 0
      %2804 = vmatpush1.bf16.msra.mxu0 0
      %2805 = vmatprep.mubr.bf16.mxu0 0
      %2806 = vmatmul.mubr.bf16.gmra.mrb[0].mxu0 %v2768
      %v2807 = vpop.f32.mrb[0].mxu0
      %v2808 = vadd.f32 %v2765, %v2807
      %v2809 = vpop.f32.mrb[0].mxu0
      %v2810 = vpop.f32.mrb[0].mxu0
      %v2811 = vadd.f32 %v2765, %v2810
      %v2812 = vpop.f32.mrb[0].mxu0
      %2813 = vmatprep.mubr.bf16.mxu0 0
      %2814 = vmatmul.mubr.bf16.gmra.mrb[0].mxu0 %v2771
      %v2815 = vpop.f32.mrb[0].mxu0
      %v2816 = vadd.f32 %v2765, %v2815
      %v2817 = vpop.f32.mrb[0].mxu0
      %v2818 = vpop.f32.mrb[0].mxu0
      %v2819 = vpop.f32.mrb[0].mxu0
      %2820 = vdwg.mxu0
      %v2821 = vmul.f32 %v2808, 0.5
      %v2822 = vmul.f32 %v2811, 0.5
      %v2823 = vmul.f32 %v2816, 0.5
      %v2824 = vmul.f32 %v2808, 0.70710677
      %v2825 = vmul.f32 %v2811, 0.70710677
      %v2826 = vmul.f32 %v2816, 0.70710677
      %v2827 = vand.u32 2147483647, %v2824
      %v2828 = vand.u32 2147483647, %v2825
      %v2829 = vand.u32 2147483647, %v2826
      %v2830 = vmul.f32 %v2827, 0.3275911
      %v2831 = vmul.f32 %v2828, 0.3275911
      %v2832 = vmul.f32 %v2829, 0.3275911
      %v2833 = vadd.f32 %v2830, 1.0
      %v2834 = vadd.f32 %v2831, 1.0
      %v2835 = vadd.f32 %v2832, 1.0
      %v2836 = vrcp.pop %v2833
      %v2837 = vmul.f32 1.0, %v2836
      %v2838 = vrcp.pop %v2834
      %v2839 = vmul.f32 1.0, %v2838
      %v2840 = vrcp.pop %v2835
      %v2841 = vmul.f32 1.0, %v2840
      %v2842 = vmul.f32 %v2837, 1.0614054
      %v2843 = vmul.f32 %v2839, 1.0614054
      %v2844 = vmul.f32 %v2841, 1.0614054
      %v2845 = vadd.f32 %v2842, -1.4531521
      %v2846 = vadd.f32 %v2843, -1.4531521
      %v2847 = vadd.f32 %v2844, -1.4531521
      %v2848 = vmul.f32 %v2845, %v2837
      %v2849 = vmul.f32 %v2846, %v2839
      %v2850 = vmul.f32 %v2847, %v2841
      %v2851 = vadd.f32 %v2848, 1.4214138
      %v2852 = vadd.f32 %v2849, 1.4214138
      %v2853 = vadd.f32 %v2850, 1.4214138
      %v2854 = vmul.f32 %v2851, %v2837
      %v2855 = vmul.f32 %v2852, %v2839
      %v2856 = vmul.f32 %v2853, %v2841
      %v2857 = vadd.f32 %v2854, -0.28449672
      %v2858 = vadd.f32 %v2855, -0.28449672
      %v2859 = vadd.f32 %v2856, -0.28449672
      %v2860 = vmul.f32 %v2857, %v2837
      %v2861 = vmul.f32 %v2858, %v2839
      %v2862 = vmul.f32 %v2859, %v2841
      %v2863 = vadd.f32 %v2860, 0.2548296
      %v2864 = vadd.f32 %v2861, 0.2548296
      %v2865 = vadd.f32 %v2862, 0.2548296
      %v2866 = vmul.f32 %v2863, %v2837
      %v2867 = vmul.f32 %v2864, %v2839
      %v2868 = vmul.f32 %v2865, %v2841
      %v2869 = vsub.f32 0.0, %v2827
      %v2870 = vsub.f32 0.0, %v2828
      %v2871 = vsub.f32 0.0, %v2829
      %v2872 = vmul.f32 %v2869, %v2827
      %v2873 = vmul.f32 %v2870, %v2828
      %v2874 = vmul.f32 %v2871, %v2829
      %v2875 = vmul.f32 %v2872, 1.442695
      %v2876 = vpow.pop %v2875
      %v2877 = vmul.f32 %v2873, 1.442695
      %v2878 = vpow.pop %v2877
      %v2879 = vmul.f32 %v2874, 1.442695
      %v2880 = vpow.pop %v2879
      %v2881 = vmul.f32 %v2866, %v2876
      %v2882 = vmul.f32 %v2867, %v2878
      %v2883 = vmul.f32 %v2868, %v2880
      %v2884 = vsub.f32 1.0, %v2881
      %v2885 = vsub.f32 1.0, %v2882
      %v2886 = vsub.f32 1.0, %v2883
      %vm2887 = vcmp.ge.f32.partialorder %v2824, 0.0
      %vm2888 = vcmp.ge.f32.partialorder %v2825, 0.0
      %vm2889 = vcmp.ge.f32.partialorder %v2826, 0.0
      %v2890 = vsub.f32 0.0, %v2884
      %v2891 = vsub.f32 0.0, %v2885
      %v2892 = vsub.f32 0.0, %v2886
      %v2893 = vsel %vm2887, %v2884, %v2890
      %v2894 = vsel %vm2888, %v2885, %v2891
      %v2895 = vsel %vm2889, %v2886, %v2892
      %v2896 = vadd.f32 %v2893, 1.0
      %v2897 = vadd.f32 %v2894, 1.0
      %v2898 = vadd.f32 %v2895, 1.0
      %v2899 = vmul.f32 %v2821, %v2896
      %v2900 = vmul.f32 %v2822, %v2897
      %v2901 = vmul.f32 %v2823, %v2898
      %v2902 = vld [vmem:[%s21] sm:$0xff]
      %v2903 = vld [vmem:[%s21 + $0x8] sm:$0xff]
      %v2904 = vld [vmem:[%s21 + $0x10] sm:$0xff]
      %v2905 = vld [vmem:[%s21 + $0x18] sm:$0xff]
      %v2906 = vld [vmem:[%s21 + $0x20] sm:$0xff]
      %v2907 = vld [vmem:[%s21 + $0x28] sm:$0xff]
      %v2908 = vld [vmem:[%s21 + $0x30] sm:$0xff]
      %v2909 = vld [vmem:[%s21 + $0x38] sm:$0xff]
      %v2910 = vld [vmem:[%s21 + $0x40] sm:$0xff]
      %v2911 = vld [vmem:[%s21 + $0x48] sm:$0xff]
      %v2912 = vld [vmem:[%s21 + $0x50] sm:$0xff]
      %v2913 = vld [vmem:[%s21 + $0x58] sm:$0xff]
      %v2914 = vld [vmem:[%s21 + $0x60] sm:$0xff]
      %v2915 = vld [vmem:[%s21 + $0x68] sm:$0xff]
      %v2916 = vld [vmem:[%s21 + $0x70] sm:$0xff]
      %v2917 = vld [vmem:[%s21 + $0x78] sm:$0xff]
      %v2918 = vpack.c.bf16 %v2900, %v2899
      %v2919 = vpack.c.bf16 %v2901, %v2901
      %v2920 = vpack.c.bf16 %v2903, %v2902
      %v2921 = vpack.c.bf16 %v2905, %v2904
      %v2922 = vpack.c.bf16 %v2907, %v2906
      %v2923 = vpack.c.bf16 %v2909, %v2908
      %v2924 = vpack.c.bf16 %v2911, %v2910
      %v2925 = vpack.c.bf16 %v2913, %v2912
      %v2926 = vpack.c.bf16 %v2915, %v2914
      %v2927 = vpack.c.bf16 %v2917, %v2916
      %2928 = vmatprep.subr.bf16.mxu0 0
      %2929 = vmatpush1.bf16.msra.mxu0 %v2920
      %2930 = vmatprep.subr.bf16.mxu0 0
      %2931 = vmatpush1.bf16.msra.mxu0 %v2921
      %2932 = vmatprep.subr.bf16.mxu0 0
      %2933 = vmatpush1.bf16.msra.mxu0 %v2922
      %2934 = vmatprep.subr.bf16.mxu0 0
      %2935 = vmatpush1.bf16.msra.mxu0 %v2923
      %2936 = vmatprep.subr.bf16.mxu0 0
      %2937 = vmatpush1.bf16.msra.mxu0 %v2924
      %2938 = vmatprep.subr.bf16.mxu0 0
      %2939 = vmatpush1.bf16.msra.mxu0 %v2925
      %2940 = vmatprep.subr.bf16.mxu0 0
      %2941 = vmatpush1.bf16.msra.mxu0 %v2926
      %2942 = vmatprep.subr.bf16.mxu0 0
      %2943 = vmatpush1.bf16.msra.mxu0 %v2927
      %2944 = vmatprep.subr.bf16.mxu0 0
      %2945 = vmatpush1.bf16.msra.mxu0 0
      %2946 = vmatprep.subr.bf16.mxu0 0
      %2947 = vmatpush1.bf16.msra.mxu0 0
      %2948 = vmatprep.subr.bf16.mxu0 0
      %2949 = vmatpush1.bf16.msra.mxu0 0
      %2950 = vmatprep.subr.bf16.mxu0 0
      %2951 = vmatpush1.bf16.msra.mxu0 0
      %2952 = vmatprep.subr.bf16.mxu0 0
      %2953 = vmatpush1.bf16.msra.mxu0 0
      %2954 = vmatprep.subr.bf16.mxu0 0
      %2955 = vmatpush1.bf16.msra.mxu0 0
      %2956 = vmatprep.subr.bf16.mxu0 0
      %2957 = vmatpush1.bf16.msra.mxu0 0
      %2958 = vmatprep.subr.bf16.mxu0 0
      %2959 = vmatpush1.bf16.msra.mxu0 0
      %2960 = vmatprep.mubr.bf16.mxu0 0
      %2961 = vmatmul.mubr.bf16.gmra.mrb[0].mxu0 %v2918
      %v2962 = vpop.f32.mrb[0].mxu0
      %v2963 = vadd.f32 0.0, %v2962
      %v2964 = vpop.f32.mrb[0].mxu0
      %v2965 = vpop.f32.mrb[0].mxu0
      %v2966 = vadd.f32 0.0, %v2965
      %v2967 = vpop.f32.mrb[0].mxu0
      %2968 = vmatprep.mubr.bf16.mxu0 0
      %2969 = vmatmul.mubr.bf16.gmra.mrb[0].mxu0 %v2919
      %v2970 = vpop.f32.mrb[0].mxu0
      %v2971 = vadd.f32 0.0, %v2970
      %v2972 = vpop.f32.mrb[0].mxu0
      %v2973 = vpop.f32.mrb[0].mxu0
      %v2974 = vpop.f32.mrb[0].mxu0
      %2975 = vdwg.mxu0
      %v2976 = vadd.f32 %v2690, %v2963
      %v2977 = vadd.f32 %v2691, %v2966
      %v2978 = vadd.f32 %v2692, %v2971
      %v2979 = vld [vmem:[%s22] sm:$0x1]
      %v2981 = vlaneseq
      %v2982 = vshrl.u32 %v2981, 7
      %v2983 = vsub.s32 0, %v2982
      %v2984 = vrot.slane %v2979, %v2983
      %v2986 = vadd.f32 %v2976, %v2984
      %v2987 = vadd.f32 %v2977, %v2984
      %v2988 = vadd.f32 %v2978, %v2984
      %s2989 = scalar_lea.vmem %s7, 1
      %v2990 = vld [vmem:[%s2989] sm:$0x1]
      %s2991 = scalar_lea.vmem %s8, 1
      %v2992 = vld [vmem:[%s2991] sm:$0x1]
      %v2993 = vsel %vm952, %v2986, 0.0
      %2994 = vadd.xlane.f32.xlu0 %v2993
      %v2995 = vpop.xlane.xlu0 %2994
      %v2996 = vsel %vm952, %v2987, 0.0
      %2997 = vadd.xlane.f32.xlu0 %v2996
      %v2998 = vpop.xlane.xlu0 %2997
      %v2999 = vsel %vm950, %v2988, 0.0
      %3000 = vadd.xlane.f32.xlu0 %v2999
      %v3001 = vpop.xlane.xlu0 %3000
      %v3002 = vmul.f32 %v2995, %v969
      %v3003 = vmul.f32 %v2998, %v969
      %v3004 = vmul.f32 %v3001, %v969
      %v3005 = vsub.f32 %v2986, %v3002
      %v3006 = vsub.f32 %v2987, %v3003
      %v3007 = vsub.f32 %v2988, %v3004
      %v3008 = vmul.f32 %v3005, %v3005
      %v3009 = vmul.f32 %v3006, %v3006
      %v3010 = vmul.f32 %v3007, %v3007
      %v3011 = vsel %vm952, %v3008, 0.0
      %3012 = vadd.xlane.f32.xlu0 %v3011
      %v3013 = vpop.xlane.xlu0 %3012
      %v3014 = vsel %vm952, %v3009, 0.0
      %3015 = vadd.xlane.f32.xlu0 %v3014
      %v3016 = vpop.xlane.xlu0 %3015
      %v3017 = vsel %vm950, %v3010, 0.0
      %3018 = vadd.xlane.f32.xlu0 %v3017
      %v3019 = vpop.xlane.xlu0 %3018
      %v3020 = vmul.f32 %v3013, %v969
      %v3021 = vmul.f32 %v3016, %v969
      %v3022 = vmul.f32 %v3019, %v969
      %v3023 = vadd.f32 %v3020, 1e-05
      %v3024 = vadd.f32 %v3021, 1e-05
      %v3025 = vadd.f32 %v3022, 1e-05
      %v3026 = vrsqrt.pop %v3023
      %v3027 = vrsqrt.pop %v3024
      %v3028 = vrsqrt.pop %v3025
      %v3029 = vmul.f32 %v3005, %v3026
      %v3030 = vmul.f32 %v3006, %v3027
      %v3031 = vmul.f32 %v3007, %v3028
      %v3033 = vlaneseq
      %v3034 = vshrl.u32 %v3033, 7
      %v3035 = vsub.s32 0, %v3034
      %v3036 = vrot.slane %v2990, %v3035
      %v3038 = vmul.f32 %v3029, %v3036
      %v3039 = vmul.f32 %v3030, %v3036
      %v3040 = vmul.f32 %v3031, %v3036
      %v3042 = vlaneseq
      %v3043 = vshrl.u32 %v3042, 7
      %v3044 = vsub.s32 0, %v3043
      %v3045 = vrot.slane %v2992, %v3044
      %v3047 = vadd.f32 %v3038, %v3045
      %v3048 = vadd.f32 %v3039, %v3045
      %v3049 = vadd.f32 %v3040, %v3045
      %s3050 = scalar_lea.vmem %s9, 128
      %v3051 = vld [vmem:[%s3050] sm:$0xff]
      %v3052 = vld [vmem:[%s3050 + $0x8] sm:$0xff]
      %v3053 = vld [vmem:[%s3050 + $0x10] sm:$0xff]
      %v3054 = vld [vmem:[%s3050 + $0x18] sm:$0xff]
      %v3055 = vpack.c.bf16 %v3048, %v3047
      %v3056 = vpack.c.bf16 %v3049, %v3049
      %v3057 = vpack.c.bf16 %v3052, %v3051
      %v3058 = vpack.c.bf16 %v3054, %v3053
      %s3059 = scalar_lea.vmem %s10, 4
      %v3060 = vld [vmem:[%s3059] sm:$0x1]
      %v3062 = vlaneseq
      %v3063 = vshrl.u32 %v3062, 7
      %v3064 = vsub.s32 0, %v3063
      %v3065 = vrot.slane %v3060, %v3064
      %v3068 = vsel %vm952, %v3055, 0
      %v3071 = vsel %vm952, %v3056, 0
      %3073 = vmatprep.subr.bf16.mxu0 0
      %3074 = vmatpush1.bf16.msra.mxu0 %v3057
      %3075 = vmatprep.subr.bf16.mxu0 0
      %3076 = vmatpush1.bf16.msra.mxu0 %v3058
      %3077 = vmatprep.subr.bf16.mxu0 0
      %3078 = vmatpush1.bf16.msra.mxu0 0
      %3079 = vmatprep.subr.bf16.mxu0 0
      %3080 = vmatpush1.bf16.msra.mxu0 0
      %3081 = vmatprep.subr.bf16.mxu0 0
      %3082 = vmatpush1.bf16.msra.mxu0 0
      %3083 = vmatprep.subr.bf16.mxu0 0
      %3084 = vmatpush1.bf16.msra.mxu0 0
      %3085 = vmatprep.subr.bf16.mxu0 0
      %3086 = vmatpush1.bf16.msra.mxu0 0
      %3087 = vmatprep.subr.bf16.mxu0 0
      %3088 = vmatpush1.bf16.msra.mxu0 0
      %3089 = vmatprep.subr.bf16.mxu0 0
      %3090 = vmatpush1.bf16.msra.mxu0 0
      %3091 = vmatprep.subr.bf16.mxu0 0
      %3092 = vmatpush1.bf16.msra.mxu0 0
      %3093 = vmatprep.subr.bf16.mxu0 0
      %3094 = vmatpush1.bf16.msra.mxu0 0
      %3095 = vmatprep.subr.bf16.mxu0 0
      %3096 = vmatpush1.bf16.msra.mxu0 0
      %3097 = vmatprep.subr.bf16.mxu0 0
      %3098 = vmatpush1.bf16.msra.mxu0 0
      %3099 = vmatprep.subr.bf16.mxu0 0
      %3100 = vmatpush1.bf16.msra.mxu0 0
      %3101 = vmatprep.subr.bf16.mxu0 0
      %3102 = vmatpush1.bf16.msra.mxu0 0
      %3103 = vmatprep.subr.bf16.mxu0 0
      %3104 = vmatpush1.bf16.msra.mxu0 0
      %3105 = vmatprep.mubr.bf16.mxu0 0
      %3106 = vmatmul.mubr.bf16.gmra.mrb[0].mxu0 %v3068
      %v3107 = vpop.f32.mrb[0].mxu0
      %v3108 = vadd.f32 %v3065, %v3107
      %v3109 = vpop.f32.mrb[0].mxu0
      %v3110 = vpop.f32.mrb[0].mxu0
      %v3111 = vadd.f32 %v3065, %v3110
      %v3112 = vpop.f32.mrb[0].mxu0
      %3113 = vmatprep.mubr.bf16.mxu0 0
      %3114 = vmatmul.mubr.bf16.gmra.mrb[0].mxu0 %v3071
      %v3115 = vpop.f32.mrb[0].mxu0
      %v3116 = vadd.f32 %v3065, %v3115
      %v3117 = vpop.f32.mrb[0].mxu0
      %v3118 = vpop.f32.mrb[0].mxu0
      %v3119 = vpop.f32.mrb[0].mxu0
      %3120 = vdwg.mxu0
      %v3121 = vmul.f32 %v3108, 0.35355338
      %v3122 = vmul.f32 %v3111, 0.35355338
      %v3123 = vmul.f32 %v3116, 0.35355338
      %s3124 = scalar_lea.vmem %s11, 128
      %v3125 = vld [vmem:[%s3124] sm:$0xff]
      %v3126 = vld [vmem:[%s3124 + $0x8] sm:$0xff]
      %v3127 = vld [vmem:[%s3124 + $0x10] sm:$0xff]
      %v3128 = vld [vmem:[%s3124 + $0x18] sm:$0xff]
      %v3129 = vpack.c.bf16 %v3126, %v3125
      %v3130 = vpack.c.bf16 %v3128, %v3127
      %s3131 = scalar_lea.vmem %s12, 4
      %v3132 = vld [vmem:[%s3131] sm:$0x1]
      %v3134 = vlaneseq
      %v3135 = vshrl.u32 %v3134, 7
      %v3136 = vsub.s32 0, %v3135
      %v3137 = vrot.slane %v3132, %v3136
      %3139 = vmatprep.subr.bf16.mxu0 0
      %3140 = vmatpush1.bf16.msra.mxu0 %v3129
      %3141 = vmatprep.subr.bf16.mxu0 0
      %3142 = vmatpush1.bf16.msra.mxu0 %v3130
      %3143 = vmatprep.subr.bf16.mxu0 0
      %3144 = vmatpush1.bf16.msra.mxu0 0
      %3145 = vmatprep.subr.bf16.mxu0 0
      %3146 = vmatpush1.bf16.msra.mxu0 0
      %3147 = vmatprep.subr.bf16.mxu0 0
      %3148 = vmatpush1.bf16.msra.mxu0 0
      %3149 = vmatprep.subr.bf16.mxu0 0
      %3150 = vmatpush1.bf16.msra.mxu0 0
      %3151 = vmatprep.subr.bf16.mxu0 0
      %3152 = vmatpush1.bf16.msra.mxu0 0
      %3153 = vmatprep.subr.bf16.mxu0 0
      %3154 = vmatpush1.bf16.msra.mxu0 0
      %3155 = vmatprep.subr.bf16.mxu0 0
      %3156 = vmatpush1.bf16.msra.mxu0 0
      %3157 = vmatprep.subr.bf16.mxu0 0
      %3158 = vmatpush1.bf16.msra.mxu0 0
      %3159 = vmatprep.subr.bf16.mxu0 0
      %3160 = vmatpush1.bf16.msra.mxu0 0
      %3161 = vmatprep.subr.bf16.mxu0 0
      %3162 = vmatpush1.bf16.msra.mxu0 0
      %3163 = vmatprep.subr.bf16.mxu0 0
      %3164 = vmatpush1.bf16.msra.mxu0 0
      %3165 = vmatprep.subr.bf16.mxu0 0
      %3166 = vmatpush1.bf16.msra.mxu0 0
      %3167 = vmatprep.subr.bf16.mxu0 0
      %3168 = vmatpush1.bf16.msra.mxu0 0
      %3169 = vmatprep.subr.bf16.mxu0 0
      %3170 = vmatpush1.bf16.msra.mxu0 0
      %3171 = vmatprep.mubr.bf16.mxu0 0
      %3172 = vmatmul.mubr.bf16.gmra.mrb[0].mxu0 %v3068
      %v3173 = vpop.f32.mrb[0].mxu0
      %v3174 = vadd.f32 %v3137, %v3173
      %v3175 = vpop.f32.mrb[0].mxu0
      %v3176 = vpop.f32.mrb[0].mxu0
      %v3177 = vadd.f32 %v3137, %v3176
      %v3178 = vpop.f32.mrb[0].mxu0
      %3179 = vmatprep.mubr.bf16.mxu0 0
      %3180 = vmatmul.mubr.bf16.gmra.mrb[0].mxu0 %v3071
      %v3181 = vpop.f32.mrb[0].mxu0
      %v3182 = vadd.f32 %v3137, %v3181
      %v3183 = vpop.f32.mrb[0].mxu0
      %v3184 = vpop.f32.mrb[0].mxu0
      %v3185 = vpop.f32.mrb[0].mxu0
      %3186 = vdwg.mxu0
      %s3187 = scalar_lea.vmem %s13, 128
      %v3188 = vld [vmem:[%s3187] sm:$0xff]
      %v3189 = vld [vmem:[%s3187 + $0x8] sm:$0xff]
      %v3190 = vld [vmem:[%s3187 + $0x10] sm:$0xff]
      %v3191 = vld [vmem:[%s3187 + $0x18] sm:$0xff]
      %v3192 = vpack.c.bf16 %v3189, %v3188
      %v3193 = vpack.c.bf16 %v3191, %v3190
      %s3194 = scalar_lea.vmem %s14, 4
      %v3195 = vld [vmem:[%s3194] sm:$0x1]
      %v3197 = vlaneseq
      %v3198 = vshrl.u32 %v3197, 7
      %v3199 = vsub.s32 0, %v3198
      %v3200 = vrot.slane %v3195, %v3199
      %3202 = vmatprep.subr.bf16.mxu0 0
      %3203 = vmatpush1.bf16.msra.mxu0 %v3192
      %3204 = vmatprep.subr.bf16.mxu0 0
      %3205 = vmatpush1.bf16.msra.mxu0 %v3193
      %3206 = vmatprep.subr.bf16.mxu0 0
      %3207 = vmatpush1.bf16.msra.mxu0 0
      %3208 = vmatprep.subr.bf16.mxu0 0
      %3209 = vmatpush1.bf16.msra.mxu0 0
      %3210 = vmatprep.subr.bf16.mxu0 0
      %3211 = vmatpush1.bf16.msra.mxu0 0
      %3212 = vmatprep.subr.bf16.mxu0 0
      %3213 = vmatpush1.bf16.msra.mxu0 0
      %3214 = vmatprep.subr.bf16.mxu0 0
      %3215 = vmatpush1.bf16.msra.mxu0 0
      %3216 = vmatprep.subr.bf16.mxu0 0
      %3217 = vmatpush1.bf16.msra.mxu0 0
      %3218 = vmatprep.subr.bf16.mxu0 0
      %3219 = vmatpush1.bf16.msra.mxu0 0
      %3220 = vmatprep.subr.bf16.mxu0 0
      %3221 = vmatpush1.bf16.msra.mxu0 0
      %3222 = vmatprep.subr.bf16.mxu0 0
      %3223 = vmatpush1.bf16.msra.mxu0 0
      %3224 = vmatprep.subr.bf16.mxu0 0
      %3225 = vmatpush1.bf16.msra.mxu0 0
      %3226 = vmatprep.subr.bf16.mxu0 0
      %3227 = vmatpush1.bf16.msra.mxu0 0
      %3228 = vmatprep.subr.bf16.mxu0 0
      %3229 = vmatpush1.bf16.msra.mxu0 0
      %3230 = vmatprep.subr.bf16.mxu0 0
      %3231 = vmatpush1.bf16.msra.mxu0 0
      %3232 = vmatprep.subr.bf16.mxu0 0
      %3233 = vmatpush1.bf16.msra.mxu0 0
      %3234 = vmatprep.mubr.bf16.mxu0 0
      %3235 = vmatmul.mubr.bf16.gmra.mrb[0].mxu0 %v3068
      %v3236 = vpop.f32.mrb[0].mxu0
      %v3237 = vadd.f32 %v3200, %v3236
      %v3238 = vpop.f32.mrb[0].mxu0
      %v3239 = vpop.f32.mrb[0].mxu0
      %v3240 = vadd.f32 %v3200, %v3239
      %v3241 = vpop.f32.mrb[0].mxu0
      %3242 = vmatprep.mubr.bf16.mxu0 0
      %3243 = vmatmul.mubr.bf16.gmra.mrb[0].mxu0 %v3071
      %v3244 = vpop.f32.mrb[0].mxu0
      %v3245 = vadd.f32 %v3200, %v3244
      %v3246 = vpop.f32.mrb[0].mxu0
      %v3247 = vpop.f32.mrb[0].mxu0
      %v3248 = vpop.f32.mrb[0].mxu0
      %3249 = vdwg.mxu0
      %v3250 = vpack.c.bf16 %v3122, %v3121
      %v3251 = vpack.c.bf16 %v3123, %v3123
      %v3252 = vpack.c.bf16 %v3177, %v3174
      %v3253 = vpack.c.bf16 %v3182, %v3182
      %v3255 = vsel %vm1216, %v3250, 0
      %v3258 = vsel %vm1216, %v3251, 0
      %v3261 = vsel %vm1216, %v3252, 0
      %v3264 = vsel %vm1216, %v3253, 0
      %3266 = vmatprep.subr.bf16.mxu0 0
      %3267 = vmatpush1.bf16.xpose.msra.mxu0 %v3261
      %3268 = vmatprep.subr.bf16.mxu0 0
      %3269 = vmatpush1.bf16.xpose.msra.mxu0 %v3264
      %3270 = vmatprep.subr.bf16.mxu0 0
      %3271 = vmatpush1.bf16.xpose.msra.mxu0 0
      %3272 = vmatprep.subr.bf16.mxu0 0
      %3273 = vmatpush1.bf16.xpose.msra.mxu0 0
      %3274 = vmatprep.subr.bf16.mxu0 0
      %3275 = vmatpush1.bf16.xpose.msra.mxu0 0
      %3276 = vmatprep.subr.bf16.mxu0 0
      %3277 = vmatpush1.bf16.xpose.msra.mxu0 0
      %3278 = vmatprep.subr.bf16.mxu0 0
      %3279 = vmatpush1.bf16.xpose.msra.mxu0 0
      %3280 = vmatprep.subr.bf16.mxu0 0
      %3281 = vmatpush1.bf16.xpose.msra.mxu0 0
      %3282 = vmatprep.subr.bf16.mxu0 0
      %3283 = vmatpush1.bf16.xpose.msra.mxu0 0
      %3284 = vmatprep.subr.bf16.mxu0 0
      %3285 = vmatpush1.bf16.xpose.msra.mxu0 0
      %3286 = vmatprep.subr.bf16.mxu0 0
      %3287 = vmatpush1.bf16.xpose.msra.mxu0 0
      %3288 = vmatprep.subr.bf16.mxu0 0
      %3289 = vmatpush1.bf16.xpose.msra.mxu0 0
      %3290 = vmatprep.subr.bf16.mxu0 0
      %3291 = vmatpush1.bf16.xpose.msra.mxu0 0
      %3292 = vmatprep.subr.bf16.mxu0 0
      %3293 = vmatpush1.bf16.xpose.msra.mxu0 0
      %3294 = vmatprep.subr.bf16.mxu0 0
      %3295 = vmatpush1.bf16.xpose.msra.mxu0 0
      %3296 = vmatprep.subr.bf16.mxu0 0
      %3297 = vmatpush1.bf16.xpose.msra.mxu0 0
      %3298 = vmatprep.mubr.bf16.mxu0 0
      %3299 = vmatmul.mubr.bf16.gmra.mrb[0].mxu0 %v3255
      %v3300 = vpop.f32.mrb[0].mxu0
      %v3301 = vadd.f32 0.0, %v3300
      %v3302 = vpop.f32.mrb[0].mxu0
      %v3303 = vpop.f32.mrb[0].mxu0
      %v3304 = vadd.f32 0.0, %v3303
      %v3305 = vpop.f32.mrb[0].mxu0
      %3306 = vmatprep.mubr.bf16.mxu0 0
      %3307 = vmatmul.mubr.bf16.gmra.mrb[0].mxu0 %v3258
      %v3308 = vpop.f32.mrb[0].mxu0
      %v3309 = vadd.f32 0.0, %v3308
      %v3310 = vpop.f32.mrb[0].mxu0
      %v3311 = vpop.f32.mrb[0].mxu0
      %v3312 = vpop.f32.mrb[0].mxu0
      %3313 = vdwg.mxu0
      %v3314 = vsel %vm1277, %v3301, -inf
      %3315 = vmax.xlane.f32.xlu0 %v3314
      %v3316 = vpop.xlane.xlu0 %3315
      %v3317 = vsel %vm1277, %v3304, -inf
      %3318 = vmax.xlane.f32.xlu0 %v3317
      %v3319 = vpop.xlane.xlu0 %3318
      %v3320 = vsel %vm1284, %v3309, -inf
      %3321 = vmax.xlane.f32.xlu0 %v3320
      %v3322 = vpop.xlane.xlu0 %3321
      %v3323 = vsub.f32 %v3301, %v3316
      %v3324 = vsub.f32 %v3304, %v3319
      %v3325 = vsub.f32 %v3309, %v3322
      %v3326 = vmul.f32 %v3323, 1.442695
      %v3327 = vpow.pop %v3326
      %v3328 = vmul.f32 %v3324, 1.442695
      %v3329 = vpow.pop %v3328
      %v3330 = vmul.f32 %v3325, 1.442695
      %v3331 = vpow.pop %v3330
      %v3332 = vsel %vm1277, %v3327, 0.0
      %3333 = vadd.xlane.f32.xlu0 %v3332
      %v3334 = vpop.xlane.xlu0 %3333
      %v3335 = vsel %vm1277, %v3329, 0.0
      %3336 = vadd.xlane.f32.xlu0 %v3335
      %v3337 = vpop.xlane.xlu0 %3336
      %v3338 = vsel %vm1284, %v3331, 0.0
      %3339 = vadd.xlane.f32.xlu0 %v3338
      %v3340 = vpop.xlane.xlu0 %3339
      %v3341 = vrcp.pop %v3334
      %v3342 = vrcp.pop %v3337
      %v3343 = vrcp.pop %v3340
      %v3344 = vmul.f32 %v3327, %v3341
      %v3345 = vmul.f32 %v3329, %v3342
      %v3346 = vmul.f32 %v3331, %v3343
      %v3347 = vpack.c.bf16 %v3345, %v3344
      %v3348 = vpack.c.bf16 %v3346, %v3346
      %v3349 = vpack.c.bf16 %v3240, %v3237
      %v3350 = vpack.c.bf16 %v3245, %v3245
      %v3352 = vsel %vm1277, %v3347, 0
      %v3355 = vsel %vm1277, %v3348, 0
      %v3358 = vand.u32 %v3350, %v1324
      %3360 = vmatprep.subr.bf16.mxu0 0
      %3361 = vmatpush1.bf16.msra.mxu0 %v3349
      %3362 = vmatprep.subr.bf16.mxu0 0
      %3363 = vmatpush1.bf16.msra.mxu0 %v3358
      %3364 = vmatprep.subr.bf16.mxu0 0
      %3365 = vmatpush1.bf16.msra.mxu0 0
      %3366 = vmatprep.subr.bf16.mxu0 0
      %3367 = vmatpush1.bf16.msra.mxu0 0
      %3368 = vmatprep.subr.bf16.mxu0 0
      %3369 = vmatpush1.bf16.msra.mxu0 0
      %3370 = vmatprep.subr.bf16.mxu0 0
      %3371 = vmatpush1.bf16.msra.mxu0 0
      %3372 = vmatprep.subr.bf16.mxu0 0
      %3373 = vmatpush1.bf16.msra.mxu0 0
      %3374 = vmatprep.subr.bf16.mxu0 0
      %3375 = vmatpush1.bf16.msra.mxu0 0
      %3376 = vmatprep.subr.bf16.mxu0 0
      %3377 = vmatpush1.bf16.msra.mxu0 0
      %3378 = vmatprep.subr.bf16.mxu0 0
      %3379 = vmatpush1.bf16.msra.mxu0 0
      %3380 = vmatprep.subr.bf16.mxu0 0
      %3381 = vmatpush1.bf16.msra.mxu0 0
      %3382 = vmatprep.subr.bf16.mxu0 0
      %3383 = vmatpush1.bf16.msra.mxu0 0
      %3384 = vmatprep.subr.bf16.mxu0 0
      %3385 = vmatpush1.bf16.msra.mxu0 0
      %3386 = vmatprep.subr.bf16.mxu0 0
      %3387 = vmatpush1.bf16.msra.mxu0 0
      %3388 = vmatprep.subr.bf16.mxu0 0
      %3389 = vmatpush1.bf16.msra.mxu0 0
      %3390 = vmatprep.subr.bf16.mxu0 0
      %3391 = vmatpush1.bf16.msra.mxu0 0
      %3392 = vmatprep.mubr.bf16.mxu0 0
      %3393 = vmatmul.mubr.bf16.gmra.mrb[0].mxu0 %v3352
      %v3394 = vpop.f32.mrb[0].mxu0
      %v3395 = vadd.f32 0.0, %v3394
      %v3396 = vpop.f32.mrb[0].mxu0
      %v3397 = vpop.f32.mrb[0].mxu0
      %v3398 = vadd.f32 0.0, %v3397
      %v3399 = vpop.f32.mrb[0].mxu0
      %3400 = vmatprep.mubr.bf16.mxu0 0
      %3401 = vmatmul.mubr.bf16.gmra.mrb[0].mxu0 %v3355
      %v3402 = vpop.f32.mrb[0].mxu0
      %v3403 = vadd.f32 0.0, %v3402
      %v3404 = vpop.f32.mrb[0].mxu0
      %v3405 = vpop.f32.mrb[0].mxu0
      %v3406 = vpop.f32.mrb[0].mxu0
      %3407 = vdwg.mxu0
      %s3408 = scalar_lea.vmem %s15, 32
      %v3409 = vld [vmem:[%s3408] sm:$0xff]
      %v3410 = vpack.c.bf16 %v3398, %v3395
      %v3411 = vpack.c.bf16 %v3403, %v3403
      %v3412 = vpack.c.bf16 %v3409, %v3409
      %s3413 = scalar_lea.vmem %s9, 160
      %v3414 = vld [vmem:[%s3413] sm:$0xff]
      %v3415 = vld [vmem:[%s3413 + $0x8] sm:$0xff]
      %v3416 = vld [vmem:[%s3413 + $0x10] sm:$0xff]
      %v3417 = vld [vmem:[%s3413 + $0x18] sm:$0xff]
      %v3418 = vpack.c.bf16 %v3415, %v3414
      %v3419 = vpack.c.bf16 %v3417, %v3416
      %s3420 = scalar_lea.vmem %s10, 5
      %v3421 = vld [vmem:[%s3420] sm:$0x1]
      %v3423 = vlaneseq
      %v3424 = vshrl.u32 %v3423, 7
      %v3425 = vsub.s32 0, %v3424
      %v3426 = vrot.slane %v3421, %v3425
      %3428 = vmatprep.subr.bf16.mxu0 0
      %3429 = vmatpush1.bf16.msra.mxu0 %v3418
      %3430 = vmatprep.subr.bf16.mxu0 0
      %3431 = vmatpush1.bf16.msra.mxu0 %v3419
      %3432 = vmatprep.subr.bf16.mxu0 0
      %3433 = vmatpush1.bf16.msra.mxu0 0
      %3434 = vmatprep.subr.bf16.mxu0 0
      %3435 = vmatpush1.bf16.msra.mxu0 0
      %3436 = vmatprep.subr.bf16.mxu0 0
      %3437 = vmatpush1.bf16.msra.mxu0 0
      %3438 = vmatprep.subr.bf16.mxu0 0
      %3439 = vmatpush1.bf16.msra.mxu0 0
      %3440 = vmatprep.subr.bf16.mxu0 0
      %3441 = vmatpush1.bf16.msra.mxu0 0
      %3442 = vmatprep.subr.bf16.mxu0 0
      %3443 = vmatpush1.bf16.msra.mxu0 0
      %3444 = vmatprep.subr.bf16.mxu0 0
      %3445 = vmatpush1.bf16.msra.mxu0 0
      %3446 = vmatprep.subr.bf16.mxu0 0
      %3447 = vmatpush1.bf16.msra.mxu0 0
      %3448 = vmatprep.subr.bf16.mxu0 0
      %3449 = vmatpush1.bf16.msra.mxu0 0
      %3450 = vmatprep.subr.bf16.mxu0 0
      %3451 = vmatpush1.bf16.msra.mxu0 0
      %3452 = vmatprep.subr.bf16.mxu0 0
      %3453 = vmatpush1.bf16.msra.mxu0 0
      %3454 = vmatprep.subr.bf16.mxu0 0
      %3455 = vmatpush1.bf16.msra.mxu0 0
      %3456 = vmatprep.subr.bf16.mxu0 0
      %3457 = vmatpush1.bf16.msra.mxu0 0
      %3458 = vmatprep.subr.bf16.mxu0 0
      %3459 = vmatpush1.bf16.msra.mxu0 0
      %3460 = vmatprep.mubr.bf16.mxu0 0
      %3461 = vmatmul.mubr.bf16.gmra.mrb[0].mxu0 %v3068
      %v3462 = vpop.f32.mrb[0].mxu0
      %v3463 = vadd.f32 %v3426, %v3462
      %v3464 = vpop.f32.mrb[0].mxu0
      %v3465 = vpop.f32.mrb[0].mxu0
      %v3466 = vadd.f32 %v3426, %v3465
      %v3467 = vpop.f32.mrb[0].mxu0
      %3468 = vmatprep.mubr.bf16.mxu0 0
      %3469 = vmatmul.mubr.bf16.gmra.mrb[0].mxu0 %v3071
      %v3470 = vpop.f32.mrb[0].mxu0
      %v3471 = vadd.f32 %v3426, %v3470
      %v3472 = vpop.f32.mrb[0].mxu0
      %v3473 = vpop.f32.mrb[0].mxu0
      %v3474 = vpop.f32.mrb[0].mxu0
      %3475 = vdwg.mxu0
      %v3476 = vmul.f32 %v3463, 0.35355338
      %v3477 = vmul.f32 %v3466, 0.35355338
      %v3478 = vmul.f32 %v3471, 0.35355338
      %s3479 = scalar_lea.vmem %s11, 160
      %v3480 = vld [vmem:[%s3479] sm:$0xff]
      %v3481 = vld [vmem:[%s3479 + $0x8] sm:$0xff]
      %v3482 = vld [vmem:[%s3479 + $0x10] sm:$0xff]
      %v3483 = vld [vmem:[%s3479 + $0x18] sm:$0xff]
      %v3484 = vpack.c.bf16 %v3481, %v3480
      %v3485 = vpack.c.bf16 %v3483, %v3482
      %s3486 = scalar_lea.vmem %s12, 5
      %v3487 = vld [vmem:[%s3486] sm:$0x1]
      %v3489 = vlaneseq
      %v3490 = vshrl.u32 %v3489, 7
      %v3491 = vsub.s32 0, %v3490
      %v3492 = vrot.slane %v3487, %v3491
      %3494 = vmatprep.subr.bf16.mxu0 0
      %3495 = vmatpush1.bf16.msra.mxu0 %v3484
      %3496 = vmatprep.subr.bf16.mxu0 0
      %3497 = vmatpush1.bf16.msra.mxu0 %v3485
      %3498 = vmatprep.subr.bf16.mxu0 0
      %3499 = vmatpush1.bf16.msra.mxu0 0
      %3500 = vmatprep.subr.bf16.mxu0 0
      %3501 = vmatpush1.bf16.msra.mxu0 0
      %3502 = vmatprep.subr.bf16.mxu0 0
      %3503 = vmatpush1.bf16.msra.mxu0 0
      %3504 = vmatprep.subr.bf16.mxu0 0
      %3505 = vmatpush1.bf16.msra.mxu0 0
      %3506 = vmatprep.subr.bf16.mxu0 0
      %3507 = vmatpush1.bf16.msra.mxu0 0
      %3508 = vmatprep.subr.bf16.mxu0 0
      %3509 = vmatpush1.bf16.msra.mxu0 0
      %3510 = vmatprep.subr.bf16.mxu0 0
      %3511 = vmatpush1.bf16.msra.mxu0 0
      %3512 = vmatprep.subr.bf16.mxu0 0
      %3513 = vmatpush1.bf16.msra.mxu0 0
      %3514 = vmatprep.subr.bf16.mxu0 0
      %3515 = vmatpush1.bf16.msra.mxu0 0
      %3516 = vmatprep.subr.bf16.mxu0 0
      %3517 = vmatpush1.bf16.msra.mxu0 0
      %3518 = vmatprep.subr.bf16.mxu0 0
      %3519 = vmatpush1.bf16.msra.mxu0 0
      %3520 = vmatprep.subr.bf16.mxu0 0
      %3521 = vmatpush1.bf16.msra.mxu0 0
      %3522 = vmatprep.subr.bf16.mxu0 0
      %3523 = vmatpush1.bf16.msra.mxu0 0
      %3524 = vmatprep.subr.bf16.mxu0 0
      %3525 = vmatpush1.bf16.msra.mxu0 0
      %3526 = vmatprep.mubr.bf16.mxu0 0
      %3527 = vmatmul.mubr.bf16.gmra.mrb[0].mxu0 %v3068
      %v3528 = vpop.f32.mrb[0].mxu0
      %v3529 = vadd.f32 %v3492, %v3528
      %v3530 = vpop.f32.mrb[0].mxu0
      %v3531 = vpop.f32.mrb[0].mxu0
      %v3532 = vadd.f32 %v3492, %v3531
      %v3533 = vpop.f32.mrb[0].mxu0
      %3534 = vmatprep.mubr.bf16.mxu0 0
      %3535 = vmatmul.mubr.bf16.gmra.mrb[0].mxu0 %v3071
      %v3536 = vpop.f32.mrb[0].mxu0
      %v3537 = vadd.f32 %v3492, %v3536
      %v3538 = vpop.f32.mrb[0].mxu0
      %v3539 = vpop.f32.mrb[0].mxu0
      %v3540 = vpop.f32.mrb[0].mxu0
      %3541 = vdwg.mxu0
      %s3542 = scalar_lea.vmem %s13, 160
      %v3543 = vld [vmem:[%s3542] sm:$0xff]
      %v3544 = vld [vmem:[%s3542 + $0x8] sm:$0xff]
      %v3545 = vld [vmem:[%s3542 + $0x10] sm:$0xff]
      %v3546 = vld [vmem:[%s3542 + $0x18] sm:$0xff]
      %v3547 = vpack.c.bf16 %v3544, %v3543
      %v3548 = vpack.c.bf16 %v3546, %v3545
      %s3549 = scalar_lea.vmem %s14, 5
      %v3550 = vld [vmem:[%s3549] sm:$0x1]
      %v3552 = vlaneseq
      %v3553 = vshrl.u32 %v3552, 7
      %v3554 = vsub.s32 0, %v3553
      %v3555 = vrot.slane %v3550, %v3554
      %3557 = vmatprep.subr.bf16.mxu0 0
      %3558 = vmatpush1.bf16.msra.mxu0 %v3547
      %3559 = vmatprep.subr.bf16.mxu0 0
      %3560 = vmatpush1.bf16.msra.mxu0 %v3548
      %3561 = vmatprep.subr.bf16.mxu0 0
      %3562 = vmatpush1.bf16.msra.mxu0 0
      %3563 = vmatprep.subr.bf16.mxu0 0
      %3564 = vmatpush1.bf16.msra.mxu0 0
      %3565 = vmatprep.subr.bf16.mxu0 0
      %3566 = vmatpush1.bf16.msra.mxu0 0
      %3567 = vmatprep.subr.bf16.mxu0 0
      %3568 = vmatpush1.bf16.msra.mxu0 0
      %3569 = vmatprep.subr.bf16.mxu0 0
      %3570 = vmatpush1.bf16.msra.mxu0 0
      %3571 = vmatprep.subr.bf16.mxu0 0
      %3572 = vmatpush1.bf16.msra.mxu0 0
      %3573 = vmatprep.subr.bf16.mxu0 0
      %3574 = vmatpush1.bf16.msra.mxu0 0
      %3575 = vmatprep.subr.bf16.mxu0 0
      %3576 = vmatpush1.bf16.msra.mxu0 0
      %3577 = vmatprep.subr.bf16.mxu0 0
      %3578 = vmatpush1.bf16.msra.mxu0 0
      %3579 = vmatprep.subr.bf16.mxu0 0
      %3580 = vmatpush1.bf16.msra.mxu0 0
      %3581 = vmatprep.subr.bf16.mxu0 0
      %3582 = vmatpush1.bf16.msra.mxu0 0
      %3583 = vmatprep.subr.bf16.mxu0 0
      %3584 = vmatpush1.bf16.msra.mxu0 0
      %3585 = vmatprep.subr.bf16.mxu0 0
      %3586 = vmatpush1.bf16.msra.mxu0 0
      %3587 = vmatprep.subr.bf16.mxu0 0
      %3588 = vmatpush1.bf16.msra.mxu0 0
      %3589 = vmatprep.mubr.bf16.mxu0 0
      %3590 = vmatmul.mubr.bf16.gmra.mrb[0].mxu0 %v3068
      %v3591 = vpop.f32.mrb[0].mxu0
      %v3592 = vadd.f32 %v3555, %v3591
      %v3593 = vpop.f32.mrb[0].mxu0
      %v3594 = vpop.f32.mrb[0].mxu0
      %v3595 = vadd.f32 %v3555, %v3594
      %v3596 = vpop.f32.mrb[0].mxu0
      %3597 = vmatprep.mubr.bf16.mxu0 0
      %3598 = vmatmul.mubr.bf16.gmra.mrb[0].mxu0 %v3071
      %v3599 = vpop.f32.mrb[0].mxu0
      %v3600 = vadd.f32 %v3555, %v3599
      %v3601 = vpop.f32.mrb[0].mxu0
      %v3602 = vpop.f32.mrb[0].mxu0
      %v3603 = vpop.f32.mrb[0].mxu0
      %3604 = vdwg.mxu0
      %v3605 = vpack.c.bf16 %v3477, %v3476
      %v3606 = vpack.c.bf16 %v3478, %v3478
      %v3607 = vpack.c.bf16 %v3532, %v3529
      %v3608 = vpack.c.bf16 %v3537, %v3537
      %v3610 = vsel %vm1216, %v3605, 0
      %v3613 = vsel %vm1216, %v3606, 0
      %v3616 = vsel %vm1216, %v3607, 0
      %v3619 = vsel %vm1216, %v3608, 0
      %3621 = vmatprep.subr.bf16.mxu0 0
      %3622 = vmatpush1.bf16.xpose.msra.mxu0 %v3616
      %3623 = vmatprep.subr.bf16.mxu0 0
      %3624 = vmatpush1.bf16.xpose.msra.mxu0 %v3619
      %3625 = vmatprep.subr.bf16.mxu0 0
      %3626 = vmatpush1.bf16.xpose.msra.mxu0 0
      %3627 = vmatprep.subr.bf16.mxu0 0
      %3628 = vmatpush1.bf16.xpose.msra.mxu0 0
      %3629 = vmatprep.subr.bf16.mxu0 0
      %3630 = vmatpush1.bf16.xpose.msra.mxu0 0
      %3631 = vmatprep.subr.bf16.mxu0 0
      %3632 = vmatpush1.bf16.xpose.msra.mxu0 0
      %3633 = vmatprep.subr.bf16.mxu0 0
      %3634 = vmatpush1.bf16.xpose.msra.mxu0 0
      %3635 = vmatprep.subr.bf16.mxu0 0
      %3636 = vmatpush1.bf16.xpose.msra.mxu0 0
      %3637 = vmatprep.subr.bf16.mxu0 0
      %3638 = vmatpush1.bf16.xpose.msra.mxu0 0
      %3639 = vmatprep.subr.bf16.mxu0 0
      %3640 = vmatpush1.bf16.xpose.msra.mxu0 0
      %3641 = vmatprep.subr.bf16.mxu0 0
      %3642 = vmatpush1.bf16.xpose.msra.mxu0 0
      %3643 = vmatprep.subr.bf16.mxu0 0
      %3644 = vmatpush1.bf16.xpose.msra.mxu0 0
      %3645 = vmatprep.subr.bf16.mxu0 0
      %3646 = vmatpush1.bf16.xpose.msra.mxu0 0
      %3647 = vmatprep.subr.bf16.mxu0 0
      %3648 = vmatpush1.bf16.xpose.msra.mxu0 0
      %3649 = vmatprep.subr.bf16.mxu0 0
      %3650 = vmatpush1.bf16.xpose.msra.mxu0 0
      %3651 = vmatprep.subr.bf16.mxu0 0
      %3652 = vmatpush1.bf16.xpose.msra.mxu0 0
      %3653 = vmatprep.mubr.bf16.mxu0 0
      %3654 = vmatmul.mubr.bf16.gmra.mrb[0].mxu0 %v3610
      %v3655 = vpop.f32.mrb[0].mxu0
      %v3656 = vadd.f32 0.0, %v3655
      %v3657 = vpop.f32.mrb[0].mxu0
      %v3658 = vpop.f32.mrb[0].mxu0
      %v3659 = vadd.f32 0.0, %v3658
      %v3660 = vpop.f32.mrb[0].mxu0
      %3661 = vmatprep.mubr.bf16.mxu0 0
      %3662 = vmatmul.mubr.bf16.gmra.mrb[0].mxu0 %v3613
      %v3663 = vpop.f32.mrb[0].mxu0
      %v3664 = vadd.f32 0.0, %v3663
      %v3665 = vpop.f32.mrb[0].mxu0
      %v3666 = vpop.f32.mrb[0].mxu0
      %v3667 = vpop.f32.mrb[0].mxu0
      %3668 = vdwg.mxu0
      %v3669 = vsel %vm1277, %v3656, -inf
      %3670 = vmax.xlane.f32.xlu0 %v3669
      %v3671 = vpop.xlane.xlu0 %3670
      %v3672 = vsel %vm1277, %v3659, -inf
      %3673 = vmax.xlane.f32.xlu0 %v3672
      %v3674 = vpop.xlane.xlu0 %3673
      %v3675 = vsel %vm1284, %v3664, -inf
      %3676 = vmax.xlane.f32.xlu0 %v3675
      %v3677 = vpop.xlane.xlu0 %3676
      %v3678 = vsub.f32 %v3656, %v3671
      %v3679 = vsub.f32 %v3659, %v3674
      %v3680 = vsub.f32 %v3664, %v3677
      %v3681 = vmul.f32 %v3678, 1.442695
      %v3682 = vpow.pop %v3681
      %v3683 = vmul.f32 %v3679, 1.442695
      %v3684 = vpow.pop %v3683
      %v3685 = vmul.f32 %v3680, 1.442695
      %v3686 = vpow.pop %v3685
      %v3687 = vsel %vm1277, %v3682, 0.0
      %3688 = vadd.xlane.f32.xlu0 %v3687
      %v3689 = vpop.xlane.xlu0 %3688
      %v3690 = vsel %vm1277, %v3684, 0.0
      %3691 = vadd.xlane.f32.xlu0 %v3690
      %v3692 = vpop.xlane.xlu0 %3691
      %v3693 = vsel %vm1284, %v3686, 0.0
      %3694 = vadd.xlane.f32.xlu0 %v3693
      %v3695 = vpop.xlane.xlu0 %3694
      %v3696 = vrcp.pop %v3689
      %v3697 = vrcp.pop %v3692
      %v3698 = vrcp.pop %v3695
      %v3699 = vmul.f32 %v3682, %v3696
      %v3700 = vmul.f32 %v3684, %v3697
      %v3701 = vmul.f32 %v3686, %v3698
      %v3702 = vpack.c.bf16 %v3700, %v3699
      %v3703 = vpack.c.bf16 %v3701, %v3701
      %v3704 = vpack.c.bf16 %v3595, %v3592
      %v3705 = vpack.c.bf16 %v3600, %v3600
      %v3707 = vsel %vm1277, %v3702, 0
      %v3710 = vsel %vm1277, %v3703, 0
      %v3713 = vand.u32 %v3705, %v1324
      %3715 = vmatprep.subr.bf16.mxu0 0
      %3716 = vmatpush1.bf16.msra.mxu0 %v3704
      %3717 = vmatprep.subr.bf16.mxu0 0
      %3718 = vmatpush1.bf16.msra.mxu0 %v3713
      %3719 = vmatprep.subr.bf16.mxu0 0
      %3720 = vmatpush1.bf16.msra.mxu0 0
      %3721 = vmatprep.subr.bf16.mxu0 0
      %3722 = vmatpush1.bf16.msra.mxu0 0
      %3723 = vmatprep.subr.bf16.mxu0 0
      %3724 = vmatpush1.bf16.msra.mxu0 0
      %3725 = vmatprep.subr.bf16.mxu0 0
      %3726 = vmatpush1.bf16.msra.mxu0 0
      %3727 = vmatprep.subr.bf16.mxu0 0
      %3728 = vmatpush1.bf16.msra.mxu0 0
      %3729 = vmatprep.subr.bf16.mxu0 0
      %3730 = vmatpush1.bf16.msra.mxu0 0
      %3731 = vmatprep.subr.bf16.mxu0 0
      %3732 = vmatpush1.bf16.msra.mxu0 0
      %3733 = vmatprep.subr.bf16.mxu0 0
      %3734 = vmatpush1.bf16.msra.mxu0 0
      %3735 = vmatprep.subr.bf16.mxu0 0
      %3736 = vmatpush1.bf16.msra.mxu0 0
      %3737 = vmatprep.subr.bf16.mxu0 0
      %3738 = vmatpush1.bf16.msra.mxu0 0
      %3739 = vmatprep.subr.bf16.mxu0 0
      %3740 = vmatpush1.bf16.msra.mxu0 0
      %3741 = vmatprep.subr.bf16.mxu0 0
      %3742 = vmatpush1.bf16.msra.mxu0 0
      %3743 = vmatprep.subr.bf16.mxu0 0
      %3744 = vmatpush1.bf16.msra.mxu0 0
      %3745 = vmatprep.subr.bf16.mxu0 0
      %3746 = vmatpush1.bf16.msra.mxu0 0
      %3747 = vmatprep.mubr.bf16.mxu0 0
      %3748 = vmatmul.mubr.bf16.gmra.mrb[0].mxu0 %v3707
      %v3749 = vpop.f32.mrb[0].mxu0
      %v3750 = vadd.f32 0.0, %v3749
      %v3751 = vpop.f32.mrb[0].mxu0
      %v3752 = vpop.f32.mrb[0].mxu0
      %v3753 = vadd.f32 0.0, %v3752
      %v3754 = vpop.f32.mrb[0].mxu0
      %3755 = vmatprep.mubr.bf16.mxu0 0
      %3756 = vmatmul.mubr.bf16.gmra.mrb[0].mxu0 %v3710
      %v3757 = vpop.f32.mrb[0].mxu0
      %v3758 = vadd.f32 0.0, %v3757
      %v3759 = vpop.f32.mrb[0].mxu0
      %v3760 = vpop.f32.mrb[0].mxu0
      %v3761 = vpop.f32.mrb[0].mxu0
      %3762 = vdwg.mxu0
      %s3763 = scalar_lea.vmem %s15, 40
      %v3764 = vld [vmem:[%s3763] sm:$0xff]
      %v3765 = vpack.c.bf16 %v3753, %v3750
      %v3766 = vpack.c.bf16 %v3758, %v3758
      %v3767 = vpack.c.bf16 %v3764, %v3764
      %v3769 = vsel %vm1216, %v3765, 0
      %v3772 = vsel %vm1216, %v3766, 0
      %v3775 = vsel %vm1741, %v3767, 0
      %3777 = vmatprep.subr.bf16.mxu0 0
      %3778 = vmatpush1.bf16.msra.mxu0 %v3775
      %3779 = vmatprep.subr.bf16.mxu0 0
      %3780 = vmatpush1.bf16.msra.mxu0 0
      %3781 = vmatprep.subr.bf16.mxu0 0
      %3782 = vmatpush1.bf16.msra.mxu0 0
      %3783 = vmatprep.subr.bf16.mxu0 0
      %3784 = vmatpush1.bf16.msra.mxu0 0
      %3785 = vmatprep.subr.bf16.mxu0 0
      %3786 = vmatpush1.bf16.msra.mxu0 0
      %3787 = vmatprep.subr.bf16.mxu0 0
      %3788 = vmatpush1.bf16.msra.mxu0 0
      %3789 = vmatprep.subr.bf16.mxu0 0
      %3790 = vmatpush1.bf16.msra.mxu0 0
      %3791 = vmatprep.subr.bf16.mxu0 0
      %3792 = vmatpush1.bf16.msra.mxu0 0
      %3793 = vmatprep.subr.bf16.mxu0 0
      %3794 = vmatpush1.bf16.msra.mxu0 0
      %3795 = vmatprep.subr.bf16.mxu0 0
      %3796 = vmatpush1.bf16.msra.mxu0 0
      %3797 = vmatprep.subr.bf16.mxu0 0
      %3798 = vmatpush1.bf16.msra.mxu0 0
      %3799 = vmatprep.subr.bf16.mxu0 0
      %3800 = vmatpush1.bf16.msra.mxu0 0
      %3801 = vmatprep.subr.bf16.mxu0 0
      %3802 = vmatpush1.bf16.msra.mxu0 0
      %3803 = vmatprep.subr.bf16.mxu0 0
      %3804 = vmatpush1.bf16.msra.mxu0 0
      %3805 = vmatprep.subr.bf16.mxu0 0
      %3806 = vmatpush1.bf16.msra.mxu0 0
      %3807 = vmatprep.subr.bf16.mxu0 0
      %3808 = vmatpush1.bf16.msra.mxu0 0
      %3809 = vmatprep.mubr.bf16.mxu0 0
      %3810 = vmatmul.mubr.bf16.gmra.mrb[0].mxu0 %v3769
      %v3811 = vpop.f32.mrb[0].mxu0
      %v3812 = vadd.f32 0.0, %v3811
      %v3813 = vpop.f32.mrb[0].mxu0
      %v3814 = vpop.f32.mrb[0].mxu0
      %v3815 = vadd.f32 0.0, %v3814
      %v3816 = vpop.f32.mrb[0].mxu0
      %3817 = vmatprep.mubr.bf16.mxu0 0
      %3818 = vmatmul.mubr.bf16.gmra.mrb[0].mxu0 %v3772
      %v3819 = vpop.f32.mrb[0].mxu0
      %v3820 = vadd.f32 0.0, %v3819
      %v3821 = vpop.f32.mrb[0].mxu0
      %v3822 = vpop.f32.mrb[0].mxu0
      %v3823 = vpop.f32.mrb[0].mxu0
      %3824 = vdwg.mxu0
      %v3826 = vsel %vm1216, %v3410, 0
      %v3829 = vsel %vm1216, %v3411, 0
      %v3832 = vsel %vm1741, %v3412, 0
      %3834 = vmatprep.subr.bf16.mxu0 0
      %3835 = vmatpush1.bf16.msra.mxu0 %v3832
      %3836 = vmatprep.subr.bf16.mxu0 0
      %3837 = vmatpush1.bf16.msra.mxu0 0
      %3838 = vmatprep.subr.bf16.mxu0 0
      %3839 = vmatpush1.bf16.msra.mxu0 0
      %3840 = vmatprep.subr.bf16.mxu0 0
      %3841 = vmatpush1.bf16.msra.mxu0 0
      %3842 = vmatprep.subr.bf16.mxu0 0
      %3843 = vmatpush1.bf16.msra.mxu0 0
      %3844 = vmatprep.subr.bf16.mxu0 0
      %3845 = vmatpush1.bf16.msra.mxu0 0
      %3846 = vmatprep.subr.bf16.mxu0 0
      %3847 = vmatpush1.bf16.msra.mxu0 0
      %3848 = vmatprep.subr.bf16.mxu0 0
      %3849 = vmatpush1.bf16.msra.mxu0 0
      %3850 = vmatprep.subr.bf16.mxu0 0
      %3851 = vmatpush1.bf16.msra.mxu0 0
      %3852 = vmatprep.subr.bf16.mxu0 0
      %3853 = vmatpush1.bf16.msra.mxu0 0
      %3854 = vmatprep.subr.bf16.mxu0 0
      %3855 = vmatpush1.bf16.msra.mxu0 0
      %3856 = vmatprep.subr.bf16.mxu0 0
      %3857 = vmatpush1.bf16.msra.mxu0 0
      %3858 = vmatprep.subr.bf16.mxu0 0
      %3859 = vmatpush1.bf16.msra.mxu0 0
      %3860 = vmatprep.subr.bf16.mxu0 0
      %3861 = vmatpush1.bf16.msra.mxu0 0
      %3862 = vmatprep.subr.bf16.mxu0 0
      %3863 = vmatpush1.bf16.msra.mxu0 0
      %3864 = vmatprep.subr.bf16.mxu0 0
      %3865 = vmatpush1.bf16.msra.mxu0 0
      %3866 = vmatprep.mubr.bf16.mxu0 0
      %3867 = vmatmul.mubr.bf16.gmra.mrb[0].mxu0 %v3826
      %v3868 = vpop.f32.mrb[0].mxu0
      %v3869 = vadd.f32 %v3812, %v3868
      %v3870 = vpop.f32.mrb[0].mxu0
      %v3871 = vpop.f32.mrb[0].mxu0
      %v3872 = vadd.f32 %v3815, %v3871
      %v3873 = vpop.f32.mrb[0].mxu0
      %3874 = vmatprep.mubr.bf16.mxu0 0
      %3875 = vmatmul.mubr.bf16.gmra.mrb[0].mxu0 %v3829
      %v3876 = vpop.f32.mrb[0].mxu0
      %v3877 = vadd.f32 %v3820, %v3876
      %v3878 = vpop.f32.mrb[0].mxu0
      %v3879 = vpop.f32.mrb[0].mxu0
      %v3880 = vpop.f32.mrb[0].mxu0
      %3881 = vdwg.mxu0
      %s3882 = scalar_lea.vmem %s9, 192
      %v3883 = vld [vmem:[%s3882] sm:$0xff]
      %v3884 = vld [vmem:[%s3882 + $0x8] sm:$0xff]
      %v3885 = vld [vmem:[%s3882 + $0x10] sm:$0xff]
      %v3886 = vld [vmem:[%s3882 + $0x18] sm:$0xff]
      %v3887 = vpack.c.bf16 %v3884, %v3883
      %v3888 = vpack.c.bf16 %v3886, %v3885
      %s3889 = scalar_lea.vmem %s10, 6
      %v3890 = vld [vmem:[%s3889] sm:$0x1]
      %v3892 = vlaneseq
      %v3893 = vshrl.u32 %v3892, 7
      %v3894 = vsub.s32 0, %v3893
      %v3895 = vrot.slane %v3890, %v3894
      %3897 = vmatprep.subr.bf16.mxu0 0
      %3898 = vmatpush1.bf16.msra.mxu0 %v3887
      %3899 = vmatprep.subr.bf16.mxu0 0
      %3900 = vmatpush1.bf16.msra.mxu0 %v3888
      %3901 = vmatprep.subr.bf16.mxu0 0
      %3902 = vmatpush1.bf16.msra.mxu0 0
      %3903 = vmatprep.subr.bf16.mxu0 0
      %3904 = vmatpush1.bf16.msra.mxu0 0
      %3905 = vmatprep.subr.bf16.mxu0 0
      %3906 = vmatpush1.bf16.msra.mxu0 0
      %3907 = vmatprep.subr.bf16.mxu0 0
      %3908 = vmatpush1.bf16.msra.mxu0 0
      %3909 = vmatprep.subr.bf16.mxu0 0
      %3910 = vmatpush1.bf16.msra.mxu0 0
      %3911 = vmatprep.subr.bf16.mxu0 0
      %3912 = vmatpush1.bf16.msra.mxu0 0
      %3913 = vmatprep.subr.bf16.mxu0 0
      %3914 = vmatpush1.bf16.msra.mxu0 0
      %3915 = vmatprep.subr.bf16.mxu0 0
      %3916 = vmatpush1.bf16.msra.mxu0 0
      %3917 = vmatprep.subr.bf16.mxu0 0
      %3918 = vmatpush1.bf16.msra.mxu0 0
      %3919 = vmatprep.subr.bf16.mxu0 0
      %3920 = vmatpush1.bf16.msra.mxu0 0
      %3921 = vmatprep.subr.bf16.mxu0 0
      %3922 = vmatpush1.bf16.msra.mxu0 0
      %3923 = vmatprep.subr.bf16.mxu0 0
      %3924 = vmatpush1.bf16.msra.mxu0 0
      %3925 = vmatprep.subr.bf16.mxu0 0
      %3926 = vmatpush1.bf16.msra.mxu0 0
      %3927 = vmatprep.subr.bf16.mxu0 0
      %3928 = vmatpush1.bf16.msra.mxu0 0
      %3929 = vmatprep.mubr.bf16.mxu0 0
      %3930 = vmatmul.mubr.bf16.gmra.mrb[0].mxu0 %v3068
      %v3931 = vpop.f32.mrb[0].mxu0
      %v3932 = vadd.f32 %v3895, %v3931
      %v3933 = vpop.f32.mrb[0].mxu0
      %v3934 = vpop.f32.mrb[0].mxu0
      %v3935 = vadd.f32 %v3895, %v3934
      %v3936 = vpop.f32.mrb[0].mxu0
      %3937 = vmatprep.mubr.bf16.mxu0 0
      %3938 = vmatmul.mubr.bf16.gmra.mrb[0].mxu0 %v3071
      %v3939 = vpop.f32.mrb[0].mxu0
      %v3940 = vadd.f32 %v3895, %v3939
      %v3941 = vpop.f32.mrb[0].mxu0
      %v3942 = vpop.f32.mrb[0].mxu0
      %v3943 = vpop.f32.mrb[0].mxu0
      %3944 = vdwg.mxu0
      %v3945 = vmul.f32 %v3932, 0.35355338
      %v3946 = vmul.f32 %v3935, 0.35355338
      %v3947 = vmul.f32 %v3940, 0.35355338
      %s3948 = scalar_lea.vmem %s11, 192
      %v3949 = vld [vmem:[%s3948] sm:$0xff]
      %v3950 = vld [vmem:[%s3948 + $0x8] sm:$0xff]
      %v3951 = vld [vmem:[%s3948 + $0x10] sm:$0xff]
      %v3952 = vld [vmem:[%s3948 + $0x18] sm:$0xff]
      %v3953 = vpack.c.bf16 %v3950, %v3949
      %v3954 = vpack.c.bf16 %v3952, %v3951
      %s3955 = scalar_lea.vmem %s12, 6
      %v3956 = vld [vmem:[%s3955] sm:$0x1]
      %v3958 = vlaneseq
      %v3959 = vshrl.u32 %v3958, 7
      %v3960 = vsub.s32 0, %v3959
      %v3961 = vrot.slane %v3956, %v3960
      %3963 = vmatprep.subr.bf16.mxu0 0
      %3964 = vmatpush1.bf16.msra.mxu0 %v3953
      %3965 = vmatprep.subr.bf16.mxu0 0
      %3966 = vmatpush1.bf16.msra.mxu0 %v3954
      %3967 = vmatprep.subr.bf16.mxu0 0
      %3968 = vmatpush1.bf16.msra.mxu0 0
      %3969 = vmatprep.subr.bf16.mxu0 0
      %3970 = vmatpush1.bf16.msra.mxu0 0
      %3971 = vmatprep.subr.bf16.mxu0 0
      %3972 = vmatpush1.bf16.msra.mxu0 0
      %3973 = vmatprep.subr.bf16.mxu0 0
      %3974 = vmatpush1.bf16.msra.mxu0 0
      %3975 = vmatprep.subr.bf16.mxu0 0
      %3976 = vmatpush1.bf16.msra.mxu0 0
      %3977 = vmatprep.subr.bf16.mxu0 0
      %3978 = vmatpush1.bf16.msra.mxu0 0
      %3979 = vmatprep.subr.bf16.mxu0 0
      %3980 = vmatpush1.bf16.msra.mxu0 0
      %3981 = vmatprep.subr.bf16.mxu0 0
      %3982 = vmatpush1.bf16.msra.mxu0 0
      %3983 = vmatprep.subr.bf16.mxu0 0
      %3984 = vmatpush1.bf16.msra.mxu0 0
      %3985 = vmatprep.subr.bf16.mxu0 0
      %3986 = vmatpush1.bf16.msra.mxu0 0
      %3987 = vmatprep.subr.bf16.mxu0 0
      %3988 = vmatpush1.bf16.msra.mxu0 0
      %3989 = vmatprep.subr.bf16.mxu0 0
      %3990 = vmatpush1.bf16.msra.mxu0 0
      %3991 = vmatprep.subr.bf16.mxu0 0
      %3992 = vmatpush1.bf16.msra.mxu0 0
      %3993 = vmatprep.subr.bf16.mxu0 0
      %3994 = vmatpush1.bf16.msra.mxu0 0
      %3995 = vmatprep.mubr.bf16.mxu0 0
      %3996 = vmatmul.mubr.bf16.gmra.mrb[0].mxu0 %v3068
      %v3997 = vpop.f32.mrb[0].mxu0
      %v3998 = vadd.f32 %v3961, %v3997
      %v3999 = vpop.f32.mrb[0].mxu0
      %v4000 = vpop.f32.mrb[0].mxu0
      %v4001 = vadd.f32 %v3961, %v4000
      %v4002 = vpop.f32.mrb[0].mxu0
      %4003 = vmatprep.mubr.bf16.mxu0 0
      %4004 = vmatmul.mubr.bf16.gmra.mrb[0].mxu0 %v3071
      %v4005 = vpop.f32.mrb[0].mxu0
      %v4006 = vadd.f32 %v3961, %v4005
      %v4007 = vpop.f32.mrb[0].mxu0
      %v4008 = vpop.f32.mrb[0].mxu0
      %v4009 = vpop.f32.mrb[0].mxu0
      %4010 = vdwg.mxu0
      %s4011 = scalar_lea.vmem %s13, 192
      %v4012 = vld [vmem:[%s4011] sm:$0xff]
      %v4013 = vld [vmem:[%s4011 + $0x8] sm:$0xff]
      %v4014 = vld [vmem:[%s4011 + $0x10] sm:$0xff]
      %v4015 = vld [vmem:[%s4011 + $0x18] sm:$0xff]
      %v4016 = vpack.c.bf16 %v4013, %v4012
      %v4017 = vpack.c.bf16 %v4015, %v4014
      %s4018 = scalar_lea.vmem %s14, 6
      %v4019 = vld [vmem:[%s4018] sm:$0x1]
      %v4021 = vlaneseq
      %v4022 = vshrl.u32 %v4021, 7
      %v4023 = vsub.s32 0, %v4022
      %v4024 = vrot.slane %v4019, %v4023
      %4026 = vmatprep.subr.bf16.mxu0 0
      %4027 = vmatpush1.bf16.msra.mxu0 %v4016
      %4028 = vmatprep.subr.bf16.mxu0 0
      %4029 = vmatpush1.bf16.msra.mxu0 %v4017
      %4030 = vmatprep.subr.bf16.mxu0 0
      %4031 = vmatpush1.bf16.msra.mxu0 0
      %4032 = vmatprep.subr.bf16.mxu0 0
      %4033 = vmatpush1.bf16.msra.mxu0 0
      %4034 = vmatprep.subr.bf16.mxu0 0
      %4035 = vmatpush1.bf16.msra.mxu0 0
      %4036 = vmatprep.subr.bf16.mxu0 0
      %4037 = vmatpush1.bf16.msra.mxu0 0
      %4038 = vmatprep.subr.bf16.mxu0 0
      %4039 = vmatpush1.bf16.msra.mxu0 0
      %4040 = vmatprep.subr.bf16.mxu0 0
      %4041 = vmatpush1.bf16.msra.mxu0 0
      %4042 = vmatprep.subr.bf16.mxu0 0
      %4043 = vmatpush1.bf16.msra.mxu0 0
      %4044 = vmatprep.subr.bf16.mxu0 0
      %4045 = vmatpush1.bf16.msra.mxu0 0
      %4046 = vmatprep.subr.bf16.mxu0 0
      %4047 = vmatpush1.bf16.msra.mxu0 0
      %4048 = vmatprep.subr.bf16.mxu0 0
      %4049 = vmatpush1.bf16.msra.mxu0 0
      %4050 = vmatprep.subr.bf16.mxu0 0
      %4051 = vmatpush1.bf16.msra.mxu0 0
      %4052 = vmatprep.subr.bf16.mxu0 0
      %4053 = vmatpush1.bf16.msra.mxu0 0
      %4054 = vmatprep.subr.bf16.mxu0 0
      %4055 = vmatpush1.bf16.msra.mxu0 0
      %4056 = vmatprep.subr.bf16.mxu0 0
      %4057 = vmatpush1.bf16.msra.mxu0 0
      %4058 = vmatprep.mubr.bf16.mxu0 0
      %4059 = vmatmul.mubr.bf16.gmra.mrb[0].mxu0 %v3068
      %v4060 = vpop.f32.mrb[0].mxu0
      %v4061 = vadd.f32 %v4024, %v4060
      %v4062 = vpop.f32.mrb[0].mxu0
      %v4063 = vpop.f32.mrb[0].mxu0
      %v4064 = vadd.f32 %v4024, %v4063
      %v4065 = vpop.f32.mrb[0].mxu0
      %4066 = vmatprep.mubr.bf16.mxu0 0
      %4067 = vmatmul.mubr.bf16.gmra.mrb[0].mxu0 %v3071
      %v4068 = vpop.f32.mrb[0].mxu0
      %v4069 = vadd.f32 %v4024, %v4068
      %v4070 = vpop.f32.mrb[0].mxu0
      %v4071 = vpop.f32.mrb[0].mxu0
      %v4072 = vpop.f32.mrb[0].mxu0
      %4073 = vdwg.mxu0
      %v4074 = vpack.c.bf16 %v3946, %v3945
      %v4075 = vpack.c.bf16 %v3947, %v3947
      %v4076 = vpack.c.bf16 %v4001, %v3998
      %v4077 = vpack.c.bf16 %v4006, %v4006
      %v4079 = vsel %vm1216, %v4074, 0
      %v4082 = vsel %vm1216, %v4075, 0
      %v4085 = vsel %vm1216, %v4076, 0
      %v4088 = vsel %vm1216, %v4077, 0
      %4090 = vmatprep.subr.bf16.mxu0 0
      %4091 = vmatpush1.bf16.xpose.msra.mxu0 %v4085
      %4092 = vmatprep.subr.bf16.mxu0 0
      %4093 = vmatpush1.bf16.xpose.msra.mxu0 %v4088
      %4094 = vmatprep.subr.bf16.mxu0 0
      %4095 = vmatpush1.bf16.xpose.msra.mxu0 0
      %4096 = vmatprep.subr.bf16.mxu0 0
      %4097 = vmatpush1.bf16.xpose.msra.mxu0 0
      %4098 = vmatprep.subr.bf16.mxu0 0
      %4099 = vmatpush1.bf16.xpose.msra.mxu0 0
      %4100 = vmatprep.subr.bf16.mxu0 0
      %4101 = vmatpush1.bf16.xpose.msra.mxu0 0
      %4102 = vmatprep.subr.bf16.mxu0 0
      %4103 = vmatpush1.bf16.xpose.msra.mxu0 0
      %4104 = vmatprep.subr.bf16.mxu0 0
      %4105 = vmatpush1.bf16.xpose.msra.mxu0 0
      %4106 = vmatprep.subr.bf16.mxu0 0
      %4107 = vmatpush1.bf16.xpose.msra.mxu0 0
      %4108 = vmatprep.subr.bf16.mxu0 0
      %4109 = vmatpush1.bf16.xpose.msra.mxu0 0
      %4110 = vmatprep.subr.bf16.mxu0 0
      %4111 = vmatpush1.bf16.xpose.msra.mxu0 0
      %4112 = vmatprep.subr.bf16.mxu0 0
      %4113 = vmatpush1.bf16.xpose.msra.mxu0 0
      %4114 = vmatprep.subr.bf16.mxu0 0
      %4115 = vmatpush1.bf16.xpose.msra.mxu0 0
      %4116 = vmatprep.subr.bf16.mxu0 0
      %4117 = vmatpush1.bf16.xpose.msra.mxu0 0
      %4118 = vmatprep.subr.bf16.mxu0 0
      %4119 = vmatpush1.bf16.xpose.msra.mxu0 0
      %4120 = vmatprep.subr.bf16.mxu0 0
      %4121 = vmatpush1.bf16.xpose.msra.mxu0 0
      %4122 = vmatprep.mubr.bf16.mxu0 0
      %4123 = vmatmul.mubr.bf16.gmra.mrb[0].mxu0 %v4079
      %v4124 = vpop.f32.mrb[0].mxu0
      %v4125 = vadd.f32 0.0, %v4124
      %v4126 = vpop.f32.mrb[0].mxu0
      %v4127 = vpop.f32.mrb[0].mxu0
      %v4128 = vadd.f32 0.0, %v4127
      %v4129 = vpop.f32.mrb[0].mxu0
      %4130 = vmatprep.mubr.bf16.mxu0 0
      %4131 = vmatmul.mubr.bf16.gmra.mrb[0].mxu0 %v4082
      %v4132 = vpop.f32.mrb[0].mxu0
      %v4133 = vadd.f32 0.0, %v4132
      %v4134 = vpop.f32.mrb[0].mxu0
      %v4135 = vpop.f32.mrb[0].mxu0
      %v4136 = vpop.f32.mrb[0].mxu0
      %4137 = vdwg.mxu0
      %v4138 = vsel %vm1277, %v4125, -inf
      %4139 = vmax.xlane.f32.xlu0 %v4138
      %v4140 = vpop.xlane.xlu0 %4139
      %v4141 = vsel %vm1277, %v4128, -inf
      %4142 = vmax.xlane.f32.xlu0 %v4141
      %v4143 = vpop.xlane.xlu0 %4142
      %v4144 = vsel %vm1284, %v4133, -inf
      %4145 = vmax.xlane.f32.xlu0 %v4144
      %v4146 = vpop.xlane.xlu0 %4145
      %v4147 = vsub.f32 %v4125, %v4140
      %v4148 = vsub.f32 %v4128, %v4143
      %v4149 = vsub.f32 %v4133, %v4146
      %v4150 = vmul.f32 %v4147, 1.442695
      %v4151 = vpow.pop %v4150
      %v4152 = vmul.f32 %v4148, 1.442695
      %v4153 = vpow.pop %v4152
      %v4154 = vmul.f32 %v4149, 1.442695
      %v4155 = vpow.pop %v4154
      %v4156 = vsel %vm1277, %v4151, 0.0
      %4157 = vadd.xlane.f32.xlu0 %v4156
      %v4158 = vpop.xlane.xlu0 %4157
      %v4159 = vsel %vm1277, %v4153, 0.0
      %4160 = vadd.xlane.f32.xlu0 %v4159
      %v4161 = vpop.xlane.xlu0 %4160
      %v4162 = vsel %vm1284, %v4155, 0.0
      %4163 = vadd.xlane.f32.xlu0 %v4162
      %v4164 = vpop.xlane.xlu0 %4163
      %v4165 = vrcp.pop %v4158
      %v4166 = vrcp.pop %v4161
      %v4167 = vrcp.pop %v4164
      %v4168 = vmul.f32 %v4151, %v4165
      %v4169 = vmul.f32 %v4153, %v4166
      %v4170 = vmul.f32 %v4155, %v4167
      %v4171 = vpack.c.bf16 %v4169, %v4168
      %v4172 = vpack.c.bf16 %v4170, %v4170
      %v4173 = vpack.c.bf16 %v4064, %v4061
      %v4174 = vpack.c.bf16 %v4069, %v4069
      %v4176 = vsel %vm1277, %v4171, 0
      %v4179 = vsel %vm1277, %v4172, 0
      %v4182 = vand.u32 %v4174, %v1324
      %4184 = vmatprep.subr.bf16.mxu0 0
      %4185 = vmatpush1.bf16.msra.mxu0 %v4173
      %4186 = vmatprep.subr.bf16.mxu0 0
      %4187 = vmatpush1.bf16.msra.mxu0 %v4182
      %4188 = vmatprep.subr.bf16.mxu0 0
      %4189 = vmatpush1.bf16.msra.mxu0 0
      %4190 = vmatprep.subr.bf16.mxu0 0
      %4191 = vmatpush1.bf16.msra.mxu0 0
      %4192 = vmatprep.subr.bf16.mxu0 0
      %4193 = vmatpush1.bf16.msra.mxu0 0
      %4194 = vmatprep.subr.bf16.mxu0 0
      %4195 = vmatpush1.bf16.msra.mxu0 0
      %4196 = vmatprep.subr.bf16.mxu0 0
      %4197 = vmatpush1.bf16.msra.mxu0 0
      %4198 = vmatprep.subr.bf16.mxu0 0
      %4199 = vmatpush1.bf16.msra.mxu0 0
      %4200 = vmatprep.subr.bf16.mxu0 0
      %4201 = vmatpush1.bf16.msra.mxu0 0
      %4202 = vmatprep.subr.bf16.mxu0 0
      %4203 = vmatpush1.bf16.msra.mxu0 0
      %4204 = vmatprep.subr.bf16.mxu0 0
      %4205 = vmatpush1.bf16.msra.mxu0 0
      %4206 = vmatprep.subr.bf16.mxu0 0
      %4207 = vmatpush1.bf16.msra.mxu0 0
      %4208 = vmatprep.subr.bf16.mxu0 0
      %4209 = vmatpush1.bf16.msra.mxu0 0
      %4210 = vmatprep.subr.bf16.mxu0 0
      %4211 = vmatpush1.bf16.msra.mxu0 0
      %4212 = vmatprep.subr.bf16.mxu0 0
      %4213 = vmatpush1.bf16.msra.mxu0 0
      %4214 = vmatprep.subr.bf16.mxu0 0
      %4215 = vmatpush1.bf16.msra.mxu0 0
      %4216 = vmatprep.mubr.bf16.mxu0 0
      %4217 = vmatmul.mubr.bf16.gmra.mrb[0].mxu0 %v4176
      %v4218 = vpop.f32.mrb[0].mxu0
      %v4219 = vadd.f32 0.0, %v4218
      %v4220 = vpop.f32.mrb[0].mxu0
      %v4221 = vpop.f32.mrb[0].mxu0
      %v4222 = vadd.f32 0.0, %v4221
      %v4223 = vpop.f32.mrb[0].mxu0
      %4224 = vmatprep.mubr.bf16.mxu0 0
      %4225 = vmatmul.mubr.bf16.gmra.mrb[0].mxu0 %v4179
      %v4226 = vpop.f32.mrb[0].mxu0
      %v4227 = vadd.f32 0.0, %v4226
      %v4228 = vpop.f32.mrb[0].mxu0
      %v4229 = vpop.f32.mrb[0].mxu0
      %v4230 = vpop.f32.mrb[0].mxu0
      %4231 = vdwg.mxu0
      %s4232 = scalar_lea.vmem %s15, 48
      %v4233 = vld [vmem:[%s4232] sm:$0xff]
      %v4234 = vpack.c.bf16 %v4222, %v4219
      %v4235 = vpack.c.bf16 %v4227, %v4227
      %v4236 = vpack.c.bf16 %v4233, %v4233
      %v4238 = vsel %vm1216, %v4234, 0
      %v4241 = vsel %vm1216, %v4235, 0
      %v4244 = vsel %vm1741, %v4236, 0
      %4246 = vmatprep.subr.bf16.mxu0 0
      %4247 = vmatpush1.bf16.msra.mxu0 %v4244
      %4248 = vmatprep.subr.bf16.mxu0 0
      %4249 = vmatpush1.bf16.msra.mxu0 0
      %4250 = vmatprep.subr.bf16.mxu0 0
      %4251 = vmatpush1.bf16.msra.mxu0 0
      %4252 = vmatprep.subr.bf16.mxu0 0
      %4253 = vmatpush1.bf16.msra.mxu0 0
      %4254 = vmatprep.subr.bf16.mxu0 0
      %4255 = vmatpush1.bf16.msra.mxu0 0
      %4256 = vmatprep.subr.bf16.mxu0 0
      %4257 = vmatpush1.bf16.msra.mxu0 0
      %4258 = vmatprep.subr.bf16.mxu0 0
      %4259 = vmatpush1.bf16.msra.mxu0 0
      %4260 = vmatprep.subr.bf16.mxu0 0
      %4261 = vmatpush1.bf16.msra.mxu0 0
      %4262 = vmatprep.subr.bf16.mxu0 0
      %4263 = vmatpush1.bf16.msra.mxu0 0
      %4264 = vmatprep.subr.bf16.mxu0 0
      %4265 = vmatpush1.bf16.msra.mxu0 0
      %4266 = vmatprep.subr.bf16.mxu0 0
      %4267 = vmatpush1.bf16.msra.mxu0 0
      %4268 = vmatprep.subr.bf16.mxu0 0
      %4269 = vmatpush1.bf16.msra.mxu0 0
      %4270 = vmatprep.subr.bf16.mxu0 0
      %4271 = vmatpush1.bf16.msra.mxu0 0
      %4272 = vmatprep.subr.bf16.mxu0 0
      %4273 = vmatpush1.bf16.msra.mxu0 0
      %4274 = vmatprep.subr.bf16.mxu0 0
      %4275 = vmatpush1.bf16.msra.mxu0 0
      %4276 = vmatprep.subr.bf16.mxu0 0
      %4277 = vmatpush1.bf16.msra.mxu0 0
      %4278 = vmatprep.mubr.bf16.mxu0 0
      %4279 = vmatmul.mubr.bf16.gmra.mrb[0].mxu0 %v4238
      %v4280 = vpop.f32.mrb[0].mxu0
      %v4281 = vadd.f32 0.0, %v4280
      %v4282 = vpop.f32.mrb[0].mxu0
      %v4283 = vpop.f32.mrb[0].mxu0
      %v4284 = vadd.f32 0.0, %v4283
      %v4285 = vpop.f32.mrb[0].mxu0
      %4286 = vmatprep.mubr.bf16.mxu0 0
      %4287 = vmatmul.mubr.bf16.gmra.mrb[0].mxu0 %v4241
      %v4288 = vpop.f32.mrb[0].mxu0
      %v4289 = vadd.f32 0.0, %v4288
      %v4290 = vpop.f32.mrb[0].mxu0
      %v4291 = vpop.f32.mrb[0].mxu0
      %v4292 = vpop.f32.mrb[0].mxu0
      %4293 = vdwg.mxu0
      %v4294 = vadd.f32 %v3869, %v4281
      %v4295 = vadd.f32 %v3872, %v4284
      %v4296 = vadd.f32 %v3877, %v4289
      %s4297 = scalar_lea.vmem %s9, 224
      %v4298 = vld [vmem:[%s4297] sm:$0xff]
      %v4299 = vld [vmem:[%s4297 + $0x8] sm:$0xff]
      %v4300 = vld [vmem:[%s4297 + $0x10] sm:$0xff]
      %v4301 = vld [vmem:[%s4297 + $0x18] sm:$0xff]
      %v4302 = vpack.c.bf16 %v4299, %v4298
      %v4303 = vpack.c.bf16 %v4301, %v4300
      %s4304 = scalar_lea.vmem %s10, 7
      %v4305 = vld [vmem:[%s4304] sm:$0x1]
      %v4307 = vlaneseq
      %v4308 = vshrl.u32 %v4307, 7
      %v4309 = vsub.s32 0, %v4308
      %v4310 = vrot.slane %v4305, %v4309
      %4312 = vmatprep.subr.bf16.mxu0 0
      %4313 = vmatpush1.bf16.msra.mxu0 %v4302
      %4314 = vmatprep.subr.bf16.mxu0 0
      %4315 = vmatpush1.bf16.msra.mxu0 %v4303
      %4316 = vmatprep.subr.bf16.mxu0 0
      %4317 = vmatpush1.bf16.msra.mxu0 0
      %4318 = vmatprep.subr.bf16.mxu0 0
      %4319 = vmatpush1.bf16.msra.mxu0 0
      %4320 = vmatprep.subr.bf16.mxu0 0
      %4321 = vmatpush1.bf16.msra.mxu0 0
      %4322 = vmatprep.subr.bf16.mxu0 0
      %4323 = vmatpush1.bf16.msra.mxu0 0
      %4324 = vmatprep.subr.bf16.mxu0 0
      %4325 = vmatpush1.bf16.msra.mxu0 0
      %4326 = vmatprep.subr.bf16.mxu0 0
      %4327 = vmatpush1.bf16.msra.mxu0 0
      %4328 = vmatprep.subr.bf16.mxu0 0
      %4329 = vmatpush1.bf16.msra.mxu0 0
      %4330 = vmatprep.subr.bf16.mxu0 0
      %4331 = vmatpush1.bf16.msra.mxu0 0
      %4332 = vmatprep.subr.bf16.mxu0 0
      %4333 = vmatpush1.bf16.msra.mxu0 0
      %4334 = vmatprep.subr.bf16.mxu0 0
      %4335 = vmatpush1.bf16.msra.mxu0 0
      %4336 = vmatprep.subr.bf16.mxu0 0
      %4337 = vmatpush1.bf16.msra.mxu0 0
      %4338 = vmatprep.subr.bf16.mxu0 0
      %4339 = vmatpush1.bf16.msra.mxu0 0
      %4340 = vmatprep.subr.bf16.mxu0 0
      %4341 = vmatpush1.bf16.msra.mxu0 0
      %4342 = vmatprep.subr.bf16.mxu0 0
      %4343 = vmatpush1.bf16.msra.mxu0 0
      %4344 = vmatprep.mubr.bf16.mxu0 0
      %4345 = vmatmul.mubr.bf16.gmra.mrb[0].mxu0 %v3068
      %v4346 = vpop.f32.mrb[0].mxu0
      %v4347 = vadd.f32 %v4310, %v4346
      %v4348 = vpop.f32.mrb[0].mxu0
      %v4349 = vpop.f32.mrb[0].mxu0
      %v4350 = vadd.f32 %v4310, %v4349
      %v4351 = vpop.f32.mrb[0].mxu0
      %4352 = vmatprep.mubr.bf16.mxu0 0
      %4353 = vmatmul.mubr.bf16.gmra.mrb[0].mxu0 %v3071
      %v4354 = vpop.f32.mrb[0].mxu0
      %v4355 = vadd.f32 %v4310, %v4354
      %v4356 = vpop.f32.mrb[0].mxu0
      %v4357 = vpop.f32.mrb[0].mxu0
      %v4358 = vpop.f32.mrb[0].mxu0
      %4359 = vdwg.mxu0
      %v4360 = vmul.f32 %v4347, 0.35355338
      %v4361 = vmul.f32 %v4350, 0.35355338
      %v4362 = vmul.f32 %v4355, 0.35355338
      %s4363 = scalar_lea.vmem %s11, 224
      %v4364 = vld [vmem:[%s4363] sm:$0xff]
      %v4365 = vld [vmem:[%s4363 + $0x8] sm:$0xff]
      %v4366 = vld [vmem:[%s4363 + $0x10] sm:$0xff]
      %v4367 = vld [vmem:[%s4363 + $0x18] sm:$0xff]
      %v4368 = vpack.c.bf16 %v4365, %v4364
      %v4369 = vpack.c.bf16 %v4367, %v4366
      %s4370 = scalar_lea.vmem %s12, 7
      %v4371 = vld [vmem:[%s4370] sm:$0x1]
      %v4373 = vlaneseq
      %v4374 = vshrl.u32 %v4373, 7
      %v4375 = vsub.s32 0, %v4374
      %v4376 = vrot.slane %v4371, %v4375
      %4378 = vmatprep.subr.bf16.mxu0 0
      %4379 = vmatpush1.bf16.msra.mxu0 %v4368
      %4380 = vmatprep.subr.bf16.mxu0 0
      %4381 = vmatpush1.bf16.msra.mxu0 %v4369
      %4382 = vmatprep.subr.bf16.mxu0 0
      %4383 = vmatpush1.bf16.msra.mxu0 0
      %4384 = vmatprep.subr.bf16.mxu0 0
      %4385 = vmatpush1.bf16.msra.mxu0 0
      %4386 = vmatprep.subr.bf16.mxu0 0
      %4387 = vmatpush1.bf16.msra.mxu0 0
      %4388 = vmatprep.subr.bf16.mxu0 0
      %4389 = vmatpush1.bf16.msra.mxu0 0
      %4390 = vmatprep.subr.bf16.mxu0 0
      %4391 = vmatpush1.bf16.msra.mxu0 0
      %4392 = vmatprep.subr.bf16.mxu0 0
      %4393 = vmatpush1.bf16.msra.mxu0 0
      %4394 = vmatprep.subr.bf16.mxu0 0
      %4395 = vmatpush1.bf16.msra.mxu0 0
      %4396 = vmatprep.subr.bf16.mxu0 0
      %4397 = vmatpush1.bf16.msra.mxu0 0
      %4398 = vmatprep.subr.bf16.mxu0 0
      %4399 = vmatpush1.bf16.msra.mxu0 0
      %4400 = vmatprep.subr.bf16.mxu0 0
      %4401 = vmatpush1.bf16.msra.mxu0 0
      %4402 = vmatprep.subr.bf16.mxu0 0
      %4403 = vmatpush1.bf16.msra.mxu0 0
      %4404 = vmatprep.subr.bf16.mxu0 0
      %4405 = vmatpush1.bf16.msra.mxu0 0
      %4406 = vmatprep.subr.bf16.mxu0 0
      %4407 = vmatpush1.bf16.msra.mxu0 0
      %4408 = vmatprep.subr.bf16.mxu0 0
      %4409 = vmatpush1.bf16.msra.mxu0 0
      %4410 = vmatprep.mubr.bf16.mxu0 0
      %4411 = vmatmul.mubr.bf16.gmra.mrb[0].mxu0 %v3068
      %v4412 = vpop.f32.mrb[0].mxu0
      %v4413 = vadd.f32 %v4376, %v4412
      %v4414 = vpop.f32.mrb[0].mxu0
      %v4415 = vpop.f32.mrb[0].mxu0
      %v4416 = vadd.f32 %v4376, %v4415
      %v4417 = vpop.f32.mrb[0].mxu0
      %4418 = vmatprep.mubr.bf16.mxu0 0
      %4419 = vmatmul.mubr.bf16.gmra.mrb[0].mxu0 %v3071
      %v4420 = vpop.f32.mrb[0].mxu0
      %v4421 = vadd.f32 %v4376, %v4420
      %v4422 = vpop.f32.mrb[0].mxu0
      %v4423 = vpop.f32.mrb[0].mxu0
      %v4424 = vpop.f32.mrb[0].mxu0
      %4425 = vdwg.mxu0
      %s4426 = scalar_lea.vmem %s13, 224
      %v4427 = vld [vmem:[%s4426] sm:$0xff]
      %v4428 = vld [vmem:[%s4426 + $0x8] sm:$0xff]
      %v4429 = vld [vmem:[%s4426 + $0x10] sm:$0xff]
      %v4430 = vld [vmem:[%s4426 + $0x18] sm:$0xff]
      %v4431 = vpack.c.bf16 %v4428, %v4427
      %v4432 = vpack.c.bf16 %v4430, %v4429
      %s4433 = scalar_lea.vmem %s14, 7
      %v4434 = vld [vmem:[%s4433] sm:$0x1]
      %v4436 = vlaneseq
      %v4437 = vshrl.u32 %v4436, 7
      %v4438 = vsub.s32 0, %v4437
      %v4439 = vrot.slane %v4434, %v4438
      %4441 = vmatprep.subr.bf16.mxu0 0
      %4442 = vmatpush1.bf16.msra.mxu0 %v4431
      %4443 = vmatprep.subr.bf16.mxu0 0
      %4444 = vmatpush1.bf16.msra.mxu0 %v4432
      %4445 = vmatprep.subr.bf16.mxu0 0
      %4446 = vmatpush1.bf16.msra.mxu0 0
      %4447 = vmatprep.subr.bf16.mxu0 0
      %4448 = vmatpush1.bf16.msra.mxu0 0
      %4449 = vmatprep.subr.bf16.mxu0 0
      %4450 = vmatpush1.bf16.msra.mxu0 0
      %4451 = vmatprep.subr.bf16.mxu0 0
      %4452 = vmatpush1.bf16.msra.mxu0 0
      %4453 = vmatprep.subr.bf16.mxu0 0
      %4454 = vmatpush1.bf16.msra.mxu0 0
      %4455 = vmatprep.subr.bf16.mxu0 0
      %4456 = vmatpush1.bf16.msra.mxu0 0
      %4457 = vmatprep.subr.bf16.mxu0 0
      %4458 = vmatpush1.bf16.msra.mxu0 0
      %4459 = vmatprep.subr.bf16.mxu0 0
      %4460 = vmatpush1.bf16.msra.mxu0 0
      %4461 = vmatprep.subr.bf16.mxu0 0
      %4462 = vmatpush1.bf16.msra.mxu0 0
      %4463 = vmatprep.subr.bf16.mxu0 0
      %4464 = vmatpush1.bf16.msra.mxu0 0
      %4465 = vmatprep.subr.bf16.mxu0 0
      %4466 = vmatpush1.bf16.msra.mxu0 0
      %4467 = vmatprep.subr.bf16.mxu0 0
      %4468 = vmatpush1.bf16.msra.mxu0 0
      %4469 = vmatprep.subr.bf16.mxu0 0
      %4470 = vmatpush1.bf16.msra.mxu0 0
      %4471 = vmatprep.subr.bf16.mxu0 0
      %4472 = vmatpush1.bf16.msra.mxu0 0
      %4473 = vmatprep.mubr.bf16.mxu0 0
      %4474 = vmatmul.mubr.bf16.gmra.mrb[0].mxu0 %v3068
      %v4475 = vpop.f32.mrb[0].mxu0
      %v4476 = vadd.f32 %v4439, %v4475
      %v4477 = vpop.f32.mrb[0].mxu0
      %v4478 = vpop.f32.mrb[0].mxu0
      %v4479 = vadd.f32 %v4439, %v4478
      %v4480 = vpop.f32.mrb[0].mxu0
      %4481 = vmatprep.mubr.bf16.mxu0 0
      %4482 = vmatmul.mubr.bf16.gmra.mrb[0].mxu0 %v3071
      %v4483 = vpop.f32.mrb[0].mxu0
      %v4484 = vadd.f32 %v4439, %v4483
      %v4485 = vpop.f32.mrb[0].mxu0
      %v4486 = vpop.f32.mrb[0].mxu0
      %v4487 = vpop.f32.mrb[0].mxu0
      %4488 = vdwg.mxu0
      %v4489 = vpack.c.bf16 %v4361, %v4360
      %v4490 = vpack.c.bf16 %v4362, %v4362
      %v4491 = vpack.c.bf16 %v4416, %v4413
      %v4492 = vpack.c.bf16 %v4421, %v4421
      %v4494 = vsel %vm1216, %v4489, 0
      %v4497 = vsel %vm1216, %v4490, 0
      %v4500 = vsel %vm1216, %v4491, 0
      %v4503 = vsel %vm1216, %v4492, 0
      %4505 = vmatprep.subr.bf16.mxu0 0
      %4506 = vmatpush1.bf16.xpose.msra.mxu0 %v4500
      %4507 = vmatprep.subr.bf16.mxu0 0
      %4508 = vmatpush1.bf16.xpose.msra.mxu0 %v4503
      %4509 = vmatprep.subr.bf16.mxu0 0
      %4510 = vmatpush1.bf16.xpose.msra.mxu0 0
      %4511 = vmatprep.subr.bf16.mxu0 0
      %4512 = vmatpush1.bf16.xpose.msra.mxu0 0
      %4513 = vmatprep.subr.bf16.mxu0 0
      %4514 = vmatpush1.bf16.xpose.msra.mxu0 0
      %4515 = vmatprep.subr.bf16.mxu0 0
      %4516 = vmatpush1.bf16.xpose.msra.mxu0 0
      %4517 = vmatprep.subr.bf16.mxu0 0
      %4518 = vmatpush1.bf16.xpose.msra.mxu0 0
      %4519 = vmatprep.subr.bf16.mxu0 0
      %4520 = vmatpush1.bf16.xpose.msra.mxu0 0
      %4521 = vmatprep.subr.bf16.mxu0 0
      %4522 = vmatpush1.bf16.xpose.msra.mxu0 0
      %4523 = vmatprep.subr.bf16.mxu0 0
      %4524 = vmatpush1.bf16.xpose.msra.mxu0 0
      %4525 = vmatprep.subr.bf16.mxu0 0
      %4526 = vmatpush1.bf16.xpose.msra.mxu0 0
      %4527 = vmatprep.subr.bf16.mxu0 0
      %4528 = vmatpush1.bf16.xpose.msra.mxu0 0
      %4529 = vmatprep.subr.bf16.mxu0 0
      %4530 = vmatpush1.bf16.xpose.msra.mxu0 0
      %4531 = vmatprep.subr.bf16.mxu0 0
      %4532 = vmatpush1.bf16.xpose.msra.mxu0 0
      %4533 = vmatprep.subr.bf16.mxu0 0
      %4534 = vmatpush1.bf16.xpose.msra.mxu0 0
      %4535 = vmatprep.subr.bf16.mxu0 0
      %4536 = vmatpush1.bf16.xpose.msra.mxu0 0
      %4537 = vmatprep.mubr.bf16.mxu0 0
      %4538 = vmatmul.mubr.bf16.gmra.mrb[0].mxu0 %v4494
      %v4539 = vpop.f32.mrb[0].mxu0
      %v4540 = vadd.f32 0.0, %v4539
      %v4541 = vpop.f32.mrb[0].mxu0
      %v4542 = vpop.f32.mrb[0].mxu0
      %v4543 = vadd.f32 0.0, %v4542
      %v4544 = vpop.f32.mrb[0].mxu0
      %4545 = vmatprep.mubr.bf16.mxu0 0
      %4546 = vmatmul.mubr.bf16.gmra.mrb[0].mxu0 %v4497
      %v4547 = vpop.f32.mrb[0].mxu0
      %v4548 = vadd.f32 0.0, %v4547
      %v4549 = vpop.f32.mrb[0].mxu0
      %v4550 = vpop.f32.mrb[0].mxu0
      %v4551 = vpop.f32.mrb[0].mxu0
      %4552 = vdwg.mxu0
      %v4553 = vsel %vm1277, %v4540, -inf
      %4554 = vmax.xlane.f32.xlu0 %v4553
      %v4555 = vpop.xlane.xlu0 %4554
      %v4556 = vsel %vm1277, %v4543, -inf
      %4557 = vmax.xlane.f32.xlu0 %v4556
      %v4558 = vpop.xlane.xlu0 %4557
      %v4559 = vsel %vm1284, %v4548, -inf
      %4560 = vmax.xlane.f32.xlu0 %v4559
      %v4561 = vpop.xlane.xlu0 %4560
      %v4562 = vsub.f32 %v4540, %v4555
      %v4563 = vsub.f32 %v4543, %v4558
      %v4564 = vsub.f32 %v4548, %v4561
      %v4565 = vmul.f32 %v4562, 1.442695
      %v4566 = vpow.pop %v4565
      %v4567 = vmul.f32 %v4563, 1.442695
      %v4568 = vpow.pop %v4567
      %v4569 = vmul.f32 %v4564, 1.442695
      %v4570 = vpow.pop %v4569
      %v4571 = vsel %vm1277, %v4566, 0.0
      %4572 = vadd.xlane.f32.xlu0 %v4571
      %v4573 = vpop.xlane.xlu0 %4572
      %v4574 = vsel %vm1277, %v4568, 0.0
      %4575 = vadd.xlane.f32.xlu0 %v4574
      %v4576 = vpop.xlane.xlu0 %4575
      %v4577 = vsel %vm1284, %v4570, 0.0
      %4578 = vadd.xlane.f32.xlu0 %v4577
      %v4579 = vpop.xlane.xlu0 %4578
      %v4580 = vrcp.pop %v4573
      %v4581 = vrcp.pop %v4576
      %v4582 = vrcp.pop %v4579
      %v4583 = vmul.f32 %v4566, %v4580
      %v4584 = vmul.f32 %v4568, %v4581
      %v4585 = vmul.f32 %v4570, %v4582
      %v4586 = vpack.c.bf16 %v4584, %v4583
      %v4587 = vpack.c.bf16 %v4585, %v4585
      %v4588 = vpack.c.bf16 %v4479, %v4476
      %v4589 = vpack.c.bf16 %v4484, %v4484
      %v4591 = vsel %vm1277, %v4586, 0
      %v4594 = vsel %vm1277, %v4587, 0
      %v4597 = vand.u32 %v4589, %v1324
      %4599 = vmatprep.subr.bf16.mxu0 0
      %4600 = vmatpush1.bf16.msra.mxu0 %v4588
      %4601 = vmatprep.subr.bf16.mxu0 0
      %4602 = vmatpush1.bf16.msra.mxu0 %v4597
      %4603 = vmatprep.subr.bf16.mxu0 0
      %4604 = vmatpush1.bf16.msra.mxu0 0
      %4605 = vmatprep.subr.bf16.mxu0 0
      %4606 = vmatpush1.bf16.msra.mxu0 0
      %4607 = vmatprep.subr.bf16.mxu0 0
      %4608 = vmatpush1.bf16.msra.mxu0 0
      %4609 = vmatprep.subr.bf16.mxu0 0
      %4610 = vmatpush1.bf16.msra.mxu0 0
      %4611 = vmatprep.subr.bf16.mxu0 0
      %4612 = vmatpush1.bf16.msra.mxu0 0
      %4613 = vmatprep.subr.bf16.mxu0 0
      %4614 = vmatpush1.bf16.msra.mxu0 0
      %4615 = vmatprep.subr.bf16.mxu0 0
      %4616 = vmatpush1.bf16.msra.mxu0 0
      %4617 = vmatprep.subr.bf16.mxu0 0
      %4618 = vmatpush1.bf16.msra.mxu0 0
      %4619 = vmatprep.subr.bf16.mxu0 0
      %4620 = vmatpush1.bf16.msra.mxu0 0
      %4621 = vmatprep.subr.bf16.mxu0 0
      %4622 = vmatpush1.bf16.msra.mxu0 0
      %4623 = vmatprep.subr.bf16.mxu0 0
      %4624 = vmatpush1.bf16.msra.mxu0 0
      %4625 = vmatprep.subr.bf16.mxu0 0
      %4626 = vmatpush1.bf16.msra.mxu0 0
      %4627 = vmatprep.subr.bf16.mxu0 0
      %4628 = vmatpush1.bf16.msra.mxu0 0
      %4629 = vmatprep.subr.bf16.mxu0 0
      %4630 = vmatpush1.bf16.msra.mxu0 0
      %4631 = vmatprep.mubr.bf16.mxu0 0
      %4632 = vmatmul.mubr.bf16.gmra.mrb[0].mxu0 %v4591
      %v4633 = vpop.f32.mrb[0].mxu0
      %v4634 = vadd.f32 0.0, %v4633
      %v4635 = vpop.f32.mrb[0].mxu0
      %v4636 = vpop.f32.mrb[0].mxu0
      %v4637 = vadd.f32 0.0, %v4636
      %v4638 = vpop.f32.mrb[0].mxu0
      %4639 = vmatprep.mubr.bf16.mxu0 0
      %4640 = vmatmul.mubr.bf16.gmra.mrb[0].mxu0 %v4594
      %v4641 = vpop.f32.mrb[0].mxu0
      %v4642 = vadd.f32 0.0, %v4641
      %v4643 = vpop.f32.mrb[0].mxu0
      %v4644 = vpop.f32.mrb[0].mxu0
      %v4645 = vpop.f32.mrb[0].mxu0
      %4646 = vdwg.mxu0
      %s4647 = scalar_lea.vmem %s15, 56
      %v4648 = vld [vmem:[%s4647] sm:$0xff]
      %v4649 = vpack.c.bf16 %v4637, %v4634
      %v4650 = vpack.c.bf16 %v4642, %v4642
      %v4651 = vpack.c.bf16 %v4648, %v4648
      %v4653 = vsel %vm1216, %v4649, 0
      %v4656 = vsel %vm1216, %v4650, 0
      %v4659 = vsel %vm1741, %v4651, 0
      %4661 = vmatprep.subr.bf16.mxu0 0
      %4662 = vmatpush1.bf16.msra.mxu0 %v4659
      %4663 = vmatprep.subr.bf16.mxu0 0
      %4664 = vmatpush1.bf16.msra.mxu0 0
      %4665 = vmatprep.subr.bf16.mxu0 0
      %4666 = vmatpush1.bf16.msra.mxu0 0
      %4667 = vmatprep.subr.bf16.mxu0 0
      %4668 = vmatpush1.bf16.msra.mxu0 0
      %4669 = vmatprep.subr.bf16.mxu0 0
      %4670 = vmatpush1.bf16.msra.mxu0 0
      %4671 = vmatprep.subr.bf16.mxu0 0
      %4672 = vmatpush1.bf16.msra.mxu0 0
      %4673 = vmatprep.subr.bf16.mxu0 0
      %4674 = vmatpush1.bf16.msra.mxu0 0
      %4675 = vmatprep.subr.bf16.mxu0 0
      %4676 = vmatpush1.bf16.msra.mxu0 0
      %4677 = vmatprep.subr.bf16.mxu0 0
      %4678 = vmatpush1.bf16.msra.mxu0 0
      %4679 = vmatprep.subr.bf16.mxu0 0
      %4680 = vmatpush1.bf16.msra.mxu0 0
      %4681 = vmatprep.subr.bf16.mxu0 0
      %4682 = vmatpush1.bf16.msra.mxu0 0
      %4683 = vmatprep.subr.bf16.mxu0 0
      %4684 = vmatpush1.bf16.msra.mxu0 0
      %4685 = vmatprep.subr.bf16.mxu0 0
      %4686 = vmatpush1.bf16.msra.mxu0 0
      %4687 = vmatprep.subr.bf16.mxu0 0
      %4688 = vmatpush1.bf16.msra.mxu0 0
      %4689 = vmatprep.subr.bf16.mxu0 0
      %4690 = vmatpush1.bf16.msra.mxu0 0
      %4691 = vmatprep.subr.bf16.mxu0 0
      %4692 = vmatpush1.bf16.msra.mxu0 0
      %4693 = vmatprep.mubr.bf16.mxu0 0
      %4694 = vmatmul.mubr.bf16.gmra.mrb[0].mxu0 %v4653
      %v4695 = vpop.f32.mrb[0].mxu0
      %v4696 = vadd.f32 0.0, %v4695
      %v4697 = vpop.f32.mrb[0].mxu0
      %v4698 = vpop.f32.mrb[0].mxu0
      %v4699 = vadd.f32 0.0, %v4698
      %v4700 = vpop.f32.mrb[0].mxu0
      %4701 = vmatprep.mubr.bf16.mxu0 0
      %4702 = vmatmul.mubr.bf16.gmra.mrb[0].mxu0 %v4656
      %v4703 = vpop.f32.mrb[0].mxu0
      %v4704 = vadd.f32 0.0, %v4703
      %v4705 = vpop.f32.mrb[0].mxu0
      %v4706 = vpop.f32.mrb[0].mxu0
      %v4707 = vpop.f32.mrb[0].mxu0
      %4708 = vdwg.mxu0
      %v4709 = vadd.f32 %v4294, %v4696
      %v4710 = vadd.f32 %v4295, %v4699
      %v4711 = vadd.f32 %v4296, %v4704
      %v4712 = vadd.f32 %v2986, %v4709
      %v4713 = vadd.f32 %v2987, %v4710
      %v4714 = vadd.f32 %v2988, %v4711
      %s4715 = scalar_lea.vmem %s16, 1
      %v4716 = vld [vmem:[%s4715] sm:$0x1]
      %v4718 = vlaneseq
      %v4719 = vshrl.u32 %v4718, 7
      %v4720 = vsub.s32 0, %v4719
      %v4721 = vrot.slane %v4716, %v4720
      %v4723 = vadd.f32 %v4712, %v4721
      %v4724 = vadd.f32 %v4713, %v4721
      %v4725 = vadd.f32 %v4714, %v4721
      %s4726 = scalar_lea.vmem %s17, 1
      %v4727 = vld [vmem:[%s4726] sm:$0x1]
      %s4728 = scalar_lea.vmem %s18, 1
      %v4729 = vld [vmem:[%s4728] sm:$0x1]
      %v4730 = vsel %vm952, %v4723, 0.0
      %4731 = vadd.xlane.f32.xlu0 %v4730
      %v4732 = vpop.xlane.xlu0 %4731
      %v4733 = vsel %vm952, %v4724, 0.0
      %4734 = vadd.xlane.f32.xlu0 %v4733
      %v4735 = vpop.xlane.xlu0 %4734
      %v4736 = vsel %vm950, %v4725, 0.0
      %4737 = vadd.xlane.f32.xlu0 %v4736
      %v4738 = vpop.xlane.xlu0 %4737
      %v4739 = vmul.f32 %v4732, %v969
      %v4740 = vmul.f32 %v4735, %v969
      %v4741 = vmul.f32 %v4738, %v969
      %v4742 = vsub.f32 %v4723, %v4739
      %v4743 = vsub.f32 %v4724, %v4740
      %v4744 = vsub.f32 %v4725, %v4741
      %v4745 = vmul.f32 %v4742, %v4742
      %v4746 = vmul.f32 %v4743, %v4743
      %v4747 = vmul.f32 %v4744, %v4744
      %v4748 = vsel %vm952, %v4745, 0.0
      %4749 = vadd.xlane.f32.xlu0 %v4748
      %v4750 = vpop.xlane.xlu0 %4749
      %v4751 = vsel %vm952, %v4746, 0.0
      %4752 = vadd.xlane.f32.xlu0 %v4751
      %v4753 = vpop.xlane.xlu0 %4752
      %v4754 = vsel %vm950, %v4747, 0.0
      %4755 = vadd.xlane.f32.xlu0 %v4754
      %v4756 = vpop.xlane.xlu0 %4755
      %v4757 = vmul.f32 %v4750, %v969
      %v4758 = vmul.f32 %v4753, %v969
      %v4759 = vmul.f32 %v4756, %v969
      %v4760 = vadd.f32 %v4757, 1e-05
      %v4761 = vadd.f32 %v4758, 1e-05
      %v4762 = vadd.f32 %v4759, 1e-05
      %v4763 = vrsqrt.pop %v4760
      %v4764 = vrsqrt.pop %v4761
      %v4765 = vrsqrt.pop %v4762
      %v4766 = vmul.f32 %v4742, %v4763
      %v4767 = vmul.f32 %v4743, %v4764
      %v4768 = vmul.f32 %v4744, %v4765
      %v4770 = vlaneseq
      %v4771 = vshrl.u32 %v4770, 7
      %v4772 = vsub.s32 0, %v4771
      %v4773 = vrot.slane %v4727, %v4772
      %v4775 = vmul.f32 %v4766, %v4773
      %v4776 = vmul.f32 %v4767, %v4773
      %v4777 = vmul.f32 %v4768, %v4773
      %v4779 = vlaneseq
      %v4780 = vshrl.u32 %v4779, 7
      %v4781 = vsub.s32 0, %v4780
      %v4782 = vrot.slane %v4729, %v4781
      %v4784 = vadd.f32 %v4775, %v4782
      %v4785 = vadd.f32 %v4776, %v4782
      %v4786 = vadd.f32 %v4777, %v4782
      %s4787 = scalar_lea.vmem %s19, 32
      %v4788 = vld [vmem:[%s4787] sm:$0xff]
      %v4789 = vld [vmem:[%s4787 + $0x8] sm:$0xff]
      %v4790 = vld [vmem:[%s4787 + $0x10] sm:$0xff]
      %v4791 = vld [vmem:[%s4787 + $0x18] sm:$0xff]
      %v4792 = vpack.c.bf16 %v4785, %v4784
      %v4793 = vpack.c.bf16 %v4786, %v4786
      %v4794 = vpack.c.bf16 %v4789, %v4788
      %v4795 = vpack.c.bf16 %v4791, %v4790
      %s4796 = scalar_lea.vmem %s20, 1
      %v4797 = vld [vmem:[%s4796] sm:$0x1]
      %v4799 = vlaneseq
      %v4800 = vshrl.u32 %v4799, 7
      %v4801 = vsub.s32 0, %v4800
      %v4802 = vrot.slane %v4797, %v4801
      %v4805 = vsel %vm952, %v4792, 0
      %v4808 = vsel %vm952, %v4793, 0
      %4810 = vmatprep.subr.bf16.mxu0 0
      %4811 = vmatpush1.bf16.msra.mxu0 %v4794
      %4812 = vmatprep.subr.bf16.mxu0 0
      %4813 = vmatpush1.bf16.msra.mxu0 %v4795
      %4814 = vmatprep.subr.bf16.mxu0 0
      %4815 = vmatpush1.bf16.msra.mxu0 0
      %4816 = vmatprep.subr.bf16.mxu0 0
      %4817 = vmatpush1.bf16.msra.mxu0 0
      %4818 = vmatprep.subr.bf16.mxu0 0
      %4819 = vmatpush1.bf16.msra.mxu0 0
      %4820 = vmatprep.subr.bf16.mxu0 0
      %4821 = vmatpush1.bf16.msra.mxu0 0
      %4822 = vmatprep.subr.bf16.mxu0 0
      %4823 = vmatpush1.bf16.msra.mxu0 0
      %4824 = vmatprep.subr.bf16.mxu0 0
      %4825 = vmatpush1.bf16.msra.mxu0 0
      %4826 = vmatprep.subr.bf16.mxu0 0
      %4827 = vmatpush1.bf16.msra.mxu0 0
      %4828 = vmatprep.subr.bf16.mxu0 0
      %4829 = vmatpush1.bf16.msra.mxu0 0
      %4830 = vmatprep.subr.bf16.mxu0 0
      %4831 = vmatpush1.bf16.msra.mxu0 0
      %4832 = vmatprep.subr.bf16.mxu0 0
      %4833 = vmatpush1.bf16.msra.mxu0 0
      %4834 = vmatprep.subr.bf16.mxu0 0
      %4835 = vmatpush1.bf16.msra.mxu0 0
      %4836 = vmatprep.subr.bf16.mxu0 0
      %4837 = vmatpush1.bf16.msra.mxu0 0
      %4838 = vmatprep.subr.bf16.mxu0 0
      %4839 = vmatpush1.bf16.msra.mxu0 0
      %4840 = vmatprep.subr.bf16.mxu0 0
      %4841 = vmatpush1.bf16.msra.mxu0 0
      %4842 = vmatprep.mubr.bf16.mxu0 0
      %4843 = vmatmul.mubr.bf16.gmra.mrb[0].mxu0 %v4805
      %v4844 = vpop.f32.mrb[0].mxu0
      %v4845 = vadd.f32 %v4802, %v4844
      %v4846 = vpop.f32.mrb[0].mxu0
      %v4847 = vpop.f32.mrb[0].mxu0
      %v4848 = vadd.f32 %v4802, %v4847
      %v4849 = vpop.f32.mrb[0].mxu0
      %4850 = vmatprep.mubr.bf16.mxu0 0
      %4851 = vmatmul.mubr.bf16.gmra.mrb[0].mxu0 %v4808
      %v4852 = vpop.f32.mrb[0].mxu0
      %v4853 = vadd.f32 %v4802, %v4852
      %v4854 = vpop.f32.mrb[0].mxu0
      %v4855 = vpop.f32.mrb[0].mxu0
      %v4856 = vpop.f32.mrb[0].mxu0
      %4857 = vdwg.mxu0
      %v4858 = vmul.f32 %v4845, 0.5
      %v4859 = vmul.f32 %v4848, 0.5
      %v4860 = vmul.f32 %v4853, 0.5
      %v4861 = vmul.f32 %v4845, 0.70710677
      %v4862 = vmul.f32 %v4848, 0.70710677
      %v4863 = vmul.f32 %v4853, 0.70710677
      %v4864 = vand.u32 2147483647, %v4861
      %v4865 = vand.u32 2147483647, %v4862
      %v4866 = vand.u32 2147483647, %v4863
      %v4867 = vmul.f32 %v4864, 0.3275911
      %v4868 = vmul.f32 %v4865, 0.3275911
      %v4869 = vmul.f32 %v4866, 0.3275911
      %v4870 = vadd.f32 %v4867, 1.0
      %v4871 = vadd.f32 %v4868, 1.0
      %v4872 = vadd.f32 %v4869, 1.0
      %v4873 = vrcp.pop %v4870
      %v4874 = vmul.f32 1.0, %v4873
      %v4875 = vrcp.pop %v4871
      %v4876 = vmul.f32 1.0, %v4875
      %v4877 = vrcp.pop %v4872
      %v4878 = vmul.f32 1.0, %v4877
      %v4879 = vmul.f32 %v4874, 1.0614054
      %v4880 = vmul.f32 %v4876, 1.0614054
      %v4881 = vmul.f32 %v4878, 1.0614054
      %v4882 = vadd.f32 %v4879, -1.4531521
      %v4883 = vadd.f32 %v4880, -1.4531521
      %v4884 = vadd.f32 %v4881, -1.4531521
      %v4885 = vmul.f32 %v4882, %v4874
      %v4886 = vmul.f32 %v4883, %v4876
      %v4887 = vmul.f32 %v4884, %v4878
      %v4888 = vadd.f32 %v4885, 1.4214138
      %v4889 = vadd.f32 %v4886, 1.4214138
      %v4890 = vadd.f32 %v4887, 1.4214138
      %v4891 = vmul.f32 %v4888, %v4874
      %v4892 = vmul.f32 %v4889, %v4876
      %v4893 = vmul.f32 %v4890, %v4878
      %v4894 = vadd.f32 %v4891, -0.28449672
      %v4895 = vadd.f32 %v4892, -0.28449672
      %v4896 = vadd.f32 %v4893, -0.28449672
      %v4897 = vmul.f32 %v4894, %v4874
      %v4898 = vmul.f32 %v4895, %v4876
      %v4899 = vmul.f32 %v4896, %v4878
      %v4900 = vadd.f32 %v4897, 0.2548296
      %v4901 = vadd.f32 %v4898, 0.2548296
      %v4902 = vadd.f32 %v4899, 0.2548296
      %v4903 = vmul.f32 %v4900, %v4874
      %v4904 = vmul.f32 %v4901, %v4876
      %v4905 = vmul.f32 %v4902, %v4878
      %v4906 = vsub.f32 0.0, %v4864
      %v4907 = vsub.f32 0.0, %v4865
      %v4908 = vsub.f32 0.0, %v4866
      %v4909 = vmul.f32 %v4906, %v4864
      %v4910 = vmul.f32 %v4907, %v4865
      %v4911 = vmul.f32 %v4908, %v4866
      %v4912 = vmul.f32 %v4909, 1.442695
      %v4913 = vpow.pop %v4912
      %v4914 = vmul.f32 %v4910, 1.442695
      %v4915 = vpow.pop %v4914
      %v4916 = vmul.f32 %v4911, 1.442695
      %v4917 = vpow.pop %v4916
      %v4918 = vmul.f32 %v4903, %v4913
      %v4919 = vmul.f32 %v4904, %v4915
      %v4920 = vmul.f32 %v4905, %v4917
      %v4921 = vsub.f32 1.0, %v4918
      %v4922 = vsub.f32 1.0, %v4919
      %v4923 = vsub.f32 1.0, %v4920
      %vm4924 = vcmp.ge.f32.partialorder %v4861, 0.0
      %vm4925 = vcmp.ge.f32.partialorder %v4862, 0.0
      %vm4926 = vcmp.ge.f32.partialorder %v4863, 0.0
      %v4927 = vsub.f32 0.0, %v4921
      %v4928 = vsub.f32 0.0, %v4922
      %v4929 = vsub.f32 0.0, %v4923
      %v4930 = vsel %vm4924, %v4921, %v4927
      %v4931 = vsel %vm4925, %v4922, %v4928
      %v4932 = vsel %vm4926, %v4923, %v4929
      %v4933 = vadd.f32 %v4930, 1.0
      %v4934 = vadd.f32 %v4931, 1.0
      %v4935 = vadd.f32 %v4932, 1.0
      %v4936 = vmul.f32 %v4858, %v4933
      %v4937 = vmul.f32 %v4859, %v4934
      %v4938 = vmul.f32 %v4860, %v4935
      %s4939 = scalar_lea.vmem %s21, 128
      %v4940 = vld [vmem:[%s4939] sm:$0xff]
      %v4941 = vld [vmem:[%s4939 + $0x8] sm:$0xff]
      %v4942 = vld [vmem:[%s4939 + $0x10] sm:$0xff]
      %v4943 = vld [vmem:[%s4939 + $0x18] sm:$0xff]
      %v4944 = vld [vmem:[%s4939 + $0x20] sm:$0xff]
      %v4945 = vld [vmem:[%s4939 + $0x28] sm:$0xff]
      %v4946 = vld [vmem:[%s4939 + $0x30] sm:$0xff]
      %v4947 = vld [vmem:[%s4939 + $0x38] sm:$0xff]
      %v4948 = vld [vmem:[%s4939 + $0x40] sm:$0xff]
      %v4949 = vld [vmem:[%s4939 + $0x48] sm:$0xff]
      %v4950 = vld [vmem:[%s4939 + $0x50] sm:$0xff]
      %v4951 = vld [vmem:[%s4939 + $0x58] sm:$0xff]
      %v4952 = vld [vmem:[%s4939 + $0x60] sm:$0xff]
      %v4953 = vld [vmem:[%s4939 + $0x68] sm:$0xff]
      %v4954 = vld [vmem:[%s4939 + $0x70] sm:$0xff]
      %v4955 = vld [vmem:[%s4939 + $0x78] sm:$0xff]
      %v4956 = vpack.c.bf16 %v4937, %v4936
      %v4957 = vpack.c.bf16 %v4938, %v4938
      %v4958 = vpack.c.bf16 %v4941, %v4940
      %v4959 = vpack.c.bf16 %v4943, %v4942
      %v4960 = vpack.c.bf16 %v4945, %v4944
      %v4961 = vpack.c.bf16 %v4947, %v4946
      %v4962 = vpack.c.bf16 %v4949, %v4948
      %v4963 = vpack.c.bf16 %v4951, %v4950
      %v4964 = vpack.c.bf16 %v4953, %v4952
      %v4965 = vpack.c.bf16 %v4955, %v4954
      %4966 = vmatprep.subr.bf16.mxu0 0
      %4967 = vmatpush1.bf16.msra.mxu0 %v4958
      %4968 = vmatprep.subr.bf16.mxu0 0
      %4969 = vmatpush1.bf16.msra.mxu0 %v4959
      %4970 = vmatprep.subr.bf16.mxu0 0
      %4971 = vmatpush1.bf16.msra.mxu0 %v4960
      %4972 = vmatprep.subr.bf16.mxu0 0
      %4973 = vmatpush1.bf16.msra.mxu0 %v4961
      %4974 = vmatprep.subr.bf16.mxu0 0
      %4975 = vmatpush1.bf16.msra.mxu0 %v4962
      %4976 = vmatprep.subr.bf16.mxu0 0
      %4977 = vmatpush1.bf16.msra.mxu0 %v4963
      %4978 = vmatprep.subr.bf16.mxu0 0
      %4979 = vmatpush1.bf16.msra.mxu0 %v4964
      %4980 = vmatprep.subr.bf16.mxu0 0
      %4981 = vmatpush1.bf16.msra.mxu0 %v4965
      %4982 = vmatprep.subr.bf16.mxu0 0
      %4983 = vmatpush1.bf16.msra.mxu0 0
      %4984 = vmatprep.subr.bf16.mxu0 0
      %4985 = vmatpush1.bf16.msra.mxu0 0
      %4986 = vmatprep.subr.bf16.mxu0 0
      %4987 = vmatpush1.bf16.msra.mxu0 0
      %4988 = vmatprep.subr.bf16.mxu0 0
      %4989 = vmatpush1.bf16.msra.mxu0 0
      %4990 = vmatprep.subr.bf16.mxu0 0
      %4991 = vmatpush1.bf16.msra.mxu0 0
      %4992 = vmatprep.subr.bf16.mxu0 0
      %4993 = vmatpush1.bf16.msra.mxu0 0
      %4994 = vmatprep.subr.bf16.mxu0 0
      %4995 = vmatpush1.bf16.msra.mxu0 0
      %4996 = vmatprep.subr.bf16.mxu0 0
      %4997 = vmatpush1.bf16.msra.mxu0 0
      %4998 = vmatprep.mubr.bf16.mxu0 0
      %4999 = vmatmul.mubr.bf16.gmra.mrb[0].mxu0 %v4956
      %v5000 = vpop.f32.mrb[0].mxu0
      %v5001 = vadd.f32 0.0, %v5000
      %v5002 = vpop.f32.mrb[0].mxu0
      %v5003 = vpop.f32.mrb[0].mxu0
      %v5004 = vadd.f32 0.0, %v5003
      %v5005 = vpop.f32.mrb[0].mxu0
      %5006 = vmatprep.mubr.bf16.mxu0 0
      %5007 = vmatmul.mubr.bf16.gmra.mrb[0].mxu0 %v4957
      %v5008 = vpop.f32.mrb[0].mxu0
      %v5009 = vadd.f32 0.0, %v5008
      %v5010 = vpop.f32.mrb[0].mxu0
      %v5011 = vpop.f32.mrb[0].mxu0
      %v5012 = vpop.f32.mrb[0].mxu0
      %5013 = vdwg.mxu0
      %v5014 = vadd.f32 %v4723, %v5001
      %v5015 = vadd.f32 %v4724, %v5004
      %v5016 = vadd.f32 %v4725, %v5009
      %s5017 = scalar_lea.vmem %s22, 1
      %v5018 = vld [vmem:[%s5017] sm:$0x1]
      %v5020 = vlaneseq
      %v5021 = vshrl.u32 %v5020, 7
      %v5022 = vsub.s32 0, %v5021
      %v5023 = vrot.slane %v5018, %v5022
      %v5025 = vadd.f32 %v5014, %v5023
      %v5026 = vadd.f32 %v5015, %v5023
      %v5027 = vadd.f32 %v5016, %v5023
      %5028 = vst.msk [vmem:[#allocation2] sm:$0xff] %vm952, %v5025
      %5029 = vst.msk [vmem:[#allocation2 + $0x8] sm:$0xff] %vm952, %v5026
      %5030 = vst.msk [vmem:[#allocation2 + $0x10] sm:$0x1] %vm950, %v5027
      %v5031 = vld [vmem:[#allocation2 + $0x9] sm:$0xff]
      %v5032 = vld [vmem:[%s23] sm:$0x1]
      %v5033 = vld [vmem:[%s24] sm:$0x1]
      %v5034 = vsel %vm952, %v5031, 0.0
      %5035 = vadd.xlane.f32.xlu0 %v5034
      %v5036 = vpop.xlane.xlu0 %5035
      %v5037 = vmul.f32 %v5036, %v969
      %v5038 = vsub.f32 %v5031, %v5037
      %v5039 = vmul.f32 %v5038, %v5038
      %v5040 = vsel %vm952, %v5039, 0.0
      %5041 = vadd.xlane.f32.xlu0 %v5040
      %v5042 = vpop.xlane.xlu0 %5041
      %v5043 = vmul.f32 %v5042, %v969
      %v5044 = vadd.f32 %v5043, 1e-05
      %v5045 = vrsqrt.pop %v5044
      %v5046 = vmul.f32 %v5038, %v5045
      %v5048 = vlaneseq
      %v5049 = vshrl.u32 %v5048, 7
      %v5050 = vsub.s32 0, %v5049
      %v5051 = vrot.slane %v5032, %v5050
      %v5053 = vmul.f32 %v5046, %v5051
      %v5055 = vlaneseq
      %v5056 = vshrl.u32 %v5055, 7
      %v5057 = vsub.s32 0, %v5056
      %v5058 = vrot.slane %v5033, %v5057
      %v5060 = vadd.f32 %v5053, %v5058
      %v5061 = vld [vmem:[%s25] sm:$0xff]
      %v5062 = vld [vmem:[%s25 + $0x8] sm:$0xff]
      %v5063 = vld [vmem:[%s25 + $0x10] sm:$0xff]
      %v5064 = vld [vmem:[%s25 + $0x18] sm:$0xff]
      %v5065 = vpack.c.bf16 %v5060, %v5060
      %v5066 = vpack.c.bf16 %v5062, %v5061
      %v5067 = vpack.c.bf16 %v5064, %v5063
      %v5068 = vld [vmem:[%s26] sm:$0x1]
      %v5070 = vlaneseq
      %v5071 = vshrl.u32 %v5070, 7
      %v5072 = vsub.s32 0, %v5071
      %v5073 = vrot.slane %v5068, %v5072
      %v5076 = vsel %vm952, %v5065, 0
      %5078 = vmatprep.subr.bf16.mxu0 0
      %5079 = vmatpush1.bf16.msra.mxu0 %v5066
      %5080 = vmatprep.subr.bf16.mxu0 0
      %5081 = vmatpush1.bf16.msra.mxu0 %v5067
      %5082 = vmatprep.subr.bf16.mxu0 0
      %5083 = vmatpush1.bf16.msra.mxu0 0
      %5084 = vmatprep.subr.bf16.mxu0 0
      %5085 = vmatpush1.bf16.msra.mxu0 0
      %5086 = vmatprep.subr.bf16.mxu0 0
      %5087 = vmatpush1.bf16.msra.mxu0 0
      %5088 = vmatprep.subr.bf16.mxu0 0
      %5089 = vmatpush1.bf16.msra.mxu0 0
      %5090 = vmatprep.subr.bf16.mxu0 0
      %5091 = vmatpush1.bf16.msra.mxu0 0
      %5092 = vmatprep.subr.bf16.mxu0 0
      %5093 = vmatpush1.bf16.msra.mxu0 0
      %5094 = vmatprep.subr.bf16.mxu0 0
      %5095 = vmatpush1.bf16.msra.mxu0 0
      %5096 = vmatprep.subr.bf16.mxu0 0
      %5097 = vmatpush1.bf16.msra.mxu0 0
      %5098 = vmatprep.subr.bf16.mxu0 0
      %5099 = vmatpush1.bf16.msra.mxu0 0
      %5100 = vmatprep.subr.bf16.mxu0 0
      %5101 = vmatpush1.bf16.msra.mxu0 0
      %5102 = vmatprep.subr.bf16.mxu0 0
      %5103 = vmatpush1.bf16.msra.mxu0 0
      %5104 = vmatprep.subr.bf16.mxu0 0
      %5105 = vmatpush1.bf16.msra.mxu0 0
      %5106 = vmatprep.subr.bf16.mxu0 0
      %5107 = vmatpush1.bf16.msra.mxu0 0
      %5108 = vmatprep.subr.bf16.mxu0 0
      %5109 = vmatpush1.bf16.msra.mxu0 0
      %5110 = vmatprep.mubr.bf16.mxu0 0
      %5111 = vmatmul.mubr.bf16.gmra.mrb[0].mxu0 %v5076
      %v5112 = vpop.f32.mrb[0].mxu0
      %v5113 = vadd.f32 %v5073, %v5112
      %v5114 = vpop.f32.mrb[0].mxu0
      %v5115 = vpop.f32.mrb[0].mxu0
      %v5116 = vpop.f32.mrb[0].mxu0
      %5117 = vdwg.mxu0
      %5118 = vst [vmem:[%s830] sm:$0xff] %v5113
      %p5119 = scmp.lt.s32.totalorder %s38, 1
      %s5120 = scalar_select %p5119, %s38, 1
      %s5121 = smul.addr %s5120, 8
      %s5122 = scalar_lea.vmem %s27, %s5121
      // Predicated region
      $region129: #{vit_forward.1} parent=127 // pred_check
        %p5123 = pneg %p633
      $region130: #{vit_forward.1} parent=127 // pred_check_branch
        %5125 = sbr.rel (%p5123) target = $region132
      $region131: #{vit_forward.1} parent=127 // pred_region
        _
      $region132: #{vit_forward.1} parent=127 // pred_fallthru
        _
    $region128: #{vit_forward.1} parent=5 // pred_fallthru
      _
    %p5126 = scmp.le.s32.totalorder 2, %s33
    // Predicated region
    $region133: #{vit_forward.1} parent=5 // pred_check
      %p5127 = pneg %p5126
    $region134: #{vit_forward.1} parent=5 // pred_check_branch
      %5129 = sbr.rel (%p5127) target = $region136
    $region135: #{vit_forward.1} parent=5 // pred_region
      %s5130 = ssub.s32 %s33, 2
      // Predicated region
      $region137: #{vit_forward.1} parent=135 // pred_check
        %p5131 = pneg %p639
      $region138: #{vit_forward.1} parent=135 // pred_check_branch
        %5133 = sbr.rel (%p5131) target = $region140
      $region139: #{vit_forward.1} parent=135 // pred_region
        %p5134 = scmp.lt.s32.totalorder %s39, 1
        %s5135 = scalar_select %p5134, %s39, 1
        %s5136 = smul.addr %s5135, 8
        %s5137 = scalar_lea.vmem %s27, %s5136
      $region140: #{vit_forward.1} parent=135 // pred_fallthru
        _
    $region136: #{vit_forward.1} parent=5 // pred_fallthru
      _
  $region6: #{vit_forward.1} parent=0 // loop_footer
    %s37 = sadd.s32 1, %s33
  $region7: #{vit_forward.1} parent=0 // loop_footer_branch
    %32 = sbr.rel target = $region3
  $region8: #{vit_forward.1} parent=0 // loop_exit
    _

</llo_original>
